<compile_context>
chip_gen: v7x
topology: tpu7x:2x2x1
jax: 0.10.0
libtpu: 0.0.40
codegen_flags: <defaults>
</compile_context>

<pallas_src>
import functools

import jax
import jax.numpy as jnp
from jax import lax
from jax.experimental import pallas as pl
from jax.experimental.pallas import tpu as pltpu

MXU_DTYPE = jnp.bfloat16   # MXU operand dtype (accumulation stays f32)
TILE_M = 256               # conv pass-1 output rows per grid step
TILE_BN = 1024             # BN/ReLU pass-2 rows per grid step (mult. of TILE_M)
UPS_CG = 8                 # (n, c) volumes handled per upsample grid step


def _round_up(x, m):
    return ((x + m - 1) // m) * m


# ------------------------------ Pallas kernels ------------------------------

def _upsample_kernel(x_ref, md_ref, mhw_ref, o_ref):
    # Fused separable trilinear x2 upsample for a group of (n, c) volumes:
    #   Y = Md @ X               (contract input D axis)      -> (2d, h*w)
    #   Z = Y @ kron(Mh, Mw)^T   (contract H and W jointly)   -> (2d, 4*h*w)
    # Two plain 2D matmuls, no in-kernel transposes/reshapes; one HBM read of
    # x1 and one write of the result (vs. 3 passes + 2 XLA relayouts before).
    for g in range(x_ref.shape[0]):
        y = jnp.dot(md_ref[...], x_ref[g], preferred_element_type=jnp.float32)
        o_ref[g] = jnp.dot(y, mhw_ref[...], preferred_element_type=jnp.float32)


def _conv_stats_kernel(a_ref, w_ref, mask_ref, y_ref, stats_ref, patch_ref, *,
                       tile_m, cin_pad, offs):
    # Pass 1: 3x3x3 conv on one M-tile via ONE K-packed MXU matmul
    # (K = 27 * cin_pad) + per-tile partial BatchNorm statistics.
    #   a_ref:     (a_rows, cin_pad)  resident padded channels-last activation
    #   w_ref:     (27*cin_pad, cout_pad)  K-packed tap weights (bf16)
    #   mask_ref:  (tile_m, 1)        1.0 for rows that are real output voxels
    #   y_ref:     (tile_m, cout_pad) conv output tile (pre-BN, f32)
    #   stats_ref: (1, 8, cout_pad)   per-tile [sum; sum_sq; 0...] partials
    #   patch_ref: (tile_m, 27*cin_pad) f32 VMEM scratch for the packed patch
    i = pl.program_id(0)
    base = pl.multiple_of(i * tile_m, tile_m)

    # In-VMEM patch gather: 27 row-shifted views of the padded activation,
    # packed side-by-side along K.  No HBM im2col materialisation.
    for k, off in enumerate(offs):
        patch_ref[:, k * cin_pad:(k + 1) * cin_pad] = \
            a_ref[pl.ds(base + off, tile_m), :]

    acc = jnp.dot(patch_ref[...].astype(MXU_DTYPE), w_ref[...],
                  preferred_element_type=jnp.float32)         # (tile_m, cout_pad)
    y_ref[...] = acc

    # Partial sums for train-mode BN over valid voxels only; reduced in the
    # wrapper, so the grid axis stays "parallel" (megacore on v7x).
    m = mask_ref[...]
    s = jnp.sum(acc * m, axis=0, keepdims=True)               # (1, cout_pad)
    ss = jnp.sum(acc * acc * m, axis=0, keepdims=True)        # (1, cout_pad)
    filler = jnp.zeros((stats_ref.shape[1] - 2, stats_ref.shape[2]),
                       jnp.float32)
    stats_ref[0] = jnp.concatenate([s, ss, filler], axis=0)


def _bn_relu_kernel(y_ref, mask_ref, scale_ref, shift_ref, o_ref):
    # Pass 2: y*scale + shift (scale/shift fold mean/var/gamma/beta), ReLU,
    # then zero the spatial-pad rows so the output is directly reusable as
    # the next conv's spatially padded channels-last input buffer.
    o_ref[...] = jnp.maximum(y_ref[...] * scale_ref[...] + shift_ref[...],
                             0.0) * mask_ref[...]


# ------------------------------ JAX wrappers --------------------------------

def _interp_matrix(s_in, s_out):
    # Linear interpolation matrix (s_out, s_in), align_corners=True.
    if s_in == 1:
        return jnp.ones((s_out, 1), jnp.float32)
    coords = jnp.arange(s_out, dtype=jnp.float32) * (s_in - 1) / (s_out - 1)
    i0 = jnp.clip(jnp.floor(coords).astype(jnp.int32), 0, s_in - 2)
    frac = coords - i0.astype(jnp.float32)
    m = jnp.zeros((s_out, s_in), jnp.float32)
    rows = jnp.arange(s_out)
    m = m.at[rows, i0].add(1.0 - frac)
    m = m.at[rows, i0 + 1].add(frac)
    return m


def trilinear_upsample_x2(x):
    # (N, C, d, h, w) -> (N, C, 2d, 2h, 2w); trilinear, align_corners=True.
    n, c, d, h, w = x.shape
    md = _interp_matrix(d, 2 * d)                          # (2d, d)
    mhw = jnp.kron(_interp_matrix(h, 2 * h),
                   _interp_matrix(w, 2 * w)).T             # (h*w, 4*h*w)
    nc = n * c
    nc_pad = _round_up(nc, UPS_CG)
    x3 = x.reshape(nc, d, h * w)
    if nc_pad != nc:
        x3 = jnp.pad(x3, ((0, nc_pad - nc), (0, 0), (0, 0)))
    out = pl.pallas_call(
        _upsample_kernel,
        out_shape=jax.ShapeDtypeStruct((nc_pad, 2 * d, 4 * h * w), jnp.float32),
        grid=(nc_pad // UPS_CG,),
        in_specs=[pl.BlockSpec((UPS_CG, d, h * w), lambda i: (i, 0, 0)),
                  pl.BlockSpec((2 * d, d), lambda i: (0, 0)),
                  pl.BlockSpec((h * w, 4 * h * w), lambda i: (0, 0))],
        out_specs=pl.BlockSpec((UPS_CG, 2 * d, 4 * h * w),
                               lambda i: (i, 0, 0)),
        compiler_params=pltpu.CompilerParams(
            dimension_semantics=("parallel",)),
    )(x3, md, mhw)
    return out[:nc].reshape(n, c, 2 * d, 2 * h, 2 * w)


def _conv_geometry(n, d, h, w):
    dp, hp, wp = d + 2, h + 2, w + 2
    plane_p = hp * wp
    vol_p = dp * plane_p
    offs = tuple(kd * plane_p + kh * wp + kw
                 for kd in range(3) for kh in range(3) for kw in range(3))
    m_rows = n * vol_p
    m_cov = _round_up(m_rows, TILE_BN)
    a_rows = _round_up(m_cov + offs[-1], 8)
    return dict(n=n, d=d, h=h, w=w, dp=dp, hp=hp, wp=wp,
                plane_p=plane_p, vol_p=vol_p, offs=offs,
                m_rows=m_rows, m_cov=m_cov, a_rows=a_rows,
                center=plane_p + wp + 1)


def _valid_mask(g):
    # 1.0 at rows (flattened padded-voxel coords) that are real output voxels.
    mask = jnp.zeros((g["n"], g["dp"], g["hp"], g["wp"]), jnp.float32)
    mask = mask.at[:, :g["d"], :g["h"], :g["w"]].set(1.0)
    mask = mask.reshape(g["m_rows"], 1)
    return jnp.pad(mask, ((0, g["m_cov"] - g["m_rows"]), (0, 0)))


def conv3x3_bn_relu_stage(a_buf, mask, w, gamma, beta, g, eps=1e-5):
    # 3x3x3 conv (padding 1; bias omitted -- exactly cancelled by train-mode
    # BN mean subtraction) + BatchNorm3d (batch stats, biased variance) + ReLU
    # on a flat, channels-last, spatially padded activation buffer.
    #   a_buf: (a_rows, cin_pad) f32, row j = flattened padded voxel coord j
    #   returns (m_cov, cout_pad) f32 with non-valid rows zeroed.
    cout, cin = w.shape[0], w.shape[1]
    cin_pad = a_buf.shape[1]
    cout_pad = _round_up(max(cout, 8), 8)
    assert cin <= cin_pad and cin_pad <= 128 and cout_pad <= 128
    k_pack = 27 * cin_pad

    # K-packed tap weights: (27, cin, cout) -> (27*cin_pad, cout_pad), bf16.
    w_mat = jnp.transpose(w, (2, 3, 4, 1, 0)).reshape(27, cin, cout)
    w_mat = jnp.pad(w_mat, ((0, 0), (0, cin_pad - cin), (0, cout_pad - cout)))
    w_mat = w_mat.reshape(k_pack, cout_pad).astype(MXU_DTYPE)

    grid_m = g["m_cov"] // TILE_M
    kernel = functools.partial(_conv_stats_kernel, tile_m=TILE_M,
                               cin_pad=cin_pad, offs=g["offs"])
    y_conv, stats = pl.pallas_call(
        kernel,
        out_shape=(jax.ShapeDtypeStruct((g["m_cov"], cout_pad), jnp.float32),
                   jax.ShapeDtypeStruct((grid_m, 8, cout_pad), jnp.float32)),
        grid=(grid_m,),
        in_specs=[pl.BlockSpec((g["a_rows"], cin_pad), lambda i: (0, 0)),
                  pl.BlockSpec((k_pack, cout_pad), lambda i: (0, 0)),
                  pl.BlockSpec((TILE_M, 1), lambda i: (i, 0))],
        out_specs=(pl.BlockSpec((TILE_M, cout_pad), lambda i: (i, 0)),
                   pl.BlockSpec((1, 8, cout_pad), lambda i: (i, 0, 0))),
        scratch_shapes=[pltpu.VMEM((TILE_M, k_pack), jnp.float32)],
        compiler_params=pltpu.CompilerParams(
            dimension_semantics=("parallel",),
            vmem_limit_bytes=32 * 1024 * 1024),
    )(a_buf, w_mat, mask)

    # Fold train-mode BN (biased variance) + affine into per-channel
    # scale/shift.  NOTE: E[x^2]-mean^2 in f32; clamped at 0 for safety.
    tot = jnp.sum(stats, axis=0)                        # (8, cout_pad)
    cnt = jnp.float32(g["n"] * g["d"] * g["h"] * g["w"])
    mean = tot[0, :cout] / cnt
    var = jnp.maximum(tot[1, :cout] / cnt - mean * mean, 0.0)
    scale = gamma * lax.rsqrt(var + eps)
    shift = beta - mean * scale
    scale = jnp.pad(scale, (0, cout_pad - cout)).reshape(1, cout_pad)
    shift = jnp.pad(shift, (0, cout_pad - cout)).reshape(1, cout_pad)

    return pl.pallas_call(
        _bn_relu_kernel,
        out_shape=jax.ShapeDtypeStruct((g["m_cov"], cout_pad), jnp.float32),
        grid=(g["m_cov"] // TILE_BN,),
        in_specs=[pl.BlockSpec((TILE_BN, cout_pad), lambda i: (i, 0)),
                  pl.BlockSpec((TILE_BN, 1), lambda i: (i, 0)),
                  pl.BlockSpec((1, cout_pad), lambda i: (0, 0)),
                  pl.BlockSpec((1, cout_pad), lambda i: (0, 0))],
        out_specs=pl.BlockSpec((TILE_BN, cout_pad), lambda i: (i, 0)),
        compiler_params=pltpu.CompilerParams(
            dimension_semantics=("parallel",)),
    )(y_conv, mask, scale, shift)


def up_forward(x1, x2, params):
    # Up.forward: trilinear x2 upsample of x1, pad to x2's spatial size (the
    # reference module's quirky diff arithmetic is replicated; it is a no-op
    # for cubic, exactly-2x inputs), concat on channels, then DoubleConv
    # (conv3 -> BN -> ReLU, twice).  Conv biases in `params` are unused: a
    # per-channel bias is exactly cancelled by train-mode BN mean subtraction.
    x1u = trilinear_upsample_x2(x1)
    diff_z = x2.shape[2] - x1u.shape[2]
    diff_y = x2.shape[3] - x1u.shape[3]
    diff_x = x2.shape[4] - x1u.shape[3]          # module uses size()[3] here
    x1u = jnp.pad(x1u, ((0, 0), (0, 0),
                        (diff_z // 2, diff_y - diff_z // 2),   # module bug kept
                        (diff_y // 2, diff_y - diff_y // 2),
                        (diff_x // 2, diff_x - diff_x // 2)))
    x = jnp.concatenate([x2, x1u], axis=1)               # (N, Cin, D, H, W)
    # TODO(synk): fuse this concat/transpose/spatial-pad relayout into the
    # upsample kernel's output (emit channels-last padded rows directly).
    x = jnp.transpose(x, (0, 2, 3, 4, 1))                # channels-last

    n, d, h, w_sp, cin = x.shape
    g = _conv_geometry(n, d, h, w_sp)
    cin_pad = _round_up(max(cin, 8), 8)
    xp = jnp.pad(x, ((0, 0), (1, 1), (1, 1), (1, 1), (0, cin_pad - cin)))
    a1 = xp.reshape(g["m_rows"], cin_pad)
    a1 = jnp.pad(a1, ((0, g["a_rows"] - g["m_rows"]), (0, 0)))
    mask = _valid_mask(g)

    b1 = conv3x3_bn_relu_stage(a1, mask, params["w1"], params["g1"],
                               params["beta1"], g)
    # b1's non-valid rows are already zero; shifting it down by `center` rows
    # turns it into the spatially padded input buffer of the second conv
    # (cheap rows-only pad instead of a full 3-axis spatial re-pad/relayout).
    a2 = jnp.pad(b1, ((g["center"], g["a_rows"] - g["center"] - g["m_cov"]),
                      (0, 0)))
    b2 = conv3x3_bn_relu_stage(a2, mask, params["w2"], params["g2"],
                               params["beta2"], g)

    cout = params["w2"].shape[0]
    y = b2[:g["m_rows"], :cout].reshape(n, g["dp"], g["hp"], g["wp"], cout)
    y = y[:, :d, :h, :w_sp, :]
    return jnp.transpose(y, (0, 4, 1, 2, 3))             # back to NCDHW


if __name__ == "__main__":
    # Up(in_channels=8, out_channels=8, bilinear=True)
    #   -> DoubleConv(8, out_channels // 2 = 4, mid = in_channels // 2 = 4)
    in_channels = 8
    mid_channels = in_channels // 2       # 4
    final_channels = 8 // 2               # 4

    key = jax.random.PRNGKey(0)
    k = jax.random.split(key, 10)
    params = {
        "w1": 0.1 * jax.random.normal(k[0], (mid_channels, in_channels, 3, 3, 3), jnp.float32),
        "b1": 0.05 * jax.random.normal(k[1], (mid_channels,), jnp.float32),   # unused (cancelled by BN)
        "g1": 1.0 + 0.1 * jax.random.normal(k[2], (mid_channels,), jnp.float32),
        "beta1": 0.05 * jax.random.normal(k[3], (mid_channels,), jnp.float32),
        "w2": 0.1 * jax.random.normal(k[4], (final_channels, mid_channels, 3, 3, 3), jnp.float32),
        "b2": 0.05 * jax.random.normal(k[5], (final_channels,), jnp.float32), # unused (cancelled by BN)
        "g2": 1.0 + 0.1 * jax.random.normal(k[6], (final_channels,), jnp.float32),
        "beta2": 0.05 * jax.random.normal(k[7], (final_channels,), jnp.float32),
    }

    # x1: deep feature (small spatial), x2: skip connection (2x spatial).
    x1 = jax.random.normal(k[8], (2, 4, 4, 4, 4), jnp.float32)
    x2 = jax.random.normal(k[9], (2, 4, 8, 8, 8), jnp.float32)

    y = jax.jit(up_forward)(x1, x2, params)
    jax.block_until_ready(y)
    assert y.shape == (2, final_channels, 8, 8, 8), y.shape
    print("KERNEL_OK")
</pallas_src>

<mosaic_0001>
module attributes {stable_mosaic.version = 11 : i64} {
  func.func @_upsample_kernel(%arg0: i32, %arg1: memref<8x4x16xf32, #tpu.memory_space<vmem>>, %arg2: memref<8x4xf32, #tpu.memory_space<vmem>>, %arg3: memref<16x64xf32, #tpu.memory_space<vmem>>, %arg4: memref<8x8x64xf32, #tpu.memory_space<vmem>>) attributes {dimension_semantics = [#tpu.dimension_semantics<parallel>], iteration_bounds = array<i64: 1>, scalar_prefetch = 0 : i64, scratch_operands = 0 : i64, tpu.core_type = #tpu.core_type<tc>, window_params = [{transform_indices = @transform_0, window_bounds = array<i64: 8, 4, 16>}, {pipeline_mode = #tpu.pipeline_mode<synchronous>, transform_indices = @transform_1, window_bounds = array<i64: 8, 4>}, {pipeline_mode = #tpu.pipeline_mode<synchronous>, transform_indices = @transform_2, window_bounds = array<i64: 16, 64>}, {transform_indices = @transform_3, window_bounds = array<i64: 8, 8, 64>}]} {
    %c0 = arith.constant 0 : index
    %c0_0 = arith.constant 0 : index
    %0 = vector.load %arg2[%c0, %c0_0] : memref<8x4xf32, #tpu.memory_space<vmem>>, vector<8x4xf32>
    %c0_1 = arith.constant 0 : index
    %c0_2 = arith.constant 0 : index
    %c0_3 = arith.constant 0 : index
    %1 = vector.load %arg1[%c0_1, %c0_2, %c0_3] : memref<8x4x16xf32, #tpu.memory_space<vmem>>, vector<1x4x16xf32>
    %2 = vector.shape_cast %1 : vector<1x4x16xf32> to vector<4x16xf32>
    %cst = arith.constant dense<0.000000e+00> : vector<8x16xf32>
    %3 = tpu.matmul %0, %2, %cst {dimension_numbers = #tpu.dot_dimension_numbers<[1], [0], [0], [1], [0, 0, 1, 1], [], []>} : vector<8x4xf32>, vector<4x16xf32>, vector<8x16xf32> -> vector<8x16xf32>
    %c0_4 = arith.constant 0 : index
    %c0_5 = arith.constant 0 : index
    %4 = vector.load %arg3[%c0_4, %c0_5] : memref<16x64xf32, #tpu.memory_space<vmem>>, vector<16x64xf32>
    %cst_6 = arith.constant dense<0.000000e+00> : vector<8x64xf32>
    %5 = tpu.matmul %3, %4, %cst_6 {dimension_numbers = #tpu.dot_dimension_numbers<[1], [0], [0], [1], [0, 0, 1, 1], [], []>} : vector<8x16xf32>, vector<16x64xf32>, vector<8x64xf32> -> vector<8x64xf32>
    %c0_7 = arith.constant 0 : index
    %c0_8 = arith.constant 0 : index
    %c0_9 = arith.constant 0 : index
    %6 = vector.load %arg4[%c0_7, %c0_8, %c0_9] : memref<8x8x64xf32, #tpu.memory_space<vmem>>, vector<1x8x64xf32>
    %7 = vector.shape_cast %6 : vector<1x8x64xf32> to vector<8x64xf32>
    %8 = vector.shape_cast %5 : vector<8x64xf32> to vector<1x8x64xf32>
    tpu.vector_store %arg4[%c0_7, %c0_8, %c0_9], %8 {strides = array<i32>} : memref<8x8x64xf32, #tpu.memory_space<vmem>>, vector<1x8x64xf32>,
    %c0_10 = arith.constant 0 : index
    %c0_11 = arith.constant 0 : index
    %9 = vector.load %arg2[%c0_10, %c0_11] : memref<8x4xf32, #tpu.memory_space<vmem>>, vector<8x4xf32>
    %c1 = arith.constant 1 : index
    %c0_12 = arith.constant 0 : index
    %c0_13 = arith.constant 0 : index
    %10 = vector.load %arg1[%c1, %c0_12, %c0_13] : memref<8x4x16xf32, #tpu.memory_space<vmem>>, vector<1x4x16xf32>
    %11 = vector.shape_cast %10 : vector<1x4x16xf32> to vector<4x16xf32>
    %cst_14 = arith.constant dense<0.000000e+00> : vector<8x16xf32>
    %12 = tpu.matmul %9, %11, %cst_14 {dimension_numbers = #tpu.dot_dimension_numbers<[1], [0], [0], [1], [0, 0, 1, 1], [], []>} : vector<8x4xf32>, vector<4x16xf32>, vector<8x16xf32> -> vector<8x16xf32>
    %c0_15 = arith.constant 0 : index
    %c0_16 = arith.constant 0 : index
    %13 = vector.load %arg3[%c0_15, %c0_16] : memref<16x64xf32, #tpu.memory_space<vmem>>, vector<16x64xf32>
    %cst_17 = arith.constant dense<0.000000e+00> : vector<8x64xf32>
    %14 = tpu.matmul %12, %13, %cst_17 {dimension_numbers = #tpu.dot_dimension_numbers<[1], [0], [0], [1], [0, 0, 1, 1], [], []>} : vector<8x16xf32>, vector<16x64xf32>, vector<8x64xf32> -> vector<8x64xf32>
    %c1_18 = arith.constant 1 : index
    %c0_19 = arith.constant 0 : index
    %c0_20 = arith.constant 0 : index
    %15 = vector.load %arg4[%c1_18, %c0_19, %c0_20] : memref<8x8x64xf32, #tpu.memory_space<vmem>>, vector<1x8x64xf32>
    %16 = vector.shape_cast %15 : vector<1x8x64xf32> to vector<8x64xf32>
    %17 = vector.shape_cast %14 : vector<8x64xf32> to vector<1x8x64xf32>
    tpu.vector_store %arg4[%c1_18, %c0_19, %c0_20], %17 {strides = array<i32>} : memref<8x8x64xf32, #tpu.memory_space<vmem>>, vector<1x8x64xf32>,
    %c0_21 = arith.constant 0 : index
    %c0_22 = arith.constant 0 : index
    %18 = vector.load %arg2[%c0_21, %c0_22] : memref<8x4xf32, #tpu.memory_space<vmem>>, vector<8x4xf32>
    %c2 = arith.constant 2 : index
    %c0_23 = arith.constant 0 : index
    %c0_24 = arith.constant 0 : index
    %19 = vector.load %arg1[%c2, %c0_23, %c0_24] : memref<8x4x16xf32, #tpu.memory_space<vmem>>, vector<1x4x16xf32>
    %20 = vector.shape_cast %19 : vector<1x4x16xf32> to vector<4x16xf32>
    %cst_25 = arith.constant dense<0.000000e+00> : vector<8x16xf32>
    %21 = tpu.matmul %18, %20, %cst_25 {dimension_numbers = #tpu.dot_dimension_numbers<[1], [0], [0], [1], [0, 0, 1, 1], [], []>} : vector<8x4xf32>, vector<4x16xf32>, vector<8x16xf32> -> vector<8x16xf32>
    %c0_26 = arith.constant 0 : index
    %c0_27 = arith.constant 0 : index
    %22 = vector.load %arg3[%c0_26, %c0_27] : memref<16x64xf32, #tpu.memory_space<vmem>>, vector<16x64xf32>
    %cst_28 = arith.constant dense<0.000000e+00> : vector<8x64xf32>
    %23 = tpu.matmul %21, %22, %cst_28 {dimension_numbers = #tpu.dot_dimension_numbers<[1], [0], [0], [1], [0, 0, 1, 1], [], []>} : vector<8x16xf32>, vector<16x64xf32>, vector<8x64xf32> -> vector<8x64xf32>
    %c2_29 = arith.constant 2 : index
    %c0_30 = arith.constant 0 : index
    %c0_31 = arith.constant 0 : index
    %24 = vector.load %arg4[%c2_29, %c0_30, %c0_31] : memref<8x8x64xf32, #tpu.memory_space<vmem>>, vector<1x8x64xf32>
    %25 = vector.shape_cast %24 : vector<1x8x64xf32> to vector<8x64xf32>
    %26 = vector.shape_cast %23 : vector<8x64xf32> to vector<1x8x64xf32>
    tpu.vector_store %arg4[%c2_29, %c0_30, %c0_31], %26 {strides = array<i32>} : memref<8x8x64xf32, #tpu.memory_space<vmem>>, vector<1x8x64xf32>,
    %c0_32 = arith.constant 0 : index
    %c0_33 = arith.constant 0 : index
    %27 = vector.load %arg2[%c0_32, %c0_33] : memref<8x4xf32, #tpu.memory_space<vmem>>, vector<8x4xf32>
    %c3 = arith.constant 3 : index
    %c0_34 = arith.constant 0 : index
    %c0_35 = arith.constant 0 : index
    %28 = vector.load %arg1[%c3, %c0_34, %c0_35] : memref<8x4x16xf32, #tpu.memory_space<vmem>>, vector<1x4x16xf32>
    %29 = vector.shape_cast %28 : vector<1x4x16xf32> to vector<4x16xf32>
    %cst_36 = arith.constant dense<0.000000e+00> : vector<8x16xf32>
    %30 = tpu.matmul %27, %29, %cst_36 {dimension_numbers = #tpu.dot_dimension_numbers<[1], [0], [0], [1], [0, 0, 1, 1], [], []>} : vector<8x4xf32>, vector<4x16xf32>, vector<8x16xf32> -> vector<8x16xf32>
    %c0_37 = arith.constant 0 : index
    %c0_38 = arith.constant 0 : index
    %31 = vector.load %arg3[%c0_37, %c0_38] : memref<16x64xf32, #tpu.memory_space<vmem>>, vector<16x64xf32>
    %cst_39 = arith.constant dense<0.000000e+00> : vector<8x64xf32>
    %32 = tpu.matmul %30, %31, %cst_39 {dimension_numbers = #tpu.dot_dimension_numbers<[1], [0], [0], [1], [0, 0, 1, 1], [], []>} : vector<8x16xf32>, vector<16x64xf32>, vector<8x64xf32> -> vector<8x64xf32>
    %c3_40 = arith.constant 3 : index
    %c0_41 = arith.constant 0 : index
    %c0_42 = arith.constant 0 : index
    %33 = vector.load %arg4[%c3_40, %c0_41, %c0_42] : memref<8x8x64xf32, #tpu.memory_space<vmem>>, vector<1x8x64xf32>
    %34 = vector.shape_cast %33 : vector<1x8x64xf32> to vector<8x64xf32>
    %35 = vector.shape_cast %32 : vector<8x64xf32> to vector<1x8x64xf32>
    tpu.vector_store %arg4[%c3_40, %c0_41, %c0_42], %35 {strides = array<i32>} : memref<8x8x64xf32, #tpu.memory_space<vmem>>, vector<1x8x64xf32>,
    %c0_43 = arith.constant 0 : index
    %c0_44 = arith.constant 0 : index
    %36 = vector.load %arg2[%c0_43, %c0_44] : memref<8x4xf32, #tpu.memory_space<vmem>>, vector<8x4xf32>
    %c4 = arith.constant 4 : index
    %c0_45 = arith.constant 0 : index
    %c0_46 = arith.constant 0 : index
    %37 = vector.load %arg1[%c4, %c0_45, %c0_46] : memref<8x4x16xf32, #tpu.memory_space<vmem>>, vector<1x4x16xf32>
    %38 = vector.shape_cast %37 : vector<1x4x16xf32> to vector<4x16xf32>
    %cst_47 = arith.constant dense<0.000000e+00> : vector<8x16xf32>
    %39 = tpu.matmul %36, %38, %cst_47 {dimension_numbers = #tpu.dot_dimension_numbers<[1], [0], [0], [1], [0, 0, 1, 1], [], []>} : vector<8x4xf32>, vector<4x16xf32>, vector<8x16xf32> -> vector<8x16xf32>
    %c0_48 = arith.constant 0 : index
    %c0_49 = arith.constant 0 : index
    %40 = vector.load %arg3[%c0_48, %c0_49] : memref<16x64xf32, #tpu.memory_space<vmem>>, vector<16x64xf32>
    %cst_50 = arith.constant dense<0.000000e+00> : vector<8x64xf32>
    %41 = tpu.matmul %39, %40, %cst_50 {dimension_numbers = #tpu.dot_dimension_numbers<[1], [0], [0], [1], [0, 0, 1, 1], [], []>} : vector<8x16xf32>, vector<16x64xf32>, vector<8x64xf32> -> vector<8x64xf32>
    %c4_51 = arith.constant 4 : index
    %c0_52 = arith.constant 0 : index
    %c0_53 = arith.constant 0 : index
    %42 = vector.load %arg4[%c4_51, %c0_52, %c0_53] : memref<8x8x64xf32, #tpu.memory_space<vmem>>, vector<1x8x64xf32>
    %43 = vector.shape_cast %42 : vector<1x8x64xf32> to vector<8x64xf32>
    %44 = vector.shape_cast %41 : vector<8x64xf32> to vector<1x8x64xf32>
    tpu.vector_store %arg4[%c4_51, %c0_52, %c0_53], %44 {strides = array<i32>} : memref<8x8x64xf32, #tpu.memory_space<vmem>>, vector<1x8x64xf32>,
    %c0_54 = arith.constant 0 : index
    %c0_55 = arith.constant 0 : index
    %45 = vector.load %arg2[%c0_54, %c0_55] : memref<8x4xf32, #tpu.memory_space<vmem>>, vector<8x4xf32>
    %c5 = arith.constant 5 : index
    %c0_56 = arith.constant 0 : index
    %c0_57 = arith.constant 0 : index
    %46 = vector.load %arg1[%c5, %c0_56, %c0_57] : memref<8x4x16xf32, #tpu.memory_space<vmem>>, vector<1x4x16xf32>
    %47 = vector.shape_cast %46 : vector<1x4x16xf32> to vector<4x16xf32>
    %cst_58 = arith.constant dense<0.000000e+00> : vector<8x16xf32>
    %48 = tpu.matmul %45, %47, %cst_58 {dimension_numbers = #tpu.dot_dimension_numbers<[1], [0], [0], [1], [0, 0, 1, 1], [], []>} : vector<8x4xf32>, vector<4x16xf32>, vector<8x16xf32> -> vector<8x16xf32>
    %c0_59 = arith.constant 0 : index
    %c0_60 = arith.constant 0 : index
    %49 = vector.load %arg3[%c0_59, %c0_60] : memref<16x64xf32, #tpu.memory_space<vmem>>, vector<16x64xf32>
    %cst_61 = arith.constant dense<0.000000e+00> : vector<8x64xf32>
    %50 = tpu.matmul %48, %49, %cst_61 {dimension_numbers = #tpu.dot_dimension_numbers<[1], [0], [0], [1], [0, 0, 1, 1], [], []>} : vector<8x16xf32>, vector<16x64xf32>, vector<8x64xf32> -> vector<8x64xf32>
    %c5_62 = arith.constant 5 : index
    %c0_63 = arith.constant 0 : index
    %c0_64 = arith.constant 0 : index
    %51 = vector.load %arg4[%c5_62, %c0_63, %c0_64] : memref<8x8x64xf32, #tpu.memory_space<vmem>>, vector<1x8x64xf32>
    %52 = vector.shape_cast %51 : vector<1x8x64xf32> to vector<8x64xf32>
    %53 = vector.shape_cast %50 : vector<8x64xf32> to vector<1x8x64xf32>
    tpu.vector_store %arg4[%c5_62, %c0_63, %c0_64], %53 {strides = array<i32>} : memref<8x8x64xf32, #tpu.memory_space<vmem>>, vector<1x8x64xf32>,
    %c0_65 = arith.constant 0 : index
    %c0_66 = arith.constant 0 : index
    %54 = vector.load %arg2[%c0_65, %c0_66] : memref<8x4xf32, #tpu.memory_space<vmem>>, vector<8x4xf32>
    %c6 = arith.constant 6 : index
    %c0_67 = arith.constant 0 : index
    %c0_68 = arith.constant 0 : index
    %55 = vector.load %arg1[%c6, %c0_67, %c0_68] : memref<8x4x16xf32, #tpu.memory_space<vmem>>, vector<1x4x16xf32>
    %56 = vector.shape_cast %55 : vector<1x4x16xf32> to vector<4x16xf32>
    %cst_69 = arith.constant dense<0.000000e+00> : vector<8x16xf32>
    %57 = tpu.matmul %54, %56, %cst_69 {dimension_numbers = #tpu.dot_dimension_numbers<[1], [0], [0], [1], [0, 0, 1, 1], [], []>} : vector<8x4xf32>, vector<4x16xf32>, vector<8x16xf32> -> vector<8x16xf32>
    %c0_70 = arith.constant 0 : index
    %c0_71 = arith.constant 0 : index
    %58 = vector.load %arg3[%c0_70, %c0_71] : memref<16x64xf32, #tpu.memory_space<vmem>>, vector<16x64xf32>
    %cst_72 = arith.constant dense<0.000000e+00> : vector<8x64xf32>
    %59 = tpu.matmul %57, %58, %cst_72 {dimension_numbers = #tpu.dot_dimension_numbers<[1], [0], [0], [1], [0, 0, 1, 1], [], []>} : vector<8x16xf32>, vector<16x64xf32>, vector<8x64xf32> -> vector<8x64xf32>
    %c6_73 = arith.constant 6 : index
    %c0_74 = arith.constant 0 : index
    %c0_75 = arith.constant 0 : index
    %60 = vector.load %arg4[%c6_73, %c0_74, %c0_75] : memref<8x8x64xf32, #tpu.memory_space<vmem>>, vector<1x8x64xf32>
    %61 = vector.shape_cast %60 : vector<1x8x64xf32> to vector<8x64xf32>
    %62 = vector.shape_cast %59 : vector<8x64xf32> to vector<1x8x64xf32>
    tpu.vector_store %arg4[%c6_73, %c0_74, %c0_75], %62 {strides = array<i32>} : memref<8x8x64xf32, #tpu.memory_space<vmem>>, vector<1x8x64xf32>,
    %c0_76 = arith.constant 0 : index
    %c0_77 = arith.constant 0 : index
    %63 = vector.load %arg2[%c0_76, %c0_77] : memref<8x4xf32, #tpu.memory_space<vmem>>, vector<8x4xf32>
    %c7 = arith.constant 7 : index
    %c0_78 = arith.constant 0 : index
    %c0_79 = arith.constant 0 : index
    %64 = vector.load %arg1[%c7, %c0_78, %c0_79] : memref<8x4x16xf32, #tpu.memory_space<vmem>>, vector<1x4x16xf32>
    %65 = vector.shape_cast %64 : vector<1x4x16xf32> to vector<4x16xf32>
    %cst_80 = arith.constant dense<0.000000e+00> : vector<8x16xf32>
    %66 = tpu.matmul %63, %65, %cst_80 {dimension_numbers = #tpu.dot_dimension_numbers<[1], [0], [0], [1], [0, 0, 1, 1], [], []>} : vector<8x4xf32>, vector<4x16xf32>, vector<8x16xf32> -> vector<8x16xf32>
    %c0_81 = arith.constant 0 : index
    %c0_82 = arith.constant 0 : index
    %67 = vector.load %arg3[%c0_81, %c0_82] : memref<16x64xf32, #tpu.memory_space<vmem>>, vector<16x64xf32>
    %cst_83 = arith.constant dense<0.000000e+00> : vector<8x64xf32>
    %68 = tpu.matmul %66, %67, %cst_83 {dimension_numbers = #tpu.dot_dimension_numbers<[1], [0], [0], [1], [0, 0, 1, 1], [], []>} : vector<8x16xf32>, vector<16x64xf32>, vector<8x64xf32> -> vector<8x64xf32>
    %c7_84 = arith.constant 7 : index
    %c0_85 = arith.constant 0 : index
    %c0_86 = arith.constant 0 : index
    %69 = vector.load %arg4[%c7_84, %c0_85, %c0_86] : memref<8x8x64xf32, #tpu.memory_space<vmem>>, vector<1x8x64xf32>
    %70 = vector.shape_cast %69 : vector<1x8x64xf32> to vector<8x64xf32>
    %71 = vector.shape_cast %68 : vector<8x64xf32> to vector<1x8x64xf32>
    tpu.vector_store %arg4[%c7_84, %c0_85, %c0_86], %71 {strides = array<i32>} : memref<8x8x64xf32, #tpu.memory_space<vmem>>, vector<1x8x64xf32>,
    return
  }
  func.func @transform_0(%arg0: i32) -> (i32, i32, i32) {
    %c0_i32 = arith.constant 0 : i32
    %c0_i32_0 = arith.constant 0 : i32
    %c0_i32_1 = arith.constant 0 : i32
    return %arg0, %c0_i32, %c0_i32_0 : i32, i32, i32
  }
  func.func @transform_1(%arg0: i32) -> (i32, i32) {
    %c0_i32 = arith.constant 0 : i32
    %c0_i32_0 = arith.constant 0 : i32
    %c0_i32_1 = arith.constant 0 : i32
    return %c0_i32, %c0_i32_0 : i32, i32
  }
  func.func @transform_2(%arg0: i32) -> (i32, i32) {
    %c0_i32 = arith.constant 0 : i32
    %c0_i32_0 = arith.constant 0 : i32
    %c0_i32_1 = arith.constant 0 : i32
    return %c0_i32, %c0_i32_0 : i32, i32
  }
  func.func @transform_3(%arg0: i32) -> (i32, i32, i32) {
    %c0_i32 = arith.constant 0 : i32
    %c0_i32_0 = arith.constant 0 : i32
    %c0_i32_1 = arith.constant 0 : i32
    return %arg0, %c0_i32, %c0_i32_0 : i32, i32, i32
  }
}

module attributes {stable_mosaic.version = 11 : i64} {
  func.func @_conv_stats_kernel(%arg0: i32, %arg1: memref<2272x8xf32, #tpu.memory_space<vmem>>, %arg2: memref<216x8xbf16, #tpu.memory_space<vmem>>, %arg3: memref<256x1xf32, #tpu.memory_space<vmem>>, %arg4: memref<256x8xf32, #tpu.memory_space<vmem>>, %arg5: memref<1x8x8xf32, #tpu.memory_space<vmem>>, %arg6: memref<256x216xf32, #tpu.memory_space<vmem>>) attributes {dimension_semantics = [#tpu.dimension_semantics<parallel>], iteration_bounds = array<i64: 8>, scalar_prefetch = 0 : i64, scratch_operands = 1 : i64, tpu.core_type = #tpu.core_type<tc>, window_params = [{pipeline_mode = #tpu.pipeline_mode<synchronous>, transform_indices = @transform_0, window_bounds = array<i64: 2272, 8>}, {pipeline_mode = #tpu.pipeline_mode<synchronous>, transform_indices = @transform_1, window_bounds = array<i64: 216, 8>}, {transform_indices = @transform_2, window_bounds = array<i64: 256, 1>}, {transform_indices = @transform_3, window_bounds = array<i64: 256, 8>}, {transform_indices = @transform_4, window_bounds = array<i64: 1, 8, 8>}]} {
    %c256_i32 = arith.constant 256 : i32
    %0 = arith.muli %arg0, %c256_i32 : i32
    %1 = tpu.assume_multiple %0, 256 : i32
    %c0_i32 = arith.constant 0 : i32
    %2 = arith.addi %1, %c0_i32 : i32
    %3 = arith.index_cast %2 : i32 to index
    %c0 = arith.constant 0 : index
    %4 = vector.load %arg1[%3, %c0] : memref<2272x8xf32, #tpu.memory_space<vmem>>, vector<256x8xf32>
    %c0_0 = arith.constant 0 : index
    %c0_1 = arith.constant 0 : index
    %5 = vector.load %arg6[%c0_0, %c0_1] : memref<256x216xf32, #tpu.memory_space<vmem>>, vector<256x8xf32>
    tpu.vector_store %arg6[%c0_0, %c0_1], %4 {strides = array<i32>} : memref<256x216xf32, #tpu.memory_space<vmem>>, vector<256x8xf32>,
    %c1_i32 = arith.constant 1 : i32
    %6 = arith.addi %1, %c1_i32 : i32
    %7 = arith.index_cast %6 : i32 to index
    %c0_2 = arith.constant 0 : index
    %8 = vector.load %arg1[%7, %c0_2] : memref<2272x8xf32, #tpu.memory_space<vmem>>, vector<256x8xf32>
    %c0_3 = arith.constant 0 : index
    %c8 = arith.constant 8 : index
    %9 = vector.load %arg6[%c0_3, %c8] : memref<256x216xf32, #tpu.memory_space<vmem>>, vector<256x8xf32>
    tpu.vector_store %arg6[%c0_3, %c8], %8 {strides = array<i32>} : memref<256x216xf32, #tpu.memory_space<vmem>>, vector<256x8xf32>,
    %c2_i32 = arith.constant 2 : i32
    %10 = arith.addi %1, %c2_i32 : i32
    %11 = arith.index_cast %10 : i32 to index
    %c0_4 = arith.constant 0 : index
    %12 = vector.load %arg1[%11, %c0_4] : memref<2272x8xf32, #tpu.memory_space<vmem>>, vector<256x8xf32>
    %c0_5 = arith.constant 0 : index
    %c16 = arith.constant 16 : index
    %13 = vector.load %arg6[%c0_5, %c16] : memref<256x216xf32, #tpu.memory_space<vmem>>, vector<256x8xf32>
    tpu.vector_store %arg6[%c0_5, %c16], %12 {strides = array<i32>} : memref<256x216xf32, #tpu.memory_space<vmem>>, vector<256x8xf32>,
    %c10_i32 = arith.constant 10 : i32
    %14 = arith.addi %1, %c10_i32 : i32
    %15 = arith.index_cast %14 : i32 to index
    %c0_6 = arith.constant 0 : index
    %16 = vector.load %arg1[%15, %c0_6] : memref<2272x8xf32, #tpu.memory_space<vmem>>, vector<256x8xf32>
    %c0_7 = arith.constant 0 : index
    %c24 = arith.constant 24 : index
    %17 = vector.load %arg6[%c0_7, %c24] : memref<256x216xf32, #tpu.memory_space<vmem>>, vector<256x8xf32>
    tpu.vector_store %arg6[%c0_7, %c24], %16 {strides = array<i32>} : memref<256x216xf32, #tpu.memory_space<vmem>>, vector<256x8xf32>,
    %c11_i32 = arith.constant 11 : i32
    %18 = arith.addi %1, %c11_i32 : i32
    %19 = arith.index_cast %18 : i32 to index
    %c0_8 = arith.constant 0 : index
    %20 = vector.load %arg1[%19, %c0_8] : memref<2272x8xf32, #tpu.memory_space<vmem>>, vector<256x8xf32>
    %c0_9 = arith.constant 0 : index
    %c32 = arith.constant 32 : index
    %21 = vector.load %arg6[%c0_9, %c32] : memref<256x216xf32, #tpu.memory_space<vmem>>, vector<256x8xf32>
    tpu.vector_store %arg6[%c0_9, %c32], %20 {strides = array<i32>} : memref<256x216xf32, #tpu.memory_space<vmem>>, vector<256x8xf32>,
    %c12_i32 = arith.constant 12 : i32
    %22 = arith.addi %1, %c12_i32 : i32
    %23 = arith.index_cast %22 : i32 to index
    %c0_10 = arith.constant 0 : index
    %24 = vector.load %arg1[%23, %c0_10] : memref<2272x8xf32, #tpu.memory_space<vmem>>, vector<256x8xf32>
    %c0_11 = arith.constant 0 : index
    %c40 = arith.constant 40 : index
    %25 = vector.load %arg6[%c0_11, %c40] : memref<256x216xf32, #tpu.memory_space<vmem>>, vector<256x8xf32>
    tpu.vector_store %arg6[%c0_11, %c40], %24 {strides = array<i32>} : memref<256x216xf32, #tpu.memory_space<vmem>>, vector<256x8xf32>,
    %c20_i32 = arith.constant 20 : i32
    %26 = arith.addi %1, %c20_i32 : i32
    %27 = arith.index_cast %26 : i32 to index
    %c0_12 = arith.constant 0 : index
    %28 = vector.load %arg1[%27, %c0_12] : memref<2272x8xf32, #tpu.memory_space<vmem>>, vector<256x8xf32>
    %c0_13 = arith.constant 0 : index
    %c48 = arith.constant 48 : index
    %29 = vector.load %arg6[%c0_13, %c48] : memref<256x216xf32, #tpu.memory_space<vmem>>, vector<256x8xf32>
    tpu.vector_store %arg6[%c0_13, %c48], %28 {strides = array<i32>} : memref<256x216xf32, #tpu.memory_space<vmem>>, vector<256x8xf32>,
    %c21_i32 = arith.constant 21 : i32
    %30 = arith.addi %1, %c21_i32 : i32
    %31 = arith.index_cast %30 : i32 to index
    %c0_14 = arith.constant 0 : index
    %32 = vector.load %arg1[%31, %c0_14] : memref<2272x8xf32, #tpu.memory_space<vmem>>, vector<256x8xf32>
    %c0_15 = arith.constant 0 : index
    %c56 = arith.constant 56 : index
    %33 = vector.load %arg6[%c0_15, %c56] : memref<256x216xf32, #tpu.memory_space<vmem>>, vector<256x8xf32>
    tpu.vector_store %arg6[%c0_15, %c56], %32 {strides = array<i32>} : memref<256x216xf32, #tpu.memory_space<vmem>>, vector<256x8xf32>,
    %c22_i32 = arith.constant 22 : i32
    %34 = arith.addi %1, %c22_i32 : i32
    %35 = arith.index_cast %34 : i32 to index
    %c0_16 = arith.constant 0 : index
    %36 = vector.load %arg1[%35, %c0_16] : memref<2272x8xf32, #tpu.memory_space<vmem>>, vector<256x8xf32>
    %c0_17 = arith.constant 0 : index
    %c64 = arith.constant 64 : index
    %37 = vector.load %arg6[%c0_17, %c64] : memref<256x216xf32, #tpu.memory_space<vmem>>, vector<256x8xf32>
    tpu.vector_store %arg6[%c0_17, %c64], %36 {strides = array<i32>} : memref<256x216xf32, #tpu.memory_space<vmem>>, vector<256x8xf32>,
    %c100_i32 = arith.constant 100 : i32
    %38 = arith.addi %1, %c100_i32 : i32
    %39 = arith.index_cast %38 : i32 to index
    %c0_18 = arith.constant 0 : index
    %40 = vector.load %arg1[%39, %c0_18] : memref<2272x8xf32, #tpu.memory_space<vmem>>, vector<256x8xf32>
    %c0_19 = arith.constant 0 : index
    %c72 = arith.constant 72 : index
    %41 = vector.load %arg6[%c0_19, %c72] : memref<256x216xf32, #tpu.memory_space<vmem>>, vector<256x8xf32>
    tpu.vector_store %arg6[%c0_19, %c72], %40 {strides = array<i32>} : memref<256x216xf32, #tpu.memory_space<vmem>>, vector<256x8xf32>,
    %c101_i32 = arith.constant 101 : i32
    %42 = arith.addi %1, %c101_i32 : i32
    %43 = arith.index_cast %42 : i32 to index
    %c0_20 = arith.constant 0 : index
    %44 = vector.load %arg1[%43, %c0_20] : memref<2272x8xf32, #tpu.memory_space<vmem>>, vector<256x8xf32>
    %c0_21 = arith.constant 0 : index
    %c80 = arith.constant 80 : index
    %45 = vector.load %arg6[%c0_21, %c80] : memref<256x216xf32, #tpu.memory_space<vmem>>, vector<256x8xf32>
    tpu.vector_store %arg6[%c0_21, %c80], %44 {strides = array<i32>} : memref<256x216xf32, #tpu.memory_space<vmem>>, vector<256x8xf32>,
    %c102_i32 = arith.constant 102 : i32
    %46 = arith.addi %1, %c102_i32 : i32
    %47 = arith.index_cast %46 : i32 to index
    %c0_22 = arith.constant 0 : index
    %48 = vector.load %arg1[%47, %c0_22] : memref<2272x8xf32, #tpu.memory_space<vmem>>, vector<256x8xf32>
    %c0_23 = arith.constant 0 : index
    %c88 = arith.constant 88 : index
    %49 = vector.load %arg6[%c0_23, %c88] : memref<256x216xf32, #tpu.memory_space<vmem>>, vector<256x8xf32>
    tpu.vector_store %arg6[%c0_23, %c88], %48 {strides = array<i32>} : memref<256x216xf32, #tpu.memory_space<vmem>>, vector<256x8xf32>,
    %c110_i32 = arith.constant 110 : i32
    %50 = arith.addi %1, %c110_i32 : i32
    %51 = arith.index_cast %50 : i32 to index
    %c0_24 = arith.constant 0 : index
    %52 = vector.load %arg1[%51, %c0_24] : memref<2272x8xf32, #tpu.memory_space<vmem>>, vector<256x8xf32>
    %c0_25 = arith.constant 0 : index
    %c96 = arith.constant 96 : index
    %53 = vector.load %arg6[%c0_25, %c96] : memref<256x216xf32, #tpu.memory_space<vmem>>, vector<256x8xf32>
    tpu.vector_store %arg6[%c0_25, %c96], %52 {strides = array<i32>} : memref<256x216xf32, #tpu.memory_space<vmem>>, vector<256x8xf32>,
    %c111_i32 = arith.constant 111 : i32
    %54 = arith.addi %1, %c111_i32 : i32
    %55 = arith.index_cast %54 : i32 to index
    %c0_26 = arith.constant 0 : index
    %56 = vector.load %arg1[%55, %c0_26] : memref<2272x8xf32, #tpu.memory_space<vmem>>, vector<256x8xf32>
    %c0_27 = arith.constant 0 : index
    %c104 = arith.constant 104 : index
    %57 = vector.load %arg6[%c0_27, %c104] : memref<256x216xf32, #tpu.memory_space<vmem>>, vector<256x8xf32>
    tpu.vector_store %arg6[%c0_27, %c104], %56 {strides = array<i32>} : memref<256x216xf32, #tpu.memory_space<vmem>>, vector<256x8xf32>,
    %c112_i32 = arith.constant 112 : i32
    %58 = arith.addi %1, %c112_i32 : i32
    %59 = arith.index_cast %58 : i32 to index
    %c0_28 = arith.constant 0 : index
    %60 = vector.load %arg1[%59, %c0_28] : memref<2272x8xf32, #tpu.memory_space<vmem>>, vector<256x8xf32>
    %c0_29 = arith.constant 0 : index
    %c112 = arith.constant 112 : index
    %61 = vector.load %arg6[%c0_29, %c112] : memref<256x216xf32, #tpu.memory_space<vmem>>, vector<256x8xf32>
    tpu.vector_store %arg6[%c0_29, %c112], %60 {strides = array<i32>} : memref<256x216xf32, #tpu.memory_space<vmem>>, vector<256x8xf32>,
    %c120_i32 = arith.constant 120 : i32
    %62 = arith.addi %1, %c120_i32 : i32
    %63 = arith.index_cast %62 : i32 to index
    %c0_30 = arith.constant 0 : index
    %64 = vector.load %arg1[%63, %c0_30] : memref<2272x8xf32, #tpu.memory_space<vmem>>, vector<256x8xf32>
    %c0_31 = arith.constant 0 : index
    %c120 = arith.constant 120 : index
    %65 = vector.load %arg6[%c0_31, %c120] : memref<256x216xf32, #tpu.memory_space<vmem>>, vector<256x8xf32>
    tpu.vector_store %arg6[%c0_31, %c120], %64 {strides = array<i32>} : memref<256x216xf32, #tpu.memory_space<vmem>>, vector<256x8xf32>,
    %c121_i32 = arith.constant 121 : i32
    %66 = arith.addi %1, %c121_i32 : i32
    %67 = arith.index_cast %66 : i32 to index
    %c0_32 = arith.constant 0 : index
    %68 = vector.load %arg1[%67, %c0_32] : memref<2272x8xf32, #tpu.memory_space<vmem>>, vector<256x8xf32>
    %c0_33 = arith.constant 0 : index
    %c128 = arith.constant 128 : index
    %69 = vector.load %arg6[%c0_33, %c128] : memref<256x216xf32, #tpu.memory_space<vmem>>, vector<256x8xf32>
    tpu.vector_store %arg6[%c0_33, %c128], %68 {strides = array<i32>} : memref<256x216xf32, #tpu.memory_space<vmem>>, vector<256x8xf32>,
    %c122_i32 = arith.constant 122 : i32
    %70 = arith.addi %1, %c122_i32 : i32
    %71 = arith.index_cast %70 : i32 to index
    %c0_34 = arith.constant 0 : index
    %72 = vector.load %arg1[%71, %c0_34] : memref<2272x8xf32, #tpu.memory_space<vmem>>, vector<256x8xf32>
    %c0_35 = arith.constant 0 : index
    %c136 = arith.constant 136 : index
    %73 = vector.load %arg6[%c0_35, %c136] : memref<256x216xf32, #tpu.memory_space<vmem>>, vector<256x8xf32>
    tpu.vector_store %arg6[%c0_35, %c136], %72 {strides = array<i32>} : memref<256x216xf32, #tpu.memory_space<vmem>>, vector<256x8xf32>,
    %c200_i32 = arith.constant 200 : i32
    %74 = arith.addi %1, %c200_i32 : i32
    %75 = arith.index_cast %74 : i32 to index
    %c0_36 = arith.constant 0 : index
    %76 = vector.load %arg1[%75, %c0_36] : memref<2272x8xf32, #tpu.memory_space<vmem>>, vector<256x8xf32>
    %c0_37 = arith.constant 0 : index
    %c144 = arith.constant 144 : index
    %77 = vector.load %arg6[%c0_37, %c144] : memref<256x216xf32, #tpu.memory_space<vmem>>, vector<256x8xf32>
    tpu.vector_store %arg6[%c0_37, %c144], %76 {strides = array<i32>} : memref<256x216xf32, #tpu.memory_space<vmem>>, vector<256x8xf32>,
    %c201_i32 = arith.constant 201 : i32
    %78 = arith.addi %1, %c201_i32 : i32
    %79 = arith.index_cast %78 : i32 to index
    %c0_38 = arith.constant 0 : index
    %80 = vector.load %arg1[%79, %c0_38] : memref<2272x8xf32, #tpu.memory_space<vmem>>, vector<256x8xf32>
    %c0_39 = arith.constant 0 : index
    %c152 = arith.constant 152 : index
    %81 = vector.load %arg6[%c0_39, %c152] : memref<256x216xf32, #tpu.memory_space<vmem>>, vector<256x8xf32>
    tpu.vector_store %arg6[%c0_39, %c152], %80 {strides = array<i32>} : memref<256x216xf32, #tpu.memory_space<vmem>>, vector<256x8xf32>,
    %c202_i32 = arith.constant 202 : i32
    %82 = arith.addi %1, %c202_i32 : i32
    %83 = arith.index_cast %82 : i32 to index
    %c0_40 = arith.constant 0 : index
    %84 = vector.load %arg1[%83, %c0_40] : memref<2272x8xf32, #tpu.memory_space<vmem>>, vector<256x8xf32>
    %c0_41 = arith.constant 0 : index
    %c160 = arith.constant 160 : index
    %85 = vector.load %arg6[%c0_41, %c160] : memref<256x216xf32, #tpu.memory_space<vmem>>, vector<256x8xf32>
    tpu.vector_store %arg6[%c0_41, %c160], %84 {strides = array<i32>} : memref<256x216xf32, #tpu.memory_space<vmem>>, vector<256x8xf32>,
    %c210_i32 = arith.constant 210 : i32
    %86 = arith.addi %1, %c210_i32 : i32
    %87 = arith.index_cast %86 : i32 to index
    %c0_42 = arith.constant 0 : index
    %88 = vector.load %arg1[%87, %c0_42] : memref<2272x8xf32, #tpu.memory_space<vmem>>, vector<256x8xf32>
    %c0_43 = arith.constant 0 : index
    %c168 = arith.constant 168 : index
    %89 = vector.load %arg6[%c0_43, %c168] : memref<256x216xf32, #tpu.memory_space<vmem>>, vector<256x8xf32>
    tpu.vector_store %arg6[%c0_43, %c168], %88 {strides = array<i32>} : memref<256x216xf32, #tpu.memory_space<vmem>>, vector<256x8xf32>,
    %c211_i32 = arith.constant 211 : i32
    %90 = arith.addi %1, %c211_i32 : i32
    %91 = arith.index_cast %90 : i32 to index
    %c0_44 = arith.constant 0 : index
    %92 = vector.load %arg1[%91, %c0_44] : memref<2272x8xf32, #tpu.memory_space<vmem>>, vector<256x8xf32>
    %c0_45 = arith.constant 0 : index
    %c176 = arith.constant 176 : index
    %93 = vector.load %arg6[%c0_45, %c176] : memref<256x216xf32, #tpu.memory_space<vmem>>, vector<256x8xf32>
    tpu.vector_store %arg6[%c0_45, %c176], %92 {strides = array<i32>} : memref<256x216xf32, #tpu.memory_space<vmem>>, vector<256x8xf32>,
    %c212_i32 = arith.constant 212 : i32
    %94 = arith.addi %1, %c212_i32 : i32
    %95 = arith.index_cast %94 : i32 to index
    %c0_46 = arith.constant 0 : index
    %96 = vector.load %arg1[%95, %c0_46] : memref<2272x8xf32, #tpu.memory_space<vmem>>, vector<256x8xf32>
    %c0_47 = arith.constant 0 : index
    %c184 = arith.constant 184 : index
    %97 = vector.load %arg6[%c0_47, %c184] : memref<256x216xf32, #tpu.memory_space<vmem>>, vector<256x8xf32>
    tpu.vector_store %arg6[%c0_47, %c184], %96 {strides = array<i32>} : memref<256x216xf32, #tpu.memory_space<vmem>>, vector<256x8xf32>,
    %c220_i32 = arith.constant 220 : i32
    %98 = arith.addi %1, %c220_i32 : i32
    %99 = arith.index_cast %98 : i32 to index
    %c0_48 = arith.constant 0 : index
    %100 = vector.load %arg1[%99, %c0_48] : memref<2272x8xf32, #tpu.memory_space<vmem>>, vector<256x8xf32>
    %c0_49 = arith.constant 0 : index
    %c192 = arith.constant 192 : index
    %101 = vector.load %arg6[%c0_49, %c192] : memref<256x216xf32, #tpu.memory_space<vmem>>, vector<256x8xf32>
    tpu.vector_store %arg6[%c0_49, %c192], %100 {strides = array<i32>} : memref<256x216xf32, #tpu.memory_space<vmem>>, vector<256x8xf32>,
    %c221_i32 = arith.constant 221 : i32
    %102 = arith.addi %1, %c221_i32 : i32
    %103 = arith.index_cast %102 : i32 to index
    %c0_50 = arith.constant 0 : index
    %104 = vector.load %arg1[%103, %c0_50] : memref<2272x8xf32, #tpu.memory_space<vmem>>, vector<256x8xf32>
    %c0_51 = arith.constant 0 : index
    %c200 = arith.constant 200 : index
    %105 = vector.load %arg6[%c0_51, %c200] : memref<256x216xf32, #tpu.memory_space<vmem>>, vector<256x8xf32>
    tpu.vector_store %arg6[%c0_51, %c200], %104 {strides = array<i32>} : memref<256x216xf32, #tpu.memory_space<vmem>>, vector<256x8xf32>,
    %c222_i32 = arith.constant 222 : i32
    %106 = arith.addi %1, %c222_i32 : i32
    %107 = arith.index_cast %106 : i32 to index
    %c0_52 = arith.constant 0 : index
    %108 = vector.load %arg1[%107, %c0_52] : memref<2272x8xf32, #tpu.memory_space<vmem>>, vector<256x8xf32>
    %c0_53 = arith.constant 0 : index
    %c208 = arith.constant 208 : index
    %109 = vector.load %arg6[%c0_53, %c208] : memref<256x216xf32, #tpu.memory_space<vmem>>, vector<256x8xf32>
    tpu.vector_store %arg6[%c0_53, %c208], %108 {strides = array<i32>} : memref<256x216xf32, #tpu.memory_space<vmem>>, vector<256x8xf32>,
    %c0_54 = arith.constant 0 : index
    %c0_55 = arith.constant 0 : index
    %110 = vector.load %arg6[%c0_54, %c0_55] : memref<256x216xf32, #tpu.memory_space<vmem>>, vector<256x216xf32>
    %111 = arith.truncf %110 : vector<256x216xf32> to vector<256x216xbf16>
    %c0_56 = arith.constant 0 : index
    %c0_57 = arith.constant 0 : index
    %112 = vector.load %arg2[%c0_56, %c0_57] : memref<216x8xbf16, #tpu.memory_space<vmem>>, vector<216x8xbf16>
    %cst = arith.constant dense<0.000000e+00> : vector<256x8xf32>
    %113 = tpu.matmul %111, %112, %cst {dimension_numbers = #tpu.dot_dimension_numbers<[1], [0], [0], [1], [0, 0, 1, 1], [], []>} : vector<256x216xbf16>, vector<216x8xbf16>, vector<256x8xf32> -> vector<256x8xf32>
    %c0_58 = arith.constant 0 : index
    %c0_59 = arith.constant 0 : index
    %114 = vector.load %arg4[%c0_58, %c0_59] : memref<256x8xf32, #tpu.memory_space<vmem>>, vector<256x8xf32>
    tpu.vector_store %arg4[%c0_58, %c0_59], %113 {strides = array<i32>} : memref<256x8xf32, #tpu.memory_space<vmem>>, vector<256x8xf32>,
    %c0_60 = arith.constant 0 : index
    %c0_61 = arith.constant 0 : index
    %115 = vector.load %arg3[%c0_60, %c0_61] : memref<256x1xf32, #tpu.memory_space<vmem>>, vector<256x1xf32>
    %116 = vector.broadcast %115 : vector<256x1xf32> to vector<256x8xf32>
    %117 = arith.mulf %113, %116 : vector<256x8xf32>
    %cst_62 = arith.constant dense<0.000000e+00> : vector<8xf32>
    %118 = vector.multi_reduction <add>, %117, %cst_62 [0] : vector<256x8xf32> to vector<8xf32>
    %119 = vector.shape_cast %118 : vector<8xf32> to vector<1x8xf32>
    %120 = arith.mulf %113, %113 : vector<256x8xf32>
    %121 = vector.broadcast %115 : vector<256x1xf32> to vector<256x8xf32>
    %122 = arith.mulf %120, %121 : vector<256x8xf32>
    %cst_63 = arith.constant dense<0.000000e+00> : vector<8xf32>
    %123 = vector.multi_reduction <add>, %122, %cst_63 [0] : vector<256x8xf32> to vector<8xf32>
    %124 = vector.shape_cast %123 : vector<8xf32> to vector<1x8xf32>
    %cst_64 = arith.constant 0.000000e+00 : f32
    %125 = vector.broadcast %cst_64 : f32 to vector<6x8xf32>
    %126 = tpu.concatenate %119, %124, %125 in 0 : vector<1x8xf32>, vector<1x8xf32>, vector<6x8xf32> -> vector<8x8xf32>
    %c0_65 = arith.constant 0 : index
    %c0_66 = arith.constant 0 : index
    %c0_67 = arith.constant 0 : index
    %127 = vector.load %arg5[%c0_65, %c0_66, %c0_67] : memref<1x8x8xf32, #tpu.memory_space<vmem>>, vector<1x8x8xf32>
    %128 = vector.shape_cast %127 : vector<1x8x8xf32> to vector<8x8xf32>
    %129 = vector.shape_cast %126 : vector<8x8xf32> to vector<1x8x8xf32>
    tpu.vector_store %arg5[%c0_65, %c0_66, %c0_67], %129 {strides = array<i32>} : memref<1x8x8xf32, #tpu.memory_space<vmem>>, vector<1x8x8xf32>,
    return
  }
  func.func @transform_0(%arg0: i32) -> (i32, i32) {
    %c0_i32 = arith.constant 0 : i32
    %c0_i32_0 = arith.constant 0 : i32
    %c0_i32_1 = arith.constant 0 : i32
    return %c0_i32, %c0_i32_0 : i32, i32
  }
  func.func @transform_1(%arg0: i32) -> (i32, i32) {
    %c0_i32 = arith.constant 0 : i32
    %c0_i32_0 = arith.constant 0 : i32
    %c0_i32_1 = arith.constant 0 : i32
    return %c0_i32, %c0_i32_0 : i32, i32
  }
  func.func @transform_2(%arg0: i32) -> (i32, i32) {
    %c0_i32 = arith.constant 0 : i32
    %c0_i32_0 = arith.constant 0 : i32
    return %arg0, %c0_i32 : i32, i32
  }
  func.func @transform_3(%arg0: i32) -> (i32, i32) {
    %c0_i32 = arith.constant 0 : i32
    %c0_i32_0 = arith.constant 0 : i32
    return %arg0, %c0_i32 : i32, i32
  }
  func.func @transform_4(%arg0: i32) -> (i32, i32, i32) {
    %c0_i32 = arith.constant 0 : i32
    %c0_i32_0 = arith.constant 0 : i32
    %c0_i32_1 = arith.constant 0 : i32
    return %arg0, %c0_i32, %c0_i32_0 : i32, i32, i32
  }
}

module attributes {stable_mosaic.version = 11 : i64} {
  func.func @_bn_relu_kernel(%arg0: i32, %arg1: memref<1024x8xf32, #tpu.memory_space<vmem>>, %arg2: memref<1024x1xf32, #tpu.memory_space<vmem>>, %arg3: memref<1x8xf32, #tpu.memory_space<vmem>>, %arg4: memref<1x8xf32, #tpu.memory_space<vmem>>, %arg5: memref<1024x8xf32, #tpu.memory_space<vmem>>) attributes {dimension_semantics = [#tpu.dimension_semantics<parallel>], iteration_bounds = array<i64: 2>, scalar_prefetch = 0 : i64, scratch_operands = 0 : i64, tpu.core_type = #tpu.core_type<tc>, window_params = [{transform_indices = @transform_0, window_bounds = array<i64: 1024, 8>}, {transform_indices = @transform_1, window_bounds = array<i64: 1024, 1>}, {pipeline_mode = #tpu.pipeline_mode<synchronous>, transform_indices = @transform_2, window_bounds = array<i64: 1, 8>}, {pipeline_mode = #tpu.pipeline_mode<synchronous>, transform_indices = @transform_3, window_bounds = array<i64: 1, 8>}, {transform_indices = @transform_4, window_bounds = array<i64: 1024, 8>}]} {
    %c0 = arith.constant 0 : index
    %c0_0 = arith.constant 0 : index
    %0 = vector.load %arg1[%c0, %c0_0] : memref<1024x8xf32, #tpu.memory_space<vmem>>, vector<1024x8xf32>
    %c0_1 = arith.constant 0 : index
    %c0_2 = arith.constant 0 : index
    %1 = vector.load %arg3[%c0_1, %c0_2] : memref<1x8xf32, #tpu.memory_space<vmem>>, vector<1x8xf32>
    %2 = vector.broadcast %1 : vector<1x8xf32> to vector<1024x8xf32>
    %3 = arith.mulf %0, %2 : vector<1024x8xf32>
    %c0_3 = arith.constant 0 : index
    %c0_4 = arith.constant 0 : index
    %4 = vector.load %arg4[%c0_3, %c0_4] : memref<1x8xf32, #tpu.memory_space<vmem>>, vector<1x8xf32>
    %5 = vector.broadcast %4 : vector<1x8xf32> to vector<1024x8xf32>
    %6 = arith.addf %3, %5 : vector<1024x8xf32>
    %cst = arith.constant 0.000000e+00 : f32
    %7 = vector.broadcast %cst : f32 to vector<1024x8xf32>
    %8 = arith.maximumf %6, %7 : vector<1024x8xf32>
    %c0_5 = arith.constant 0 : index
    %c0_6 = arith.constant 0 : index
    %9 = vector.load %arg2[%c0_5, %c0_6] : memref<1024x1xf32, #tpu.memory_space<vmem>>, vector<1024x1xf32>
    %10 = vector.broadcast %9 : vector<1024x1xf32> to vector<1024x8xf32>
    %11 = arith.mulf %8, %10 : vector<1024x8xf32>
    %c0_7 = arith.constant 0 : index
    %c0_8 = arith.constant 0 : index
    %12 = vector.load %arg5[%c0_7, %c0_8] : memref<1024x8xf32, #tpu.memory_space<vmem>>, vector<1024x8xf32>
    tpu.vector_store %arg5[%c0_7, %c0_8], %11 {strides = array<i32>} : memref<1024x8xf32, #tpu.memory_space<vmem>>, vector<1024x8xf32>,
    return
  }
  func.func @transform_0(%arg0: i32) -> (i32, i32) {
    %c0_i32 = arith.constant 0 : i32
    %c0_i32_0 = arith.constant 0 : i32
    return %arg0, %c0_i32 : i32, i32
  }
  func.func @transform_1(%arg0: i32) -> (i32, i32) {
    %c0_i32 = arith.constant 0 : i32
    %c0_i32_0 = arith.constant 0 : i32
    return %arg0, %c0_i32 : i32, i32
  }
  func.func @transform_2(%arg0: i32) -> (i32, i32) {
    %c0_i32 = arith.constant 0 : i32
    %c0_i32_0 = arith.constant 0 : i32
    %c0_i32_1 = arith.constant 0 : i32
    return %c0_i32, %c0_i32_0 : i32, i32
  }
  func.func @transform_3(%arg0: i32) -> (i32, i32) {
    %c0_i32 = arith.constant 0 : i32
    %c0_i32_0 = arith.constant 0 : i32
    %c0_i32_1 = arith.constant 0 : i32
    return %c0_i32, %c0_i32_0 : i32, i32
  }
  func.func @transform_4(%arg0: i32) -> (i32, i32) {
    %c0_i32 = arith.constant 0 : i32
    %c0_i32_0 = arith.constant 0 : i32
    return %arg0, %c0_i32 : i32, i32
  }
}

</mosaic_0001>

<llo_original>
// kernel: up_forward.5
$region0: #{up_forward.5}
  #allocation0 [shape = 'u32[]', space=smem, size = 0x4, offset = 0x4, fixed_abs, tag = 'smem constant byte address 0x4 - core index']
  #allocation1 [shape = 'u32[144,128]{1,0:T(1,128)}', space=vmem, size = 0x12000, scoped, tag = 'internal scratch']
  %s0 = inlined_call_operand.vmem [shape: f32[8,4,16], index: 0, kind: input, shape index: {}]
  %s1 = inlined_call_operand.vmem [shape: f32[8,4], index: 1, kind: input, shape index: {}]
  %s2 = inlined_call_operand.vmem [shape: f32[16,64], index: 2, kind: input, shape index: {}]
  %s3 = inlined_call_operand.vmem [shape: f32[8,8,64], index: 3, kind: output, shape index: {}]
  %s4 = sld [smem:[#allocation0]]
  $region22: #{up_forward.5} parent=0
    _
  %s6 = ssub.s32 1, %s4
  %s7 = scalar_select 0, %s6, %s4
  // Predicated region
  $region2: #{up_forward.5} parent=0 // pred_check
    _
  $region3: #{up_forward.5} parent=0 // pred_check_branch
    %9 = sbr.rel (0) target = $region5
  $region4: #{up_forward.5} parent=0 // pred_region
    _
  $region5: #{up_forward.5} parent=0 // pred_fallthru
    _
  // Predicated region
  $region6: #{up_forward.5} parent=0 // pred_check
    _
  $region7: #{up_forward.5} parent=0 // pred_check_branch
    %11 = sbr.rel (0) target = $region9
  $region8: #{up_forward.5} parent=0 // pred_region
    _
  $region9: #{up_forward.5} parent=0 // pred_fallthru
    _
  // Predicated region
  $region10: #{up_forward.5} parent=0 // pred_check
    _
  $region11: #{up_forward.5} parent=0 // pred_check_branch
    %13 = sbr.rel (0) target = $region13
  $region12: #{up_forward.5} parent=0 // pred_region
    _
  $region13: #{up_forward.5} parent=0 // pred_fallthru
    _
  %v14 = vld [vmem:[%s1] sm:$0xff]
  %v15 = vld [vmem:[%s0] sm:$0xf]
  %vm16 = vcmask 31744
  %v18 = vsel %vm16, %v14, 0
  %vm20 = vcmask 1043456
  %v22 = vsel %vm20, %v15, 0
  %24 = vmatprep.subr.mxu0 0.0
  %25 = vmatpush1.msra.mxu0 %v22
  %26 = vmatprep.subr.mxu0 0.0
  %27 = vmatpush1.msra.mxu0 0.0
  %28 = vmatprep.subr.mxu0 0.0
  %29 = vmatpush1.msra.mxu0 0.0
  %30 = vmatprep.subr.mxu0 0.0
  %31 = vmatpush1.msra.mxu0 0.0
  %32 = vmatprep.subr.mxu0 0.0
  %33 = vmatpush1.msra.mxu0 0.0
  %34 = vmatprep.subr.mxu0 0.0
  %35 = vmatpush1.msra.mxu0 0.0
  %36 = vmatprep.subr.mxu0 0.0
  %37 = vmatpush1.msra.mxu0 0.0
  %38 = vmatprep.subr.mxu0 0.0
  %39 = vmatpush1.msra.mxu0 0.0
  %40 = vmatprep.subr.mxu0 0.0
  %41 = vmatpush1.msra.mxu0 0.0
  %42 = vmatprep.subr.mxu0 0.0
  %43 = vmatpush1.msra.mxu0 0.0
  %44 = vmatprep.subr.mxu0 0.0
  %45 = vmatpush1.msra.mxu0 0.0
  %46 = vmatprep.subr.mxu0 0.0
  %47 = vmatpush1.msra.mxu0 0.0
  %48 = vmatprep.subr.mxu0 0.0
  %49 = vmatpush1.msra.mxu0 0.0
  %50 = vmatprep.subr.mxu0 0.0
  %51 = vmatpush1.msra.mxu0 0.0
  %52 = vmatprep.subr.mxu0 0.0
  %53 = vmatpush1.msra.mxu0 0.0
  %54 = vmatprep.subr.mxu0 0.0
  %55 = vmatpush1.msra.mxu0 0.0
  %56 = vmatprep.subr.mxu0 0.0
  %57 = vmatpush1.msra.mxu0 0.0
  %58 = vmatprep.subr.mxu0 0.0
  %59 = vmatpush1.msra.mxu0 0.0
  %60 = vmatprep.subr.mxu0 0.0
  %61 = vmatpush1.msra.mxu0 0.0
  %62 = vmatprep.subr.mxu0 0.0
  %63 = vmatpush1.msra.mxu0 0.0
  %64 = vmatprep.subr.mxu0 0.0
  %65 = vmatpush1.msra.mxu0 0.0
  %66 = vmatprep.subr.mxu0 0.0
  %67 = vmatpush1.msra.mxu0 0.0
  %68 = vmatprep.subr.mxu0 0.0
  %69 = vmatpush1.msra.mxu0 0.0
  %70 = vmatprep.subr.mxu0 0.0
  %71 = vmatpush1.msra.mxu0 0.0
  %72 = vmatprep.subr.mxu0 0.0
  %73 = vmatpush1.msra.mxu0 0.0
  %74 = vmatprep.subr.mxu0 0.0
  %75 = vmatpush1.msra.mxu0 0.0
  %76 = vmatprep.subr.mxu0 0.0
  %77 = vmatpush1.msra.mxu0 0.0
  %78 = vmatprep.subr.mxu0 0.0
  %79 = vmatpush1.msra.mxu0 0.0
  %80 = vmatprep.subr.mxu0 0.0
  %81 = vmatpush1.msra.mxu0 0.0
  %82 = vmatprep.subr.mxu0 0.0
  %83 = vmatpush1.msra.mxu0 0.0
  %84 = vmatprep.subr.mxu0 0.0
  %85 = vmatpush1.msra.mxu0 0.0
  %86 = vmatprep.subr.mxu0 0.0
  %87 = vmatpush1.msra.mxu0 0.0
  %88 = vmatprep.mubr.f32.mxu0 0.0
  %89 = vmatmul.mubr.f32.gmra.mrb[0].mxu0 %v18
  %v90 = vpop.f32.mrb[0].mxu0
  %v91 = vadd.f32 0.0, %v90
  %v92 = vpop.f32.mrb[0].mxu0
  %93 = vdwg.mxu0
  %v94 = vld [vmem:[%s2] sm:$0xff]
  %v95 = vld [vmem:[%s2 + $0x8] sm:$0xff]
  %vm96 = vcmask 130048
  %v98 = vsel %vm96, %v91, 0
  %100 = vmatprep.subr.mxu0 0.0
  %101 = vmatpush1.msra.mxu0 %v94
  %102 = vmatprep.subr.mxu0 0.0
  %103 = vmatpush1.msra.mxu0 %v95
  %104 = vmatprep.subr.mxu0 0.0
  %105 = vmatpush1.msra.mxu0 0.0
  %106 = vmatprep.subr.mxu0 0.0
  %107 = vmatpush1.msra.mxu0 0.0
  %108 = vmatprep.subr.mxu0 0.0
  %109 = vmatpush1.msra.mxu0 0.0
  %110 = vmatprep.subr.mxu0 0.0
  %111 = vmatpush1.msra.mxu0 0.0
  %112 = vmatprep.subr.mxu0 0.0
  %113 = vmatpush1.msra.mxu0 0.0
  %114 = vmatprep.subr.mxu0 0.0
  %115 = vmatpush1.msra.mxu0 0.0
  %116 = vmatprep.subr.mxu0 0.0
  %117 = vmatpush1.msra.mxu0 0.0
  %118 = vmatprep.subr.mxu0 0.0
  %119 = vmatpush1.msra.mxu0 0.0
  %120 = vmatprep.subr.mxu0 0.0
  %121 = vmatpush1.msra.mxu0 0.0
  %122 = vmatprep.subr.mxu0 0.0
  %123 = vmatpush1.msra.mxu0 0.0
  %124 = vmatprep.subr.mxu0 0.0
  %125 = vmatpush1.msra.mxu0 0.0
  %126 = vmatprep.subr.mxu0 0.0
  %127 = vmatpush1.msra.mxu0 0.0
  %128 = vmatprep.subr.mxu0 0.0
  %129 = vmatpush1.msra.mxu0 0.0
  %130 = vmatprep.subr.mxu0 0.0
  %131 = vmatpush1.msra.mxu0 0.0
  %132 = vmatprep.subr.mxu0 0.0
  %133 = vmatpush1.msra.mxu0 0.0
  %134 = vmatprep.subr.mxu0 0.0
  %135 = vmatpush1.msra.mxu0 0.0
  %136 = vmatprep.subr.mxu0 0.0
  %137 = vmatpush1.msra.mxu0 0.0
  %138 = vmatprep.subr.mxu0 0.0
  %139 = vmatpush1.msra.mxu0 0.0
  %140 = vmatprep.subr.mxu0 0.0
  %141 = vmatpush1.msra.mxu0 0.0
  %142 = vmatprep.subr.mxu0 0.0
  %143 = vmatpush1.msra.mxu0 0.0
  %144 = vmatprep.subr.mxu0 0.0
  %145 = vmatpush1.msra.mxu0 0.0
  %146 = vmatprep.subr.mxu0 0.0
  %147 = vmatpush1.msra.mxu0 0.0
  %148 = vmatprep.subr.mxu0 0.0
  %149 = vmatpush1.msra.mxu0 0.0
  %150 = vmatprep.subr.mxu0 0.0
  %151 = vmatpush1.msra.mxu0 0.0
  %152 = vmatprep.subr.mxu0 0.0
  %153 = vmatpush1.msra.mxu0 0.0
  %154 = vmatprep.subr.mxu0 0.0
  %155 = vmatpush1.msra.mxu0 0.0
  %156 = vmatprep.subr.mxu0 0.0
  %157 = vmatpush1.msra.mxu0 0.0
  %158 = vmatprep.subr.mxu0 0.0
  %159 = vmatpush1.msra.mxu0 0.0
  %160 = vmatprep.subr.mxu0 0.0
  %161 = vmatpush1.msra.mxu0 0.0
  %162 = vmatprep.subr.mxu0 0.0
  %163 = vmatpush1.msra.mxu0 0.0
  %164 = vmatprep.mubr.f32.mxu0 0.0
  %165 = vmatmul.mubr.f32.gmra.mrb[0].mxu0 %v98
  %v166 = vpop.f32.mrb[0].mxu0
  %v167 = vadd.f32 0.0, %v166
  %v168 = vpop.f32.mrb[0].mxu0
  %169 = vdwg.mxu0
  %vm170 = vcmask 523264
  %171 = vst.msk [vmem:[%s3] sm:$0xff] %vm170, %v167
  %v172 = vld [vmem:[%s1] sm:$0xff]
  %s173 = scalar_lea.vmem %s0, 4
  %v174 = vld [vmem:[%s173] sm:$0xf]
  %v176 = vsel %vm16, %v172, 0
  %v179 = vsel %vm20, %v174, 0
  %181 = vmatprep.subr.mxu0 0.0
  %182 = vmatpush1.msra.mxu0 %v179
  %183 = vmatprep.subr.mxu0 0.0
  %184 = vmatpush1.msra.mxu0 0.0
  %185 = vmatprep.subr.mxu0 0.0
  %186 = vmatpush1.msra.mxu0 0.0
  %187 = vmatprep.subr.mxu0 0.0
  %188 = vmatpush1.msra.mxu0 0.0
  %189 = vmatprep.subr.mxu0 0.0
  %190 = vmatpush1.msra.mxu0 0.0
  %191 = vmatprep.subr.mxu0 0.0
  %192 = vmatpush1.msra.mxu0 0.0
  %193 = vmatprep.subr.mxu0 0.0
  %194 = vmatpush1.msra.mxu0 0.0
  %195 = vmatprep.subr.mxu0 0.0
  %196 = vmatpush1.msra.mxu0 0.0
  %197 = vmatprep.subr.mxu0 0.0
  %198 = vmatpush1.msra.mxu0 0.0
  %199 = vmatprep.subr.mxu0 0.0
  %200 = vmatpush1.msra.mxu0 0.0
  %201 = vmatprep.subr.mxu0 0.0
  %202 = vmatpush1.msra.mxu0 0.0
  %203 = vmatprep.subr.mxu0 0.0
  %204 = vmatpush1.msra.mxu0 0.0
  %205 = vmatprep.subr.mxu0 0.0
  %206 = vmatpush1.msra.mxu0 0.0
  %207 = vmatprep.subr.mxu0 0.0
  %208 = vmatpush1.msra.mxu0 0.0
  %209 = vmatprep.subr.mxu0 0.0
  %210 = vmatpush1.msra.mxu0 0.0
  %211 = vmatprep.subr.mxu0 0.0
  %212 = vmatpush1.msra.mxu0 0.0
  %213 = vmatprep.subr.mxu0 0.0
  %214 = vmatpush1.msra.mxu0 0.0
  %215 = vmatprep.subr.mxu0 0.0
  %216 = vmatpush1.msra.mxu0 0.0
  %217 = vmatprep.subr.mxu0 0.0
  %218 = vmatpush1.msra.mxu0 0.0
  %219 = vmatprep.subr.mxu0 0.0
  %220 = vmatpush1.msra.mxu0 0.0
  %221 = vmatprep.subr.mxu0 0.0
  %222 = vmatpush1.msra.mxu0 0.0
  %223 = vmatprep.subr.mxu0 0.0
  %224 = vmatpush1.msra.mxu0 0.0
  %225 = vmatprep.subr.mxu0 0.0
  %226 = vmatpush1.msra.mxu0 0.0
  %227 = vmatprep.subr.mxu0 0.0
  %228 = vmatpush1.msra.mxu0 0.0
  %229 = vmatprep.subr.mxu0 0.0
  %230 = vmatpush1.msra.mxu0 0.0
  %231 = vmatprep.subr.mxu0 0.0
  %232 = vmatpush1.msra.mxu0 0.0
  %233 = vmatprep.subr.mxu0 0.0
  %234 = vmatpush1.msra.mxu0 0.0
  %235 = vmatprep.subr.mxu0 0.0
  %236 = vmatpush1.msra.mxu0 0.0
  %237 = vmatprep.subr.mxu0 0.0
  %238 = vmatpush1.msra.mxu0 0.0
  %239 = vmatprep.subr.mxu0 0.0
  %240 = vmatpush1.msra.mxu0 0.0
  %241 = vmatprep.subr.mxu0 0.0
  %242 = vmatpush1.msra.mxu0 0.0
  %243 = vmatprep.subr.mxu0 0.0
  %244 = vmatpush1.msra.mxu0 0.0
  %245 = vmatprep.mubr.f32.mxu0 0.0
  %246 = vmatmul.mubr.f32.gmra.mrb[0].mxu0 %v176
  %v247 = vpop.f32.mrb[0].mxu0
  %v248 = vadd.f32 0.0, %v247
  %v249 = vpop.f32.mrb[0].mxu0
  %250 = vdwg.mxu0
  %v251 = vld [vmem:[%s2] sm:$0xff]
  %v252 = vld [vmem:[%s2 + $0x8] sm:$0xff]
  %v254 = vsel %vm96, %v248, 0
  %256 = vmatprep.subr.mxu0 0.0
  %257 = vmatpush1.msra.mxu0 %v251
  %258 = vmatprep.subr.mxu0 0.0
  %259 = vmatpush1.msra.mxu0 %v252
  %260 = vmatprep.subr.mxu0 0.0
  %261 = vmatpush1.msra.mxu0 0.0
  %262 = vmatprep.subr.mxu0 0.0
  %263 = vmatpush1.msra.mxu0 0.0
  %264 = vmatprep.subr.mxu0 0.0
  %265 = vmatpush1.msra.mxu0 0.0
  %266 = vmatprep.subr.mxu0 0.0
  %267 = vmatpush1.msra.mxu0 0.0
  %268 = vmatprep.subr.mxu0 0.0
  %269 = vmatpush1.msra.mxu0 0.0
  %270 = vmatprep.subr.mxu0 0.0
  %271 = vmatpush1.msra.mxu0 0.0
  %272 = vmatprep.subr.mxu0 0.0
  %273 = vmatpush1.msra.mxu0 0.0
  %274 = vmatprep.subr.mxu0 0.0
  %275 = vmatpush1.msra.mxu0 0.0
  %276 = vmatprep.subr.mxu0 0.0
  %277 = vmatpush1.msra.mxu0 0.0
  %278 = vmatprep.subr.mxu0 0.0
  %279 = vmatpush1.msra.mxu0 0.0
  %280 = vmatprep.subr.mxu0 0.0
  %281 = vmatpush1.msra.mxu0 0.0
  %282 = vmatprep.subr.mxu0 0.0
  %283 = vmatpush1.msra.mxu0 0.0
  %284 = vmatprep.subr.mxu0 0.0
  %285 = vmatpush1.msra.mxu0 0.0
  %286 = vmatprep.subr.mxu0 0.0
  %287 = vmatpush1.msra.mxu0 0.0
  %288 = vmatprep.subr.mxu0 0.0
  %289 = vmatpush1.msra.mxu0 0.0
  %290 = vmatprep.subr.mxu0 0.0
  %291 = vmatpush1.msra.mxu0 0.0
  %292 = vmatprep.subr.mxu0 0.0
  %293 = vmatpush1.msra.mxu0 0.0
  %294 = vmatprep.subr.mxu0 0.0
  %295 = vmatpush1.msra.mxu0 0.0
  %296 = vmatprep.subr.mxu0 0.0
  %297 = vmatpush1.msra.mxu0 0.0
  %298 = vmatprep.subr.mxu0 0.0
  %299 = vmatpush1.msra.mxu0 0.0
  %300 = vmatprep.subr.mxu0 0.0
  %301 = vmatpush1.msra.mxu0 0.0
  %302 = vmatprep.subr.mxu0 0.0
  %303 = vmatpush1.msra.mxu0 0.0
  %304 = vmatprep.subr.mxu0 0.0
  %305 = vmatpush1.msra.mxu0 0.0
  %306 = vmatprep.subr.mxu0 0.0
  %307 = vmatpush1.msra.mxu0 0.0
  %308 = vmatprep.subr.mxu0 0.0
  %309 = vmatpush1.msra.mxu0 0.0
  %310 = vmatprep.subr.mxu0 0.0
  %311 = vmatpush1.msra.mxu0 0.0
  %312 = vmatprep.subr.mxu0 0.0
  %313 = vmatpush1.msra.mxu0 0.0
  %314 = vmatprep.subr.mxu0 0.0
  %315 = vmatpush1.msra.mxu0 0.0
  %316 = vmatprep.subr.mxu0 0.0
  %317 = vmatpush1.msra.mxu0 0.0
  %318 = vmatprep.subr.mxu0 0.0
  %319 = vmatpush1.msra.mxu0 0.0
  %320 = vmatprep.mubr.f32.mxu0 0.0
  %321 = vmatmul.mubr.f32.gmra.mrb[0].mxu0 %v254
  %v322 = vpop.f32.mrb[0].mxu0
  %v323 = vadd.f32 0.0, %v322
  %v324 = vpop.f32.mrb[0].mxu0
  %325 = vdwg.mxu0
  %s326 = scalar_lea.vmem %s3, 8
  %327 = vst.msk [vmem:[%s326] sm:$0xff] %vm170, %v323
  %v328 = vld [vmem:[%s1] sm:$0xff]
  %s329 = scalar_lea.vmem %s0, 8
  %v330 = vld [vmem:[%s329] sm:$0xf]
  %v332 = vsel %vm16, %v328, 0
  %v335 = vsel %vm20, %v330, 0
  %337 = vmatprep.subr.mxu0 0.0
  %338 = vmatpush1.msra.mxu0 %v335
  %339 = vmatprep.subr.mxu0 0.0
  %340 = vmatpush1.msra.mxu0 0.0
  %341 = vmatprep.subr.mxu0 0.0
  %342 = vmatpush1.msra.mxu0 0.0
  %343 = vmatprep.subr.mxu0 0.0
  %344 = vmatpush1.msra.mxu0 0.0
  %345 = vmatprep.subr.mxu0 0.0
  %346 = vmatpush1.msra.mxu0 0.0
  %347 = vmatprep.subr.mxu0 0.0
  %348 = vmatpush1.msra.mxu0 0.0
  %349 = vmatprep.subr.mxu0 0.0
  %350 = vmatpush1.msra.mxu0 0.0
  %351 = vmatprep.subr.mxu0 0.0
  %352 = vmatpush1.msra.mxu0 0.0
  %353 = vmatprep.subr.mxu0 0.0
  %354 = vmatpush1.msra.mxu0 0.0
  %355 = vmatprep.subr.mxu0 0.0
  %356 = vmatpush1.msra.mxu0 0.0
  %357 = vmatprep.subr.mxu0 0.0
  %358 = vmatpush1.msra.mxu0 0.0
  %359 = vmatprep.subr.mxu0 0.0
  %360 = vmatpush1.msra.mxu0 0.0
  %361 = vmatprep.subr.mxu0 0.0
  %362 = vmatpush1.msra.mxu0 0.0
  %363 = vmatprep.subr.mxu0 0.0
  %364 = vmatpush1.msra.mxu0 0.0
  %365 = vmatprep.subr.mxu0 0.0
  %366 = vmatpush1.msra.mxu0 0.0
  %367 = vmatprep.subr.mxu0 0.0
  %368 = vmatpush1.msra.mxu0 0.0
  %369 = vmatprep.subr.mxu0 0.0
  %370 = vmatpush1.msra.mxu0 0.0
  %371 = vmatprep.subr.mxu0 0.0
  %372 = vmatpush1.msra.mxu0 0.0
  %373 = vmatprep.subr.mxu0 0.0
  %374 = vmatpush1.msra.mxu0 0.0
  %375 = vmatprep.subr.mxu0 0.0
  %376 = vmatpush1.msra.mxu0 0.0
  %377 = vmatprep.subr.mxu0 0.0
  %378 = vmatpush1.msra.mxu0 0.0
  %379 = vmatprep.subr.mxu0 0.0
  %380 = vmatpush1.msra.mxu0 0.0
  %381 = vmatprep.subr.mxu0 0.0
  %382 = vmatpush1.msra.mxu0 0.0
  %383 = vmatprep.subr.mxu0 0.0
  %384 = vmatpush1.msra.mxu0 0.0
  %385 = vmatprep.subr.mxu0 0.0
  %386 = vmatpush1.msra.mxu0 0.0
  %387 = vmatprep.subr.mxu0 0.0
  %388 = vmatpush1.msra.mxu0 0.0
  %389 = vmatprep.subr.mxu0 0.0
  %390 = vmatpush1.msra.mxu0 0.0
  %391 = vmatprep.subr.mxu0 0.0
  %392 = vmatpush1.msra.mxu0 0.0
  %393 = vmatprep.subr.mxu0 0.0
  %394 = vmatpush1.msra.mxu0 0.0
  %395 = vmatprep.subr.mxu0 0.0
  %396 = vmatpush1.msra.mxu0 0.0
  %397 = vmatprep.subr.mxu0 0.0
  %398 = vmatpush1.msra.mxu0 0.0
  %399 = vmatprep.subr.mxu0 0.0
  %400 = vmatpush1.msra.mxu0 0.0
  %401 = vmatprep.mubr.f32.mxu0 0.0
  %402 = vmatmul.mubr.f32.gmra.mrb[0].mxu0 %v332
  %v403 = vpop.f32.mrb[0].mxu0
  %v404 = vadd.f32 0.0, %v403
  %v405 = vpop.f32.mrb[0].mxu0
  %406 = vdwg.mxu0
  %v407 = vld [vmem:[%s2] sm:$0xff]
  %v408 = vld [vmem:[%s2 + $0x8] sm:$0xff]
  %v410 = vsel %vm96, %v404, 0
  %412 = vmatprep.subr.mxu0 0.0
  %413 = vmatpush1.msra.mxu0 %v407
  %414 = vmatprep.subr.mxu0 0.0
  %415 = vmatpush1.msra.mxu0 %v408
  %416 = vmatprep.subr.mxu0 0.0
  %417 = vmatpush1.msra.mxu0 0.0
  %418 = vmatprep.subr.mxu0 0.0
  %419 = vmatpush1.msra.mxu0 0.0
  %420 = vmatprep.subr.mxu0 0.0
  %421 = vmatpush1.msra.mxu0 0.0
  %422 = vmatprep.subr.mxu0 0.0
  %423 = vmatpush1.msra.mxu0 0.0
  %424 = vmatprep.subr.mxu0 0.0
  %425 = vmatpush1.msra.mxu0 0.0
  %426 = vmatprep.subr.mxu0 0.0
  %427 = vmatpush1.msra.mxu0 0.0
  %428 = vmatprep.subr.mxu0 0.0
  %429 = vmatpush1.msra.mxu0 0.0
  %430 = vmatprep.subr.mxu0 0.0
  %431 = vmatpush1.msra.mxu0 0.0
  %432 = vmatprep.subr.mxu0 0.0
  %433 = vmatpush1.msra.mxu0 0.0
  %434 = vmatprep.subr.mxu0 0.0
  %435 = vmatpush1.msra.mxu0 0.0
  %436 = vmatprep.subr.mxu0 0.0
  %437 = vmatpush1.msra.mxu0 0.0
  %438 = vmatprep.subr.mxu0 0.0
  %439 = vmatpush1.msra.mxu0 0.0
  %440 = vmatprep.subr.mxu0 0.0
  %441 = vmatpush1.msra.mxu0 0.0
  %442 = vmatprep.subr.mxu0 0.0
  %443 = vmatpush1.msra.mxu0 0.0
  %444 = vmatprep.subr.mxu0 0.0
  %445 = vmatpush1.msra.mxu0 0.0
  %446 = vmatprep.subr.mxu0 0.0
  %447 = vmatpush1.msra.mxu0 0.0
  %448 = vmatprep.subr.mxu0 0.0
  %449 = vmatpush1.msra.mxu0 0.0
  %450 = vmatprep.subr.mxu0 0.0
  %451 = vmatpush1.msra.mxu0 0.0
  %452 = vmatprep.subr.mxu0 0.0
  %453 = vmatpush1.msra.mxu0 0.0
  %454 = vmatprep.subr.mxu0 0.0
  %455 = vmatpush1.msra.mxu0 0.0
  %456 = vmatprep.subr.mxu0 0.0
  %457 = vmatpush1.msra.mxu0 0.0
  %458 = vmatprep.subr.mxu0 0.0
  %459 = vmatpush1.msra.mxu0 0.0
  %460 = vmatprep.subr.mxu0 0.0
  %461 = vmatpush1.msra.mxu0 0.0
  %462 = vmatprep.subr.mxu0 0.0
  %463 = vmatpush1.msra.mxu0 0.0
  %464 = vmatprep.subr.mxu0 0.0
  %465 = vmatpush1.msra.mxu0 0.0
  %466 = vmatprep.subr.mxu0 0.0
  %467 = vmatpush1.msra.mxu0 0.0
  %468 = vmatprep.subr.mxu0 0.0
  %469 = vmatpush1.msra.mxu0 0.0
  %470 = vmatprep.subr.mxu0 0.0
  %471 = vmatpush1.msra.mxu0 0.0
  %472 = vmatprep.subr.mxu0 0.0
  %473 = vmatpush1.msra.mxu0 0.0
  %474 = vmatprep.subr.mxu0 0.0
  %475 = vmatpush1.msra.mxu0 0.0
  %476 = vmatprep.mubr.f32.mxu0 0.0
  %477 = vmatmul.mubr.f32.gmra.mrb[0].mxu0 %v410
  %v478 = vpop.f32.mrb[0].mxu0
  %v479 = vadd.f32 0.0, %v478
  %v480 = vpop.f32.mrb[0].mxu0
  %481 = vdwg.mxu0
  %s482 = scalar_lea.vmem %s3, 16
  %483 = vst.msk [vmem:[%s482] sm:$0xff] %vm170, %v479
  %v484 = vld [vmem:[%s1] sm:$0xff]
  %s485 = scalar_lea.vmem %s0, 12
  %v486 = vld [vmem:[%s485] sm:$0xf]
  %v488 = vsel %vm16, %v484, 0
  %v491 = vsel %vm20, %v486, 0
  %493 = vmatprep.subr.mxu0 0.0
  %494 = vmatpush1.msra.mxu0 %v491
  %495 = vmatprep.subr.mxu0 0.0
  %496 = vmatpush1.msra.mxu0 0.0
  %497 = vmatprep.subr.mxu0 0.0
  %498 = vmatpush1.msra.mxu0 0.0
  %499 = vmatprep.subr.mxu0 0.0
  %500 = vmatpush1.msra.mxu0 0.0
  %501 = vmatprep.subr.mxu0 0.0
  %502 = vmatpush1.msra.mxu0 0.0
  %503 = vmatprep.subr.mxu0 0.0
  %504 = vmatpush1.msra.mxu0 0.0
  %505 = vmatprep.subr.mxu0 0.0
  %506 = vmatpush1.msra.mxu0 0.0
  %507 = vmatprep.subr.mxu0 0.0
  %508 = vmatpush1.msra.mxu0 0.0
  %509 = vmatprep.subr.mxu0 0.0
  %510 = vmatpush1.msra.mxu0 0.0
  %511 = vmatprep.subr.mxu0 0.0
  %512 = vmatpush1.msra.mxu0 0.0
  %513 = vmatprep.subr.mxu0 0.0
  %514 = vmatpush1.msra.mxu0 0.0
  %515 = vmatprep.subr.mxu0 0.0
  %516 = vmatpush1.msra.mxu0 0.0
  %517 = vmatprep.subr.mxu0 0.0
  %518 = vmatpush1.msra.mxu0 0.0
  %519 = vmatprep.subr.mxu0 0.0
  %520 = vmatpush1.msra.mxu0 0.0
  %521 = vmatprep.subr.mxu0 0.0
  %522 = vmatpush1.msra.mxu0 0.0
  %523 = vmatprep.subr.mxu0 0.0
  %524 = vmatpush1.msra.mxu0 0.0
  %525 = vmatprep.subr.mxu0 0.0
  %526 = vmatpush1.msra.mxu0 0.0
  %527 = vmatprep.subr.mxu0 0.0
  %528 = vmatpush1.msra.mxu0 0.0
  %529 = vmatprep.subr.mxu0 0.0
  %530 = vmatpush1.msra.mxu0 0.0
  %531 = vmatprep.subr.mxu0 0.0
  %532 = vmatpush1.msra.mxu0 0.0
  %533 = vmatprep.subr.mxu0 0.0
  %534 = vmatpush1.msra.mxu0 0.0
  %535 = vmatprep.subr.mxu0 0.0
  %536 = vmatpush1.msra.mxu0 0.0
  %537 = vmatprep.subr.mxu0 0.0
  %538 = vmatpush1.msra.mxu0 0.0
  %539 = vmatprep.subr.mxu0 0.0
  %540 = vmatpush1.msra.mxu0 0.0
  %541 = vmatprep.subr.mxu0 0.0
  %542 = vmatpush1.msra.mxu0 0.0
  %543 = vmatprep.subr.mxu0 0.0
  %544 = vmatpush1.msra.mxu0 0.0
  %545 = vmatprep.subr.mxu0 0.0
  %546 = vmatpush1.msra.mxu0 0.0
  %547 = vmatprep.subr.mxu0 0.0
  %548 = vmatpush1.msra.mxu0 0.0
  %549 = vmatprep.subr.mxu0 0.0
  %550 = vmatpush1.msra.mxu0 0.0
  %551 = vmatprep.subr.mxu0 0.0
  %552 = vmatpush1.msra.mxu0 0.0
  %553 = vmatprep.subr.mxu0 0.0
  %554 = vmatpush1.msra.mxu0 0.0
  %555 = vmatprep.subr.mxu0 0.0
  %556 = vmatpush1.msra.mxu0 0.0
  %557 = vmatprep.mubr.f32.mxu0 0.0
  %558 = vmatmul.mubr.f32.gmra.mrb[0].mxu0 %v488
  %v559 = vpop.f32.mrb[0].mxu0
  %v560 = vadd.f32 0.0, %v559
  %v561 = vpop.f32.mrb[0].mxu0
  %562 = vdwg.mxu0
  %v563 = vld [vmem:[%s2] sm:$0xff]
  %v564 = vld [vmem:[%s2 + $0x8] sm:$0xff]
  %v566 = vsel %vm96, %v560, 0
  %568 = vmatprep.subr.mxu0 0.0
  %569 = vmatpush1.msra.mxu0 %v563
  %570 = vmatprep.subr.mxu0 0.0
  %571 = vmatpush1.msra.mxu0 %v564
  %572 = vmatprep.subr.mxu0 0.0
  %573 = vmatpush1.msra.mxu0 0.0
  %574 = vmatprep.subr.mxu0 0.0
  %575 = vmatpush1.msra.mxu0 0.0
  %576 = vmatprep.subr.mxu0 0.0
  %577 = vmatpush1.msra.mxu0 0.0
  %578 = vmatprep.subr.mxu0 0.0
  %579 = vmatpush1.msra.mxu0 0.0
  %580 = vmatprep.subr.mxu0 0.0
  %581 = vmatpush1.msra.mxu0 0.0
  %582 = vmatprep.subr.mxu0 0.0
  %583 = vmatpush1.msra.mxu0 0.0
  %584 = vmatprep.subr.mxu0 0.0
  %585 = vmatpush1.msra.mxu0 0.0
  %586 = vmatprep.subr.mxu0 0.0
  %587 = vmatpush1.msra.mxu0 0.0
  %588 = vmatprep.subr.mxu0 0.0
  %589 = vmatpush1.msra.mxu0 0.0
  %590 = vmatprep.subr.mxu0 0.0
  %591 = vmatpush1.msra.mxu0 0.0
  %592 = vmatprep.subr.mxu0 0.0
  %593 = vmatpush1.msra.mxu0 0.0
  %594 = vmatprep.subr.mxu0 0.0
  %595 = vmatpush1.msra.mxu0 0.0
  %596 = vmatprep.subr.mxu0 0.0
  %597 = vmatpush1.msra.mxu0 0.0
  %598 = vmatprep.subr.mxu0 0.0
  %599 = vmatpush1.msra.mxu0 0.0
  %600 = vmatprep.subr.mxu0 0.0
  %601 = vmatpush1.msra.mxu0 0.0
  %602 = vmatprep.subr.mxu0 0.0
  %603 = vmatpush1.msra.mxu0 0.0
  %604 = vmatprep.subr.mxu0 0.0
  %605 = vmatpush1.msra.mxu0 0.0
  %606 = vmatprep.subr.mxu0 0.0
  %607 = vmatpush1.msra.mxu0 0.0
  %608 = vmatprep.subr.mxu0 0.0
  %609 = vmatpush1.msra.mxu0 0.0
  %610 = vmatprep.subr.mxu0 0.0
  %611 = vmatpush1.msra.mxu0 0.0
  %612 = vmatprep.subr.mxu0 0.0
  %613 = vmatpush1.msra.mxu0 0.0
  %614 = vmatprep.subr.mxu0 0.0
  %615 = vmatpush1.msra.mxu0 0.0
  %616 = vmatprep.subr.mxu0 0.0
  %617 = vmatpush1.msra.mxu0 0.0
  %618 = vmatprep.subr.mxu0 0.0
  %619 = vmatpush1.msra.mxu0 0.0
  %620 = vmatprep.subr.mxu0 0.0
  %621 = vmatpush1.msra.mxu0 0.0
  %622 = vmatprep.subr.mxu0 0.0
  %623 = vmatpush1.msra.mxu0 0.0
  %624 = vmatprep.subr.mxu0 0.0
  %625 = vmatpush1.msra.mxu0 0.0
  %626 = vmatprep.subr.mxu0 0.0
  %627 = vmatpush1.msra.mxu0 0.0
  %628 = vmatprep.subr.mxu0 0.0
  %629 = vmatpush1.msra.mxu0 0.0
  %630 = vmatprep.subr.mxu0 0.0
  %631 = vmatpush1.msra.mxu0 0.0
  %632 = vmatprep.mubr.f32.mxu0 0.0
  %633 = vmatmul.mubr.f32.gmra.mrb[0].mxu0 %v566
  %v634 = vpop.f32.mrb[0].mxu0
  %v635 = vadd.f32 0.0, %v634
  %v636 = vpop.f32.mrb[0].mxu0
  %637 = vdwg.mxu0
  %s638 = scalar_lea.vmem %s3, 24
  %639 = vst.msk [vmem:[%s638] sm:$0xff] %vm170, %v635
  %v640 = vld [vmem:[%s1] sm:$0xff]
  %s641 = scalar_lea.vmem %s0, 16
  %v642 = vld [vmem:[%s641] sm:$0xf]
  %v644 = vsel %vm16, %v640, 0
  %v647 = vsel %vm20, %v642, 0
  %649 = vmatprep.subr.mxu0 0.0
  %650 = vmatpush1.msra.mxu0 %v647
  %651 = vmatprep.subr.mxu0 0.0
  %652 = vmatpush1.msra.mxu0 0.0
  %653 = vmatprep.subr.mxu0 0.0
  %654 = vmatpush1.msra.mxu0 0.0
  %655 = vmatprep.subr.mxu0 0.0
  %656 = vmatpush1.msra.mxu0 0.0
  %657 = vmatprep.subr.mxu0 0.0
  %658 = vmatpush1.msra.mxu0 0.0
  %659 = vmatprep.subr.mxu0 0.0
  %660 = vmatpush1.msra.mxu0 0.0
  %661 = vmatprep.subr.mxu0 0.0
  %662 = vmatpush1.msra.mxu0 0.0
  %663 = vmatprep.subr.mxu0 0.0
  %664 = vmatpush1.msra.mxu0 0.0
  %665 = vmatprep.subr.mxu0 0.0
  %666 = vmatpush1.msra.mxu0 0.0
  %667 = vmatprep.subr.mxu0 0.0
  %668 = vmatpush1.msra.mxu0 0.0
  %669 = vmatprep.subr.mxu0 0.0
  %670 = vmatpush1.msra.mxu0 0.0
  %671 = vmatprep.subr.mxu0 0.0
  %672 = vmatpush1.msra.mxu0 0.0
  %673 = vmatprep.subr.mxu0 0.0
  %674 = vmatpush1.msra.mxu0 0.0
  %675 = vmatprep.subr.mxu0 0.0
  %676 = vmatpush1.msra.mxu0 0.0
  %677 = vmatprep.subr.mxu0 0.0
  %678 = vmatpush1.msra.mxu0 0.0
  %679 = vmatprep.subr.mxu0 0.0
  %680 = vmatpush1.msra.mxu0 0.0
  %681 = vmatprep.subr.mxu0 0.0
  %682 = vmatpush1.msra.mxu0 0.0
  %683 = vmatprep.subr.mxu0 0.0
  %684 = vmatpush1.msra.mxu0 0.0
  %685 = vmatprep.subr.mxu0 0.0
  %686 = vmatpush1.msra.mxu0 0.0
  %687 = vmatprep.subr.mxu0 0.0
  %688 = vmatpush1.msra.mxu0 0.0
  %689 = vmatprep.subr.mxu0 0.0
  %690 = vmatpush1.msra.mxu0 0.0
  %691 = vmatprep.subr.mxu0 0.0
  %692 = vmatpush1.msra.mxu0 0.0
  %693 = vmatprep.subr.mxu0 0.0
  %694 = vmatpush1.msra.mxu0 0.0
  %695 = vmatprep.subr.mxu0 0.0
  %696 = vmatpush1.msra.mxu0 0.0
  %697 = vmatprep.subr.mxu0 0.0
  %698 = vmatpush1.msra.mxu0 0.0
  %699 = vmatprep.subr.mxu0 0.0
  %700 = vmatpush1.msra.mxu0 0.0
  %701 = vmatprep.subr.mxu0 0.0
  %702 = vmatpush1.msra.mxu0 0.0
  %703 = vmatprep.subr.mxu0 0.0
  %704 = vmatpush1.msra.mxu0 0.0
  %705 = vmatprep.subr.mxu0 0.0
  %706 = vmatpush1.msra.mxu0 0.0
  %707 = vmatprep.subr.mxu0 0.0
  %708 = vmatpush1.msra.mxu0 0.0
  %709 = vmatprep.subr.mxu0 0.0
  %710 = vmatpush1.msra.mxu0 0.0
  %711 = vmatprep.subr.mxu0 0.0
  %712 = vmatpush1.msra.mxu0 0.0
  %713 = vmatprep.mubr.f32.mxu0 0.0
  %714 = vmatmul.mubr.f32.gmra.mrb[0].mxu0 %v644
  %v715 = vpop.f32.mrb[0].mxu0
  %v716 = vadd.f32 0.0, %v715
  %v717 = vpop.f32.mrb[0].mxu0
  %718 = vdwg.mxu0
  %v719 = vld [vmem:[%s2] sm:$0xff]
  %v720 = vld [vmem:[%s2 + $0x8] sm:$0xff]
  %v722 = vsel %vm96, %v716, 0
  %724 = vmatprep.subr.mxu0 0.0
  %725 = vmatpush1.msra.mxu0 %v719
  %726 = vmatprep.subr.mxu0 0.0
  %727 = vmatpush1.msra.mxu0 %v720
  %728 = vmatprep.subr.mxu0 0.0
  %729 = vmatpush1.msra.mxu0 0.0
  %730 = vmatprep.subr.mxu0 0.0
  %731 = vmatpush1.msra.mxu0 0.0
  %732 = vmatprep.subr.mxu0 0.0
  %733 = vmatpush1.msra.mxu0 0.0
  %734 = vmatprep.subr.mxu0 0.0
  %735 = vmatpush1.msra.mxu0 0.0
  %736 = vmatprep.subr.mxu0 0.0
  %737 = vmatpush1.msra.mxu0 0.0
  %738 = vmatprep.subr.mxu0 0.0
  %739 = vmatpush1.msra.mxu0 0.0
  %740 = vmatprep.subr.mxu0 0.0
  %741 = vmatpush1.msra.mxu0 0.0
  %742 = vmatprep.subr.mxu0 0.0
  %743 = vmatpush1.msra.mxu0 0.0
  %744 = vmatprep.subr.mxu0 0.0
  %745 = vmatpush1.msra.mxu0 0.0
  %746 = vmatprep.subr.mxu0 0.0
  %747 = vmatpush1.msra.mxu0 0.0
  %748 = vmatprep.subr.mxu0 0.0
  %749 = vmatpush1.msra.mxu0 0.0
  %750 = vmatprep.subr.mxu0 0.0
  %751 = vmatpush1.msra.mxu0 0.0
  %752 = vmatprep.subr.mxu0 0.0
  %753 = vmatpush1.msra.mxu0 0.0
  %754 = vmatprep.subr.mxu0 0.0
  %755 = vmatpush1.msra.mxu0 0.0
  %756 = vmatprep.subr.mxu0 0.0
  %757 = vmatpush1.msra.mxu0 0.0
  %758 = vmatprep.subr.mxu0 0.0
  %759 = vmatpush1.msra.mxu0 0.0
  %760 = vmatprep.subr.mxu0 0.0
  %761 = vmatpush1.msra.mxu0 0.0
  %762 = vmatprep.subr.mxu0 0.0
  %763 = vmatpush1.msra.mxu0 0.0
  %764 = vmatprep.subr.mxu0 0.0
  %765 = vmatpush1.msra.mxu0 0.0
  %766 = vmatprep.subr.mxu0 0.0
  %767 = vmatpush1.msra.mxu0 0.0
  %768 = vmatprep.subr.mxu0 0.0
  %769 = vmatpush1.msra.mxu0 0.0
  %770 = vmatprep.subr.mxu0 0.0
  %771 = vmatpush1.msra.mxu0 0.0
  %772 = vmatprep.subr.mxu0 0.0
  %773 = vmatpush1.msra.mxu0 0.0
  %774 = vmatprep.subr.mxu0 0.0
  %775 = vmatpush1.msra.mxu0 0.0
  %776 = vmatprep.subr.mxu0 0.0
  %777 = vmatpush1.msra.mxu0 0.0
  %778 = vmatprep.subr.mxu0 0.0
  %779 = vmatpush1.msra.mxu0 0.0
  %780 = vmatprep.subr.mxu0 0.0
  %781 = vmatpush1.msra.mxu0 0.0
  %782 = vmatprep.subr.mxu0 0.0
  %783 = vmatpush1.msra.mxu0 0.0
  %784 = vmatprep.subr.mxu0 0.0
  %785 = vmatpush1.msra.mxu0 0.0
  %786 = vmatprep.subr.mxu0 0.0
  %787 = vmatpush1.msra.mxu0 0.0
  %788 = vmatprep.mubr.f32.mxu0 0.0
  %789 = vmatmul.mubr.f32.gmra.mrb[0].mxu0 %v722
  %v790 = vpop.f32.mrb[0].mxu0
  %v791 = vadd.f32 0.0, %v790
  %v792 = vpop.f32.mrb[0].mxu0
  %793 = vdwg.mxu0
  %s794 = scalar_lea.vmem %s3, 32
  %795 = vst.msk [vmem:[%s794] sm:$0xff] %vm170, %v791
  %v796 = vld [vmem:[%s1] sm:$0xff]
  %s797 = scalar_lea.vmem %s0, 20
  %v798 = vld [vmem:[%s797] sm:$0xf]
  %v800 = vsel %vm16, %v796, 0
  %v803 = vsel %vm20, %v798, 0
  %805 = vmatprep.subr.mxu0 0.0
  %806 = vmatpush1.msra.mxu0 %v803
  %807 = vmatprep.subr.mxu0 0.0
  %808 = vmatpush1.msra.mxu0 0.0
  %809 = vmatprep.subr.mxu0 0.0
  %810 = vmatpush1.msra.mxu0 0.0
  %811 = vmatprep.subr.mxu0 0.0
  %812 = vmatpush1.msra.mxu0 0.0
  %813 = vmatprep.subr.mxu0 0.0
  %814 = vmatpush1.msra.mxu0 0.0
  %815 = vmatprep.subr.mxu0 0.0
  %816 = vmatpush1.msra.mxu0 0.0
  %817 = vmatprep.subr.mxu0 0.0
  %818 = vmatpush1.msra.mxu0 0.0
  %819 = vmatprep.subr.mxu0 0.0
  %820 = vmatpush1.msra.mxu0 0.0
  %821 = vmatprep.subr.mxu0 0.0
  %822 = vmatpush1.msra.mxu0 0.0
  %823 = vmatprep.subr.mxu0 0.0
  %824 = vmatpush1.msra.mxu0 0.0
  %825 = vmatprep.subr.mxu0 0.0
  %826 = vmatpush1.msra.mxu0 0.0
  %827 = vmatprep.subr.mxu0 0.0
  %828 = vmatpush1.msra.mxu0 0.0
  %829 = vmatprep.subr.mxu0 0.0
  %830 = vmatpush1.msra.mxu0 0.0
  %831 = vmatprep.subr.mxu0 0.0
  %832 = vmatpush1.msra.mxu0 0.0
  %833 = vmatprep.subr.mxu0 0.0
  %834 = vmatpush1.msra.mxu0 0.0
  %835 = vmatprep.subr.mxu0 0.0
  %836 = vmatpush1.msra.mxu0 0.0
  %837 = vmatprep.subr.mxu0 0.0
  %838 = vmatpush1.msra.mxu0 0.0
  %839 = vmatprep.subr.mxu0 0.0
  %840 = vmatpush1.msra.mxu0 0.0
  %841 = vmatprep.subr.mxu0 0.0
  %842 = vmatpush1.msra.mxu0 0.0
  %843 = vmatprep.subr.mxu0 0.0
  %844 = vmatpush1.msra.mxu0 0.0
  %845 = vmatprep.subr.mxu0 0.0
  %846 = vmatpush1.msra.mxu0 0.0
  %847 = vmatprep.subr.mxu0 0.0
  %848 = vmatpush1.msra.mxu0 0.0
  %849 = vmatprep.subr.mxu0 0.0
  %850 = vmatpush1.msra.mxu0 0.0
  %851 = vmatprep.subr.mxu0 0.0
  %852 = vmatpush1.msra.mxu0 0.0
  %853 = vmatprep.subr.mxu0 0.0
  %854 = vmatpush1.msra.mxu0 0.0
  %855 = vmatprep.subr.mxu0 0.0
  %856 = vmatpush1.msra.mxu0 0.0
  %857 = vmatprep.subr.mxu0 0.0
  %858 = vmatpush1.msra.mxu0 0.0
  %859 = vmatprep.subr.mxu0 0.0
  %860 = vmatpush1.msra.mxu0 0.0
  %861 = vmatprep.subr.mxu0 0.0
  %862 = vmatpush1.msra.mxu0 0.0
  %863 = vmatprep.subr.mxu0 0.0
  %864 = vmatpush1.msra.mxu0 0.0
  %865 = vmatprep.subr.mxu0 0.0
  %866 = vmatpush1.msra.mxu0 0.0
  %867 = vmatprep.subr.mxu0 0.0
  %868 = vmatpush1.msra.mxu0 0.0
  %869 = vmatprep.mubr.f32.mxu0 0.0
  %870 = vmatmul.mubr.f32.gmra.mrb[0].mxu0 %v800
  %v871 = vpop.f32.mrb[0].mxu0
  %v872 = vadd.f32 0.0, %v871
  %v873 = vpop.f32.mrb[0].mxu0
  %874 = vdwg.mxu0
  %v875 = vld [vmem:[%s2] sm:$0xff]
  %v876 = vld [vmem:[%s2 + $0x8] sm:$0xff]
  %v878 = vsel %vm96, %v872, 0
  %880 = vmatprep.subr.mxu0 0.0
  %881 = vmatpush1.msra.mxu0 %v875
  %882 = vmatprep.subr.mxu0 0.0
  %883 = vmatpush1.msra.mxu0 %v876
  %884 = vmatprep.subr.mxu0 0.0
  %885 = vmatpush1.msra.mxu0 0.0
  %886 = vmatprep.subr.mxu0 0.0
  %887 = vmatpush1.msra.mxu0 0.0
  %888 = vmatprep.subr.mxu0 0.0
  %889 = vmatpush1.msra.mxu0 0.0
  %890 = vmatprep.subr.mxu0 0.0
  %891 = vmatpush1.msra.mxu0 0.0
  %892 = vmatprep.subr.mxu0 0.0
  %893 = vmatpush1.msra.mxu0 0.0
  %894 = vmatprep.subr.mxu0 0.0
  %895 = vmatpush1.msra.mxu0 0.0
  %896 = vmatprep.subr.mxu0 0.0
  %897 = vmatpush1.msra.mxu0 0.0
  %898 = vmatprep.subr.mxu0 0.0
  %899 = vmatpush1.msra.mxu0 0.0
  %900 = vmatprep.subr.mxu0 0.0
  %901 = vmatpush1.msra.mxu0 0.0
  %902 = vmatprep.subr.mxu0 0.0
  %903 = vmatpush1.msra.mxu0 0.0
  %904 = vmatprep.subr.mxu0 0.0
  %905 = vmatpush1.msra.mxu0 0.0
  %906 = vmatprep.subr.mxu0 0.0
  %907 = vmatpush1.msra.mxu0 0.0
  %908 = vmatprep.subr.mxu0 0.0
  %909 = vmatpush1.msra.mxu0 0.0
  %910 = vmatprep.subr.mxu0 0.0
  %911 = vmatpush1.msra.mxu0 0.0
  %912 = vmatprep.subr.mxu0 0.0
  %913 = vmatpush1.msra.mxu0 0.0
  %914 = vmatprep.subr.mxu0 0.0
  %915 = vmatpush1.msra.mxu0 0.0
  %916 = vmatprep.subr.mxu0 0.0
  %917 = vmatpush1.msra.mxu0 0.0
  %918 = vmatprep.subr.mxu0 0.0
  %919 = vmatpush1.msra.mxu0 0.0
  %920 = vmatprep.subr.mxu0 0.0
  %921 = vmatpush1.msra.mxu0 0.0
  %922 = vmatprep.subr.mxu0 0.0
  %923 = vmatpush1.msra.mxu0 0.0
  %924 = vmatprep.subr.mxu0 0.0
  %925 = vmatpush1.msra.mxu0 0.0
  %926 = vmatprep.subr.mxu0 0.0
  %927 = vmatpush1.msra.mxu0 0.0
  %928 = vmatprep.subr.mxu0 0.0
  %929 = vmatpush1.msra.mxu0 0.0
  %930 = vmatprep.subr.mxu0 0.0
  %931 = vmatpush1.msra.mxu0 0.0
  %932 = vmatprep.subr.mxu0 0.0
  %933 = vmatpush1.msra.mxu0 0.0
  %934 = vmatprep.subr.mxu0 0.0
  %935 = vmatpush1.msra.mxu0 0.0
  %936 = vmatprep.subr.mxu0 0.0
  %937 = vmatpush1.msra.mxu0 0.0
  %938 = vmatprep.subr.mxu0 0.0
  %939 = vmatpush1.msra.mxu0 0.0
  %940 = vmatprep.subr.mxu0 0.0
  %941 = vmatpush1.msra.mxu0 0.0
  %942 = vmatprep.subr.mxu0 0.0
  %943 = vmatpush1.msra.mxu0 0.0
  %944 = vmatprep.mubr.f32.mxu0 0.0
  %945 = vmatmul.mubr.f32.gmra.mrb[0].mxu0 %v878
  %v946 = vpop.f32.mrb[0].mxu0
  %v947 = vadd.f32 0.0, %v946
  %v948 = vpop.f32.mrb[0].mxu0
  %949 = vdwg.mxu0
  %s950 = scalar_lea.vmem %s3, 40
  %951 = vst.msk [vmem:[%s950] sm:$0xff] %vm170, %v947
  %v952 = vld [vmem:[%s1] sm:$0xff]
  %s953 = scalar_lea.vmem %s0, 24
  %v954 = vld [vmem:[%s953] sm:$0xf]
  %v956 = vsel %vm16, %v952, 0
  %v959 = vsel %vm20, %v954, 0
  %961 = vmatprep.subr.mxu0 0.0
  %962 = vmatpush1.msra.mxu0 %v959
  %963 = vmatprep.subr.mxu0 0.0
  %964 = vmatpush1.msra.mxu0 0.0
  %965 = vmatprep.subr.mxu0 0.0
  %966 = vmatpush1.msra.mxu0 0.0
  %967 = vmatprep.subr.mxu0 0.0
  %968 = vmatpush1.msra.mxu0 0.0
  %969 = vmatprep.subr.mxu0 0.0
  %970 = vmatpush1.msra.mxu0 0.0
  %971 = vmatprep.subr.mxu0 0.0
  %972 = vmatpush1.msra.mxu0 0.0
  %973 = vmatprep.subr.mxu0 0.0
  %974 = vmatpush1.msra.mxu0 0.0
  %975 = vmatprep.subr.mxu0 0.0
  %976 = vmatpush1.msra.mxu0 0.0
  %977 = vmatprep.subr.mxu0 0.0
  %978 = vmatpush1.msra.mxu0 0.0
  %979 = vmatprep.subr.mxu0 0.0
  %980 = vmatpush1.msra.mxu0 0.0
  %981 = vmatprep.subr.mxu0 0.0
  %982 = vmatpush1.msra.mxu0 0.0
  %983 = vmatprep.subr.mxu0 0.0
  %984 = vmatpush1.msra.mxu0 0.0
  %985 = vmatprep.subr.mxu0 0.0
  %986 = vmatpush1.msra.mxu0 0.0
  %987 = vmatprep.subr.mxu0 0.0
  %988 = vmatpush1.msra.mxu0 0.0
  %989 = vmatprep.subr.mxu0 0.0
  %990 = vmatpush1.msra.mxu0 0.0
  %991 = vmatprep.subr.mxu0 0.0
  %992 = vmatpush1.msra.mxu0 0.0
  %993 = vmatprep.subr.mxu0 0.0
  %994 = vmatpush1.msra.mxu0 0.0
  %995 = vmatprep.subr.mxu0 0.0
  %996 = vmatpush1.msra.mxu0 0.0
  %997 = vmatprep.subr.mxu0 0.0
  %998 = vmatpush1.msra.mxu0 0.0
  %999 = vmatprep.subr.mxu0 0.0
  %1000 = vmatpush1.msra.mxu0 0.0
  %1001 = vmatprep.subr.mxu0 0.0
  %1002 = vmatpush1.msra.mxu0 0.0
  %1003 = vmatprep.subr.mxu0 0.0
  %1004 = vmatpush1.msra.mxu0 0.0
  %1005 = vmatprep.subr.mxu0 0.0
  %1006 = vmatpush1.msra.mxu0 0.0
  %1007 = vmatprep.subr.mxu0 0.0
  %1008 = vmatpush1.msra.mxu0 0.0
  %1009 = vmatprep.subr.mxu0 0.0
  %1010 = vmatpush1.msra.mxu0 0.0
  %1011 = vmatprep.subr.mxu0 0.0
  %1012 = vmatpush1.msra.mxu0 0.0
  %1013 = vmatprep.subr.mxu0 0.0
  %1014 = vmatpush1.msra.mxu0 0.0
  %1015 = vmatprep.subr.mxu0 0.0
  %1016 = vmatpush1.msra.mxu0 0.0
  %1017 = vmatprep.subr.mxu0 0.0
  %1018 = vmatpush1.msra.mxu0 0.0
  %1019 = vmatprep.subr.mxu0 0.0
  %1020 = vmatpush1.msra.mxu0 0.0
  %1021 = vmatprep.subr.mxu0 0.0
  %1022 = vmatpush1.msra.mxu0 0.0
  %1023 = vmatprep.subr.mxu0 0.0
  %1024 = vmatpush1.msra.mxu0 0.0
  %1025 = vmatprep.mubr.f32.mxu0 0.0
  %1026 = vmatmul.mubr.f32.gmra.mrb[0].mxu0 %v956
  %v1027 = vpop.f32.mrb[0].mxu0
  %v1028 = vadd.f32 0.0, %v1027
  %v1029 = vpop.f32.mrb[0].mxu0
  %1030 = vdwg.mxu0
  %v1031 = vld [vmem:[%s2] sm:$0xff]
  %v1032 = vld [vmem:[%s2 + $0x8] sm:$0xff]
  %v1034 = vsel %vm96, %v1028, 0
  %1036 = vmatprep.subr.mxu0 0.0
  %1037 = vmatpush1.msra.mxu0 %v1031
  %1038 = vmatprep.subr.mxu0 0.0
  %1039 = vmatpush1.msra.mxu0 %v1032
  %1040 = vmatprep.subr.mxu0 0.0
  %1041 = vmatpush1.msra.mxu0 0.0
  %1042 = vmatprep.subr.mxu0 0.0
  %1043 = vmatpush1.msra.mxu0 0.0
  %1044 = vmatprep.subr.mxu0 0.0
  %1045 = vmatpush1.msra.mxu0 0.0
  %1046 = vmatprep.subr.mxu0 0.0
  %1047 = vmatpush1.msra.mxu0 0.0
  %1048 = vmatprep.subr.mxu0 0.0
  %1049 = vmatpush1.msra.mxu0 0.0
  %1050 = vmatprep.subr.mxu0 0.0
  %1051 = vmatpush1.msra.mxu0 0.0
  %1052 = vmatprep.subr.mxu0 0.0
  %1053 = vmatpush1.msra.mxu0 0.0
  %1054 = vmatprep.subr.mxu0 0.0
  %1055 = vmatpush1.msra.mxu0 0.0
  %1056 = vmatprep.subr.mxu0 0.0
  %1057 = vmatpush1.msra.mxu0 0.0
  %1058 = vmatprep.subr.mxu0 0.0
  %1059 = vmatpush1.msra.mxu0 0.0
  %1060 = vmatprep.subr.mxu0 0.0
  %1061 = vmatpush1.msra.mxu0 0.0
  %1062 = vmatprep.subr.mxu0 0.0
  %1063 = vmatpush1.msra.mxu0 0.0
  %1064 = vmatprep.subr.mxu0 0.0
  %1065 = vmatpush1.msra.mxu0 0.0
  %1066 = vmatprep.subr.mxu0 0.0
  %1067 = vmatpush1.msra.mxu0 0.0
  %1068 = vmatprep.subr.mxu0 0.0
  %1069 = vmatpush1.msra.mxu0 0.0
  %1070 = vmatprep.subr.mxu0 0.0
  %1071 = vmatpush1.msra.mxu0 0.0
  %1072 = vmatprep.subr.mxu0 0.0
  %1073 = vmatpush1.msra.mxu0 0.0
  %1074 = vmatprep.subr.mxu0 0.0
  %1075 = vmatpush1.msra.mxu0 0.0
  %1076 = vmatprep.subr.mxu0 0.0
  %1077 = vmatpush1.msra.mxu0 0.0
  %1078 = vmatprep.subr.mxu0 0.0
  %1079 = vmatpush1.msra.mxu0 0.0
  %1080 = vmatprep.subr.mxu0 0.0
  %1081 = vmatpush1.msra.mxu0 0.0
  %1082 = vmatprep.subr.mxu0 0.0
  %1083 = vmatpush1.msra.mxu0 0.0
  %1084 = vmatprep.subr.mxu0 0.0
  %1085 = vmatpush1.msra.mxu0 0.0
  %1086 = vmatprep.subr.mxu0 0.0
  %1087 = vmatpush1.msra.mxu0 0.0
  %1088 = vmatprep.subr.mxu0 0.0
  %1089 = vmatpush1.msra.mxu0 0.0
  %1090 = vmatprep.subr.mxu0 0.0
  %1091 = vmatpush1.msra.mxu0 0.0
  %1092 = vmatprep.subr.mxu0 0.0
  %1093 = vmatpush1.msra.mxu0 0.0
  %1094 = vmatprep.subr.mxu0 0.0
  %1095 = vmatpush1.msra.mxu0 0.0
  %1096 = vmatprep.subr.mxu0 0.0
  %1097 = vmatpush1.msra.mxu0 0.0
  %1098 = vmatprep.subr.mxu0 0.0
  %1099 = vmatpush1.msra.mxu0 0.0
  %1100 = vmatprep.mubr.f32.mxu0 0.0
  %1101 = vmatmul.mubr.f32.gmra.mrb[0].mxu0 %v1034
  %v1102 = vpop.f32.mrb[0].mxu0
  %v1103 = vadd.f32 0.0, %v1102
  %v1104 = vpop.f32.mrb[0].mxu0
  %1105 = vdwg.mxu0
  %s1106 = scalar_lea.vmem %s3, 48
  %1107 = vst.msk [vmem:[%s1106] sm:$0xff] %vm170, %v1103
  %v1108 = vld [vmem:[%s1] sm:$0xff]
  %s1109 = scalar_lea.vmem %s0, 28
  %v1110 = vld [vmem:[%s1109] sm:$0xf]
  %v1112 = vsel %vm16, %v1108, 0
  %v1115 = vsel %vm20, %v1110, 0
  %1117 = vmatprep.subr.mxu0 0.0
  %1118 = vmatpush1.msra.mxu0 %v1115
  %1119 = vmatprep.subr.mxu0 0.0
  %1120 = vmatpush1.msra.mxu0 0.0
  %1121 = vmatprep.subr.mxu0 0.0
  %1122 = vmatpush1.msra.mxu0 0.0
  %1123 = vmatprep.subr.mxu0 0.0
  %1124 = vmatpush1.msra.mxu0 0.0
  %1125 = vmatprep.subr.mxu0 0.0
  %1126 = vmatpush1.msra.mxu0 0.0
  %1127 = vmatprep.subr.mxu0 0.0
  %1128 = vmatpush1.msra.mxu0 0.0
  %1129 = vmatprep.subr.mxu0 0.0
  %1130 = vmatpush1.msra.mxu0 0.0
  %1131 = vmatprep.subr.mxu0 0.0
  %1132 = vmatpush1.msra.mxu0 0.0
  %1133 = vmatprep.subr.mxu0 0.0
  %1134 = vmatpush1.msra.mxu0 0.0
  %1135 = vmatprep.subr.mxu0 0.0
  %1136 = vmatpush1.msra.mxu0 0.0
  %1137 = vmatprep.subr.mxu0 0.0
  %1138 = vmatpush1.msra.mxu0 0.0
  %1139 = vmatprep.subr.mxu0 0.0
  %1140 = vmatpush1.msra.mxu0 0.0
  %1141 = vmatprep.subr.mxu0 0.0
  %1142 = vmatpush1.msra.mxu0 0.0
  %1143 = vmatprep.subr.mxu0 0.0
  %1144 = vmatpush1.msra.mxu0 0.0
  %1145 = vmatprep.subr.mxu0 0.0
  %1146 = vmatpush1.msra.mxu0 0.0
  %1147 = vmatprep.subr.mxu0 0.0
  %1148 = vmatpush1.msra.mxu0 0.0
  %1149 = vmatprep.subr.mxu0 0.0
  %1150 = vmatpush1.msra.mxu0 0.0
  %1151 = vmatprep.subr.mxu0 0.0
  %1152 = vmatpush1.msra.mxu0 0.0
  %1153 = vmatprep.subr.mxu0 0.0
  %1154 = vmatpush1.msra.mxu0 0.0
  %1155 = vmatprep.subr.mxu0 0.0
  %1156 = vmatpush1.msra.mxu0 0.0
  %1157 = vmatprep.subr.mxu0 0.0
  %1158 = vmatpush1.msra.mxu0 0.0
  %1159 = vmatprep.subr.mxu0 0.0
  %1160 = vmatpush1.msra.mxu0 0.0
  %1161 = vmatprep.subr.mxu0 0.0
  %1162 = vmatpush1.msra.mxu0 0.0
  %1163 = vmatprep.subr.mxu0 0.0
  %1164 = vmatpush1.msra.mxu0 0.0
  %1165 = vmatprep.subr.mxu0 0.0
  %1166 = vmatpush1.msra.mxu0 0.0
  %1167 = vmatprep.subr.mxu0 0.0
  %1168 = vmatpush1.msra.mxu0 0.0
  %1169 = vmatprep.subr.mxu0 0.0
  %1170 = vmatpush1.msra.mxu0 0.0
  %1171 = vmatprep.subr.mxu0 0.0
  %1172 = vmatpush1.msra.mxu0 0.0
  %1173 = vmatprep.subr.mxu0 0.0
  %1174 = vmatpush1.msra.mxu0 0.0
  %1175 = vmatprep.subr.mxu0 0.0
  %1176 = vmatpush1.msra.mxu0 0.0
  %1177 = vmatprep.subr.mxu0 0.0
  %1178 = vmatpush1.msra.mxu0 0.0
  %1179 = vmatprep.subr.mxu0 0.0
  %1180 = vmatpush1.msra.mxu0 0.0
  %1181 = vmatprep.mubr.f32.mxu0 0.0
  %1182 = vmatmul.mubr.f32.gmra.mrb[0].mxu0 %v1112
  %v1183 = vpop.f32.mrb[0].mxu0
  %v1184 = vadd.f32 0.0, %v1183
  %v1185 = vpop.f32.mrb[0].mxu0
  %1186 = vdwg.mxu0
  %v1187 = vld [vmem:[%s2] sm:$0xff]
  %v1188 = vld [vmem:[%s2 + $0x8] sm:$0xff]
  %v1190 = vsel %vm96, %v1184, 0
  %1192 = vmatprep.subr.mxu0 0.0
  %1193 = vmatpush1.msra.mxu0 %v1187
  %1194 = vmatprep.subr.mxu0 0.0
  %1195 = vmatpush1.msra.mxu0 %v1188
  %1196 = vmatprep.subr.mxu0 0.0
  %1197 = vmatpush1.msra.mxu0 0.0
  %1198 = vmatprep.subr.mxu0 0.0
  %1199 = vmatpush1.msra.mxu0 0.0
  %1200 = vmatprep.subr.mxu0 0.0
  %1201 = vmatpush1.msra.mxu0 0.0
  %1202 = vmatprep.subr.mxu0 0.0
  %1203 = vmatpush1.msra.mxu0 0.0
  %1204 = vmatprep.subr.mxu0 0.0
  %1205 = vmatpush1.msra.mxu0 0.0
  %1206 = vmatprep.subr.mxu0 0.0
  %1207 = vmatpush1.msra.mxu0 0.0
  %1208 = vmatprep.subr.mxu0 0.0
  %1209 = vmatpush1.msra.mxu0 0.0
  %1210 = vmatprep.subr.mxu0 0.0
  %1211 = vmatpush1.msra.mxu0 0.0
  %1212 = vmatprep.subr.mxu0 0.0
  %1213 = vmatpush1.msra.mxu0 0.0
  %1214 = vmatprep.subr.mxu0 0.0
  %1215 = vmatpush1.msra.mxu0 0.0
  %1216 = vmatprep.subr.mxu0 0.0
  %1217 = vmatpush1.msra.mxu0 0.0
  %1218 = vmatprep.subr.mxu0 0.0
  %1219 = vmatpush1.msra.mxu0 0.0
  %1220 = vmatprep.subr.mxu0 0.0
  %1221 = vmatpush1.msra.mxu0 0.0
  %1222 = vmatprep.subr.mxu0 0.0
  %1223 = vmatpush1.msra.mxu0 0.0
  %1224 = vmatprep.subr.mxu0 0.0
  %1225 = vmatpush1.msra.mxu0 0.0
  %1226 = vmatprep.subr.mxu0 0.0
  %1227 = vmatpush1.msra.mxu0 0.0
  %1228 = vmatprep.subr.mxu0 0.0
  %1229 = vmatpush1.msra.mxu0 0.0
  %1230 = vmatprep.subr.mxu0 0.0
  %1231 = vmatpush1.msra.mxu0 0.0
  %1232 = vmatprep.subr.mxu0 0.0
  %1233 = vmatpush1.msra.mxu0 0.0
  %1234 = vmatprep.subr.mxu0 0.0
  %1235 = vmatpush1.msra.mxu0 0.0
  %1236 = vmatprep.subr.mxu0 0.0
  %1237 = vmatpush1.msra.mxu0 0.0
  %1238 = vmatprep.subr.mxu0 0.0
  %1239 = vmatpush1.msra.mxu0 0.0
  %1240 = vmatprep.subr.mxu0 0.0
  %1241 = vmatpush1.msra.mxu0 0.0
  %1242 = vmatprep.subr.mxu0 0.0
  %1243 = vmatpush1.msra.mxu0 0.0
  %1244 = vmatprep.subr.mxu0 0.0
  %1245 = vmatpush1.msra.mxu0 0.0
  %1246 = vmatprep.subr.mxu0 0.0
  %1247 = vmatpush1.msra.mxu0 0.0
  %1248 = vmatprep.subr.mxu0 0.0
  %1249 = vmatpush1.msra.mxu0 0.0
  %1250 = vmatprep.subr.mxu0 0.0
  %1251 = vmatpush1.msra.mxu0 0.0
  %1252 = vmatprep.subr.mxu0 0.0
  %1253 = vmatpush1.msra.mxu0 0.0
  %1254 = vmatprep.subr.mxu0 0.0
  %1255 = vmatpush1.msra.mxu0 0.0
  %1256 = vmatprep.mubr.f32.mxu0 0.0
  %1257 = vmatmul.mubr.f32.gmra.mrb[0].mxu0 %v1190
  %v1258 = vpop.f32.mrb[0].mxu0
  %v1259 = vadd.f32 0.0, %v1258
  %v1260 = vpop.f32.mrb[0].mxu0
  %1261 = vdwg.mxu0
  %s1262 = scalar_lea.vmem %s3, 56
  %1263 = vst.msk [vmem:[%s1262] sm:$0xff] %vm170, %v1259
  // Predicated region
  $region14: #{up_forward.5} parent=0 // pred_check
    _
  $region15: #{up_forward.5} parent=0 // pred_check_branch
    %1265 = sbr.rel (0) target = $region17
  $region16: #{up_forward.5} parent=0 // pred_region
    _
  $region17: #{up_forward.5} parent=0 // pred_fallthru
    _
  // Predicated region
  $region18: #{up_forward.5} parent=0 // pred_check
    _
  $region19: #{up_forward.5} parent=0 // pred_check_branch
    %1267 = sbr.rel (0) target = $region21
  $region20: #{up_forward.5} parent=0 // pred_region
    _
  $region21: #{up_forward.5} parent=0 // pred_fallthru
    _

// kernel: up_forward.7
$region0: #{up_forward.7}
  #allocation0 [shape = 'u32[]', space=smem, size = 0x4, offset = 0x4, fixed_abs, tag = 'smem constant byte address 0x4 - core index']
  #allocation1 [shape = 'u32[144,128]{1,0:T(1,128)}', space=vmem, size = 0x12000, scoped, tag = 'internal scratch']
  %s0 = inlined_call_operand.vmem [shape: f32[2048,8], index: 0, kind: input, shape index: {}]
  %s1 = inlined_call_operand.vmem [shape: f32[2048,1], index: 1, kind: input, shape index: {}]
  %s2 = inlined_call_operand.vmem [shape: f32[1,8], index: 2, kind: input, shape index: {}]
  %s3 = inlined_call_operand.vmem [shape: f32[1,8], index: 3, kind: input, shape index: {}]
  %s4 = inlined_call_operand.vmem [shape: f32[2048,8], index: 4, kind: output, shape index: {}]
  %s5 = sld [smem:[#allocation0]]
  $region49: #{up_forward.7} parent=0
    _
  %s7 = ssub.s32 1, %s5
  %s8 = scalar_select 0, %s7, %s5
  loop: start=0, step=1, limit=4
  $region2: #{up_forward.7} parent=0 // loop_pre_header
    _
  $region3: #{up_forward.7} parent=0 // loop_header
    %s10 = sphi 0, %s14
    %p11 = scmp.ge.s32.totalorder %s10, 4
    %s20 = sphi 0, %s22
    %s23 = sphi 0, %s20
    %s24 = sphi 0, %s23
    %s40 = sphi 0, %s24
    %s46 = sphi 0, %s48
    %s49 = sphi 0, %s46
    %s50 = sphi 0, %s49
    %s66 = sphi 0, %s50
    %s70 = sphi 0, %s70
    %s72 = sphi 0, %s70
    %s73 = sphi 0, %s72
    %s87 = sphi 0, %s73
    %s91 = sphi 0, %s91
    %s93 = sphi 0, %s91
    %s94 = sphi 0, %s93
    %s108 = sphi 0, %s94
    %s114 = sphi 0, %s116
    %s117 = sphi 0, %s114
    %s118 = sphi 0, %s117
    %s134 = sphi 0, %s118
  $region4: #{up_forward.7} parent=0 // loop_header_branch
    %13 = sbr.rel (%p11) target = $region8
  $region5: #{up_forward.7} parent=0 // loop_body
    %s15 = ssub.s32 %s10, 1
    %s16 = ssub.s32 %s10, 2
    %s17 = sadd.s32 %s10, 1
    %s18 = ssub.s32 %s10, %s17
    %p19 = scmp.eq.s32.totalorder %s18, 0
    %s21 = sadd.s32 %s20, 1
    %s22 = scalar_select %p19, %s20, %s21
    %p25 = pneg %p19
    %p26 = scmp.eq.s32.totalorder %s10, 1
    %p27 = por %p25, %p26
    %p28 = scmp.ne.s32.totalorder %s20, %s23
    %p29 = scmp.eq.s32.totalorder %s10, 0
    %p30 = por %p28, %p29
    %p31 = scmp.ne.s32.totalorder %s20, %s23
    %p32 = scmp.eq.s32.totalorder %s15, 1
    %p33 = por %p31, %p32
    %p34 = scmp.ne.s32.totalorder %s23, %s24
    %p35 = scmp.eq.s32.totalorder %s15, 0
    %p36 = por %p34, %p35
    %p37 = scmp.ne.s32.totalorder %s23, %s24
    %p38 = scmp.eq.s32.totalorder %s16, 1
    %p39 = por %p37, %p38
    %p41 = scmp.ne.s32.totalorder %s24, %s40
    %p42 = scmp.eq.s32.totalorder %s16, 0
    %p43 = por %p41, %p42
    %s44 = ssub.s32 %s10, %s17
    %p45 = scmp.eq.s32.totalorder %s44, 0
    %s47 = sadd.s32 %s46, 1
    %s48 = scalar_select %p45, %s46, %s47
    %p51 = pneg %p45
    %p52 = scmp.eq.s32.totalorder %s10, 1
    %p53 = por %p51, %p52
    %p54 = scmp.ne.s32.totalorder %s46, %s49
    %p55 = scmp.eq.s32.totalorder %s10, 0
    %p56 = por %p54, %p55
    %p57 = scmp.ne.s32.totalorder %s46, %s49
    %p58 = scmp.eq.s32.totalorder %s15, 1
    %p59 = por %p57, %p58
    %p60 = scmp.ne.s32.totalorder %s49, %s50
    %p61 = scmp.eq.s32.totalorder %s15, 0
    %p62 = por %p60, %p61
    %p63 = scmp.ne.s32.totalorder %s49, %s50
    %p64 = scmp.eq.s32.totalorder %s16, 1
    %p65 = por %p63, %p64
    %p67 = scmp.ne.s32.totalorder %s50, %s66
    %p68 = scmp.eq.s32.totalorder %s16, 0
    %p69 = por %p67, %p68
    %s71 = sadd.s32 %s70, 1
    %p74 = scmp.eq.s32.totalorder %s10, 1
    %p75 = scmp.ne.s32.totalorder %s70, %s72
    %p76 = scmp.eq.s32.totalorder %s10, 0
    %p77 = por %p75, %p76
    %p78 = scmp.ne.s32.totalorder %s70, %s72
    %p79 = scmp.eq.s32.totalorder %s15, 1
    %p80 = por %p78, %p79
    %p81 = scmp.ne.s32.totalorder %s72, %s73
    %p82 = scmp.eq.s32.totalorder %s15, 0
    %p83 = por %p81, %p82
    %p84 = scmp.ne.s32.totalorder %s72, %s73
    %p85 = scmp.eq.s32.totalorder %s16, 1
    %p86 = por %p84, %p85
    %p88 = scmp.ne.s32.totalorder %s73, %s87
    %p89 = scmp.eq.s32.totalorder %s16, 0
    %p90 = por %p88, %p89
    %s92 = sadd.s32 %s91, 1
    %p95 = scmp.eq.s32.totalorder %s10, 1
    %p96 = scmp.ne.s32.totalorder %s91, %s93
    %p97 = scmp.eq.s32.totalorder %s10, 0
    %p98 = por %p96, %p97
    %p99 = scmp.ne.s32.totalorder %s91, %s93
    %p100 = scmp.eq.s32.totalorder %s15, 1
    %p101 = por %p99, %p100
    %p102 = scmp.ne.s32.totalorder %s93, %s94
    %p103 = scmp.eq.s32.totalorder %s15, 0
    %p104 = por %p102, %p103
    %p105 = scmp.ne.s32.totalorder %s93, %s94
    %p106 = scmp.eq.s32.totalorder %s16, 1
    %p107 = por %p105, %p106
    %p109 = scmp.ne.s32.totalorder %s94, %s108
    %p110 = scmp.eq.s32.totalorder %s16, 0
    %p111 = por %p109, %p110
    %s112 = ssub.s32 %s10, %s17
    %p113 = scmp.eq.s32.totalorder %s112, 0
    %s115 = sadd.s32 %s114, 1
    %s116 = scalar_select %p113, %s114, %s115
    %p119 = pneg %p113
    %p120 = scmp.eq.s32.totalorder %s10, 1
    %p121 = por %p119, %p120
    %p122 = scmp.ne.s32.totalorder %s114, %s117
    %p123 = scmp.eq.s32.totalorder %s10, 0
    %p124 = por %p122, %p123
    %p125 = scmp.ne.s32.totalorder %s114, %s117
    %p126 = scmp.eq.s32.totalorder %s15, 1
    %p127 = por %p125, %p126
    %p128 = scmp.ne.s32.totalorder %s117, %s118
    %p129 = scmp.eq.s32.totalorder %s15, 0
    %p130 = por %p128, %p129
    %p131 = scmp.ne.s32.totalorder %s117, %s118
    %p132 = scmp.eq.s32.totalorder %s16, 1
    %p133 = por %p131, %p132
    %p135 = scmp.ne.s32.totalorder %s118, %s134
    %p136 = scmp.eq.s32.totalorder %s16, 0
    %p137 = por %p135, %p136
    %p138 = scmp.le.s32.totalorder 1, %s10
    %p139 = scmp.lt.s32.totalorder %s10, 3
    %p140 = pnand %p138, %p139
    %p141 = pneg %p140
    // Predicated region
    $region9: #{up_forward.7} parent=5 // pred_check
      _
    $region10: #{up_forward.7} parent=5 // pred_check_branch
      %143 = sbr.rel (%p140) target = $region12
    $region11: #{up_forward.7} parent=5 // pred_region
      %s144 = ssub.s32 %s10, 1
      // Predicated region
      $region13: #{up_forward.7} parent=11 // pred_check
        %p145 = pneg %p83
      $region14: #{up_forward.7} parent=11 // pred_check_branch
        %147 = sbr.rel (%p145) target = $region16
      $region15: #{up_forward.7} parent=11 // pred_region
        _
      $region16: #{up_forward.7} parent=11 // pred_fallthru
        _
      // Predicated region
      $region17: #{up_forward.7} parent=11 // pred_check
        %p148 = pneg %p104
      $region18: #{up_forward.7} parent=11 // pred_check_branch
        %150 = sbr.rel (%p148) target = $region20
      $region19: #{up_forward.7} parent=11 // pred_region
        _
      $region20: #{up_forward.7} parent=11 // pred_fallthru
        _
    $region12: #{up_forward.7} parent=5 // pred_fallthru
      _
    %p151 = scmp.lt.s32.totalorder %s10, 2
    // Predicated region
    $region21: #{up_forward.7} parent=5 // pred_check
      %p152 = pneg %p151
    $region22: #{up_forward.7} parent=5 // pred_check_branch
      %154 = sbr.rel (%p152) target = $region24
    $region23: #{up_forward.7} parent=5 // pred_region
      // Predicated region
      $region25: #{up_forward.7} parent=23 // pred_check
        %p155 = pneg %p30
      $region26: #{up_forward.7} parent=23 // pred_check_branch
        %157 = sbr.rel (%p155) target = $region28
      $region27: #{up_forward.7} parent=23 // pred_region
        %s158 = smul.u32 128, %s10
        %p159 = scmp.lt.s32.totalorder %s158, 255
        %s160 = scalar_select %p159, %s158, 255
        %s161 = smul.addr %s160, 8
        %s162 = scalar_lea.vmem %s0, %s161
        %s163 = smul.u32 128, %s10
      $region28: #{up_forward.7} parent=23 // pred_fallthru
        _
      // Predicated region
      $region29: #{up_forward.7} parent=23 // pred_check
        %p164 = pneg %p56
      $region30: #{up_forward.7} parent=23 // pred_check_branch
        %166 = sbr.rel (%p164) target = $region32
      $region31: #{up_forward.7} parent=23 // pred_region
        %s167 = smul.u32 128, %s10
        %p168 = scmp.lt.s32.totalorder %s167, 255
        %s169 = scalar_select %p168, %s167, 255
        %s170 = smul.addr %s169, 8
        %s171 = scalar_lea.vmem %s1, %s170
        %s172 = smul.u32 128, %s10
      $region32: #{up_forward.7} parent=23 // pred_fallthru
        _
    $region24: #{up_forward.7} parent=5 // pred_fallthru
      _
    %p173 = scmp.le.s32.totalorder 1, %s10
    %p174 = scmp.lt.s32.totalorder %s10, 3
    %p175 = pnand %p173, %p174
    %p176 = pneg %p175
    // Predicated region
    $region33: #{up_forward.7} parent=5 // pred_check
      _
    $region34: #{up_forward.7} parent=5 // pred_check_branch
      %178 = sbr.rel (%p175) target = $region36
    $region35: #{up_forward.7} parent=5 // pred_region
      %s179 = ssub.s32 %s10, 1
      %s180 = smul.u32 128, %s15
      %p181 = scmp.lt.s32.totalorder %s180, 255
      %s182 = scalar_select %p181, %s180, 255
      %s183 = smul.addr %s182, 8
      %s184 = scalar_lea.vmem %s0, %s183
      %p185 = pneg %p36
      %p186 = pneg %p33
      %s187 = smul.u32 128, %s15
      %p188 = scmp.lt.s32.totalorder %s187, 255
      %s189 = scalar_select %p188, %s187, 255
      %s190 = smul.addr %s189, 8
      %s191 = scalar_lea.vmem %s1, %s190
      %p192 = pneg %p62
      %p193 = pneg %p59
      %p194 = pneg %p83
      %p195 = pneg %p80
      %p196 = pneg %p104
      %p197 = pneg %p101
      %p198 = pneg %p130
      %p199 = pneg %p127
      %s200 = smul.u32 128, %s15
      %p201 = scmp.lt.s32.totalorder %s200, 255
      %s202 = scalar_select %p201, %s200, 255
      %s203 = smul.addr %s202, 8
      %s204 = scalar_lea.vmem %s4, %s203
      %s205 = smul.u32 128, %s15
      %p206 = scmp.lt.s32.totalorder %s205, 255
      %s207 = scalar_select %p206, %s205, 255
      %s208 = smul.addr %s207, 8
      %s209 = scalar_lea.vmem %s0, %s208
      %s210 = smul.u32 128, %s15
      %s211 = smul.u32 128, %s15
      %p212 = scmp.lt.s32.totalorder %s211, 255
      %s213 = scalar_select %p212, %s211, 255
      %s214 = smul.addr %s213, 8
      %s215 = scalar_lea.vmem %s1, %s214
      %s216 = smul.u32 128, %s15
      %s217 = smul.u32 128, %s15
      %p218 = scmp.lt.s32.totalorder %s217, 255
      %s219 = scalar_select %p218, %s217, 255
      %s220 = smul.addr %s219, 8
      %s221 = scalar_lea.vmem %s4, %s220
      %s222 = smul.u32 128, %s15
      %v223 = vld [vmem:[%s209] sm:$0xff]
      %v224 = vld [vmem:[%s209 + $0x8] sm:$0xff]
      %v225 = vld [vmem:[%s209 + $0x10] sm:$0xff]
      %v226 = vld [vmem:[%s209 + $0x18] sm:$0xff]
      %v227 = vld [vmem:[%s209 + $0x20] sm:$0xff]
      %v228 = vld [vmem:[%s209 + $0x28] sm:$0xff]
      %v229 = vld [vmem:[%s209 + $0x30] sm:$0xff]
      %v230 = vld [vmem:[%s209 + $0x38] sm:$0xff]
      %v231 = vld [vmem:[%s209 + $0x40] sm:$0xff]
      %v232 = vld [vmem:[%s209 + $0x48] sm:$0xff]
      %v233 = vld [vmem:[%s209 + $0x50] sm:$0xff]
      %v234 = vld [vmem:[%s209 + $0x58] sm:$0xff]
      %v235 = vld [vmem:[%s209 + $0x60] sm:$0xff]
      %v236 = vld [vmem:[%s209 + $0x68] sm:$0xff]
      %v237 = vld [vmem:[%s209 + $0x70] sm:$0xff]
      %v238 = vld [vmem:[%s209 + $0x78] sm:$0xff]
      %v239 = vld [vmem:[%s209 + $0x80] sm:$0xff]
      %v240 = vld [vmem:[%s209 + $0x88] sm:$0xff]
      %v241 = vld [vmem:[%s209 + $0x90] sm:$0xff]
      %v242 = vld [vmem:[%s209 + $0x98] sm:$0xff]
      %v243 = vld [vmem:[%s209 + $0xa0] sm:$0xff]
      %v244 = vld [vmem:[%s209 + $0xa8] sm:$0xff]
      %v245 = vld [vmem:[%s209 + $0xb0] sm:$0xff]
      %v246 = vld [vmem:[%s209 + $0xb8] sm:$0xff]
      %v247 = vld [vmem:[%s209 + $0xc0] sm:$0xff]
      %v248 = vld [vmem:[%s209 + $0xc8] sm:$0xff]
      %v249 = vld [vmem:[%s209 + $0xd0] sm:$0xff]
      %v250 = vld [vmem:[%s209 + $0xd8] sm:$0xff]
      %v251 = vld [vmem:[%s209 + $0xe0] sm:$0xff]
      %v252 = vld [vmem:[%s209 + $0xe8] sm:$0xff]
      %v253 = vld [vmem:[%s209 + $0xf0] sm:$0xff]
      %v254 = vld [vmem:[%s209 + $0xf8] sm:$0xff]
      %v255 = vld [vmem:[%s209 + $0x100] sm:$0xff]
      %v256 = vld [vmem:[%s209 + $0x108] sm:$0xff]
      %v257 = vld [vmem:[%s209 + $0x110] sm:$0xff]
      %v258 = vld [vmem:[%s209 + $0x118] sm:$0xff]
      %v259 = vld [vmem:[%s209 + $0x120] sm:$0xff]
      %v260 = vld [vmem:[%s209 + $0x128] sm:$0xff]
      %v261 = vld [vmem:[%s209 + $0x130] sm:$0xff]
      %v262 = vld [vmem:[%s209 + $0x138] sm:$0xff]
      %v263 = vld [vmem:[%s209 + $0x140] sm:$0xff]
      %v264 = vld [vmem:[%s209 + $0x148] sm:$0xff]
      %v265 = vld [vmem:[%s209 + $0x150] sm:$0xff]
      %v266 = vld [vmem:[%s209 + $0x158] sm:$0xff]
      %v267 = vld [vmem:[%s209 + $0x160] sm:$0xff]
      %v268 = vld [vmem:[%s209 + $0x168] sm:$0xff]
      %v269 = vld [vmem:[%s209 + $0x170] sm:$0xff]
      %v270 = vld [vmem:[%s209 + $0x178] sm:$0xff]
      %v271 = vld [vmem:[%s209 + $0x180] sm:$0xff]
      %v272 = vld [vmem:[%s209 + $0x188] sm:$0xff]
      %v273 = vld [vmem:[%s209 + $0x190] sm:$0xff]
      %v274 = vld [vmem:[%s209 + $0x198] sm:$0xff]
      %v275 = vld [vmem:[%s209 + $0x1a0] sm:$0xff]
      %v276 = vld [vmem:[%s209 + $0x1a8] sm:$0xff]
      %v277 = vld [vmem:[%s209 + $0x1b0] sm:$0xff]
      %v278 = vld [vmem:[%s209 + $0x1b8] sm:$0xff]
      %v279 = vld [vmem:[%s209 + $0x1c0] sm:$0xff]
      %v280 = vld [vmem:[%s209 + $0x1c8] sm:$0xff]
      %v281 = vld [vmem:[%s209 + $0x1d0] sm:$0xff]
      %v282 = vld [vmem:[%s209 + $0x1d8] sm:$0xff]
      %v283 = vld [vmem:[%s209 + $0x1e0] sm:$0xff]
      %v284 = vld [vmem:[%s209 + $0x1e8] sm:$0xff]
      %v285 = vld [vmem:[%s209 + $0x1f0] sm:$0xff]
      %v286 = vld [vmem:[%s209 + $0x1f8] sm:$0xff]
      %v287 = vld [vmem:[%s209 + $0x200] sm:$0xff]
      %v288 = vld [vmem:[%s209 + $0x208] sm:$0xff]
      %v289 = vld [vmem:[%s209 + $0x210] sm:$0xff]
      %v290 = vld [vmem:[%s209 + $0x218] sm:$0xff]
      %v291 = vld [vmem:[%s209 + $0x220] sm:$0xff]
      %v292 = vld [vmem:[%s209 + $0x228] sm:$0xff]
      %v293 = vld [vmem:[%s209 + $0x230] sm:$0xff]
      %v294 = vld [vmem:[%s209 + $0x238] sm:$0xff]
      %v295 = vld [vmem:[%s209 + $0x240] sm:$0xff]
      %v296 = vld [vmem:[%s209 + $0x248] sm:$0xff]
      %v297 = vld [vmem:[%s209 + $0x250] sm:$0xff]
      %v298 = vld [vmem:[%s209 + $0x258] sm:$0xff]
      %v299 = vld [vmem:[%s209 + $0x260] sm:$0xff]
      %v300 = vld [vmem:[%s209 + $0x268] sm:$0xff]
      %v301 = vld [vmem:[%s209 + $0x270] sm:$0xff]
      %v302 = vld [vmem:[%s209 + $0x278] sm:$0xff]
      %v303 = vld [vmem:[%s209 + $0x280] sm:$0xff]
      %v304 = vld [vmem:[%s209 + $0x288] sm:$0xff]
      %v305 = vld [vmem:[%s209 + $0x290] sm:$0xff]
      %v306 = vld [vmem:[%s209 + $0x298] sm:$0xff]
      %v307 = vld [vmem:[%s209 + $0x2a0] sm:$0xff]
      %v308 = vld [vmem:[%s209 + $0x2a8] sm:$0xff]
      %v309 = vld [vmem:[%s209 + $0x2b0] sm:$0xff]
      %v310 = vld [vmem:[%s209 + $0x2b8] sm:$0xff]
      %v311 = vld [vmem:[%s209 + $0x2c0] sm:$0xff]
      %v312 = vld [vmem:[%s209 + $0x2c8] sm:$0xff]
      %v313 = vld [vmem:[%s209 + $0x2d0] sm:$0xff]
      %v314 = vld [vmem:[%s209 + $0x2d8] sm:$0xff]
      %v315 = vld [vmem:[%s209 + $0x2e0] sm:$0xff]
      %v316 = vld [vmem:[%s209 + $0x2e8] sm:$0xff]
      %v317 = vld [vmem:[%s209 + $0x2f0] sm:$0xff]
      %v318 = vld [vmem:[%s209 + $0x2f8] sm:$0xff]
      %v319 = vld [vmem:[%s209 + $0x300] sm:$0xff]
      %v320 = vld [vmem:[%s209 + $0x308] sm:$0xff]
      %v321 = vld [vmem:[%s209 + $0x310] sm:$0xff]
      %v322 = vld [vmem:[%s209 + $0x318] sm:$0xff]
      %v323 = vld [vmem:[%s209 + $0x320] sm:$0xff]
      %v324 = vld [vmem:[%s209 + $0x328] sm:$0xff]
      %v325 = vld [vmem:[%s209 + $0x330] sm:$0xff]
      %v326 = vld [vmem:[%s209 + $0x338] sm:$0xff]
      %v327 = vld [vmem:[%s209 + $0x340] sm:$0xff]
      %v328 = vld [vmem:[%s209 + $0x348] sm:$0xff]
      %v329 = vld [vmem:[%s209 + $0x350] sm:$0xff]
      %v330 = vld [vmem:[%s209 + $0x358] sm:$0xff]
      %v331 = vld [vmem:[%s209 + $0x360] sm:$0xff]
      %v332 = vld [vmem:[%s209 + $0x368] sm:$0xff]
      %v333 = vld [vmem:[%s209 + $0x370] sm:$0xff]
      %v334 = vld [vmem:[%s209 + $0x378] sm:$0xff]
      %v335 = vld [vmem:[%s209 + $0x380] sm:$0xff]
      %v336 = vld [vmem:[%s209 + $0x388] sm:$0xff]
      %v337 = vld [vmem:[%s209 + $0x390] sm:$0xff]
      %v338 = vld [vmem:[%s209 + $0x398] sm:$0xff]
      %v339 = vld [vmem:[%s209 + $0x3a0] sm:$0xff]
      %v340 = vld [vmem:[%s209 + $0x3a8] sm:$0xff]
      %v341 = vld [vmem:[%s209 + $0x3b0] sm:$0xff]
      %v342 = vld [vmem:[%s209 + $0x3b8] sm:$0xff]
      %v343 = vld [vmem:[%s209 + $0x3c0] sm:$0xff]
      %v344 = vld [vmem:[%s209 + $0x3c8] sm:$0xff]
      %v345 = vld [vmem:[%s209 + $0x3d0] sm:$0xff]
      %v346 = vld [vmem:[%s209 + $0x3d8] sm:$0xff]
      %v347 = vld [vmem:[%s209 + $0x3e0] sm:$0xff]
      %v348 = vld [vmem:[%s209 + $0x3e8] sm:$0xff]
      %v349 = vld [vmem:[%s209 + $0x3f0] sm:$0xff]
      %v350 = vld [vmem:[%s209 + $0x3f8] sm:$0xff]
      %v351 = vld [vmem:[%s2] sm:$0x1]
      %v353 = vlaneseq
      %v354 = vshrl.u32 %v353, 7
      %v355 = vsub.s32 0, %v354
      %v356 = vrot.slane %v351, %v355
      %v358 = vmul.f32 %v223, %v356
      %v359 = vmul.f32 %v224, %v356
      %v360 = vmul.f32 %v225, %v356
      %v361 = vmul.f32 %v226, %v356
      %v362 = vmul.f32 %v227, %v356
      %v363 = vmul.f32 %v228, %v356
      %v364 = vmul.f32 %v229, %v356
      %v365 = vmul.f32 %v230, %v356
      %v366 = vmul.f32 %v231, %v356
      %v367 = vmul.f32 %v232, %v356
      %v368 = vmul.f32 %v233, %v356
      %v369 = vmul.f32 %v234, %v356
      %v370 = vmul.f32 %v235, %v356
      %v371 = vmul.f32 %v236, %v356
      %v372 = vmul.f32 %v237, %v356
      %v373 = vmul.f32 %v238, %v356
      %v374 = vmul.f32 %v239, %v356
      %v375 = vmul.f32 %v240, %v356
      %v376 = vmul.f32 %v241, %v356
      %v377 = vmul.f32 %v242, %v356
      %v378 = vmul.f32 %v243, %v356
      %v379 = vmul.f32 %v244, %v356
      %v380 = vmul.f32 %v245, %v356
      %v381 = vmul.f32 %v246, %v356
      %v382 = vmul.f32 %v247, %v356
      %v383 = vmul.f32 %v248, %v356
      %v384 = vmul.f32 %v249, %v356
      %v385 = vmul.f32 %v250, %v356
      %v386 = vmul.f32 %v251, %v356
      %v387 = vmul.f32 %v252, %v356
      %v388 = vmul.f32 %v253, %v356
      %v389 = vmul.f32 %v254, %v356
      %v390 = vmul.f32 %v255, %v356
      %v391 = vmul.f32 %v256, %v356
      %v392 = vmul.f32 %v257, %v356
      %v393 = vmul.f32 %v258, %v356
      %v394 = vmul.f32 %v259, %v356
      %v395 = vmul.f32 %v260, %v356
      %v396 = vmul.f32 %v261, %v356
      %v397 = vmul.f32 %v262, %v356
      %v398 = vmul.f32 %v263, %v356
      %v399 = vmul.f32 %v264, %v356
      %v400 = vmul.f32 %v265, %v356
      %v401 = vmul.f32 %v266, %v356
      %v402 = vmul.f32 %v267, %v356
      %v403 = vmul.f32 %v268, %v356
      %v404 = vmul.f32 %v269, %v356
      %v405 = vmul.f32 %v270, %v356
      %v406 = vmul.f32 %v271, %v356
      %v407 = vmul.f32 %v272, %v356
      %v408 = vmul.f32 %v273, %v356
      %v409 = vmul.f32 %v274, %v356
      %v410 = vmul.f32 %v275, %v356
      %v411 = vmul.f32 %v276, %v356
      %v412 = vmul.f32 %v277, %v356
      %v413 = vmul.f32 %v278, %v356
      %v414 = vmul.f32 %v279, %v356
      %v415 = vmul.f32 %v280, %v356
      %v416 = vmul.f32 %v281, %v356
      %v417 = vmul.f32 %v282, %v356
      %v418 = vmul.f32 %v283, %v356
      %v419 = vmul.f32 %v284, %v356
      %v420 = vmul.f32 %v285, %v356
      %v421 = vmul.f32 %v286, %v356
      %v422 = vmul.f32 %v287, %v356
      %v423 = vmul.f32 %v288, %v356
      %v424 = vmul.f32 %v289, %v356
      %v425 = vmul.f32 %v290, %v356
      %v426 = vmul.f32 %v291, %v356
      %v427 = vmul.f32 %v292, %v356
      %v428 = vmul.f32 %v293, %v356
      %v429 = vmul.f32 %v294, %v356
      %v430 = vmul.f32 %v295, %v356
      %v431 = vmul.f32 %v296, %v356
      %v432 = vmul.f32 %v297, %v356
      %v433 = vmul.f32 %v298, %v356
      %v434 = vmul.f32 %v299, %v356
      %v435 = vmul.f32 %v300, %v356
      %v436 = vmul.f32 %v301, %v356
      %v437 = vmul.f32 %v302, %v356
      %v438 = vmul.f32 %v303, %v356
      %v439 = vmul.f32 %v304, %v356
      %v440 = vmul.f32 %v305, %v356
      %v441 = vmul.f32 %v306, %v356
      %v442 = vmul.f32 %v307, %v356
      %v443 = vmul.f32 %v308, %v356
      %v444 = vmul.f32 %v309, %v356
      %v445 = vmul.f32 %v310, %v356
      %v446 = vmul.f32 %v311, %v356
      %v447 = vmul.f32 %v312, %v356
      %v448 = vmul.f32 %v313, %v356
      %v449 = vmul.f32 %v314, %v356
      %v450 = vmul.f32 %v315, %v356
      %v451 = vmul.f32 %v316, %v356
      %v452 = vmul.f32 %v317, %v356
      %v453 = vmul.f32 %v318, %v356
      %v454 = vmul.f32 %v319, %v356
      %v455 = vmul.f32 %v320, %v356
      %v456 = vmul.f32 %v321, %v356
      %v457 = vmul.f32 %v322, %v356
      %v458 = vmul.f32 %v323, %v356
      %v459 = vmul.f32 %v324, %v356
      %v460 = vmul.f32 %v325, %v356
      %v461 = vmul.f32 %v326, %v356
      %v462 = vmul.f32 %v327, %v356
      %v463 = vmul.f32 %v328, %v356
      %v464 = vmul.f32 %v329, %v356
      %v465 = vmul.f32 %v330, %v356
      %v466 = vmul.f32 %v331, %v356
      %v467 = vmul.f32 %v332, %v356
      %v468 = vmul.f32 %v333, %v356
      %v469 = vmul.f32 %v334, %v356
      %v470 = vmul.f32 %v335, %v356
      %v471 = vmul.f32 %v336, %v356
      %v472 = vmul.f32 %v337, %v356
      %v473 = vmul.f32 %v338, %v356
      %v474 = vmul.f32 %v339, %v356
      %v475 = vmul.f32 %v340, %v356
      %v476 = vmul.f32 %v341, %v356
      %v477 = vmul.f32 %v342, %v356
      %v478 = vmul.f32 %v343, %v356
      %v479 = vmul.f32 %v344, %v356
      %v480 = vmul.f32 %v345, %v356
      %v481 = vmul.f32 %v346, %v356
      %v482 = vmul.f32 %v347, %v356
      %v483 = vmul.f32 %v348, %v356
      %v484 = vmul.f32 %v349, %v356
      %v485 = vmul.f32 %v350, %v356
      %v486 = vld [vmem:[%s3] sm:$0x1]
      %v488 = vlaneseq
      %v489 = vshrl.u32 %v488, 7
      %v490 = vsub.s32 0, %v489
      %v491 = vrot.slane %v486, %v490
      %v493 = vadd.f32 %v358, %v491
      %v494 = vadd.f32 %v359, %v491
      %v495 = vadd.f32 %v360, %v491
      %v496 = vadd.f32 %v361, %v491
      %v497 = vadd.f32 %v362, %v491
      %v498 = vadd.f32 %v363, %v491
      %v499 = vadd.f32 %v364, %v491
      %v500 = vadd.f32 %v365, %v491
      %v501 = vadd.f32 %v366, %v491
      %v502 = vadd.f32 %v367, %v491
      %v503 = vadd.f32 %v368, %v491
      %v504 = vadd.f32 %v369, %v491
      %v505 = vadd.f32 %v370, %v491
      %v506 = vadd.f32 %v371, %v491
      %v507 = vadd.f32 %v372, %v491
      %v508 = vadd.f32 %v373, %v491
      %v509 = vadd.f32 %v374, %v491
      %v510 = vadd.f32 %v375, %v491
      %v511 = vadd.f32 %v376, %v491
      %v512 = vadd.f32 %v377, %v491
      %v513 = vadd.f32 %v378, %v491
      %v514 = vadd.f32 %v379, %v491
      %v515 = vadd.f32 %v380, %v491
      %v516 = vadd.f32 %v381, %v491
      %v517 = vadd.f32 %v382, %v491
      %v518 = vadd.f32 %v383, %v491
      %v519 = vadd.f32 %v384, %v491
      %v520 = vadd.f32 %v385, %v491
      %v521 = vadd.f32 %v386, %v491
      %v522 = vadd.f32 %v387, %v491
      %v523 = vadd.f32 %v388, %v491
      %v524 = vadd.f32 %v389, %v491
      %v525 = vadd.f32 %v390, %v491
      %v526 = vadd.f32 %v391, %v491
      %v527 = vadd.f32 %v392, %v491
      %v528 = vadd.f32 %v393, %v491
      %v529 = vadd.f32 %v394, %v491
      %v530 = vadd.f32 %v395, %v491
      %v531 = vadd.f32 %v396, %v491
      %v532 = vadd.f32 %v397, %v491
      %v533 = vadd.f32 %v398, %v491
      %v534 = vadd.f32 %v399, %v491
      %v535 = vadd.f32 %v400, %v491
      %v536 = vadd.f32 %v401, %v491
      %v537 = vadd.f32 %v402, %v491
      %v538 = vadd.f32 %v403, %v491
      %v539 = vadd.f32 %v404, %v491
      %v540 = vadd.f32 %v405, %v491
      %v541 = vadd.f32 %v406, %v491
      %v542 = vadd.f32 %v407, %v491
      %v543 = vadd.f32 %v408, %v491
      %v544 = vadd.f32 %v409, %v491
      %v545 = vadd.f32 %v410, %v491
      %v546 = vadd.f32 %v411, %v491
      %v547 = vadd.f32 %v412, %v491
      %v548 = vadd.f32 %v413, %v491
      %v549 = vadd.f32 %v414, %v491
      %v550 = vadd.f32 %v415, %v491
      %v551 = vadd.f32 %v416, %v491
      %v552 = vadd.f32 %v417, %v491
      %v553 = vadd.f32 %v418, %v491
      %v554 = vadd.f32 %v419, %v491
      %v555 = vadd.f32 %v420, %v491
      %v556 = vadd.f32 %v421, %v491
      %v557 = vadd.f32 %v422, %v491
      %v558 = vadd.f32 %v423, %v491
      %v559 = vadd.f32 %v424, %v491
      %v560 = vadd.f32 %v425, %v491
      %v561 = vadd.f32 %v426, %v491
      %v562 = vadd.f32 %v427, %v491
      %v563 = vadd.f32 %v428, %v491
      %v564 = vadd.f32 %v429, %v491
      %v565 = vadd.f32 %v430, %v491
      %v566 = vadd.f32 %v431, %v491
      %v567 = vadd.f32 %v432, %v491
      %v568 = vadd.f32 %v433, %v491
      %v569 = vadd.f32 %v434, %v491
      %v570 = vadd.f32 %v435, %v491
      %v571 = vadd.f32 %v436, %v491
      %v572 = vadd.f32 %v437, %v491
      %v573 = vadd.f32 %v438, %v491
      %v574 = vadd.f32 %v439, %v491
      %v575 = vadd.f32 %v440, %v491
      %v576 = vadd.f32 %v441, %v491
      %v577 = vadd.f32 %v442, %v491
      %v578 = vadd.f32 %v443, %v491
      %v579 = vadd.f32 %v444, %v491
      %v580 = vadd.f32 %v445, %v491
      %v581 = vadd.f32 %v446, %v491
      %v582 = vadd.f32 %v447, %v491
      %v583 = vadd.f32 %v448, %v491
      %v584 = vadd.f32 %v449, %v491
      %v585 = vadd.f32 %v450, %v491
      %v586 = vadd.f32 %v451, %v491
      %v587 = vadd.f32 %v452, %v491
      %v588 = vadd.f32 %v453, %v491
      %v589 = vadd.f32 %v454, %v491
      %v590 = vadd.f32 %v455, %v491
      %v591 = vadd.f32 %v456, %v491
      %v592 = vadd.f32 %v457, %v491
      %v593 = vadd.f32 %v458, %v491
      %v594 = vadd.f32 %v459, %v491
      %v595 = vadd.f32 %v460, %v491
      %v596 = vadd.f32 %v461, %v491
      %v597 = vadd.f32 %v462, %v491
      %v598 = vadd.f32 %v463, %v491
      %v599 = vadd.f32 %v464, %v491
      %v600 = vadd.f32 %v465, %v491
      %v601 = vadd.f32 %v466, %v491
      %v602 = vadd.f32 %v467, %v491
      %v603 = vadd.f32 %v468, %v491
      %v604 = vadd.f32 %v469, %v491
      %v605 = vadd.f32 %v470, %v491
      %v606 = vadd.f32 %v471, %v491
      %v607 = vadd.f32 %v472, %v491
      %v608 = vadd.f32 %v473, %v491
      %v609 = vadd.f32 %v474, %v491
      %v610 = vadd.f32 %v475, %v491
      %v611 = vadd.f32 %v476, %v491
      %v612 = vadd.f32 %v477, %v491
      %v613 = vadd.f32 %v478, %v491
      %v614 = vadd.f32 %v479, %v491
      %v615 = vadd.f32 %v480, %v491
      %v616 = vadd.f32 %v481, %v491
      %v617 = vadd.f32 %v482, %v491
      %v618 = vadd.f32 %v483, %v491
      %v619 = vadd.f32 %v484, %v491
      %v620 = vadd.f32 %v485, %v491
      %v621 = vmax.f32 %v493, 0.0
      %v622 = vmax.f32 %v494, 0.0
      %v623 = vmax.f32 %v495, 0.0
      %v624 = vmax.f32 %v496, 0.0
      %v625 = vmax.f32 %v497, 0.0
      %v626 = vmax.f32 %v498, 0.0
      %v627 = vmax.f32 %v499, 0.0
      %v628 = vmax.f32 %v500, 0.0
      %v629 = vmax.f32 %v501, 0.0
      %v630 = vmax.f32 %v502, 0.0
      %v631 = vmax.f32 %v503, 0.0
      %v632 = vmax.f32 %v504, 0.0
      %v633 = vmax.f32 %v505, 0.0
      %v634 = vmax.f32 %v506, 0.0
      %v635 = vmax.f32 %v507, 0.0
      %v636 = vmax.f32 %v508, 0.0
      %v637 = vmax.f32 %v509, 0.0
      %v638 = vmax.f32 %v510, 0.0
      %v639 = vmax.f32 %v511, 0.0
      %v640 = vmax.f32 %v512, 0.0
      %v641 = vmax.f32 %v513, 0.0
      %v642 = vmax.f32 %v514, 0.0
      %v643 = vmax.f32 %v515, 0.0
      %v644 = vmax.f32 %v516, 0.0
      %v645 = vmax.f32 %v517, 0.0
      %v646 = vmax.f32 %v518, 0.0
      %v647 = vmax.f32 %v519, 0.0
      %v648 = vmax.f32 %v520, 0.0
      %v649 = vmax.f32 %v521, 0.0
      %v650 = vmax.f32 %v522, 0.0
      %v651 = vmax.f32 %v523, 0.0
      %v652 = vmax.f32 %v524, 0.0
      %v653 = vmax.f32 %v525, 0.0
      %v654 = vmax.f32 %v526, 0.0
      %v655 = vmax.f32 %v527, 0.0
      %v656 = vmax.f32 %v528, 0.0
      %v657 = vmax.f32 %v529, 0.0
      %v658 = vmax.f32 %v530, 0.0
      %v659 = vmax.f32 %v531, 0.0
      %v660 = vmax.f32 %v532, 0.0
      %v661 = vmax.f32 %v533, 0.0
      %v662 = vmax.f32 %v534, 0.0
      %v663 = vmax.f32 %v535, 0.0
      %v664 = vmax.f32 %v536, 0.0
      %v665 = vmax.f32 %v537, 0.0
      %v666 = vmax.f32 %v538, 0.0
      %v667 = vmax.f32 %v539, 0.0
      %v668 = vmax.f32 %v540, 0.0
      %v669 = vmax.f32 %v541, 0.0
      %v670 = vmax.f32 %v542, 0.0
      %v671 = vmax.f32 %v543, 0.0
      %v672 = vmax.f32 %v544, 0.0
      %v673 = vmax.f32 %v545, 0.0
      %v674 = vmax.f32 %v546, 0.0
      %v675 = vmax.f32 %v547, 0.0
      %v676 = vmax.f32 %v548, 0.0
      %v677 = vmax.f32 %v549, 0.0
      %v678 = vmax.f32 %v550, 0.0
      %v679 = vmax.f32 %v551, 0.0
      %v680 = vmax.f32 %v552, 0.0
      %v681 = vmax.f32 %v553, 0.0
      %v682 = vmax.f32 %v554, 0.0
      %v683 = vmax.f32 %v555, 0.0
      %v684 = vmax.f32 %v556, 0.0
      %v685 = vmax.f32 %v557, 0.0
      %v686 = vmax.f32 %v558, 0.0
      %v687 = vmax.f32 %v559, 0.0
      %v688 = vmax.f32 %v560, 0.0
      %v689 = vmax.f32 %v561, 0.0
      %v690 = vmax.f32 %v562, 0.0
      %v691 = vmax.f32 %v563, 0.0
      %v692 = vmax.f32 %v564, 0.0
      %v693 = vmax.f32 %v565, 0.0
      %v694 = vmax.f32 %v566, 0.0
      %v695 = vmax.f32 %v567, 0.0
      %v696 = vmax.f32 %v568, 0.0
      %v697 = vmax.f32 %v569, 0.0
      %v698 = vmax.f32 %v570, 0.0
      %v699 = vmax.f32 %v571, 0.0
      %v700 = vmax.f32 %v572, 0.0
      %v701 = vmax.f32 %v573, 0.0
      %v702 = vmax.f32 %v574, 0.0
      %v703 = vmax.f32 %v575, 0.0
      %v704 = vmax.f32 %v576, 0.0
      %v705 = vmax.f32 %v577, 0.0
      %v706 = vmax.f32 %v578, 0.0
      %v707 = vmax.f32 %v579, 0.0
      %v708 = vmax.f32 %v580, 0.0
      %v709 = vmax.f32 %v581, 0.0
      %v710 = vmax.f32 %v582, 0.0
      %v711 = vmax.f32 %v583, 0.0
      %v712 = vmax.f32 %v584, 0.0
      %v713 = vmax.f32 %v585, 0.0
      %v714 = vmax.f32 %v586, 0.0
      %v715 = vmax.f32 %v587, 0.0
      %v716 = vmax.f32 %v588, 0.0
      %v717 = vmax.f32 %v589, 0.0
      %v718 = vmax.f32 %v590, 0.0
      %v719 = vmax.f32 %v591, 0.0
      %v720 = vmax.f32 %v592, 0.0
      %v721 = vmax.f32 %v593, 0.0
      %v722 = vmax.f32 %v594, 0.0
      %v723 = vmax.f32 %v595, 0.0
      %v724 = vmax.f32 %v596, 0.0
      %v725 = vmax.f32 %v597, 0.0
      %v726 = vmax.f32 %v598, 0.0
      %v727 = vmax.f32 %v599, 0.0
      %v728 = vmax.f32 %v600, 0.0
      %v729 = vmax.f32 %v601, 0.0
      %v730 = vmax.f32 %v602, 0.0
      %v731 = vmax.f32 %v603, 0.0
      %v732 = vmax.f32 %v604, 0.0
      %v733 = vmax.f32 %v605, 0.0
      %v734 = vmax.f32 %v606, 0.0
      %v735 = vmax.f32 %v607, 0.0
      %v736 = vmax.f32 %v608, 0.0
      %v737 = vmax.f32 %v609, 0.0
      %v738 = vmax.f32 %v610, 0.0
      %v739 = vmax.f32 %v611, 0.0
      %v740 = vmax.f32 %v612, 0.0
      %v741 = vmax.f32 %v613, 0.0
      %v742 = vmax.f32 %v614, 0.0
      %v743 = vmax.f32 %v615, 0.0
      %v744 = vmax.f32 %v616, 0.0
      %v745 = vmax.f32 %v617, 0.0
      %v746 = vmax.f32 %v618, 0.0
      %v747 = vmax.f32 %v619, 0.0
      %v748 = vmax.f32 %v620, 0.0
      %v749 = vld [vmem:[%s215] sm:$0xff]
      %v750 = vld [vmem:[%s215 + $0x8] sm:$0xff]
      %v751 = vld [vmem:[%s215 + $0x10] sm:$0xff]
      %v752 = vld [vmem:[%s215 + $0x18] sm:$0xff]
      %v753 = vld [vmem:[%s215 + $0x20] sm:$0xff]
      %v754 = vld [vmem:[%s215 + $0x28] sm:$0xff]
      %v755 = vld [vmem:[%s215 + $0x30] sm:$0xff]
      %v756 = vld [vmem:[%s215 + $0x38] sm:$0xff]
      %v757 = vld [vmem:[%s215 + $0x40] sm:$0xff]
      %v758 = vld [vmem:[%s215 + $0x48] sm:$0xff]
      %v759 = vld [vmem:[%s215 + $0x50] sm:$0xff]
      %v760 = vld [vmem:[%s215 + $0x58] sm:$0xff]
      %v761 = vld [vmem:[%s215 + $0x60] sm:$0xff]
      %v762 = vld [vmem:[%s215 + $0x68] sm:$0xff]
      %v763 = vld [vmem:[%s215 + $0x70] sm:$0xff]
      %v764 = vld [vmem:[%s215 + $0x78] sm:$0xff]
      %v765 = vld [vmem:[%s215 + $0x80] sm:$0xff]
      %v766 = vld [vmem:[%s215 + $0x88] sm:$0xff]
      %v767 = vld [vmem:[%s215 + $0x90] sm:$0xff]
      %v768 = vld [vmem:[%s215 + $0x98] sm:$0xff]
      %v769 = vld [vmem:[%s215 + $0xa0] sm:$0xff]
      %v770 = vld [vmem:[%s215 + $0xa8] sm:$0xff]
      %v771 = vld [vmem:[%s215 + $0xb0] sm:$0xff]
      %v772 = vld [vmem:[%s215 + $0xb8] sm:$0xff]
      %v773 = vld [vmem:[%s215 + $0xc0] sm:$0xff]
      %v774 = vld [vmem:[%s215 + $0xc8] sm:$0xff]
      %v775 = vld [vmem:[%s215 + $0xd0] sm:$0xff]
      %v776 = vld [vmem:[%s215 + $0xd8] sm:$0xff]
      %v777 = vld [vmem:[%s215 + $0xe0] sm:$0xff]
      %v778 = vld [vmem:[%s215 + $0xe8] sm:$0xff]
      %v779 = vld [vmem:[%s215 + $0xf0] sm:$0xff]
      %v780 = vld [vmem:[%s215 + $0xf8] sm:$0xff]
      %v781 = vld [vmem:[%s215 + $0x100] sm:$0xff]
      %v782 = vld [vmem:[%s215 + $0x108] sm:$0xff]
      %v783 = vld [vmem:[%s215 + $0x110] sm:$0xff]
      %v784 = vld [vmem:[%s215 + $0x118] sm:$0xff]
      %v785 = vld [vmem:[%s215 + $0x120] sm:$0xff]
      %v786 = vld [vmem:[%s215 + $0x128] sm:$0xff]
      %v787 = vld [vmem:[%s215 + $0x130] sm:$0xff]
      %v788 = vld [vmem:[%s215 + $0x138] sm:$0xff]
      %v789 = vld [vmem:[%s215 + $0x140] sm:$0xff]
      %v790 = vld [vmem:[%s215 + $0x148] sm:$0xff]
      %v791 = vld [vmem:[%s215 + $0x150] sm:$0xff]
      %v792 = vld [vmem:[%s215 + $0x158] sm:$0xff]
      %v793 = vld [vmem:[%s215 + $0x160] sm:$0xff]
      %v794 = vld [vmem:[%s215 + $0x168] sm:$0xff]
      %v795 = vld [vmem:[%s215 + $0x170] sm:$0xff]
      %v796 = vld [vmem:[%s215 + $0x178] sm:$0xff]
      %v797 = vld [vmem:[%s215 + $0x180] sm:$0xff]
      %v798 = vld [vmem:[%s215 + $0x188] sm:$0xff]
      %v799 = vld [vmem:[%s215 + $0x190] sm:$0xff]
      %v800 = vld [vmem:[%s215 + $0x198] sm:$0xff]
      %v801 = vld [vmem:[%s215 + $0x1a0] sm:$0xff]
      %v802 = vld [vmem:[%s215 + $0x1a8] sm:$0xff]
      %v803 = vld [vmem:[%s215 + $0x1b0] sm:$0xff]
      %v804 = vld [vmem:[%s215 + $0x1b8] sm:$0xff]
      %v805 = vld [vmem:[%s215 + $0x1c0] sm:$0xff]
      %v806 = vld [vmem:[%s215 + $0x1c8] sm:$0xff]
      %v807 = vld [vmem:[%s215 + $0x1d0] sm:$0xff]
      %v808 = vld [vmem:[%s215 + $0x1d8] sm:$0xff]
      %v809 = vld [vmem:[%s215 + $0x1e0] sm:$0xff]
      %v810 = vld [vmem:[%s215 + $0x1e8] sm:$0xff]
      %v811 = vld [vmem:[%s215 + $0x1f0] sm:$0xff]
      %v812 = vld [vmem:[%s215 + $0x1f8] sm:$0xff]
      %v813 = vld [vmem:[%s215 + $0x200] sm:$0xff]
      %v814 = vld [vmem:[%s215 + $0x208] sm:$0xff]
      %v815 = vld [vmem:[%s215 + $0x210] sm:$0xff]
      %v816 = vld [vmem:[%s215 + $0x218] sm:$0xff]
      %v817 = vld [vmem:[%s215 + $0x220] sm:$0xff]
      %v818 = vld [vmem:[%s215 + $0x228] sm:$0xff]
      %v819 = vld [vmem:[%s215 + $0x230] sm:$0xff]
      %v820 = vld [vmem:[%s215 + $0x238] sm:$0xff]
      %v821 = vld [vmem:[%s215 + $0x240] sm:$0xff]
      %v822 = vld [vmem:[%s215 + $0x248] sm:$0xff]
      %v823 = vld [vmem:[%s215 + $0x250] sm:$0xff]
      %v824 = vld [vmem:[%s215 + $0x258] sm:$0xff]
      %v825 = vld [vmem:[%s215 + $0x260] sm:$0xff]
      %v826 = vld [vmem:[%s215 + $0x268] sm:$0xff]
      %v827 = vld [vmem:[%s215 + $0x270] sm:$0xff]
      %v828 = vld [vmem:[%s215 + $0x278] sm:$0xff]
      %v829 = vld [vmem:[%s215 + $0x280] sm:$0xff]
      %v830 = vld [vmem:[%s215 + $0x288] sm:$0xff]
      %v831 = vld [vmem:[%s215 + $0x290] sm:$0xff]
      %v832 = vld [vmem:[%s215 + $0x298] sm:$0xff]
      %v833 = vld [vmem:[%s215 + $0x2a0] sm:$0xff]
      %v834 = vld [vmem:[%s215 + $0x2a8] sm:$0xff]
      %v835 = vld [vmem:[%s215 + $0x2b0] sm:$0xff]
      %v836 = vld [vmem:[%s215 + $0x2b8] sm:$0xff]
      %v837 = vld [vmem:[%s215 + $0x2c0] sm:$0xff]
      %v838 = vld [vmem:[%s215 + $0x2c8] sm:$0xff]
      %v839 = vld [vmem:[%s215 + $0x2d0] sm:$0xff]
      %v840 = vld [vmem:[%s215 + $0x2d8] sm:$0xff]
      %v841 = vld [vmem:[%s215 + $0x2e0] sm:$0xff]
      %v842 = vld [vmem:[%s215 + $0x2e8] sm:$0xff]
      %v843 = vld [vmem:[%s215 + $0x2f0] sm:$0xff]
      %v844 = vld [vmem:[%s215 + $0x2f8] sm:$0xff]
      %v845 = vld [vmem:[%s215 + $0x300] sm:$0xff]
      %v846 = vld [vmem:[%s215 + $0x308] sm:$0xff]
      %v847 = vld [vmem:[%s215 + $0x310] sm:$0xff]
      %v848 = vld [vmem:[%s215 + $0x318] sm:$0xff]
      %v849 = vld [vmem:[%s215 + $0x320] sm:$0xff]
      %v850 = vld [vmem:[%s215 + $0x328] sm:$0xff]
      %v851 = vld [vmem:[%s215 + $0x330] sm:$0xff]
      %v852 = vld [vmem:[%s215 + $0x338] sm:$0xff]
      %v853 = vld [vmem:[%s215 + $0x340] sm:$0xff]
      %v854 = vld [vmem:[%s215 + $0x348] sm:$0xff]
      %v855 = vld [vmem:[%s215 + $0x350] sm:$0xff]
      %v856 = vld [vmem:[%s215 + $0x358] sm:$0xff]
      %v857 = vld [vmem:[%s215 + $0x360] sm:$0xff]
      %v858 = vld [vmem:[%s215 + $0x368] sm:$0xff]
      %v859 = vld [vmem:[%s215 + $0x370] sm:$0xff]
      %v860 = vld [vmem:[%s215 + $0x378] sm:$0xff]
      %v861 = vld [vmem:[%s215 + $0x380] sm:$0xff]
      %v862 = vld [vmem:[%s215 + $0x388] sm:$0xff]
      %v863 = vld [vmem:[%s215 + $0x390] sm:$0xff]
      %v864 = vld [vmem:[%s215 + $0x398] sm:$0xff]
      %v865 = vld [vmem:[%s215 + $0x3a0] sm:$0xff]
      %v866 = vld [vmem:[%s215 + $0x3a8] sm:$0xff]
      %v867 = vld [vmem:[%s215 + $0x3b0] sm:$0xff]
      %v868 = vld [vmem:[%s215 + $0x3b8] sm:$0xff]
      %v869 = vld [vmem:[%s215 + $0x3c0] sm:$0xff]
      %v870 = vld [vmem:[%s215 + $0x3c8] sm:$0xff]
      %v871 = vld [vmem:[%s215 + $0x3d0] sm:$0xff]
      %v872 = vld [vmem:[%s215 + $0x3d8] sm:$0xff]
      %v873 = vld [vmem:[%s215 + $0x3e0] sm:$0xff]
      %v874 = vld [vmem:[%s215 + $0x3e8] sm:$0xff]
      %v875 = vld [vmem:[%s215 + $0x3f0] sm:$0xff]
      %v876 = vld [vmem:[%s215 + $0x3f8] sm:$0xff]
      %878 = vset.pattern.permute.xlu0 0
      %879 = vperm.xlu0 %878, %v749
      %v880 = vpop.permute.xlu0 %879
      %883 = vset.pattern.permute.xlu0 0
      %884 = vperm.xlu0 %883, %v750
      %v885 = vpop.permute.xlu0 %884
      %888 = vset.pattern.permute.xlu0 0
      %889 = vperm.xlu0 %888, %v751
      %v890 = vpop.permute.xlu0 %889
      %893 = vset.pattern.permute.xlu0 0
      %894 = vperm.xlu0 %893, %v752
      %v895 = vpop.permute.xlu0 %894
      %898 = vset.pattern.permute.xlu0 0
      %899 = vperm.xlu0 %898, %v753
      %v900 = vpop.permute.xlu0 %899
      %903 = vset.pattern.permute.xlu0 0
      %904 = vperm.xlu0 %903, %v754
      %v905 = vpop.permute.xlu0 %904
      %908 = vset.pattern.permute.xlu0 0
      %909 = vperm.xlu0 %908, %v755
      %v910 = vpop.permute.xlu0 %909
      %913 = vset.pattern.permute.xlu0 0
      %914 = vperm.xlu0 %913, %v756
      %v915 = vpop.permute.xlu0 %914
      %918 = vset.pattern.permute.xlu0 0
      %919 = vperm.xlu0 %918, %v757
      %v920 = vpop.permute.xlu0 %919
      %923 = vset.pattern.permute.xlu0 0
      %924 = vperm.xlu0 %923, %v758
      %v925 = vpop.permute.xlu0 %924
      %928 = vset.pattern.permute.xlu0 0
      %929 = vperm.xlu0 %928, %v759
      %v930 = vpop.permute.xlu0 %929
      %933 = vset.pattern.permute.xlu0 0
      %934 = vperm.xlu0 %933, %v760
      %v935 = vpop.permute.xlu0 %934
      %938 = vset.pattern.permute.xlu0 0
      %939 = vperm.xlu0 %938, %v761
      %v940 = vpop.permute.xlu0 %939
      %943 = vset.pattern.permute.xlu0 0
      %944 = vperm.xlu0 %943, %v762
      %v945 = vpop.permute.xlu0 %944
      %948 = vset.pattern.permute.xlu0 0
      %949 = vperm.xlu0 %948, %v763
      %v950 = vpop.permute.xlu0 %949
      %953 = vset.pattern.permute.xlu0 0
      %954 = vperm.xlu0 %953, %v764
      %v955 = vpop.permute.xlu0 %954
      %958 = vset.pattern.permute.xlu0 0
      %959 = vperm.xlu0 %958, %v765
      %v960 = vpop.permute.xlu0 %959
      %963 = vset.pattern.permute.xlu0 0
      %964 = vperm.xlu0 %963, %v766
      %v965 = vpop.permute.xlu0 %964
      %968 = vset.pattern.permute.xlu0 0
      %969 = vperm.xlu0 %968, %v767
      %v970 = vpop.permute.xlu0 %969
      %973 = vset.pattern.permute.xlu0 0
      %974 = vperm.xlu0 %973, %v768
      %v975 = vpop.permute.xlu0 %974
      %978 = vset.pattern.permute.xlu0 0
      %979 = vperm.xlu0 %978, %v769
      %v980 = vpop.permute.xlu0 %979
      %983 = vset.pattern.permute.xlu0 0
      %984 = vperm.xlu0 %983, %v770
      %v985 = vpop.permute.xlu0 %984
      %988 = vset.pattern.permute.xlu0 0
      %989 = vperm.xlu0 %988, %v771
      %v990 = vpop.permute.xlu0 %989
      %993 = vset.pattern.permute.xlu0 0
      %994 = vperm.xlu0 %993, %v772
      %v995 = vpop.permute.xlu0 %994
      %998 = vset.pattern.permute.xlu0 0
      %999 = vperm.xlu0 %998, %v773
      %v1000 = vpop.permute.xlu0 %999
      %1003 = vset.pattern.permute.xlu0 0
      %1004 = vperm.xlu0 %1003, %v774
      %v1005 = vpop.permute.xlu0 %1004
      %1008 = vset.pattern.permute.xlu0 0
      %1009 = vperm.xlu0 %1008, %v775
      %v1010 = vpop.permute.xlu0 %1009
      %1013 = vset.pattern.permute.xlu0 0
      %1014 = vperm.xlu0 %1013, %v776
      %v1015 = vpop.permute.xlu0 %1014
      %1018 = vset.pattern.permute.xlu0 0
      %1019 = vperm.xlu0 %1018, %v777
      %v1020 = vpop.permute.xlu0 %1019
      %1023 = vset.pattern.permute.xlu0 0
      %1024 = vperm.xlu0 %1023, %v778
      %v1025 = vpop.permute.xlu0 %1024
      %1028 = vset.pattern.permute.xlu0 0
      %1029 = vperm.xlu0 %1028, %v779
      %v1030 = vpop.permute.xlu0 %1029
      %1033 = vset.pattern.permute.xlu0 0
      %1034 = vperm.xlu0 %1033, %v780
      %v1035 = vpop.permute.xlu0 %1034
      %1038 = vset.pattern.permute.xlu0 0
      %1039 = vperm.xlu0 %1038, %v781
      %v1040 = vpop.permute.xlu0 %1039
      %1043 = vset.pattern.permute.xlu0 0
      %1044 = vperm.xlu0 %1043, %v782
      %v1045 = vpop.permute.xlu0 %1044
      %1048 = vset.pattern.permute.xlu0 0
      %1049 = vperm.xlu0 %1048, %v783
      %v1050 = vpop.permute.xlu0 %1049
      %1053 = vset.pattern.permute.xlu0 0
      %1054 = vperm.xlu0 %1053, %v784
      %v1055 = vpop.permute.xlu0 %1054
      %1058 = vset.pattern.permute.xlu0 0
      %1059 = vperm.xlu0 %1058, %v785
      %v1060 = vpop.permute.xlu0 %1059
      %1063 = vset.pattern.permute.xlu0 0
      %1064 = vperm.xlu0 %1063, %v786
      %v1065 = vpop.permute.xlu0 %1064
      %1068 = vset.pattern.permute.xlu0 0
      %1069 = vperm.xlu0 %1068, %v787
      %v1070 = vpop.permute.xlu0 %1069
      %1073 = vset.pattern.permute.xlu0 0
      %1074 = vperm.xlu0 %1073, %v788
      %v1075 = vpop.permute.xlu0 %1074
      %1078 = vset.pattern.permute.xlu0 0
      %1079 = vperm.xlu0 %1078, %v789
      %v1080 = vpop.permute.xlu0 %1079
      %1083 = vset.pattern.permute.xlu0 0
      %1084 = vperm.xlu0 %1083, %v790
      %v1085 = vpop.permute.xlu0 %1084
      %1088 = vset.pattern.permute.xlu0 0
      %1089 = vperm.xlu0 %1088, %v791
      %v1090 = vpop.permute.xlu0 %1089
      %1093 = vset.pattern.permute.xlu0 0
      %1094 = vperm.xlu0 %1093, %v792
      %v1095 = vpop.permute.xlu0 %1094
      %1098 = vset.pattern.permute.xlu0 0
      %1099 = vperm.xlu0 %1098, %v793
      %v1100 = vpop.permute.xlu0 %1099
      %1103 = vset.pattern.permute.xlu0 0
      %1104 = vperm.xlu0 %1103, %v794
      %v1105 = vpop.permute.xlu0 %1104
      %1108 = vset.pattern.permute.xlu0 0
      %1109 = vperm.xlu0 %1108, %v795
      %v1110 = vpop.permute.xlu0 %1109
      %1113 = vset.pattern.permute.xlu0 0
      %1114 = vperm.xlu0 %1113, %v796
      %v1115 = vpop.permute.xlu0 %1114
      %1118 = vset.pattern.permute.xlu0 0
      %1119 = vperm.xlu0 %1118, %v797
      %v1120 = vpop.permute.xlu0 %1119
      %1123 = vset.pattern.permute.xlu0 0
      %1124 = vperm.xlu0 %1123, %v798
      %v1125 = vpop.permute.xlu0 %1124
      %1128 = vset.pattern.permute.xlu0 0
      %1129 = vperm.xlu0 %1128, %v799
      %v1130 = vpop.permute.xlu0 %1129
      %1133 = vset.pattern.permute.xlu0 0
      %1134 = vperm.xlu0 %1133, %v800
      %v1135 = vpop.permute.xlu0 %1134
      %1138 = vset.pattern.permute.xlu0 0
      %1139 = vperm.xlu0 %1138, %v801
      %v1140 = vpop.permute.xlu0 %1139
      %1143 = vset.pattern.permute.xlu0 0
      %1144 = vperm.xlu0 %1143, %v802
      %v1145 = vpop.permute.xlu0 %1144
      %1148 = vset.pattern.permute.xlu0 0
      %1149 = vperm.xlu0 %1148, %v803
      %v1150 = vpop.permute.xlu0 %1149
      %1153 = vset.pattern.permute.xlu0 0
      %1154 = vperm.xlu0 %1153, %v804
      %v1155 = vpop.permute.xlu0 %1154
      %1158 = vset.pattern.permute.xlu0 0
      %1159 = vperm.xlu0 %1158, %v805
      %v1160 = vpop.permute.xlu0 %1159
      %1163 = vset.pattern.permute.xlu0 0
      %1164 = vperm.xlu0 %1163, %v806
      %v1165 = vpop.permute.xlu0 %1164
      %1168 = vset.pattern.permute.xlu0 0
      %1169 = vperm.xlu0 %1168, %v807
      %v1170 = vpop.permute.xlu0 %1169
      %1173 = vset.pattern.permute.xlu0 0
      %1174 = vperm.xlu0 %1173, %v808
      %v1175 = vpop.permute.xlu0 %1174
      %1178 = vset.pattern.permute.xlu0 0
      %1179 = vperm.xlu0 %1178, %v809
      %v1180 = vpop.permute.xlu0 %1179
      %1183 = vset.pattern.permute.xlu0 0
      %1184 = vperm.xlu0 %1183, %v810
      %v1185 = vpop.permute.xlu0 %1184
      %1188 = vset.pattern.permute.xlu0 0
      %1189 = vperm.xlu0 %1188, %v811
      %v1190 = vpop.permute.xlu0 %1189
      %1193 = vset.pattern.permute.xlu0 0
      %1194 = vperm.xlu0 %1193, %v812
      %v1195 = vpop.permute.xlu0 %1194
      %1198 = vset.pattern.permute.xlu0 0
      %1199 = vperm.xlu0 %1198, %v813
      %v1200 = vpop.permute.xlu0 %1199
      %1203 = vset.pattern.permute.xlu0 0
      %1204 = vperm.xlu0 %1203, %v814
      %v1205 = vpop.permute.xlu0 %1204
      %1208 = vset.pattern.permute.xlu0 0
      %1209 = vperm.xlu0 %1208, %v815
      %v1210 = vpop.permute.xlu0 %1209
      %1213 = vset.pattern.permute.xlu0 0
      %1214 = vperm.xlu0 %1213, %v816
      %v1215 = vpop.permute.xlu0 %1214
      %1218 = vset.pattern.permute.xlu0 0
      %1219 = vperm.xlu0 %1218, %v817
      %v1220 = vpop.permute.xlu0 %1219
      %1223 = vset.pattern.permute.xlu0 0
      %1224 = vperm.xlu0 %1223, %v818
      %v1225 = vpop.permute.xlu0 %1224
      %1228 = vset.pattern.permute.xlu0 0
      %1229 = vperm.xlu0 %1228, %v819
      %v1230 = vpop.permute.xlu0 %1229
      %1233 = vset.pattern.permute.xlu0 0
      %1234 = vperm.xlu0 %1233, %v820
      %v1235 = vpop.permute.xlu0 %1234
      %1238 = vset.pattern.permute.xlu0 0
      %1239 = vperm.xlu0 %1238, %v821
      %v1240 = vpop.permute.xlu0 %1239
      %1243 = vset.pattern.permute.xlu0 0
      %1244 = vperm.xlu0 %1243, %v822
      %v1245 = vpop.permute.xlu0 %1244
      %1248 = vset.pattern.permute.xlu0 0
      %1249 = vperm.xlu0 %1248, %v823
      %v1250 = vpop.permute.xlu0 %1249
      %1253 = vset.pattern.permute.xlu0 0
      %1254 = vperm.xlu0 %1253, %v824
      %v1255 = vpop.permute.xlu0 %1254
      %1258 = vset.pattern.permute.xlu0 0
      %1259 = vperm.xlu0 %1258, %v825
      %v1260 = vpop.permute.xlu0 %1259
      %1263 = vset.pattern.permute.xlu0 0
      %1264 = vperm.xlu0 %1263, %v826
      %v1265 = vpop.permute.xlu0 %1264
      %1268 = vset.pattern.permute.xlu0 0
      %1269 = vperm.xlu0 %1268, %v827
      %v1270 = vpop.permute.xlu0 %1269
      %1273 = vset.pattern.permute.xlu0 0
      %1274 = vperm.xlu0 %1273, %v828
      %v1275 = vpop.permute.xlu0 %1274
      %1278 = vset.pattern.permute.xlu0 0
      %1279 = vperm.xlu0 %1278, %v829
      %v1280 = vpop.permute.xlu0 %1279
      %1283 = vset.pattern.permute.xlu0 0
      %1284 = vperm.xlu0 %1283, %v830
      %v1285 = vpop.permute.xlu0 %1284
      %1288 = vset.pattern.permute.xlu0 0
      %1289 = vperm.xlu0 %1288, %v831
      %v1290 = vpop.permute.xlu0 %1289
      %1293 = vset.pattern.permute.xlu0 0
      %1294 = vperm.xlu0 %1293, %v832
      %v1295 = vpop.permute.xlu0 %1294
      %1298 = vset.pattern.permute.xlu0 0
      %1299 = vperm.xlu0 %1298, %v833
      %v1300 = vpop.permute.xlu0 %1299
      %1303 = vset.pattern.permute.xlu0 0
      %1304 = vperm.xlu0 %1303, %v834
      %v1305 = vpop.permute.xlu0 %1304
      %1308 = vset.pattern.permute.xlu0 0
      %1309 = vperm.xlu0 %1308, %v835
      %v1310 = vpop.permute.xlu0 %1309
      %1313 = vset.pattern.permute.xlu0 0
      %1314 = vperm.xlu0 %1313, %v836
      %v1315 = vpop.permute.xlu0 %1314
      %1318 = vset.pattern.permute.xlu0 0
      %1319 = vperm.xlu0 %1318, %v837
      %v1320 = vpop.permute.xlu0 %1319
      %1323 = vset.pattern.permute.xlu0 0
      %1324 = vperm.xlu0 %1323, %v838
      %v1325 = vpop.permute.xlu0 %1324
      %1328 = vset.pattern.permute.xlu0 0
      %1329 = vperm.xlu0 %1328, %v839
      %v1330 = vpop.permute.xlu0 %1329
      %1333 = vset.pattern.permute.xlu0 0
      %1334 = vperm.xlu0 %1333, %v840
      %v1335 = vpop.permute.xlu0 %1334
      %1338 = vset.pattern.permute.xlu0 0
      %1339 = vperm.xlu0 %1338, %v841
      %v1340 = vpop.permute.xlu0 %1339
      %1343 = vset.pattern.permute.xlu0 0
      %1344 = vperm.xlu0 %1343, %v842
      %v1345 = vpop.permute.xlu0 %1344
      %1348 = vset.pattern.permute.xlu0 0
      %1349 = vperm.xlu0 %1348, %v843
      %v1350 = vpop.permute.xlu0 %1349
      %1353 = vset.pattern.permute.xlu0 0
      %1354 = vperm.xlu0 %1353, %v844
      %v1355 = vpop.permute.xlu0 %1354
      %1358 = vset.pattern.permute.xlu0 0
      %1359 = vperm.xlu0 %1358, %v845
      %v1360 = vpop.permute.xlu0 %1359
      %1363 = vset.pattern.permute.xlu0 0
      %1364 = vperm.xlu0 %1363, %v846
      %v1365 = vpop.permute.xlu0 %1364
      %1368 = vset.pattern.permute.xlu0 0
      %1369 = vperm.xlu0 %1368, %v847
      %v1370 = vpop.permute.xlu0 %1369
      %1373 = vset.pattern.permute.xlu0 0
      %1374 = vperm.xlu0 %1373, %v848
      %v1375 = vpop.permute.xlu0 %1374
      %1378 = vset.pattern.permute.xlu0 0
      %1379 = vperm.xlu0 %1378, %v849
      %v1380 = vpop.permute.xlu0 %1379
      %1383 = vset.pattern.permute.xlu0 0
      %1384 = vperm.xlu0 %1383, %v850
      %v1385 = vpop.permute.xlu0 %1384
      %1388 = vset.pattern.permute.xlu0 0
      %1389 = vperm.xlu0 %1388, %v851
      %v1390 = vpop.permute.xlu0 %1389
      %1393 = vset.pattern.permute.xlu0 0
      %1394 = vperm.xlu0 %1393, %v852
      %v1395 = vpop.permute.xlu0 %1394
      %1398 = vset.pattern.permute.xlu0 0
      %1399 = vperm.xlu0 %1398, %v853
      %v1400 = vpop.permute.xlu0 %1399
      %1403 = vset.pattern.permute.xlu0 0
      %1404 = vperm.xlu0 %1403, %v854
      %v1405 = vpop.permute.xlu0 %1404
      %1408 = vset.pattern.permute.xlu0 0
      %1409 = vperm.xlu0 %1408, %v855
      %v1410 = vpop.permute.xlu0 %1409
      %1413 = vset.pattern.permute.xlu0 0
      %1414 = vperm.xlu0 %1413, %v856
      %v1415 = vpop.permute.xlu0 %1414
      %1418 = vset.pattern.permute.xlu0 0
      %1419 = vperm.xlu0 %1418, %v857
      %v1420 = vpop.permute.xlu0 %1419
      %1423 = vset.pattern.permute.xlu0 0
      %1424 = vperm.xlu0 %1423, %v858
      %v1425 = vpop.permute.xlu0 %1424
      %1428 = vset.pattern.permute.xlu0 0
      %1429 = vperm.xlu0 %1428, %v859
      %v1430 = vpop.permute.xlu0 %1429
      %1433 = vset.pattern.permute.xlu0 0
      %1434 = vperm.xlu0 %1433, %v860
      %v1435 = vpop.permute.xlu0 %1434
      %1438 = vset.pattern.permute.xlu0 0
      %1439 = vperm.xlu0 %1438, %v861
      %v1440 = vpop.permute.xlu0 %1439
      %1443 = vset.pattern.permute.xlu0 0
      %1444 = vperm.xlu0 %1443, %v862
      %v1445 = vpop.permute.xlu0 %1444
      %1448 = vset.pattern.permute.xlu0 0
      %1449 = vperm.xlu0 %1448, %v863
      %v1450 = vpop.permute.xlu0 %1449
      %1453 = vset.pattern.permute.xlu0 0
      %1454 = vperm.xlu0 %1453, %v864
      %v1455 = vpop.permute.xlu0 %1454
      %1458 = vset.pattern.permute.xlu0 0
      %1459 = vperm.xlu0 %1458, %v865
      %v1460 = vpop.permute.xlu0 %1459
      %1463 = vset.pattern.permute.xlu0 0
      %1464 = vperm.xlu0 %1463, %v866
      %v1465 = vpop.permute.xlu0 %1464
      %1468 = vset.pattern.permute.xlu0 0
      %1469 = vperm.xlu0 %1468, %v867
      %v1470 = vpop.permute.xlu0 %1469
      %1473 = vset.pattern.permute.xlu0 0
      %1474 = vperm.xlu0 %1473, %v868
      %v1475 = vpop.permute.xlu0 %1474
      %1478 = vset.pattern.permute.xlu0 0
      %1479 = vperm.xlu0 %1478, %v869
      %v1480 = vpop.permute.xlu0 %1479
      %1483 = vset.pattern.permute.xlu0 0
      %1484 = vperm.xlu0 %1483, %v870
      %v1485 = vpop.permute.xlu0 %1484
      %1488 = vset.pattern.permute.xlu0 0
      %1489 = vperm.xlu0 %1488, %v871
      %v1490 = vpop.permute.xlu0 %1489
      %1493 = vset.pattern.permute.xlu0 0
      %1494 = vperm.xlu0 %1493, %v872
      %v1495 = vpop.permute.xlu0 %1494
      %1498 = vset.pattern.permute.xlu0 0
      %1499 = vperm.xlu0 %1498, %v873
      %v1500 = vpop.permute.xlu0 %1499
      %1503 = vset.pattern.permute.xlu0 0
      %1504 = vperm.xlu0 %1503, %v874
      %v1505 = vpop.permute.xlu0 %1504
      %1508 = vset.pattern.permute.xlu0 0
      %1509 = vperm.xlu0 %1508, %v875
      %v1510 = vpop.permute.xlu0 %1509
      %1513 = vset.pattern.permute.xlu0 0
      %1514 = vperm.xlu0 %1513, %v876
      %v1515 = vpop.permute.xlu0 %1514
      %v1517 = vmul.f32 %v621, %v880
      %v1518 = vmul.f32 %v622, %v885
      %v1519 = vmul.f32 %v623, %v890
      %v1520 = vmul.f32 %v624, %v895
      %v1521 = vmul.f32 %v625, %v900
      %v1522 = vmul.f32 %v626, %v905
      %v1523 = vmul.f32 %v627, %v910
      %v1524 = vmul.f32 %v628, %v915
      %v1525 = vmul.f32 %v629, %v920
      %v1526 = vmul.f32 %v630, %v925
      %v1527 = vmul.f32 %v631, %v930
      %v1528 = vmul.f32 %v632, %v935
      %v1529 = vmul.f32 %v633, %v940
      %v1530 = vmul.f32 %v634, %v945
      %v1531 = vmul.f32 %v635, %v950
      %v1532 = vmul.f32 %v636, %v955
      %v1533 = vmul.f32 %v637, %v960
      %v1534 = vmul.f32 %v638, %v965
      %v1535 = vmul.f32 %v639, %v970
      %v1536 = vmul.f32 %v640, %v975
      %v1537 = vmul.f32 %v641, %v980
      %v1538 = vmul.f32 %v642, %v985
      %v1539 = vmul.f32 %v643, %v990
      %v1540 = vmul.f32 %v644, %v995
      %v1541 = vmul.f32 %v645, %v1000
      %v1542 = vmul.f32 %v646, %v1005
      %v1543 = vmul.f32 %v647, %v1010
      %v1544 = vmul.f32 %v648, %v1015
      %v1545 = vmul.f32 %v649, %v1020
      %v1546 = vmul.f32 %v650, %v1025
      %v1547 = vmul.f32 %v651, %v1030
      %v1548 = vmul.f32 %v652, %v1035
      %v1549 = vmul.f32 %v653, %v1040
      %v1550 = vmul.f32 %v654, %v1045
      %v1551 = vmul.f32 %v655, %v1050
      %v1552 = vmul.f32 %v656, %v1055
      %v1553 = vmul.f32 %v657, %v1060
      %v1554 = vmul.f32 %v658, %v1065
      %v1555 = vmul.f32 %v659, %v1070
      %v1556 = vmul.f32 %v660, %v1075
      %v1557 = vmul.f32 %v661, %v1080
      %v1558 = vmul.f32 %v662, %v1085
      %v1559 = vmul.f32 %v663, %v1090
      %v1560 = vmul.f32 %v664, %v1095
      %v1561 = vmul.f32 %v665, %v1100
      %v1562 = vmul.f32 %v666, %v1105
      %v1563 = vmul.f32 %v667, %v1110
      %v1564 = vmul.f32 %v668, %v1115
      %v1565 = vmul.f32 %v669, %v1120
      %v1566 = vmul.f32 %v670, %v1125
      %v1567 = vmul.f32 %v671, %v1130
      %v1568 = vmul.f32 %v672, %v1135
      %v1569 = vmul.f32 %v673, %v1140
      %v1570 = vmul.f32 %v674, %v1145
      %v1571 = vmul.f32 %v675, %v1150
      %v1572 = vmul.f32 %v676, %v1155
      %v1573 = vmul.f32 %v677, %v1160
      %v1574 = vmul.f32 %v678, %v1165
      %v1575 = vmul.f32 %v679, %v1170
      %v1576 = vmul.f32 %v680, %v1175
      %v1577 = vmul.f32 %v681, %v1180
      %v1578 = vmul.f32 %v682, %v1185
      %v1579 = vmul.f32 %v683, %v1190
      %v1580 = vmul.f32 %v684, %v1195
      %v1581 = vmul.f32 %v685, %v1200
      %v1582 = vmul.f32 %v686, %v1205
      %v1583 = vmul.f32 %v687, %v1210
      %v1584 = vmul.f32 %v688, %v1215
      %v1585 = vmul.f32 %v689, %v1220
      %v1586 = vmul.f32 %v690, %v1225
      %v1587 = vmul.f32 %v691, %v1230
      %v1588 = vmul.f32 %v692, %v1235
      %v1589 = vmul.f32 %v693, %v1240
      %v1590 = vmul.f32 %v694, %v1245
      %v1591 = vmul.f32 %v695, %v1250
      %v1592 = vmul.f32 %v696, %v1255
      %v1593 = vmul.f32 %v697, %v1260
      %v1594 = vmul.f32 %v698, %v1265
      %v1595 = vmul.f32 %v699, %v1270
      %v1596 = vmul.f32 %v700, %v1275
      %v1597 = vmul.f32 %v701, %v1280
      %v1598 = vmul.f32 %v702, %v1285
      %v1599 = vmul.f32 %v703, %v1290
      %v1600 = vmul.f32 %v704, %v1295
      %v1601 = vmul.f32 %v705, %v1300
      %v1602 = vmul.f32 %v706, %v1305
      %v1603 = vmul.f32 %v707, %v1310
      %v1604 = vmul.f32 %v708, %v1315
      %v1605 = vmul.f32 %v709, %v1320
      %v1606 = vmul.f32 %v710, %v1325
      %v1607 = vmul.f32 %v711, %v1330
      %v1608 = vmul.f32 %v712, %v1335
      %v1609 = vmul.f32 %v713, %v1340
      %v1610 = vmul.f32 %v714, %v1345
      %v1611 = vmul.f32 %v715, %v1350
      %v1612 = vmul.f32 %v716, %v1355
      %v1613 = vmul.f32 %v717, %v1360
      %v1614 = vmul.f32 %v718, %v1365
      %v1615 = vmul.f32 %v719, %v1370
      %v1616 = vmul.f32 %v720, %v1375
      %v1617 = vmul.f32 %v721, %v1380
      %v1618 = vmul.f32 %v722, %v1385
      %v1619 = vmul.f32 %v723, %v1390
      %v1620 = vmul.f32 %v724, %v1395
      %v1621 = vmul.f32 %v725, %v1400
      %v1622 = vmul.f32 %v726, %v1405
      %v1623 = vmul.f32 %v727, %v1410
      %v1624 = vmul.f32 %v728, %v1415
      %v1625 = vmul.f32 %v729, %v1420
      %v1626 = vmul.f32 %v730, %v1425
      %v1627 = vmul.f32 %v731, %v1430
      %v1628 = vmul.f32 %v732, %v1435
      %v1629 = vmul.f32 %v733, %v1440
      %v1630 = vmul.f32 %v734, %v1445
      %v1631 = vmul.f32 %v735, %v1450
      %v1632 = vmul.f32 %v736, %v1455
      %v1633 = vmul.f32 %v737, %v1460
      %v1634 = vmul.f32 %v738, %v1465
      %v1635 = vmul.f32 %v739, %v1470
      %v1636 = vmul.f32 %v740, %v1475
      %v1637 = vmul.f32 %v741, %v1480
      %v1638 = vmul.f32 %v742, %v1485
      %v1639 = vmul.f32 %v743, %v1490
      %v1640 = vmul.f32 %v744, %v1495
      %v1641 = vmul.f32 %v745, %v1500
      %v1642 = vmul.f32 %v746, %v1505
      %v1643 = vmul.f32 %v747, %v1510
      %v1644 = vmul.f32 %v748, %v1515
      %vm1645 = vcmask 64512
      %1646 = vst.msk [vmem:[%s221] sm:$0xff] %vm1645, %v1517
      %1647 = vst.msk [vmem:[%s221 + $0x8] sm:$0xff] %vm1645, %v1518
      %1648 = vst.msk [vmem:[%s221 + $0x10] sm:$0xff] %vm1645, %v1519
      %1649 = vst.msk [vmem:[%s221 + $0x18] sm:$0xff] %vm1645, %v1520
      %1650 = vst.msk [vmem:[%s221 + $0x20] sm:$0xff] %vm1645, %v1521
      %1651 = vst.msk [vmem:[%s221 + $0x28] sm:$0xff] %vm1645, %v1522
      %1652 = vst.msk [vmem:[%s221 + $0x30] sm:$0xff] %vm1645, %v1523
      %1653 = vst.msk [vmem:[%s221 + $0x38] sm:$0xff] %vm1645, %v1524
      %1654 = vst.msk [vmem:[%s221 + $0x40] sm:$0xff] %vm1645, %v1525
      %1655 = vst.msk [vmem:[%s221 + $0x48] sm:$0xff] %vm1645, %v1526
      %1656 = vst.msk [vmem:[%s221 + $0x50] sm:$0xff] %vm1645, %v1527
      %1657 = vst.msk [vmem:[%s221 + $0x58] sm:$0xff] %vm1645, %v1528
      %1658 = vst.msk [vmem:[%s221 + $0x60] sm:$0xff] %vm1645, %v1529
      %1659 = vst.msk [vmem:[%s221 + $0x68] sm:$0xff] %vm1645, %v1530
      %1660 = vst.msk [vmem:[%s221 + $0x70] sm:$0xff] %vm1645, %v1531
      %1661 = vst.msk [vmem:[%s221 + $0x78] sm:$0xff] %vm1645, %v1532
      %1662 = vst.msk [vmem:[%s221 + $0x80] sm:$0xff] %vm1645, %v1533
      %1663 = vst.msk [vmem:[%s221 + $0x88] sm:$0xff] %vm1645, %v1534
      %1664 = vst.msk [vmem:[%s221 + $0x90] sm:$0xff] %vm1645, %v1535
      %1665 = vst.msk [vmem:[%s221 + $0x98] sm:$0xff] %vm1645, %v1536
      %1666 = vst.msk [vmem:[%s221 + $0xa0] sm:$0xff] %vm1645, %v1537
      %1667 = vst.msk [vmem:[%s221 + $0xa8] sm:$0xff] %vm1645, %v1538
      %1668 = vst.msk [vmem:[%s221 + $0xb0] sm:$0xff] %vm1645, %v1539
      %1669 = vst.msk [vmem:[%s221 + $0xb8] sm:$0xff] %vm1645, %v1540
      %1670 = vst.msk [vmem:[%s221 + $0xc0] sm:$0xff] %vm1645, %v1541
      %1671 = vst.msk [vmem:[%s221 + $0xc8] sm:$0xff] %vm1645, %v1542
      %1672 = vst.msk [vmem:[%s221 + $0xd0] sm:$0xff] %vm1645, %v1543
      %1673 = vst.msk [vmem:[%s221 + $0xd8] sm:$0xff] %vm1645, %v1544
      %1674 = vst.msk [vmem:[%s221 + $0xe0] sm:$0xff] %vm1645, %v1545
      %1675 = vst.msk [vmem:[%s221 + $0xe8] sm:$0xff] %vm1645, %v1546
      %1676 = vst.msk [vmem:[%s221 + $0xf0] sm:$0xff] %vm1645, %v1547
      %1677 = vst.msk [vmem:[%s221 + $0xf8] sm:$0xff] %vm1645, %v1548
      %1678 = vst.msk [vmem:[%s221 + $0x100] sm:$0xff] %vm1645, %v1549
      %1679 = vst.msk [vmem:[%s221 + $0x108] sm:$0xff] %vm1645, %v1550
      %1680 = vst.msk [vmem:[%s221 + $0x110] sm:$0xff] %vm1645, %v1551
      %1681 = vst.msk [vmem:[%s221 + $0x118] sm:$0xff] %vm1645, %v1552
      %1682 = vst.msk [vmem:[%s221 + $0x120] sm:$0xff] %vm1645, %v1553
      %1683 = vst.msk [vmem:[%s221 + $0x128] sm:$0xff] %vm1645, %v1554
      %1684 = vst.msk [vmem:[%s221 + $0x130] sm:$0xff] %vm1645, %v1555
      %1685 = vst.msk [vmem:[%s221 + $0x138] sm:$0xff] %vm1645, %v1556
      %1686 = vst.msk [vmem:[%s221 + $0x140] sm:$0xff] %vm1645, %v1557
      %1687 = vst.msk [vmem:[%s221 + $0x148] sm:$0xff] %vm1645, %v1558
      %1688 = vst.msk [vmem:[%s221 + $0x150] sm:$0xff] %vm1645, %v1559
      %1689 = vst.msk [vmem:[%s221 + $0x158] sm:$0xff] %vm1645, %v1560
      %1690 = vst.msk [vmem:[%s221 + $0x160] sm:$0xff] %vm1645, %v1561
      %1691 = vst.msk [vmem:[%s221 + $0x168] sm:$0xff] %vm1645, %v1562
      %1692 = vst.msk [vmem:[%s221 + $0x170] sm:$0xff] %vm1645, %v1563
      %1693 = vst.msk [vmem:[%s221 + $0x178] sm:$0xff] %vm1645, %v1564
      %1694 = vst.msk [vmem:[%s221 + $0x180] sm:$0xff] %vm1645, %v1565
      %1695 = vst.msk [vmem:[%s221 + $0x188] sm:$0xff] %vm1645, %v1566
      %1696 = vst.msk [vmem:[%s221 + $0x190] sm:$0xff] %vm1645, %v1567
      %1697 = vst.msk [vmem:[%s221 + $0x198] sm:$0xff] %vm1645, %v1568
      %1698 = vst.msk [vmem:[%s221 + $0x1a0] sm:$0xff] %vm1645, %v1569
      %1699 = vst.msk [vmem:[%s221 + $0x1a8] sm:$0xff] %vm1645, %v1570
      %1700 = vst.msk [vmem:[%s221 + $0x1b0] sm:$0xff] %vm1645, %v1571
      %1701 = vst.msk [vmem:[%s221 + $0x1b8] sm:$0xff] %vm1645, %v1572
      %1702 = vst.msk [vmem:[%s221 + $0x1c0] sm:$0xff] %vm1645, %v1573
      %1703 = vst.msk [vmem:[%s221 + $0x1c8] sm:$0xff] %vm1645, %v1574
      %1704 = vst.msk [vmem:[%s221 + $0x1d0] sm:$0xff] %vm1645, %v1575
      %1705 = vst.msk [vmem:[%s221 + $0x1d8] sm:$0xff] %vm1645, %v1576
      %1706 = vst.msk [vmem:[%s221 + $0x1e0] sm:$0xff] %vm1645, %v1577
      %1707 = vst.msk [vmem:[%s221 + $0x1e8] sm:$0xff] %vm1645, %v1578
      %1708 = vst.msk [vmem:[%s221 + $0x1f0] sm:$0xff] %vm1645, %v1579
      %1709 = vst.msk [vmem:[%s221 + $0x1f8] sm:$0xff] %vm1645, %v1580
      %1710 = vst.msk [vmem:[%s221 + $0x200] sm:$0xff] %vm1645, %v1581
      %1711 = vst.msk [vmem:[%s221 + $0x208] sm:$0xff] %vm1645, %v1582
      %1712 = vst.msk [vmem:[%s221 + $0x210] sm:$0xff] %vm1645, %v1583
      %1713 = vst.msk [vmem:[%s221 + $0x218] sm:$0xff] %vm1645, %v1584
      %1714 = vst.msk [vmem:[%s221 + $0x220] sm:$0xff] %vm1645, %v1585
      %1715 = vst.msk [vmem:[%s221 + $0x228] sm:$0xff] %vm1645, %v1586
      %1716 = vst.msk [vmem:[%s221 + $0x230] sm:$0xff] %vm1645, %v1587
      %1717 = vst.msk [vmem:[%s221 + $0x238] sm:$0xff] %vm1645, %v1588
      %1718 = vst.msk [vmem:[%s221 + $0x240] sm:$0xff] %vm1645, %v1589
      %1719 = vst.msk [vmem:[%s221 + $0x248] sm:$0xff] %vm1645, %v1590
      %1720 = vst.msk [vmem:[%s221 + $0x250] sm:$0xff] %vm1645, %v1591
      %1721 = vst.msk [vmem:[%s221 + $0x258] sm:$0xff] %vm1645, %v1592
      %1722 = vst.msk [vmem:[%s221 + $0x260] sm:$0xff] %vm1645, %v1593
      %1723 = vst.msk [vmem:[%s221 + $0x268] sm:$0xff] %vm1645, %v1594
      %1724 = vst.msk [vmem:[%s221 + $0x270] sm:$0xff] %vm1645, %v1595
      %1725 = vst.msk [vmem:[%s221 + $0x278] sm:$0xff] %vm1645, %v1596
      %1726 = vst.msk [vmem:[%s221 + $0x280] sm:$0xff] %vm1645, %v1597
      %1727 = vst.msk [vmem:[%s221 + $0x288] sm:$0xff] %vm1645, %v1598
      %1728 = vst.msk [vmem:[%s221 + $0x290] sm:$0xff] %vm1645, %v1599
      %1729 = vst.msk [vmem:[%s221 + $0x298] sm:$0xff] %vm1645, %v1600
      %1730 = vst.msk [vmem:[%s221 + $0x2a0] sm:$0xff] %vm1645, %v1601
      %1731 = vst.msk [vmem:[%s221 + $0x2a8] sm:$0xff] %vm1645, %v1602
      %1732 = vst.msk [vmem:[%s221 + $0x2b0] sm:$0xff] %vm1645, %v1603
      %1733 = vst.msk [vmem:[%s221 + $0x2b8] sm:$0xff] %vm1645, %v1604
      %1734 = vst.msk [vmem:[%s221 + $0x2c0] sm:$0xff] %vm1645, %v1605
      %1735 = vst.msk [vmem:[%s221 + $0x2c8] sm:$0xff] %vm1645, %v1606
      %1736 = vst.msk [vmem:[%s221 + $0x2d0] sm:$0xff] %vm1645, %v1607
      %1737 = vst.msk [vmem:[%s221 + $0x2d8] sm:$0xff] %vm1645, %v1608
      %1738 = vst.msk [vmem:[%s221 + $0x2e0] sm:$0xff] %vm1645, %v1609
      %1739 = vst.msk [vmem:[%s221 + $0x2e8] sm:$0xff] %vm1645, %v1610
      %1740 = vst.msk [vmem:[%s221 + $0x2f0] sm:$0xff] %vm1645, %v1611
      %1741 = vst.msk [vmem:[%s221 + $0x2f8] sm:$0xff] %vm1645, %v1612
      %1742 = vst.msk [vmem:[%s221 + $0x300] sm:$0xff] %vm1645, %v1613
      %1743 = vst.msk [vmem:[%s221 + $0x308] sm:$0xff] %vm1645, %v1614
      %1744 = vst.msk [vmem:[%s221 + $0x310] sm:$0xff] %vm1645, %v1615
      %1745 = vst.msk [vmem:[%s221 + $0x318] sm:$0xff] %vm1645, %v1616
      %1746 = vst.msk [vmem:[%s221 + $0x320] sm:$0xff] %vm1645, %v1617
      %1747 = vst.msk [vmem:[%s221 + $0x328] sm:$0xff] %vm1645, %v1618
      %1748 = vst.msk [vmem:[%s221 + $0x330] sm:$0xff] %vm1645, %v1619
      %1749 = vst.msk [vmem:[%s221 + $0x338] sm:$0xff] %vm1645, %v1620
      %1750 = vst.msk [vmem:[%s221 + $0x340] sm:$0xff] %vm1645, %v1621
      %1751 = vst.msk [vmem:[%s221 + $0x348] sm:$0xff] %vm1645, %v1622
      %1752 = vst.msk [vmem:[%s221 + $0x350] sm:$0xff] %vm1645, %v1623
      %1753 = vst.msk [vmem:[%s221 + $0x358] sm:$0xff] %vm1645, %v1624
      %1754 = vst.msk [vmem:[%s221 + $0x360] sm:$0xff] %vm1645, %v1625
      %1755 = vst.msk [vmem:[%s221 + $0x368] sm:$0xff] %vm1645, %v1626
      %1756 = vst.msk [vmem:[%s221 + $0x370] sm:$0xff] %vm1645, %v1627
      %1757 = vst.msk [vmem:[%s221 + $0x378] sm:$0xff] %vm1645, %v1628
      %1758 = vst.msk [vmem:[%s221 + $0x380] sm:$0xff] %vm1645, %v1629
      %1759 = vst.msk [vmem:[%s221 + $0x388] sm:$0xff] %vm1645, %v1630
      %1760 = vst.msk [vmem:[%s221 + $0x390] sm:$0xff] %vm1645, %v1631
      %1761 = vst.msk [vmem:[%s221 + $0x398] sm:$0xff] %vm1645, %v1632
      %1762 = vst.msk [vmem:[%s221 + $0x3a0] sm:$0xff] %vm1645, %v1633
      %1763 = vst.msk [vmem:[%s221 + $0x3a8] sm:$0xff] %vm1645, %v1634
      %1764 = vst.msk [vmem:[%s221 + $0x3b0] sm:$0xff] %vm1645, %v1635
      %1765 = vst.msk [vmem:[%s221 + $0x3b8] sm:$0xff] %vm1645, %v1636
      %1766 = vst.msk [vmem:[%s221 + $0x3c0] sm:$0xff] %vm1645, %v1637
      %1767 = vst.msk [vmem:[%s221 + $0x3c8] sm:$0xff] %vm1645, %v1638
      %1768 = vst.msk [vmem:[%s221 + $0x3d0] sm:$0xff] %vm1645, %v1639
      %1769 = vst.msk [vmem:[%s221 + $0x3d8] sm:$0xff] %vm1645, %v1640
      %1770 = vst.msk [vmem:[%s221 + $0x3e0] sm:$0xff] %vm1645, %v1641
      %1771 = vst.msk [vmem:[%s221 + $0x3e8] sm:$0xff] %vm1645, %v1642
      %1772 = vst.msk [vmem:[%s221 + $0x3f0] sm:$0xff] %vm1645, %v1643
      %1773 = vst.msk [vmem:[%s221 + $0x3f8] sm:$0xff] %vm1645, %v1644
      %s1774 = smul.u32 128, %s15
      %p1775 = scmp.lt.s32.totalorder %s1774, 255
      %s1776 = scalar_select %p1775, %s1774, 255
      %s1777 = smul.addr %s1776, 8
      %s1778 = scalar_lea.vmem %s4, %s1777
      // Predicated region
      $region37: #{up_forward.7} parent=35 // pred_check
        %p1779 = pneg %p127
      $region38: #{up_forward.7} parent=35 // pred_check_branch
        %1781 = sbr.rel (%p1779) target = $region40
      $region39: #{up_forward.7} parent=35 // pred_region
        %s1782 = smul.u32 128, %s15
      $region40: #{up_forward.7} parent=35 // pred_fallthru
        _
    $region36: #{up_forward.7} parent=5 // pred_fallthru
      _
    %p1783 = scmp.le.s32.totalorder 2, %s10
    // Predicated region
    $region41: #{up_forward.7} parent=5 // pred_check
      %p1784 = pneg %p1783
    $region42: #{up_forward.7} parent=5 // pred_check_branch
      %1786 = sbr.rel (%p1784) target = $region44
    $region43: #{up_forward.7} parent=5 // pred_region
      %s1787 = ssub.s32 %s10, 2
      // Predicated region
      $region45: #{up_forward.7} parent=43 // pred_check
        %p1788 = pneg %p133
      $region46: #{up_forward.7} parent=43 // pred_check_branch
        %1790 = sbr.rel (%p1788) target = $region48
      $region47: #{up_forward.7} parent=43 // pred_region
        %s1791 = smul.u32 128, %s16
        %p1792 = scmp.lt.s32.totalorder %s1791, 255
        %s1793 = scalar_select %p1792, %s1791, 255
        %s1794 = smul.addr %s1793, 8
        %s1795 = scalar_lea.vmem %s4, %s1794
      $region48: #{up_forward.7} parent=43 // pred_fallthru
        _
    $region44: #{up_forward.7} parent=5 // pred_fallthru
      _
  $region6: #{up_forward.7} parent=0 // loop_footer
    %s14 = sadd.s32 1, %s10
  $region7: #{up_forward.7} parent=0 // loop_footer_branch
    %9 = sbr.rel target = $region3
  $region8: #{up_forward.7} parent=0 // loop_exit
    _

// kernel: up_forward.6
$region0: #{up_forward.6}
  #allocation0 [shape = 'u32[]', space=smem, size = 0x4, offset = 0x4, fixed_abs, tag = 'smem constant byte address 0x4 - core index']
  #allocation1 [shape = 'u32[144,128]{1,0:T(1,128)}', space=vmem, size = 0x12000, scoped, tag = 'internal scratch']
  #allocation2 [shape = 'f32[256,216]{1,0:T(8,128)}', space=vmem, size = 0x40000, scoped, tag = 'scratch operand']
  %s0 = inlined_call_operand.vmem [shape: f32[2272,8], index: 0, kind: input, shape index: {}]
  %s1 = inlined_call_operand.vmem [shape: bf16[216,8], index: 1, kind: input, shape index: {}]
  %s2 = inlined_call_operand.vmem [shape: f32[2048,1], index: 2, kind: input, shape index: {}]
  %s3 = inlined_call_operand.vmem [shape: f32[2048,8], index: 3, kind: output, shape index: {0}]
  %s4 = inlined_call_operand.vmem [shape: f32[8,8,8], index: 4, kind: output, shape index: {1}]
  %5 = xla_tuple %s3, %s4
  %s6 = sld [smem:[#allocation0]]
  $region53: #{up_forward.6} parent=0
    _
  %s8 = ssub.s32 1, %s6
  %s9 = scalar_select 0, %s8, %s6
  loop: start=0, step=1, limit=10
  $region2: #{up_forward.6} parent=0 // loop_pre_header
    _
  $region3: #{up_forward.6} parent=0 // loop_header
    %s11 = sphi 0, %s15
    %p12 = scmp.ge.s32.totalorder %s11, 10
    %s19 = sphi 0, %s19
    %s21 = sphi 0, %s19
    %s22 = sphi 0, %s21
    %s36 = sphi 0, %s22
    %s40 = sphi 0, %s40
    %s42 = sphi 0, %s40
    %s43 = sphi 0, %s42
    %s57 = sphi 0, %s43
    %s63 = sphi 0, %s65
    %s66 = sphi 0, %s63
    %s67 = sphi 0, %s66
    %s83 = sphi 0, %s67
    %s89 = sphi 0, %s91
    %s92 = sphi 0, %s89
    %s93 = sphi 0, %s92
    %s109 = sphi 0, %s93
    %s115 = sphi 0, %s117
    %s118 = sphi 0, %s115
    %s119 = sphi 0, %s118
    %s135 = sphi 0, %s119
  $region4: #{up_forward.6} parent=0 // loop_header_branch
    %14 = sbr.rel (%p12) target = $region8
  $region5: #{up_forward.6} parent=0 // loop_body
    %s16 = ssub.s32 %s11, 1
    %s17 = ssub.s32 %s11, 2
    %s18 = sadd.s32 %s11, 1
    %s20 = sadd.s32 %s19, 1
    %p23 = scmp.eq.s32.totalorder %s11, 7
    %p24 = scmp.ne.s32.totalorder %s19, %s21
    %p25 = scmp.eq.s32.totalorder %s11, 0
    %p26 = por %p24, %p25
    %p27 = scmp.ne.s32.totalorder %s19, %s21
    %p28 = scmp.eq.s32.totalorder %s16, 7
    %p29 = por %p27, %p28
    %p30 = scmp.ne.s32.totalorder %s21, %s22
    %p31 = scmp.eq.s32.totalorder %s16, 0
    %p32 = por %p30, %p31
    %p33 = scmp.ne.s32.totalorder %s21, %s22
    %p34 = scmp.eq.s32.totalorder %s17, 7
    %p35 = por %p33, %p34
    %p37 = scmp.ne.s32.totalorder %s22, %s36
    %p38 = scmp.eq.s32.totalorder %s17, 0
    %p39 = por %p37, %p38
    %s41 = sadd.s32 %s40, 1
    %p44 = scmp.eq.s32.totalorder %s11, 7
    %p45 = scmp.ne.s32.totalorder %s40, %s42
    %p46 = scmp.eq.s32.totalorder %s11, 0
    %p47 = por %p45, %p46
    %p48 = scmp.ne.s32.totalorder %s40, %s42
    %p49 = scmp.eq.s32.totalorder %s16, 7
    %p50 = por %p48, %p49
    %p51 = scmp.ne.s32.totalorder %s42, %s43
    %p52 = scmp.eq.s32.totalorder %s16, 0
    %p53 = por %p51, %p52
    %p54 = scmp.ne.s32.totalorder %s42, %s43
    %p55 = scmp.eq.s32.totalorder %s17, 7
    %p56 = por %p54, %p55
    %p58 = scmp.ne.s32.totalorder %s43, %s57
    %p59 = scmp.eq.s32.totalorder %s17, 0
    %p60 = por %p58, %p59
    %s61 = ssub.s32 %s11, %s18
    %p62 = scmp.eq.s32.totalorder %s61, 0
    %s64 = sadd.s32 %s63, 1
    %s65 = scalar_select %p62, %s63, %s64
    %p68 = pneg %p62
    %p69 = scmp.eq.s32.totalorder %s11, 7
    %p70 = por %p68, %p69
    %p71 = scmp.ne.s32.totalorder %s63, %s66
    %p72 = scmp.eq.s32.totalorder %s11, 0
    %p73 = por %p71, %p72
    %p74 = scmp.ne.s32.totalorder %s63, %s66
    %p75 = scmp.eq.s32.totalorder %s16, 7
    %p76 = por %p74, %p75
    %p77 = scmp.ne.s32.totalorder %s66, %s67
    %p78 = scmp.eq.s32.totalorder %s16, 0
    %p79 = por %p77, %p78
    %p80 = scmp.ne.s32.totalorder %s66, %s67
    %p81 = scmp.eq.s32.totalorder %s17, 7
    %p82 = por %p80, %p81
    %p84 = scmp.ne.s32.totalorder %s67, %s83
    %p85 = scmp.eq.s32.totalorder %s17, 0
    %p86 = por %p84, %p85
    %s87 = ssub.s32 %s11, %s18
    %p88 = scmp.eq.s32.totalorder %s87, 0
    %s90 = sadd.s32 %s89, 1
    %s91 = scalar_select %p88, %s89, %s90
    %p94 = pneg %p88
    %p95 = scmp.eq.s32.totalorder %s11, 7
    %p96 = por %p94, %p95
    %p97 = scmp.ne.s32.totalorder %s89, %s92
    %p98 = scmp.eq.s32.totalorder %s11, 0
    %p99 = por %p97, %p98
    %p100 = scmp.ne.s32.totalorder %s89, %s92
    %p101 = scmp.eq.s32.totalorder %s16, 7
    %p102 = por %p100, %p101
    %p103 = scmp.ne.s32.totalorder %s92, %s93
    %p104 = scmp.eq.s32.totalorder %s16, 0
    %p105 = por %p103, %p104
    %p106 = scmp.ne.s32.totalorder %s92, %s93
    %p107 = scmp.eq.s32.totalorder %s17, 7
    %p108 = por %p106, %p107
    %p110 = scmp.ne.s32.totalorder %s93, %s109
    %p111 = scmp.eq.s32.totalorder %s17, 0
    %p112 = por %p110, %p111
    %s113 = ssub.s32 %s11, %s18
    %p114 = scmp.eq.s32.totalorder %s113, 0
    %s116 = sadd.s32 %s115, 1
    %s117 = scalar_select %p114, %s115, %s116
    %p120 = pneg %p114
    %p121 = scmp.eq.s32.totalorder %s11, 7
    %p122 = por %p120, %p121
    %p123 = scmp.ne.s32.totalorder %s115, %s118
    %p124 = scmp.eq.s32.totalorder %s11, 0
    %p125 = por %p123, %p124
    %p126 = scmp.ne.s32.totalorder %s115, %s118
    %p127 = scmp.eq.s32.totalorder %s16, 7
    %p128 = por %p126, %p127
    %p129 = scmp.ne.s32.totalorder %s118, %s119
    %p130 = scmp.eq.s32.totalorder %s16, 0
    %p131 = por %p129, %p130
    %p132 = scmp.ne.s32.totalorder %s118, %s119
    %p133 = scmp.eq.s32.totalorder %s17, 7
    %p134 = por %p132, %p133
    %p136 = scmp.ne.s32.totalorder %s119, %s135
    %p137 = scmp.eq.s32.totalorder %s17, 0
    %p138 = por %p136, %p137
    %p139 = scmp.le.s32.totalorder 1, %s11
    %p140 = scmp.lt.s32.totalorder %s11, 9
    %p141 = pnand %p139, %p140
    %p142 = pneg %p141
    // Predicated region
    $region9: #{up_forward.6} parent=5 // pred_check
      _
    $region10: #{up_forward.6} parent=5 // pred_check_branch
      %144 = sbr.rel (%p141) target = $region12
    $region11: #{up_forward.6} parent=5 // pred_region
      %s145 = ssub.s32 %s11, 1
      // Predicated region
      $region13: #{up_forward.6} parent=11 // pred_check
        %p146 = pneg %p32
      $region14: #{up_forward.6} parent=11 // pred_check_branch
        %148 = sbr.rel (%p146) target = $region16
      $region15: #{up_forward.6} parent=11 // pred_region
        _
      $region16: #{up_forward.6} parent=11 // pred_fallthru
        _
      // Predicated region
      $region17: #{up_forward.6} parent=11 // pred_check
        %p149 = pneg %p53
      $region18: #{up_forward.6} parent=11 // pred_check_branch
        %151 = sbr.rel (%p149) target = $region20
      $region19: #{up_forward.6} parent=11 // pred_region
        _
      $region20: #{up_forward.6} parent=11 // pred_fallthru
        _
    $region12: #{up_forward.6} parent=5 // pred_fallthru
      _
    %p152 = scmp.lt.s32.totalorder %s11, 8
    // Predicated region
    $region21: #{up_forward.6} parent=5 // pred_check
      %p153 = pneg %p152
    $region22: #{up_forward.6} parent=5 // pred_check_branch
      %155 = sbr.rel (%p153) target = $region24
    $region23: #{up_forward.6} parent=5 // pred_region
      // Predicated region
      $region25: #{up_forward.6} parent=23 // pred_check
        %p156 = pneg %p73
      $region26: #{up_forward.6} parent=23 // pred_check_branch
        %158 = sbr.rel (%p156) target = $region28
      $region27: #{up_forward.6} parent=23 // pred_region
        %s159 = smul.u32 32, %s11
        %p160 = scmp.lt.s32.totalorder %s159, 255
        %s161 = scalar_select %p160, %s159, 255
        %s162 = smul.addr %s161, 8
        %s163 = scalar_lea.vmem %s2, %s162
        %s164 = smul.u32 32, %s11
      $region28: #{up_forward.6} parent=23 // pred_fallthru
        _
    $region24: #{up_forward.6} parent=5 // pred_fallthru
      _
    %p165 = scmp.le.s32.totalorder 1, %s11
    %p166 = scmp.lt.s32.totalorder %s11, 9
    %p167 = pnand %p165, %p166
    %p168 = pneg %p167
    // Predicated region
    $region29: #{up_forward.6} parent=5 // pred_check
      _
    $region30: #{up_forward.6} parent=5 // pred_check_branch
      %170 = sbr.rel (%p167) target = $region32
    $region31: #{up_forward.6} parent=5 // pred_region
      %s171 = ssub.s32 %s11, 1
      %p172 = pneg %p32
      %p173 = pneg %p29
      %p174 = pneg %p53
      %p175 = pneg %p50
      %s176 = smul.u32 32, %s16
      %p177 = scmp.lt.s32.totalorder %s176, 255
      %s178 = scalar_select %p177, %s176, 255
      %s179 = smul.addr %s178, 8
      %s180 = scalar_lea.vmem %s2, %s179
      %p181 = pneg %p79
      %p182 = pneg %p76
      %p183 = pneg %p105
      %p184 = pneg %p102
      %s185 = smul.u32 32, %s16
      %p186 = scmp.lt.s32.totalorder %s185, 255
      %s187 = scalar_select %p186, %s185, 255
      %s188 = smul.addr %s187, 8
      %s189 = scalar_lea.vmem %s3, %s188
      %p190 = pneg %p131
      %p191 = pneg %p128
      %p192 = scmp.lt.s32.totalorder %s16, 7
      %s193 = scalar_select %p192, %s16, 7
      %s194 = smul.addr %s193, 8
      %s195 = scalar_lea.vmem %s4, %s194
      %s196 = smul.u32 32, %s16
      %p197 = scmp.lt.s32.totalorder %s196, 255
      %s198 = scalar_select %p197, %s196, 255
      %s199 = smul.addr %s198, 8
      %s200 = scalar_lea.vmem %s2, %s199
      %s201 = smul.u32 32, %s16
      %s202 = smul.u32 32, %s16
      %p203 = scmp.lt.s32.totalorder %s202, 255
      %s204 = scalar_select %p203, %s202, 255
      %s205 = smul.addr %s204, 8
      %s206 = scalar_lea.vmem %s3, %s205
      %s207 = smul.u32 32, %s16
      %p208 = scmp.lt.s32.totalorder %s16, 7
      %s209 = scalar_select %p208, %s16, 7
      %s210 = smul.addr %s209, 8
      %s211 = scalar_lea.vmem %s4, %s210
      %s213 = smul.u32 %s16, 256
      %s214 = scalar_lea.vmem %s0, %s213
      %v215 = vld [vmem:[%s214] sm:$0xff]
      %v216 = vld [vmem:[%s214 + $0x8] sm:$0xff]
      %v217 = vld [vmem:[%s214 + $0x10] sm:$0xff]
      %v218 = vld [vmem:[%s214 + $0x18] sm:$0xff]
      %v219 = vld [vmem:[%s214 + $0x20] sm:$0xff]
      %v220 = vld [vmem:[%s214 + $0x28] sm:$0xff]
      %v221 = vld [vmem:[%s214 + $0x30] sm:$0xff]
      %v222 = vld [vmem:[%s214 + $0x38] sm:$0xff]
      %v223 = vld [vmem:[%s214 + $0x40] sm:$0xff]
      %v224 = vld [vmem:[%s214 + $0x48] sm:$0xff]
      %v225 = vld [vmem:[%s214 + $0x50] sm:$0xff]
      %v226 = vld [vmem:[%s214 + $0x58] sm:$0xff]
      %v227 = vld [vmem:[%s214 + $0x60] sm:$0xff]
      %v228 = vld [vmem:[%s214 + $0x68] sm:$0xff]
      %v229 = vld [vmem:[%s214 + $0x70] sm:$0xff]
      %v230 = vld [vmem:[%s214 + $0x78] sm:$0xff]
      %v231 = vld [vmem:[%s214 + $0x80] sm:$0xff]
      %v232 = vld [vmem:[%s214 + $0x88] sm:$0xff]
      %v233 = vld [vmem:[%s214 + $0x90] sm:$0xff]
      %v234 = vld [vmem:[%s214 + $0x98] sm:$0xff]
      %v235 = vld [vmem:[%s214 + $0xa0] sm:$0xff]
      %v236 = vld [vmem:[%s214 + $0xa8] sm:$0xff]
      %v237 = vld [vmem:[%s214 + $0xb0] sm:$0xff]
      %v238 = vld [vmem:[%s214 + $0xb8] sm:$0xff]
      %v239 = vld [vmem:[%s214 + $0xc0] sm:$0xff]
      %v240 = vld [vmem:[%s214 + $0xc8] sm:$0xff]
      %v241 = vld [vmem:[%s214 + $0xd0] sm:$0xff]
      %v242 = vld [vmem:[%s214 + $0xd8] sm:$0xff]
      %v243 = vld [vmem:[%s214 + $0xe0] sm:$0xff]
      %v244 = vld [vmem:[%s214 + $0xe8] sm:$0xff]
      %v245 = vld [vmem:[%s214 + $0xf0] sm:$0xff]
      %v246 = vld [vmem:[%s214 + $0xf8] sm:$0xff]
      %vm247 = vcmask 64512
      %248 = vst.msk [vmem:[#allocation2] sm:$0xff] %vm247, %v215
      %249 = vst.msk [vmem:[#allocation2 + $0x10] sm:$0xff] %vm247, %v216
      %250 = vst.msk [vmem:[#allocation2 + $0x20] sm:$0xff] %vm247, %v217
      %251 = vst.msk [vmem:[#allocation2 + $0x30] sm:$0xff] %vm247, %v218
      %252 = vst.msk [vmem:[#allocation2 + $0x40] sm:$0xff] %vm247, %v219
      %253 = vst.msk [vmem:[#allocation2 + $0x50] sm:$0xff] %vm247, %v220
      %254 = vst.msk [vmem:[#allocation2 + $0x60] sm:$0xff] %vm247, %v221
      %255 = vst.msk [vmem:[#allocation2 + $0x70] sm:$0xff] %vm247, %v222
      %256 = vst.msk [vmem:[#allocation2 + $0x80] sm:$0xff] %vm247, %v223
      %257 = vst.msk [vmem:[#allocation2 + $0x90] sm:$0xff] %vm247, %v224
      %258 = vst.msk [vmem:[#allocation2 + $0xa0] sm:$0xff] %vm247, %v225
      %259 = vst.msk [vmem:[#allocation2 + $0xb0] sm:$0xff] %vm247, %v226
      %260 = vst.msk [vmem:[#allocation2 + $0xc0] sm:$0xff] %vm247, %v227
      %261 = vst.msk [vmem:[#allocation2 + $0xd0] sm:$0xff] %vm247, %v228
      %262 = vst.msk [vmem:[#allocation2 + $0xe0] sm:$0xff] %vm247, %v229
      %263 = vst.msk [vmem:[#allocation2 + $0xf0] sm:$0xff] %vm247, %v230
      %264 = vst.msk [vmem:[#allocation2 + $0x100] sm:$0xff] %vm247, %v231
      %265 = vst.msk [vmem:[#allocation2 + $0x110] sm:$0xff] %vm247, %v232
      %266 = vst.msk [vmem:[#allocation2 + $0x120] sm:$0xff] %vm247, %v233
      %267 = vst.msk [vmem:[#allocation2 + $0x130] sm:$0xff] %vm247, %v234
      %268 = vst.msk [vmem:[#allocation2 + $0x140] sm:$0xff] %vm247, %v235
      %269 = vst.msk [vmem:[#allocation2 + $0x150] sm:$0xff] %vm247, %v236
      %270 = vst.msk [vmem:[#allocation2 + $0x160] sm:$0xff] %vm247, %v237
      %271 = vst.msk [vmem:[#allocation2 + $0x170] sm:$0xff] %vm247, %v238
      %272 = vst.msk [vmem:[#allocation2 + $0x180] sm:$0xff] %vm247, %v239
      %273 = vst.msk [vmem:[#allocation2 + $0x190] sm:$0xff] %vm247, %v240
      %274 = vst.msk [vmem:[#allocation2 + $0x1a0] sm:$0xff] %vm247, %v241
      %275 = vst.msk [vmem:[#allocation2 + $0x1b0] sm:$0xff] %vm247, %v242
      %276 = vst.msk [vmem:[#allocation2 + $0x1c0] sm:$0xff] %vm247, %v243
      %277 = vst.msk [vmem:[#allocation2 + $0x1d0] sm:$0xff] %vm247, %v244
      %278 = vst.msk [vmem:[#allocation2 + $0x1e0] sm:$0xff] %vm247, %v245
      %279 = vst.msk [vmem:[#allocation2 + $0x1f0] sm:$0xff] %vm247, %v246
      %s280 = sadd.s32 %s213, 1
      %s281 = scalar_lea.vmem %s0, %s280
      %v282 = vld [vmem:[%s281] sm:$0xff]
      %v283 = vld [vmem:[%s281 + $0x8] sm:$0xff]
      %v284 = vld [vmem:[%s281 + $0x10] sm:$0xff]
      %v285 = vld [vmem:[%s281 + $0x18] sm:$0xff]
      %v286 = vld [vmem:[%s281 + $0x20] sm:$0xff]
      %v287 = vld [vmem:[%s281 + $0x28] sm:$0xff]
      %v288 = vld [vmem:[%s281 + $0x30] sm:$0xff]
      %v289 = vld [vmem:[%s281 + $0x38] sm:$0xff]
      %v290 = vld [vmem:[%s281 + $0x40] sm:$0xff]
      %v291 = vld [vmem:[%s281 + $0x48] sm:$0xff]
      %v292 = vld [vmem:[%s281 + $0x50] sm:$0xff]
      %v293 = vld [vmem:[%s281 + $0x58] sm:$0xff]
      %v294 = vld [vmem:[%s281 + $0x60] sm:$0xff]
      %v295 = vld [vmem:[%s281 + $0x68] sm:$0xff]
      %v296 = vld [vmem:[%s281 + $0x70] sm:$0xff]
      %v297 = vld [vmem:[%s281 + $0x78] sm:$0xff]
      %v298 = vld [vmem:[%s281 + $0x80] sm:$0xff]
      %v299 = vld [vmem:[%s281 + $0x88] sm:$0xff]
      %v300 = vld [vmem:[%s281 + $0x90] sm:$0xff]
      %v301 = vld [vmem:[%s281 + $0x98] sm:$0xff]
      %v302 = vld [vmem:[%s281 + $0xa0] sm:$0xff]
      %v303 = vld [vmem:[%s281 + $0xa8] sm:$0xff]
      %v304 = vld [vmem:[%s281 + $0xb0] sm:$0xff]
      %v305 = vld [vmem:[%s281 + $0xb8] sm:$0xff]
      %v306 = vld [vmem:[%s281 + $0xc0] sm:$0xff]
      %v307 = vld [vmem:[%s281 + $0xc8] sm:$0xff]
      %v308 = vld [vmem:[%s281 + $0xd0] sm:$0xff]
      %v309 = vld [vmem:[%s281 + $0xd8] sm:$0xff]
      %v310 = vld [vmem:[%s281 + $0xe0] sm:$0xff]
      %v311 = vld [vmem:[%s281 + $0xe8] sm:$0xff]
      %v312 = vld [vmem:[%s281 + $0xf0] sm:$0xff]
      %v313 = vld [vmem:[%s281 + $0xf8] sm:$0xff]
      %346 = vrot.lane.b32.xlu0 %v282, 8
      %v347 = vpop.permute.xlu0 %346
      %348 = vrot.lane.b32.xlu0 %v283, 8
      %v349 = vpop.permute.xlu0 %348
      %350 = vrot.lane.b32.xlu0 %v284, 8
      %v351 = vpop.permute.xlu0 %350
      %352 = vrot.lane.b32.xlu0 %v285, 8
      %v353 = vpop.permute.xlu0 %352
      %354 = vrot.lane.b32.xlu0 %v286, 8
      %v355 = vpop.permute.xlu0 %354
      %356 = vrot.lane.b32.xlu0 %v287, 8
      %v357 = vpop.permute.xlu0 %356
      %358 = vrot.lane.b32.xlu0 %v288, 8
      %v359 = vpop.permute.xlu0 %358
      %360 = vrot.lane.b32.xlu0 %v289, 8
      %v361 = vpop.permute.xlu0 %360
      %362 = vrot.lane.b32.xlu0 %v290, 8
      %v363 = vpop.permute.xlu0 %362
      %364 = vrot.lane.b32.xlu0 %v291, 8
      %v365 = vpop.permute.xlu0 %364
      %366 = vrot.lane.b32.xlu0 %v292, 8
      %v367 = vpop.permute.xlu0 %366
      %368 = vrot.lane.b32.xlu0 %v293, 8
      %v369 = vpop.permute.xlu0 %368
      %370 = vrot.lane.b32.xlu0 %v294, 8
      %v371 = vpop.permute.xlu0 %370
      %372 = vrot.lane.b32.xlu0 %v295, 8
      %v373 = vpop.permute.xlu0 %372
      %374 = vrot.lane.b32.xlu0 %v296, 8
      %v375 = vpop.permute.xlu0 %374
      %376 = vrot.lane.b32.xlu0 %v297, 8
      %v377 = vpop.permute.xlu0 %376
      %378 = vrot.lane.b32.xlu0 %v298, 8
      %v379 = vpop.permute.xlu0 %378
      %380 = vrot.lane.b32.xlu0 %v299, 8
      %v381 = vpop.permute.xlu0 %380
      %382 = vrot.lane.b32.xlu0 %v300, 8
      %v383 = vpop.permute.xlu0 %382
      %384 = vrot.lane.b32.xlu0 %v301, 8
      %v385 = vpop.permute.xlu0 %384
      %386 = vrot.lane.b32.xlu0 %v302, 8
      %v387 = vpop.permute.xlu0 %386
      %388 = vrot.lane.b32.xlu0 %v303, 8
      %v389 = vpop.permute.xlu0 %388
      %390 = vrot.lane.b32.xlu0 %v304, 8
      %v391 = vpop.permute.xlu0 %390
      %392 = vrot.lane.b32.xlu0 %v305, 8
      %v393 = vpop.permute.xlu0 %392
      %394 = vrot.lane.b32.xlu0 %v306, 8
      %v395 = vpop.permute.xlu0 %394
      %396 = vrot.lane.b32.xlu0 %v307, 8
      %v397 = vpop.permute.xlu0 %396
      %398 = vrot.lane.b32.xlu0 %v308, 8
      %v399 = vpop.permute.xlu0 %398
      %400 = vrot.lane.b32.xlu0 %v309, 8
      %v401 = vpop.permute.xlu0 %400
      %402 = vrot.lane.b32.xlu0 %v310, 8
      %v403 = vpop.permute.xlu0 %402
      %404 = vrot.lane.b32.xlu0 %v311, 8
      %v405 = vpop.permute.xlu0 %404
      %406 = vrot.lane.b32.xlu0 %v312, 8
      %v407 = vpop.permute.xlu0 %406
      %408 = vrot.lane.b32.xlu0 %v313, 8
      %v409 = vpop.permute.xlu0 %408
      %vm442 = vcmask 130112
      %443 = vst.msk [vmem:[#allocation2] sm:$0xff] %vm442, %v347
      %444 = vst.msk [vmem:[#allocation2 + $0x10] sm:$0xff] %vm442, %v349
      %445 = vst.msk [vmem:[#allocation2 + $0x20] sm:$0xff] %vm442, %v351
      %446 = vst.msk [vmem:[#allocation2 + $0x30] sm:$0xff] %vm442, %v353
      %447 = vst.msk [vmem:[#allocation2 + $0x40] sm:$0xff] %vm442, %v355
      %448 = vst.msk [vmem:[#allocation2 + $0x50] sm:$0xff] %vm442, %v357
      %449 = vst.msk [vmem:[#allocation2 + $0x60] sm:$0xff] %vm442, %v359
      %450 = vst.msk [vmem:[#allocation2 + $0x70] sm:$0xff] %vm442, %v361
      %451 = vst.msk [vmem:[#allocation2 + $0x80] sm:$0xff] %vm442, %v363
      %452 = vst.msk [vmem:[#allocation2 + $0x90] sm:$0xff] %vm442, %v365
      %453 = vst.msk [vmem:[#allocation2 + $0xa0] sm:$0xff] %vm442, %v367
      %454 = vst.msk [vmem:[#allocation2 + $0xb0] sm:$0xff] %vm442, %v369
      %455 = vst.msk [vmem:[#allocation2 + $0xc0] sm:$0xff] %vm442, %v371
      %456 = vst.msk [vmem:[#allocation2 + $0xd0] sm:$0xff] %vm442, %v373
      %457 = vst.msk [vmem:[#allocation2 + $0xe0] sm:$0xff] %vm442, %v375
      %458 = vst.msk [vmem:[#allocation2 + $0xf0] sm:$0xff] %vm442, %v377
      %459 = vst.msk [vmem:[#allocation2 + $0x100] sm:$0xff] %vm442, %v379
      %460 = vst.msk [vmem:[#allocation2 + $0x110] sm:$0xff] %vm442, %v381
      %461 = vst.msk [vmem:[#allocation2 + $0x120] sm:$0xff] %vm442, %v383
      %462 = vst.msk [vmem:[#allocation2 + $0x130] sm:$0xff] %vm442, %v385
      %463 = vst.msk [vmem:[#allocation2 + $0x140] sm:$0xff] %vm442, %v387
      %464 = vst.msk [vmem:[#allocation2 + $0x150] sm:$0xff] %vm442, %v389
      %465 = vst.msk [vmem:[#allocation2 + $0x160] sm:$0xff] %vm442, %v391
      %466 = vst.msk [vmem:[#allocation2 + $0x170] sm:$0xff] %vm442, %v393
      %467 = vst.msk [vmem:[#allocation2 + $0x180] sm:$0xff] %vm442, %v395
      %468 = vst.msk [vmem:[#allocation2 + $0x190] sm:$0xff] %vm442, %v397
      %469 = vst.msk [vmem:[#allocation2 + $0x1a0] sm:$0xff] %vm442, %v399
      %470 = vst.msk [vmem:[#allocation2 + $0x1b0] sm:$0xff] %vm442, %v401
      %471 = vst.msk [vmem:[#allocation2 + $0x1c0] sm:$0xff] %vm442, %v403
      %472 = vst.msk [vmem:[#allocation2 + $0x1d0] sm:$0xff] %vm442, %v405
      %473 = vst.msk [vmem:[#allocation2 + $0x1e0] sm:$0xff] %vm442, %v407
      %474 = vst.msk [vmem:[#allocation2 + $0x1f0] sm:$0xff] %vm442, %v409
      %s475 = sadd.s32 %s213, 2
      %s476 = scalar_lea.vmem %s0, %s475
      %v477 = vld [vmem:[%s476] sm:$0xff]
      %v478 = vld [vmem:[%s476 + $0x8] sm:$0xff]
      %v479 = vld [vmem:[%s476 + $0x10] sm:$0xff]
      %v480 = vld [vmem:[%s476 + $0x18] sm:$0xff]
      %v481 = vld [vmem:[%s476 + $0x20] sm:$0xff]
      %v482 = vld [vmem:[%s476 + $0x28] sm:$0xff]
      %v483 = vld [vmem:[%s476 + $0x30] sm:$0xff]
      %v484 = vld [vmem:[%s476 + $0x38] sm:$0xff]
      %v485 = vld [vmem:[%s476 + $0x40] sm:$0xff]
      %v486 = vld [vmem:[%s476 + $0x48] sm:$0xff]
      %v487 = vld [vmem:[%s476 + $0x50] sm:$0xff]
      %v488 = vld [vmem:[%s476 + $0x58] sm:$0xff]
      %v489 = vld [vmem:[%s476 + $0x60] sm:$0xff]
      %v490 = vld [vmem:[%s476 + $0x68] sm:$0xff]
      %v491 = vld [vmem:[%s476 + $0x70] sm:$0xff]
      %v492 = vld [vmem:[%s476 + $0x78] sm:$0xff]
      %v493 = vld [vmem:[%s476 + $0x80] sm:$0xff]
      %v494 = vld [vmem:[%s476 + $0x88] sm:$0xff]
      %v495 = vld [vmem:[%s476 + $0x90] sm:$0xff]
      %v496 = vld [vmem:[%s476 + $0x98] sm:$0xff]
      %v497 = vld [vmem:[%s476 + $0xa0] sm:$0xff]
      %v498 = vld [vmem:[%s476 + $0xa8] sm:$0xff]
      %v499 = vld [vmem:[%s476 + $0xb0] sm:$0xff]
      %v500 = vld [vmem:[%s476 + $0xb8] sm:$0xff]
      %v501 = vld [vmem:[%s476 + $0xc0] sm:$0xff]
      %v502 = vld [vmem:[%s476 + $0xc8] sm:$0xff]
      %v503 = vld [vmem:[%s476 + $0xd0] sm:$0xff]
      %v504 = vld [vmem:[%s476 + $0xd8] sm:$0xff]
      %v505 = vld [vmem:[%s476 + $0xe0] sm:$0xff]
      %v506 = vld [vmem:[%s476 + $0xe8] sm:$0xff]
      %v507 = vld [vmem:[%s476 + $0xf0] sm:$0xff]
      %v508 = vld [vmem:[%s476 + $0xf8] sm:$0xff]
      %541 = vrot.lane.b32.xlu0 %v477, 16
      %v542 = vpop.permute.xlu0 %541
      %543 = vrot.lane.b32.xlu0 %v478, 16
      %v544 = vpop.permute.xlu0 %543
      %545 = vrot.lane.b32.xlu0 %v479, 16
      %v546 = vpop.permute.xlu0 %545
      %547 = vrot.lane.b32.xlu0 %v480, 16
      %v548 = vpop.permute.xlu0 %547
      %549 = vrot.lane.b32.xlu0 %v481, 16
      %v550 = vpop.permute.xlu0 %549
      %551 = vrot.lane.b32.xlu0 %v482, 16
      %v552 = vpop.permute.xlu0 %551
      %553 = vrot.lane.b32.xlu0 %v483, 16
      %v554 = vpop.permute.xlu0 %553
      %555 = vrot.lane.b32.xlu0 %v484, 16
      %v556 = vpop.permute.xlu0 %555
      %557 = vrot.lane.b32.xlu0 %v485, 16
      %v558 = vpop.permute.xlu0 %557
      %559 = vrot.lane.b32.xlu0 %v486, 16
      %v560 = vpop.permute.xlu0 %559
      %561 = vrot.lane.b32.xlu0 %v487, 16
      %v562 = vpop.permute.xlu0 %561
      %563 = vrot.lane.b32.xlu0 %v488, 16
      %v564 = vpop.permute.xlu0 %563
      %565 = vrot.lane.b32.xlu0 %v489, 16
      %v566 = vpop.permute.xlu0 %565
      %567 = vrot.lane.b32.xlu0 %v490, 16
      %v568 = vpop.permute.xlu0 %567
      %569 = vrot.lane.b32.xlu0 %v491, 16
      %v570 = vpop.permute.xlu0 %569
      %571 = vrot.lane.b32.xlu0 %v492, 16
      %v572 = vpop.permute.xlu0 %571
      %573 = vrot.lane.b32.xlu0 %v493, 16
      %v574 = vpop.permute.xlu0 %573
      %575 = vrot.lane.b32.xlu0 %v494, 16
      %v576 = vpop.permute.xlu0 %575
      %577 = vrot.lane.b32.xlu0 %v495, 16
      %v578 = vpop.permute.xlu0 %577
      %579 = vrot.lane.b32.xlu0 %v496, 16
      %v580 = vpop.permute.xlu0 %579
      %581 = vrot.lane.b32.xlu0 %v497, 16
      %v582 = vpop.permute.xlu0 %581
      %583 = vrot.lane.b32.xlu0 %v498, 16
      %v584 = vpop.permute.xlu0 %583
      %585 = vrot.lane.b32.xlu0 %v499, 16
      %v586 = vpop.permute.xlu0 %585
      %587 = vrot.lane.b32.xlu0 %v500, 16
      %v588 = vpop.permute.xlu0 %587
      %589 = vrot.lane.b32.xlu0 %v501, 16
      %v590 = vpop.permute.xlu0 %589
      %591 = vrot.lane.b32.xlu0 %v502, 16
      %v592 = vpop.permute.xlu0 %591
      %593 = vrot.lane.b32.xlu0 %v503, 16
      %v594 = vpop.permute.xlu0 %593
      %595 = vrot.lane.b32.xlu0 %v504, 16
      %v596 = vpop.permute.xlu0 %595
      %597 = vrot.lane.b32.xlu0 %v505, 16
      %v598 = vpop.permute.xlu0 %597
      %599 = vrot.lane.b32.xlu0 %v506, 16
      %v600 = vpop.permute.xlu0 %599
      %601 = vrot.lane.b32.xlu0 %v507, 16
      %v602 = vpop.permute.xlu0 %601
      %603 = vrot.lane.b32.xlu0 %v508, 16
      %v604 = vpop.permute.xlu0 %603
      %vm637 = vcmask 195712
      %638 = vst.msk [vmem:[#allocation2] sm:$0xff] %vm637, %v542
      %639 = vst.msk [vmem:[#allocation2 + $0x10] sm:$0xff] %vm637, %v544
      %640 = vst.msk [vmem:[#allocation2 + $0x20] sm:$0xff] %vm637, %v546
      %641 = vst.msk [vmem:[#allocation2 + $0x30] sm:$0xff] %vm637, %v548
      %642 = vst.msk [vmem:[#allocation2 + $0x40] sm:$0xff] %vm637, %v550
      %643 = vst.msk [vmem:[#allocation2 + $0x50] sm:$0xff] %vm637, %v552
      %644 = vst.msk [vmem:[#allocation2 + $0x60] sm:$0xff] %vm637, %v554
      %645 = vst.msk [vmem:[#allocation2 + $0x70] sm:$0xff] %vm637, %v556
      %646 = vst.msk [vmem:[#allocation2 + $0x80] sm:$0xff] %vm637, %v558
      %647 = vst.msk [vmem:[#allocation2 + $0x90] sm:$0xff] %vm637, %v560
      %648 = vst.msk [vmem:[#allocation2 + $0xa0] sm:$0xff] %vm637, %v562
      %649 = vst.msk [vmem:[#allocation2 + $0xb0] sm:$0xff] %vm637, %v564
      %650 = vst.msk [vmem:[#allocation2 + $0xc0] sm:$0xff] %vm637, %v566
      %651 = vst.msk [vmem:[#allocation2 + $0xd0] sm:$0xff] %vm637, %v568
      %652 = vst.msk [vmem:[#allocation2 + $0xe0] sm:$0xff] %vm637, %v570
      %653 = vst.msk [vmem:[#allocation2 + $0xf0] sm:$0xff] %vm637, %v572
      %654 = vst.msk [vmem:[#allocation2 + $0x100] sm:$0xff] %vm637, %v574
      %655 = vst.msk [vmem:[#allocation2 + $0x110] sm:$0xff] %vm637, %v576
      %656 = vst.msk [vmem:[#allocation2 + $0x120] sm:$0xff] %vm637, %v578
      %657 = vst.msk [vmem:[#allocation2 + $0x130] sm:$0xff] %vm637, %v580
      %658 = vst.msk [vmem:[#allocation2 + $0x140] sm:$0xff] %vm637, %v582
      %659 = vst.msk [vmem:[#allocation2 + $0x150] sm:$0xff] %vm637, %v584
      %660 = vst.msk [vmem:[#allocation2 + $0x160] sm:$0xff] %vm637, %v586
      %661 = vst.msk [vmem:[#allocation2 + $0x170] sm:$0xff] %vm637, %v588
      %662 = vst.msk [vmem:[#allocation2 + $0x180] sm:$0xff] %vm637, %v590
      %663 = vst.msk [vmem:[#allocation2 + $0x190] sm:$0xff] %vm637, %v592
      %664 = vst.msk [vmem:[#allocation2 + $0x1a0] sm:$0xff] %vm637, %v594
      %665 = vst.msk [vmem:[#allocation2 + $0x1b0] sm:$0xff] %vm637, %v596
      %666 = vst.msk [vmem:[#allocation2 + $0x1c0] sm:$0xff] %vm637, %v598
      %667 = vst.msk [vmem:[#allocation2 + $0x1d0] sm:$0xff] %vm637, %v600
      %668 = vst.msk [vmem:[#allocation2 + $0x1e0] sm:$0xff] %vm637, %v602
      %669 = vst.msk [vmem:[#allocation2 + $0x1f0] sm:$0xff] %vm637, %v604
      %s670 = sadd.s32 %s213, 10
      %s671 = scalar_lea.vmem %s0, %s670
      %v672 = vld [vmem:[%s671] sm:$0xff]
      %v673 = vld [vmem:[%s671 + $0x8] sm:$0xff]
      %v674 = vld [vmem:[%s671 + $0x10] sm:$0xff]
      %v675 = vld [vmem:[%s671 + $0x18] sm:$0xff]
      %v676 = vld [vmem:[%s671 + $0x20] sm:$0xff]
      %v677 = vld [vmem:[%s671 + $0x28] sm:$0xff]
      %v678 = vld [vmem:[%s671 + $0x30] sm:$0xff]
      %v679 = vld [vmem:[%s671 + $0x38] sm:$0xff]
      %v680 = vld [vmem:[%s671 + $0x40] sm:$0xff]
      %v681 = vld [vmem:[%s671 + $0x48] sm:$0xff]
      %v682 = vld [vmem:[%s671 + $0x50] sm:$0xff]
      %v683 = vld [vmem:[%s671 + $0x58] sm:$0xff]
      %v684 = vld [vmem:[%s671 + $0x60] sm:$0xff]
      %v685 = vld [vmem:[%s671 + $0x68] sm:$0xff]
      %v686 = vld [vmem:[%s671 + $0x70] sm:$0xff]
      %v687 = vld [vmem:[%s671 + $0x78] sm:$0xff]
      %v688 = vld [vmem:[%s671 + $0x80] sm:$0xff]
      %v689 = vld [vmem:[%s671 + $0x88] sm:$0xff]
      %v690 = vld [vmem:[%s671 + $0x90] sm:$0xff]
      %v691 = vld [vmem:[%s671 + $0x98] sm:$0xff]
      %v692 = vld [vmem:[%s671 + $0xa0] sm:$0xff]
      %v693 = vld [vmem:[%s671 + $0xa8] sm:$0xff]
      %v694 = vld [vmem:[%s671 + $0xb0] sm:$0xff]
      %v695 = vld [vmem:[%s671 + $0xb8] sm:$0xff]
      %v696 = vld [vmem:[%s671 + $0xc0] sm:$0xff]
      %v697 = vld [vmem:[%s671 + $0xc8] sm:$0xff]
      %v698 = vld [vmem:[%s671 + $0xd0] sm:$0xff]
      %v699 = vld [vmem:[%s671 + $0xd8] sm:$0xff]
      %v700 = vld [vmem:[%s671 + $0xe0] sm:$0xff]
      %v701 = vld [vmem:[%s671 + $0xe8] sm:$0xff]
      %v702 = vld [vmem:[%s671 + $0xf0] sm:$0xff]
      %v703 = vld [vmem:[%s671 + $0xf8] sm:$0xff]
      %736 = vrot.lane.b32.xlu0 %v672, 24
      %v737 = vpop.permute.xlu0 %736
      %738 = vrot.lane.b32.xlu0 %v673, 24
      %v739 = vpop.permute.xlu0 %738
      %740 = vrot.lane.b32.xlu0 %v674, 24
      %v741 = vpop.permute.xlu0 %740
      %742 = vrot.lane.b32.xlu0 %v675, 24
      %v743 = vpop.permute.xlu0 %742
      %744 = vrot.lane.b32.xlu0 %v676, 24
      %v745 = vpop.permute.xlu0 %744
      %746 = vrot.lane.b32.xlu0 %v677, 24
      %v747 = vpop.permute.xlu0 %746
      %748 = vrot.lane.b32.xlu0 %v678, 24
      %v749 = vpop.permute.xlu0 %748
      %750 = vrot.lane.b32.xlu0 %v679, 24
      %v751 = vpop.permute.xlu0 %750
      %752 = vrot.lane.b32.xlu0 %v680, 24
      %v753 = vpop.permute.xlu0 %752
      %754 = vrot.lane.b32.xlu0 %v681, 24
      %v755 = vpop.permute.xlu0 %754
      %756 = vrot.lane.b32.xlu0 %v682, 24
      %v757 = vpop.permute.xlu0 %756
      %758 = vrot.lane.b32.xlu0 %v683, 24
      %v759 = vpop.permute.xlu0 %758
      %760 = vrot.lane.b32.xlu0 %v684, 24
      %v761 = vpop.permute.xlu0 %760
      %762 = vrot.lane.b32.xlu0 %v685, 24
      %v763 = vpop.permute.xlu0 %762
      %764 = vrot.lane.b32.xlu0 %v686, 24
      %v765 = vpop.permute.xlu0 %764
      %766 = vrot.lane.b32.xlu0 %v687, 24
      %v767 = vpop.permute.xlu0 %766
      %768 = vrot.lane.b32.xlu0 %v688, 24
      %v769 = vpop.permute.xlu0 %768
      %770 = vrot.lane.b32.xlu0 %v689, 24
      %v771 = vpop.permute.xlu0 %770
      %772 = vrot.lane.b32.xlu0 %v690, 24
      %v773 = vpop.permute.xlu0 %772
      %774 = vrot.lane.b32.xlu0 %v691, 24
      %v775 = vpop.permute.xlu0 %774
      %776 = vrot.lane.b32.xlu0 %v692, 24
      %v777 = vpop.permute.xlu0 %776
      %778 = vrot.lane.b32.xlu0 %v693, 24
      %v779 = vpop.permute.xlu0 %778
      %780 = vrot.lane.b32.xlu0 %v694, 24
      %v781 = vpop.permute.xlu0 %780
      %782 = vrot.lane.b32.xlu0 %v695, 24
      %v783 = vpop.permute.xlu0 %782
      %784 = vrot.lane.b32.xlu0 %v696, 24
      %v785 = vpop.permute.xlu0 %784
      %786 = vrot.lane.b32.xlu0 %v697, 24
      %v787 = vpop.permute.xlu0 %786
      %788 = vrot.lane.b32.xlu0 %v698, 24
      %v789 = vpop.permute.xlu0 %788
      %790 = vrot.lane.b32.xlu0 %v699, 24
      %v791 = vpop.permute.xlu0 %790
      %792 = vrot.lane.b32.xlu0 %v700, 24
      %v793 = vpop.permute.xlu0 %792
      %794 = vrot.lane.b32.xlu0 %v701, 24
      %v795 = vpop.permute.xlu0 %794
      %796 = vrot.lane.b32.xlu0 %v702, 24
      %v797 = vpop.permute.xlu0 %796
      %798 = vrot.lane.b32.xlu0 %v703, 24
      %v799 = vpop.permute.xlu0 %798
      %vm832 = vcmask 261312
      %833 = vst.msk [vmem:[#allocation2] sm:$0xff] %vm832, %v737
      %834 = vst.msk [vmem:[#allocation2 + $0x10] sm:$0xff] %vm832, %v739
      %835 = vst.msk [vmem:[#allocation2 + $0x20] sm:$0xff] %vm832, %v741
      %836 = vst.msk [vmem:[#allocation2 + $0x30] sm:$0xff] %vm832, %v743
      %837 = vst.msk [vmem:[#allocation2 + $0x40] sm:$0xff] %vm832, %v745
      %838 = vst.msk [vmem:[#allocation2 + $0x50] sm:$0xff] %vm832, %v747
      %839 = vst.msk [vmem:[#allocation2 + $0x60] sm:$0xff] %vm832, %v749
      %840 = vst.msk [vmem:[#allocation2 + $0x70] sm:$0xff] %vm832, %v751
      %841 = vst.msk [vmem:[#allocation2 + $0x80] sm:$0xff] %vm832, %v753
      %842 = vst.msk [vmem:[#allocation2 + $0x90] sm:$0xff] %vm832, %v755
      %843 = vst.msk [vmem:[#allocation2 + $0xa0] sm:$0xff] %vm832, %v757
      %844 = vst.msk [vmem:[#allocation2 + $0xb0] sm:$0xff] %vm832, %v759
      %845 = vst.msk [vmem:[#allocation2 + $0xc0] sm:$0xff] %vm832, %v761
      %846 = vst.msk [vmem:[#allocation2 + $0xd0] sm:$0xff] %vm832, %v763
      %847 = vst.msk [vmem:[#allocation2 + $0xe0] sm:$0xff] %vm832, %v765
      %848 = vst.msk [vmem:[#allocation2 + $0xf0] sm:$0xff] %vm832, %v767
      %849 = vst.msk [vmem:[#allocation2 + $0x100] sm:$0xff] %vm832, %v769
      %850 = vst.msk [vmem:[#allocation2 + $0x110] sm:$0xff] %vm832, %v771
      %851 = vst.msk [vmem:[#allocation2 + $0x120] sm:$0xff] %vm832, %v773
      %852 = vst.msk [vmem:[#allocation2 + $0x130] sm:$0xff] %vm832, %v775
      %853 = vst.msk [vmem:[#allocation2 + $0x140] sm:$0xff] %vm832, %v777
      %854 = vst.msk [vmem:[#allocation2 + $0x150] sm:$0xff] %vm832, %v779
      %855 = vst.msk [vmem:[#allocation2 + $0x160] sm:$0xff] %vm832, %v781
      %856 = vst.msk [vmem:[#allocation2 + $0x170] sm:$0xff] %vm832, %v783
      %857 = vst.msk [vmem:[#allocation2 + $0x180] sm:$0xff] %vm832, %v785
      %858 = vst.msk [vmem:[#allocation2 + $0x190] sm:$0xff] %vm832, %v787
      %859 = vst.msk [vmem:[#allocation2 + $0x1a0] sm:$0xff] %vm832, %v789
      %860 = vst.msk [vmem:[#allocation2 + $0x1b0] sm:$0xff] %vm832, %v791
      %861 = vst.msk [vmem:[#allocation2 + $0x1c0] sm:$0xff] %vm832, %v793
      %862 = vst.msk [vmem:[#allocation2 + $0x1d0] sm:$0xff] %vm832, %v795
      %863 = vst.msk [vmem:[#allocation2 + $0x1e0] sm:$0xff] %vm832, %v797
      %864 = vst.msk [vmem:[#allocation2 + $0x1f0] sm:$0xff] %vm832, %v799
      %s865 = sadd.s32 %s213, 11
      %s866 = scalar_lea.vmem %s0, %s865
      %v867 = vld [vmem:[%s866] sm:$0xff]
      %v868 = vld [vmem:[%s866 + $0x8] sm:$0xff]
      %v869 = vld [vmem:[%s866 + $0x10] sm:$0xff]
      %v870 = vld [vmem:[%s866 + $0x18] sm:$0xff]
      %v871 = vld [vmem:[%s866 + $0x20] sm:$0xff]
      %v872 = vld [vmem:[%s866 + $0x28] sm:$0xff]
      %v873 = vld [vmem:[%s866 + $0x30] sm:$0xff]
      %v874 = vld [vmem:[%s866 + $0x38] sm:$0xff]
      %v875 = vld [vmem:[%s866 + $0x40] sm:$0xff]
      %v876 = vld [vmem:[%s866 + $0x48] sm:$0xff]
      %v877 = vld [vmem:[%s866 + $0x50] sm:$0xff]
      %v878 = vld [vmem:[%s866 + $0x58] sm:$0xff]
      %v879 = vld [vmem:[%s866 + $0x60] sm:$0xff]
      %v880 = vld [vmem:[%s866 + $0x68] sm:$0xff]
      %v881 = vld [vmem:[%s866 + $0x70] sm:$0xff]
      %v882 = vld [vmem:[%s866 + $0x78] sm:$0xff]
      %v883 = vld [vmem:[%s866 + $0x80] sm:$0xff]
      %v884 = vld [vmem:[%s866 + $0x88] sm:$0xff]
      %v885 = vld [vmem:[%s866 + $0x90] sm:$0xff]
      %v886 = vld [vmem:[%s866 + $0x98] sm:$0xff]
      %v887 = vld [vmem:[%s866 + $0xa0] sm:$0xff]
      %v888 = vld [vmem:[%s866 + $0xa8] sm:$0xff]
      %v889 = vld [vmem:[%s866 + $0xb0] sm:$0xff]
      %v890 = vld [vmem:[%s866 + $0xb8] sm:$0xff]
      %v891 = vld [vmem:[%s866 + $0xc0] sm:$0xff]
      %v892 = vld [vmem:[%s866 + $0xc8] sm:$0xff]
      %v893 = vld [vmem:[%s866 + $0xd0] sm:$0xff]
      %v894 = vld [vmem:[%s866 + $0xd8] sm:$0xff]
      %v895 = vld [vmem:[%s866 + $0xe0] sm:$0xff]
      %v896 = vld [vmem:[%s866 + $0xe8] sm:$0xff]
      %v897 = vld [vmem:[%s866 + $0xf0] sm:$0xff]
      %v898 = vld [vmem:[%s866 + $0xf8] sm:$0xff]
      %931 = vrot.lane.b32.xlu0 %v867, 32
      %v932 = vpop.permute.xlu0 %931
      %933 = vrot.lane.b32.xlu0 %v868, 32
      %v934 = vpop.permute.xlu0 %933
      %935 = vrot.lane.b32.xlu0 %v869, 32
      %v936 = vpop.permute.xlu0 %935
      %937 = vrot.lane.b32.xlu0 %v870, 32
      %v938 = vpop.permute.xlu0 %937
      %939 = vrot.lane.b32.xlu0 %v871, 32
      %v940 = vpop.permute.xlu0 %939
      %941 = vrot.lane.b32.xlu0 %v872, 32
      %v942 = vpop.permute.xlu0 %941
      %943 = vrot.lane.b32.xlu0 %v873, 32
      %v944 = vpop.permute.xlu0 %943
      %945 = vrot.lane.b32.xlu0 %v874, 32
      %v946 = vpop.permute.xlu0 %945
      %947 = vrot.lane.b32.xlu0 %v875, 32
      %v948 = vpop.permute.xlu0 %947
      %949 = vrot.lane.b32.xlu0 %v876, 32
      %v950 = vpop.permute.xlu0 %949
      %951 = vrot.lane.b32.xlu0 %v877, 32
      %v952 = vpop.permute.xlu0 %951
      %953 = vrot.lane.b32.xlu0 %v878, 32
      %v954 = vpop.permute.xlu0 %953
      %955 = vrot.lane.b32.xlu0 %v879, 32
      %v956 = vpop.permute.xlu0 %955
      %957 = vrot.lane.b32.xlu0 %v880, 32
      %v958 = vpop.permute.xlu0 %957
      %959 = vrot.lane.b32.xlu0 %v881, 32
      %v960 = vpop.permute.xlu0 %959
      %961 = vrot.lane.b32.xlu0 %v882, 32
      %v962 = vpop.permute.xlu0 %961
      %963 = vrot.lane.b32.xlu0 %v883, 32
      %v964 = vpop.permute.xlu0 %963
      %965 = vrot.lane.b32.xlu0 %v884, 32
      %v966 = vpop.permute.xlu0 %965
      %967 = vrot.lane.b32.xlu0 %v885, 32
      %v968 = vpop.permute.xlu0 %967
      %969 = vrot.lane.b32.xlu0 %v886, 32
      %v970 = vpop.permute.xlu0 %969
      %971 = vrot.lane.b32.xlu0 %v887, 32
      %v972 = vpop.permute.xlu0 %971
      %973 = vrot.lane.b32.xlu0 %v888, 32
      %v974 = vpop.permute.xlu0 %973
      %975 = vrot.lane.b32.xlu0 %v889, 32
      %v976 = vpop.permute.xlu0 %975
      %977 = vrot.lane.b32.xlu0 %v890, 32
      %v978 = vpop.permute.xlu0 %977
      %979 = vrot.lane.b32.xlu0 %v891, 32
      %v980 = vpop.permute.xlu0 %979
      %981 = vrot.lane.b32.xlu0 %v892, 32
      %v982 = vpop.permute.xlu0 %981
      %983 = vrot.lane.b32.xlu0 %v893, 32
      %v984 = vpop.permute.xlu0 %983
      %985 = vrot.lane.b32.xlu0 %v894, 32
      %v986 = vpop.permute.xlu0 %985
      %987 = vrot.lane.b32.xlu0 %v895, 32
      %v988 = vpop.permute.xlu0 %987
      %989 = vrot.lane.b32.xlu0 %v896, 32
      %v990 = vpop.permute.xlu0 %989
      %991 = vrot.lane.b32.xlu0 %v897, 32
      %v992 = vpop.permute.xlu0 %991
      %993 = vrot.lane.b32.xlu0 %v898, 32
      %v994 = vpop.permute.xlu0 %993
      %vm1027 = vcmask 326912
      %1028 = vst.msk [vmem:[#allocation2] sm:$0xff] %vm1027, %v932
      %1029 = vst.msk [vmem:[#allocation2 + $0x10] sm:$0xff] %vm1027, %v934
      %1030 = vst.msk [vmem:[#allocation2 + $0x20] sm:$0xff] %vm1027, %v936
      %1031 = vst.msk [vmem:[#allocation2 + $0x30] sm:$0xff] %vm1027, %v938
      %1032 = vst.msk [vmem:[#allocation2 + $0x40] sm:$0xff] %vm1027, %v940
      %1033 = vst.msk [vmem:[#allocation2 + $0x50] sm:$0xff] %vm1027, %v942
      %1034 = vst.msk [vmem:[#allocation2 + $0x60] sm:$0xff] %vm1027, %v944
      %1035 = vst.msk [vmem:[#allocation2 + $0x70] sm:$0xff] %vm1027, %v946
      %1036 = vst.msk [vmem:[#allocation2 + $0x80] sm:$0xff] %vm1027, %v948
      %1037 = vst.msk [vmem:[#allocation2 + $0x90] sm:$0xff] %vm1027, %v950
      %1038 = vst.msk [vmem:[#allocation2 + $0xa0] sm:$0xff] %vm1027, %v952
      %1039 = vst.msk [vmem:[#allocation2 + $0xb0] sm:$0xff] %vm1027, %v954
      %1040 = vst.msk [vmem:[#allocation2 + $0xc0] sm:$0xff] %vm1027, %v956
      %1041 = vst.msk [vmem:[#allocation2 + $0xd0] sm:$0xff] %vm1027, %v958
      %1042 = vst.msk [vmem:[#allocation2 + $0xe0] sm:$0xff] %vm1027, %v960
      %1043 = vst.msk [vmem:[#allocation2 + $0xf0] sm:$0xff] %vm1027, %v962
      %1044 = vst.msk [vmem:[#allocation2 + $0x100] sm:$0xff] %vm1027, %v964
      %1045 = vst.msk [vmem:[#allocation2 + $0x110] sm:$0xff] %vm1027, %v966
      %1046 = vst.msk [vmem:[#allocation2 + $0x120] sm:$0xff] %vm1027, %v968
      %1047 = vst.msk [vmem:[#allocation2 + $0x130] sm:$0xff] %vm1027, %v970
      %1048 = vst.msk [vmem:[#allocation2 + $0x140] sm:$0xff] %vm1027, %v972
      %1049 = vst.msk [vmem:[#allocation2 + $0x150] sm:$0xff] %vm1027, %v974
      %1050 = vst.msk [vmem:[#allocation2 + $0x160] sm:$0xff] %vm1027, %v976
      %1051 = vst.msk [vmem:[#allocation2 + $0x170] sm:$0xff] %vm1027, %v978
      %1052 = vst.msk [vmem:[#allocation2 + $0x180] sm:$0xff] %vm1027, %v980
      %1053 = vst.msk [vmem:[#allocation2 + $0x190] sm:$0xff] %vm1027, %v982
      %1054 = vst.msk [vmem:[#allocation2 + $0x1a0] sm:$0xff] %vm1027, %v984
      %1055 = vst.msk [vmem:[#allocation2 + $0x1b0] sm:$0xff] %vm1027, %v986
      %1056 = vst.msk [vmem:[#allocation2 + $0x1c0] sm:$0xff] %vm1027, %v988
      %1057 = vst.msk [vmem:[#allocation2 + $0x1d0] sm:$0xff] %vm1027, %v990
      %1058 = vst.msk [vmem:[#allocation2 + $0x1e0] sm:$0xff] %vm1027, %v992
      %1059 = vst.msk [vmem:[#allocation2 + $0x1f0] sm:$0xff] %vm1027, %v994
      %s1060 = sadd.s32 %s213, 12
      %s1061 = scalar_lea.vmem %s0, %s1060
      %v1062 = vld [vmem:[%s1061] sm:$0xff]
      %v1063 = vld [vmem:[%s1061 + $0x8] sm:$0xff]
      %v1064 = vld [vmem:[%s1061 + $0x10] sm:$0xff]
      %v1065 = vld [vmem:[%s1061 + $0x18] sm:$0xff]
      %v1066 = vld [vmem:[%s1061 + $0x20] sm:$0xff]
      %v1067 = vld [vmem:[%s1061 + $0x28] sm:$0xff]
      %v1068 = vld [vmem:[%s1061 + $0x30] sm:$0xff]
      %v1069 = vld [vmem:[%s1061 + $0x38] sm:$0xff]
      %v1070 = vld [vmem:[%s1061 + $0x40] sm:$0xff]
      %v1071 = vld [vmem:[%s1061 + $0x48] sm:$0xff]
      %v1072 = vld [vmem:[%s1061 + $0x50] sm:$0xff]
      %v1073 = vld [vmem:[%s1061 + $0x58] sm:$0xff]
      %v1074 = vld [vmem:[%s1061 + $0x60] sm:$0xff]
      %v1075 = vld [vmem:[%s1061 + $0x68] sm:$0xff]
      %v1076 = vld [vmem:[%s1061 + $0x70] sm:$0xff]
      %v1077 = vld [vmem:[%s1061 + $0x78] sm:$0xff]
      %v1078 = vld [vmem:[%s1061 + $0x80] sm:$0xff]
      %v1079 = vld [vmem:[%s1061 + $0x88] sm:$0xff]
      %v1080 = vld [vmem:[%s1061 + $0x90] sm:$0xff]
      %v1081 = vld [vmem:[%s1061 + $0x98] sm:$0xff]
      %v1082 = vld [vmem:[%s1061 + $0xa0] sm:$0xff]
      %v1083 = vld [vmem:[%s1061 + $0xa8] sm:$0xff]
      %v1084 = vld [vmem:[%s1061 + $0xb0] sm:$0xff]
      %v1085 = vld [vmem:[%s1061 + $0xb8] sm:$0xff]
      %v1086 = vld [vmem:[%s1061 + $0xc0] sm:$0xff]
      %v1087 = vld [vmem:[%s1061 + $0xc8] sm:$0xff]
      %v1088 = vld [vmem:[%s1061 + $0xd0] sm:$0xff]
      %v1089 = vld [vmem:[%s1061 + $0xd8] sm:$0xff]
      %v1090 = vld [vmem:[%s1061 + $0xe0] sm:$0xff]
      %v1091 = vld [vmem:[%s1061 + $0xe8] sm:$0xff]
      %v1092 = vld [vmem:[%s1061 + $0xf0] sm:$0xff]
      %v1093 = vld [vmem:[%s1061 + $0xf8] sm:$0xff]
      %1126 = vrot.lane.b32.xlu0 %v1062, 40
      %v1127 = vpop.permute.xlu0 %1126
      %1128 = vrot.lane.b32.xlu0 %v1063, 40
      %v1129 = vpop.permute.xlu0 %1128
      %1130 = vrot.lane.b32.xlu0 %v1064, 40
      %v1131 = vpop.permute.xlu0 %1130
      %1132 = vrot.lane.b32.xlu0 %v1065, 40
      %v1133 = vpop.permute.xlu0 %1132
      %1134 = vrot.lane.b32.xlu0 %v1066, 40
      %v1135 = vpop.permute.xlu0 %1134
      %1136 = vrot.lane.b32.xlu0 %v1067, 40
      %v1137 = vpop.permute.xlu0 %1136
      %1138 = vrot.lane.b32.xlu0 %v1068, 40
      %v1139 = vpop.permute.xlu0 %1138
      %1140 = vrot.lane.b32.xlu0 %v1069, 40
      %v1141 = vpop.permute.xlu0 %1140
      %1142 = vrot.lane.b32.xlu0 %v1070, 40
      %v1143 = vpop.permute.xlu0 %1142
      %1144 = vrot.lane.b32.xlu0 %v1071, 40
      %v1145 = vpop.permute.xlu0 %1144
      %1146 = vrot.lane.b32.xlu0 %v1072, 40
      %v1147 = vpop.permute.xlu0 %1146
      %1148 = vrot.lane.b32.xlu0 %v1073, 40
      %v1149 = vpop.permute.xlu0 %1148
      %1150 = vrot.lane.b32.xlu0 %v1074, 40
      %v1151 = vpop.permute.xlu0 %1150
      %1152 = vrot.lane.b32.xlu0 %v1075, 40
      %v1153 = vpop.permute.xlu0 %1152
      %1154 = vrot.lane.b32.xlu0 %v1076, 40
      %v1155 = vpop.permute.xlu0 %1154
      %1156 = vrot.lane.b32.xlu0 %v1077, 40
      %v1157 = vpop.permute.xlu0 %1156
      %1158 = vrot.lane.b32.xlu0 %v1078, 40
      %v1159 = vpop.permute.xlu0 %1158
      %1160 = vrot.lane.b32.xlu0 %v1079, 40
      %v1161 = vpop.permute.xlu0 %1160
      %1162 = vrot.lane.b32.xlu0 %v1080, 40
      %v1163 = vpop.permute.xlu0 %1162
      %1164 = vrot.lane.b32.xlu0 %v1081, 40
      %v1165 = vpop.permute.xlu0 %1164
      %1166 = vrot.lane.b32.xlu0 %v1082, 40
      %v1167 = vpop.permute.xlu0 %1166
      %1168 = vrot.lane.b32.xlu0 %v1083, 40
      %v1169 = vpop.permute.xlu0 %1168
      %1170 = vrot.lane.b32.xlu0 %v1084, 40
      %v1171 = vpop.permute.xlu0 %1170
      %1172 = vrot.lane.b32.xlu0 %v1085, 40
      %v1173 = vpop.permute.xlu0 %1172
      %1174 = vrot.lane.b32.xlu0 %v1086, 40
      %v1175 = vpop.permute.xlu0 %1174
      %1176 = vrot.lane.b32.xlu0 %v1087, 40
      %v1177 = vpop.permute.xlu0 %1176
      %1178 = vrot.lane.b32.xlu0 %v1088, 40
      %v1179 = vpop.permute.xlu0 %1178
      %1180 = vrot.lane.b32.xlu0 %v1089, 40
      %v1181 = vpop.permute.xlu0 %1180
      %1182 = vrot.lane.b32.xlu0 %v1090, 40
      %v1183 = vpop.permute.xlu0 %1182
      %1184 = vrot.lane.b32.xlu0 %v1091, 40
      %v1185 = vpop.permute.xlu0 %1184
      %1186 = vrot.lane.b32.xlu0 %v1092, 40
      %v1187 = vpop.permute.xlu0 %1186
      %1188 = vrot.lane.b32.xlu0 %v1093, 40
      %v1189 = vpop.permute.xlu0 %1188
      %vm1222 = vcmask 392512
      %1223 = vst.msk [vmem:[#allocation2] sm:$0xff] %vm1222, %v1127
      %1224 = vst.msk [vmem:[#allocation2 + $0x10] sm:$0xff] %vm1222, %v1129
      %1225 = vst.msk [vmem:[#allocation2 + $0x20] sm:$0xff] %vm1222, %v1131
      %1226 = vst.msk [vmem:[#allocation2 + $0x30] sm:$0xff] %vm1222, %v1133
      %1227 = vst.msk [vmem:[#allocation2 + $0x40] sm:$0xff] %vm1222, %v1135
      %1228 = vst.msk [vmem:[#allocation2 + $0x50] sm:$0xff] %vm1222, %v1137
      %1229 = vst.msk [vmem:[#allocation2 + $0x60] sm:$0xff] %vm1222, %v1139
      %1230 = vst.msk [vmem:[#allocation2 + $0x70] sm:$0xff] %vm1222, %v1141
      %1231 = vst.msk [vmem:[#allocation2 + $0x80] sm:$0xff] %vm1222, %v1143
      %1232 = vst.msk [vmem:[#allocation2 + $0x90] sm:$0xff] %vm1222, %v1145
      %1233 = vst.msk [vmem:[#allocation2 + $0xa0] sm:$0xff] %vm1222, %v1147
      %1234 = vst.msk [vmem:[#allocation2 + $0xb0] sm:$0xff] %vm1222, %v1149
      %1235 = vst.msk [vmem:[#allocation2 + $0xc0] sm:$0xff] %vm1222, %v1151
      %1236 = vst.msk [vmem:[#allocation2 + $0xd0] sm:$0xff] %vm1222, %v1153
      %1237 = vst.msk [vmem:[#allocation2 + $0xe0] sm:$0xff] %vm1222, %v1155
      %1238 = vst.msk [vmem:[#allocation2 + $0xf0] sm:$0xff] %vm1222, %v1157
      %1239 = vst.msk [vmem:[#allocation2 + $0x100] sm:$0xff] %vm1222, %v1159
      %1240 = vst.msk [vmem:[#allocation2 + $0x110] sm:$0xff] %vm1222, %v1161
      %1241 = vst.msk [vmem:[#allocation2 + $0x120] sm:$0xff] %vm1222, %v1163
      %1242 = vst.msk [vmem:[#allocation2 + $0x130] sm:$0xff] %vm1222, %v1165
      %1243 = vst.msk [vmem:[#allocation2 + $0x140] sm:$0xff] %vm1222, %v1167
      %1244 = vst.msk [vmem:[#allocation2 + $0x150] sm:$0xff] %vm1222, %v1169
      %1245 = vst.msk [vmem:[#allocation2 + $0x160] sm:$0xff] %vm1222, %v1171
      %1246 = vst.msk [vmem:[#allocation2 + $0x170] sm:$0xff] %vm1222, %v1173
      %1247 = vst.msk [vmem:[#allocation2 + $0x180] sm:$0xff] %vm1222, %v1175
      %1248 = vst.msk [vmem:[#allocation2 + $0x190] sm:$0xff] %vm1222, %v1177
      %1249 = vst.msk [vmem:[#allocation2 + $0x1a0] sm:$0xff] %vm1222, %v1179
      %1250 = vst.msk [vmem:[#allocation2 + $0x1b0] sm:$0xff] %vm1222, %v1181
      %1251 = vst.msk [vmem:[#allocation2 + $0x1c0] sm:$0xff] %vm1222, %v1183
      %1252 = vst.msk [vmem:[#allocation2 + $0x1d0] sm:$0xff] %vm1222, %v1185
      %1253 = vst.msk [vmem:[#allocation2 + $0x1e0] sm:$0xff] %vm1222, %v1187
      %1254 = vst.msk [vmem:[#allocation2 + $0x1f0] sm:$0xff] %vm1222, %v1189
      %s1255 = sadd.s32 %s213, 20
      %s1256 = scalar_lea.vmem %s0, %s1255
      %v1257 = vld [vmem:[%s1256] sm:$0xff]
      %v1258 = vld [vmem:[%s1256 + $0x8] sm:$0xff]
      %v1259 = vld [vmem:[%s1256 + $0x10] sm:$0xff]
      %v1260 = vld [vmem:[%s1256 + $0x18] sm:$0xff]
      %v1261 = vld [vmem:[%s1256 + $0x20] sm:$0xff]
      %v1262 = vld [vmem:[%s1256 + $0x28] sm:$0xff]
      %v1263 = vld [vmem:[%s1256 + $0x30] sm:$0xff]
      %v1264 = vld [vmem:[%s1256 + $0x38] sm:$0xff]
      %v1265 = vld [vmem:[%s1256 + $0x40] sm:$0xff]
      %v1266 = vld [vmem:[%s1256 + $0x48] sm:$0xff]
      %v1267 = vld [vmem:[%s1256 + $0x50] sm:$0xff]
      %v1268 = vld [vmem:[%s1256 + $0x58] sm:$0xff]
      %v1269 = vld [vmem:[%s1256 + $0x60] sm:$0xff]
      %v1270 = vld [vmem:[%s1256 + $0x68] sm:$0xff]
      %v1271 = vld [vmem:[%s1256 + $0x70] sm:$0xff]
      %v1272 = vld [vmem:[%s1256 + $0x78] sm:$0xff]
      %v1273 = vld [vmem:[%s1256 + $0x80] sm:$0xff]
      %v1274 = vld [vmem:[%s1256 + $0x88] sm:$0xff]
      %v1275 = vld [vmem:[%s1256 + $0x90] sm:$0xff]
      %v1276 = vld [vmem:[%s1256 + $0x98] sm:$0xff]
      %v1277 = vld [vmem:[%s1256 + $0xa0] sm:$0xff]
      %v1278 = vld [vmem:[%s1256 + $0xa8] sm:$0xff]
      %v1279 = vld [vmem:[%s1256 + $0xb0] sm:$0xff]
      %v1280 = vld [vmem:[%s1256 + $0xb8] sm:$0xff]
      %v1281 = vld [vmem:[%s1256 + $0xc0] sm:$0xff]
      %v1282 = vld [vmem:[%s1256 + $0xc8] sm:$0xff]
      %v1283 = vld [vmem:[%s1256 + $0xd0] sm:$0xff]
      %v1284 = vld [vmem:[%s1256 + $0xd8] sm:$0xff]
      %v1285 = vld [vmem:[%s1256 + $0xe0] sm:$0xff]
      %v1286 = vld [vmem:[%s1256 + $0xe8] sm:$0xff]
      %v1287 = vld [vmem:[%s1256 + $0xf0] sm:$0xff]
      %v1288 = vld [vmem:[%s1256 + $0xf8] sm:$0xff]
      %1321 = vrot.lane.b32.xlu0 %v1257, 48
      %v1322 = vpop.permute.xlu0 %1321
      %1323 = vrot.lane.b32.xlu0 %v1258, 48
      %v1324 = vpop.permute.xlu0 %1323
      %1325 = vrot.lane.b32.xlu0 %v1259, 48
      %v1326 = vpop.permute.xlu0 %1325
      %1327 = vrot.lane.b32.xlu0 %v1260, 48
      %v1328 = vpop.permute.xlu0 %1327
      %1329 = vrot.lane.b32.xlu0 %v1261, 48
      %v1330 = vpop.permute.xlu0 %1329
      %1331 = vrot.lane.b32.xlu0 %v1262, 48
      %v1332 = vpop.permute.xlu0 %1331
      %1333 = vrot.lane.b32.xlu0 %v1263, 48
      %v1334 = vpop.permute.xlu0 %1333
      %1335 = vrot.lane.b32.xlu0 %v1264, 48
      %v1336 = vpop.permute.xlu0 %1335
      %1337 = vrot.lane.b32.xlu0 %v1265, 48
      %v1338 = vpop.permute.xlu0 %1337
      %1339 = vrot.lane.b32.xlu0 %v1266, 48
      %v1340 = vpop.permute.xlu0 %1339
      %1341 = vrot.lane.b32.xlu0 %v1267, 48
      %v1342 = vpop.permute.xlu0 %1341
      %1343 = vrot.lane.b32.xlu0 %v1268, 48
      %v1344 = vpop.permute.xlu0 %1343
      %1345 = vrot.lane.b32.xlu0 %v1269, 48
      %v1346 = vpop.permute.xlu0 %1345
      %1347 = vrot.lane.b32.xlu0 %v1270, 48
      %v1348 = vpop.permute.xlu0 %1347
      %1349 = vrot.lane.b32.xlu0 %v1271, 48
      %v1350 = vpop.permute.xlu0 %1349
      %1351 = vrot.lane.b32.xlu0 %v1272, 48
      %v1352 = vpop.permute.xlu0 %1351
      %1353 = vrot.lane.b32.xlu0 %v1273, 48
      %v1354 = vpop.permute.xlu0 %1353
      %1355 = vrot.lane.b32.xlu0 %v1274, 48
      %v1356 = vpop.permute.xlu0 %1355
      %1357 = vrot.lane.b32.xlu0 %v1275, 48
      %v1358 = vpop.permute.xlu0 %1357
      %1359 = vrot.lane.b32.xlu0 %v1276, 48
      %v1360 = vpop.permute.xlu0 %1359
      %1361 = vrot.lane.b32.xlu0 %v1277, 48
      %v1362 = vpop.permute.xlu0 %1361
      %1363 = vrot.lane.b32.xlu0 %v1278, 48
      %v1364 = vpop.permute.xlu0 %1363
      %1365 = vrot.lane.b32.xlu0 %v1279, 48
      %v1366 = vpop.permute.xlu0 %1365
      %1367 = vrot.lane.b32.xlu0 %v1280, 48
      %v1368 = vpop.permute.xlu0 %1367
      %1369 = vrot.lane.b32.xlu0 %v1281, 48
      %v1370 = vpop.permute.xlu0 %1369
      %1371 = vrot.lane.b32.xlu0 %v1282, 48
      %v1372 = vpop.permute.xlu0 %1371
      %1373 = vrot.lane.b32.xlu0 %v1283, 48
      %v1374 = vpop.permute.xlu0 %1373
      %1375 = vrot.lane.b32.xlu0 %v1284, 48
      %v1376 = vpop.permute.xlu0 %1375
      %1377 = vrot.lane.b32.xlu0 %v1285, 48
      %v1378 = vpop.permute.xlu0 %1377
      %1379 = vrot.lane.b32.xlu0 %v1286, 48
      %v1380 = vpop.permute.xlu0 %1379
      %1381 = vrot.lane.b32.xlu0 %v1287, 48
      %v1382 = vpop.permute.xlu0 %1381
      %1383 = vrot.lane.b32.xlu0 %v1288, 48
      %v1384 = vpop.permute.xlu0 %1383
      %vm1417 = vcmask 458112
      %1418 = vst.msk [vmem:[#allocation2] sm:$0xff] %vm1417, %v1322
      %1419 = vst.msk [vmem:[#allocation2 + $0x10] sm:$0xff] %vm1417, %v1324
      %1420 = vst.msk [vmem:[#allocation2 + $0x20] sm:$0xff] %vm1417, %v1326
      %1421 = vst.msk [vmem:[#allocation2 + $0x30] sm:$0xff] %vm1417, %v1328
      %1422 = vst.msk [vmem:[#allocation2 + $0x40] sm:$0xff] %vm1417, %v1330
      %1423 = vst.msk [vmem:[#allocation2 + $0x50] sm:$0xff] %vm1417, %v1332
      %1424 = vst.msk [vmem:[#allocation2 + $0x60] sm:$0xff] %vm1417, %v1334
      %1425 = vst.msk [vmem:[#allocation2 + $0x70] sm:$0xff] %vm1417, %v1336
      %1426 = vst.msk [vmem:[#allocation2 + $0x80] sm:$0xff] %vm1417, %v1338
      %1427 = vst.msk [vmem:[#allocation2 + $0x90] sm:$0xff] %vm1417, %v1340
      %1428 = vst.msk [vmem:[#allocation2 + $0xa0] sm:$0xff] %vm1417, %v1342
      %1429 = vst.msk [vmem:[#allocation2 + $0xb0] sm:$0xff] %vm1417, %v1344
      %1430 = vst.msk [vmem:[#allocation2 + $0xc0] sm:$0xff] %vm1417, %v1346
      %1431 = vst.msk [vmem:[#allocation2 + $0xd0] sm:$0xff] %vm1417, %v1348
      %1432 = vst.msk [vmem:[#allocation2 + $0xe0] sm:$0xff] %vm1417, %v1350
      %1433 = vst.msk [vmem:[#allocation2 + $0xf0] sm:$0xff] %vm1417, %v1352
      %1434 = vst.msk [vmem:[#allocation2 + $0x100] sm:$0xff] %vm1417, %v1354
      %1435 = vst.msk [vmem:[#allocation2 + $0x110] sm:$0xff] %vm1417, %v1356
      %1436 = vst.msk [vmem:[#allocation2 + $0x120] sm:$0xff] %vm1417, %v1358
      %1437 = vst.msk [vmem:[#allocation2 + $0x130] sm:$0xff] %vm1417, %v1360
      %1438 = vst.msk [vmem:[#allocation2 + $0x140] sm:$0xff] %vm1417, %v1362
      %1439 = vst.msk [vmem:[#allocation2 + $0x150] sm:$0xff] %vm1417, %v1364
      %1440 = vst.msk [vmem:[#allocation2 + $0x160] sm:$0xff] %vm1417, %v1366
      %1441 = vst.msk [vmem:[#allocation2 + $0x170] sm:$0xff] %vm1417, %v1368
      %1442 = vst.msk [vmem:[#allocation2 + $0x180] sm:$0xff] %vm1417, %v1370
      %1443 = vst.msk [vmem:[#allocation2 + $0x190] sm:$0xff] %vm1417, %v1372
      %1444 = vst.msk [vmem:[#allocation2 + $0x1a0] sm:$0xff] %vm1417, %v1374
      %1445 = vst.msk [vmem:[#allocation2 + $0x1b0] sm:$0xff] %vm1417, %v1376
      %1446 = vst.msk [vmem:[#allocation2 + $0x1c0] sm:$0xff] %vm1417, %v1378
      %1447 = vst.msk [vmem:[#allocation2 + $0x1d0] sm:$0xff] %vm1417, %v1380
      %1448 = vst.msk [vmem:[#allocation2 + $0x1e0] sm:$0xff] %vm1417, %v1382
      %1449 = vst.msk [vmem:[#allocation2 + $0x1f0] sm:$0xff] %vm1417, %v1384
      %s1450 = sadd.s32 %s213, 21
      %s1451 = scalar_lea.vmem %s0, %s1450
      %v1452 = vld [vmem:[%s1451] sm:$0xff]
      %v1453 = vld [vmem:[%s1451 + $0x8] sm:$0xff]
      %v1454 = vld [vmem:[%s1451 + $0x10] sm:$0xff]
      %v1455 = vld [vmem:[%s1451 + $0x18] sm:$0xff]
      %v1456 = vld [vmem:[%s1451 + $0x20] sm:$0xff]
      %v1457 = vld [vmem:[%s1451 + $0x28] sm:$0xff]
      %v1458 = vld [vmem:[%s1451 + $0x30] sm:$0xff]
      %v1459 = vld [vmem:[%s1451 + $0x38] sm:$0xff]
      %v1460 = vld [vmem:[%s1451 + $0x40] sm:$0xff]
      %v1461 = vld [vmem:[%s1451 + $0x48] sm:$0xff]
      %v1462 = vld [vmem:[%s1451 + $0x50] sm:$0xff]
      %v1463 = vld [vmem:[%s1451 + $0x58] sm:$0xff]
      %v1464 = vld [vmem:[%s1451 + $0x60] sm:$0xff]
      %v1465 = vld [vmem:[%s1451 + $0x68] sm:$0xff]
      %v1466 = vld [vmem:[%s1451 + $0x70] sm:$0xff]
      %v1467 = vld [vmem:[%s1451 + $0x78] sm:$0xff]
      %v1468 = vld [vmem:[%s1451 + $0x80] sm:$0xff]
      %v1469 = vld [vmem:[%s1451 + $0x88] sm:$0xff]
      %v1470 = vld [vmem:[%s1451 + $0x90] sm:$0xff]
      %v1471 = vld [vmem:[%s1451 + $0x98] sm:$0xff]
      %v1472 = vld [vmem:[%s1451 + $0xa0] sm:$0xff]
      %v1473 = vld [vmem:[%s1451 + $0xa8] sm:$0xff]
      %v1474 = vld [vmem:[%s1451 + $0xb0] sm:$0xff]
      %v1475 = vld [vmem:[%s1451 + $0xb8] sm:$0xff]
      %v1476 = vld [vmem:[%s1451 + $0xc0] sm:$0xff]
      %v1477 = vld [vmem:[%s1451 + $0xc8] sm:$0xff]
      %v1478 = vld [vmem:[%s1451 + $0xd0] sm:$0xff]
      %v1479 = vld [vmem:[%s1451 + $0xd8] sm:$0xff]
      %v1480 = vld [vmem:[%s1451 + $0xe0] sm:$0xff]
      %v1481 = vld [vmem:[%s1451 + $0xe8] sm:$0xff]
      %v1482 = vld [vmem:[%s1451 + $0xf0] sm:$0xff]
      %v1483 = vld [vmem:[%s1451 + $0xf8] sm:$0xff]
      %1516 = vrot.lane.b32.xlu0 %v1452, 56
      %v1517 = vpop.permute.xlu0 %1516
      %1518 = vrot.lane.b32.xlu0 %v1453, 56
      %v1519 = vpop.permute.xlu0 %1518
      %1520 = vrot.lane.b32.xlu0 %v1454, 56
      %v1521 = vpop.permute.xlu0 %1520
      %1522 = vrot.lane.b32.xlu0 %v1455, 56
      %v1523 = vpop.permute.xlu0 %1522
      %1524 = vrot.lane.b32.xlu0 %v1456, 56
      %v1525 = vpop.permute.xlu0 %1524
      %1526 = vrot.lane.b32.xlu0 %v1457, 56
      %v1527 = vpop.permute.xlu0 %1526
      %1528 = vrot.lane.b32.xlu0 %v1458, 56
      %v1529 = vpop.permute.xlu0 %1528
      %1530 = vrot.lane.b32.xlu0 %v1459, 56
      %v1531 = vpop.permute.xlu0 %1530
      %1532 = vrot.lane.b32.xlu0 %v1460, 56
      %v1533 = vpop.permute.xlu0 %1532
      %1534 = vrot.lane.b32.xlu0 %v1461, 56
      %v1535 = vpop.permute.xlu0 %1534
      %1536 = vrot.lane.b32.xlu0 %v1462, 56
      %v1537 = vpop.permute.xlu0 %1536
      %1538 = vrot.lane.b32.xlu0 %v1463, 56
      %v1539 = vpop.permute.xlu0 %1538
      %1540 = vrot.lane.b32.xlu0 %v1464, 56
      %v1541 = vpop.permute.xlu0 %1540
      %1542 = vrot.lane.b32.xlu0 %v1465, 56
      %v1543 = vpop.permute.xlu0 %1542
      %1544 = vrot.lane.b32.xlu0 %v1466, 56
      %v1545 = vpop.permute.xlu0 %1544
      %1546 = vrot.lane.b32.xlu0 %v1467, 56
      %v1547 = vpop.permute.xlu0 %1546
      %1548 = vrot.lane.b32.xlu0 %v1468, 56
      %v1549 = vpop.permute.xlu0 %1548
      %1550 = vrot.lane.b32.xlu0 %v1469, 56
      %v1551 = vpop.permute.xlu0 %1550
      %1552 = vrot.lane.b32.xlu0 %v1470, 56
      %v1553 = vpop.permute.xlu0 %1552
      %1554 = vrot.lane.b32.xlu0 %v1471, 56
      %v1555 = vpop.permute.xlu0 %1554
      %1556 = vrot.lane.b32.xlu0 %v1472, 56
      %v1557 = vpop.permute.xlu0 %1556
      %1558 = vrot.lane.b32.xlu0 %v1473, 56
      %v1559 = vpop.permute.xlu0 %1558
      %1560 = vrot.lane.b32.xlu0 %v1474, 56
      %v1561 = vpop.permute.xlu0 %1560
      %1562 = vrot.lane.b32.xlu0 %v1475, 56
      %v1563 = vpop.permute.xlu0 %1562
      %1564 = vrot.lane.b32.xlu0 %v1476, 56
      %v1565 = vpop.permute.xlu0 %1564
      %1566 = vrot.lane.b32.xlu0 %v1477, 56
      %v1567 = vpop.permute.xlu0 %1566
      %1568 = vrot.lane.b32.xlu0 %v1478, 56
      %v1569 = vpop.permute.xlu0 %1568
      %1570 = vrot.lane.b32.xlu0 %v1479, 56
      %v1571 = vpop.permute.xlu0 %1570
      %1572 = vrot.lane.b32.xlu0 %v1480, 56
      %v1573 = vpop.permute.xlu0 %1572
      %1574 = vrot.lane.b32.xlu0 %v1481, 56
      %v1575 = vpop.permute.xlu0 %1574
      %1576 = vrot.lane.b32.xlu0 %v1482, 56
      %v1577 = vpop.permute.xlu0 %1576
      %1578 = vrot.lane.b32.xlu0 %v1483, 56
      %v1579 = vpop.permute.xlu0 %1578
      %vm1612 = vcmask 523712
      %1613 = vst.msk [vmem:[#allocation2] sm:$0xff] %vm1612, %v1517
      %1614 = vst.msk [vmem:[#allocation2 + $0x10] sm:$0xff] %vm1612, %v1519
      %1615 = vst.msk [vmem:[#allocation2 + $0x20] sm:$0xff] %vm1612, %v1521
      %1616 = vst.msk [vmem:[#allocation2 + $0x30] sm:$0xff] %vm1612, %v1523
      %1617 = vst.msk [vmem:[#allocation2 + $0x40] sm:$0xff] %vm1612, %v1525
      %1618 = vst.msk [vmem:[#allocation2 + $0x50] sm:$0xff] %vm1612, %v1527
      %1619 = vst.msk [vmem:[#allocation2 + $0x60] sm:$0xff] %vm1612, %v1529
      %1620 = vst.msk [vmem:[#allocation2 + $0x70] sm:$0xff] %vm1612, %v1531
      %1621 = vst.msk [vmem:[#allocation2 + $0x80] sm:$0xff] %vm1612, %v1533
      %1622 = vst.msk [vmem:[#allocation2 + $0x90] sm:$0xff] %vm1612, %v1535
      %1623 = vst.msk [vmem:[#allocation2 + $0xa0] sm:$0xff] %vm1612, %v1537
      %1624 = vst.msk [vmem:[#allocation2 + $0xb0] sm:$0xff] %vm1612, %v1539
      %1625 = vst.msk [vmem:[#allocation2 + $0xc0] sm:$0xff] %vm1612, %v1541
      %1626 = vst.msk [vmem:[#allocation2 + $0xd0] sm:$0xff] %vm1612, %v1543
      %1627 = vst.msk [vmem:[#allocation2 + $0xe0] sm:$0xff] %vm1612, %v1545
      %1628 = vst.msk [vmem:[#allocation2 + $0xf0] sm:$0xff] %vm1612, %v1547
      %1629 = vst.msk [vmem:[#allocation2 + $0x100] sm:$0xff] %vm1612, %v1549
      %1630 = vst.msk [vmem:[#allocation2 + $0x110] sm:$0xff] %vm1612, %v1551
      %1631 = vst.msk [vmem:[#allocation2 + $0x120] sm:$0xff] %vm1612, %v1553
      %1632 = vst.msk [vmem:[#allocation2 + $0x130] sm:$0xff] %vm1612, %v1555
      %1633 = vst.msk [vmem:[#allocation2 + $0x140] sm:$0xff] %vm1612, %v1557
      %1634 = vst.msk [vmem:[#allocation2 + $0x150] sm:$0xff] %vm1612, %v1559
      %1635 = vst.msk [vmem:[#allocation2 + $0x160] sm:$0xff] %vm1612, %v1561
      %1636 = vst.msk [vmem:[#allocation2 + $0x170] sm:$0xff] %vm1612, %v1563
      %1637 = vst.msk [vmem:[#allocation2 + $0x180] sm:$0xff] %vm1612, %v1565
      %1638 = vst.msk [vmem:[#allocation2 + $0x190] sm:$0xff] %vm1612, %v1567
      %1639 = vst.msk [vmem:[#allocation2 + $0x1a0] sm:$0xff] %vm1612, %v1569
      %1640 = vst.msk [vmem:[#allocation2 + $0x1b0] sm:$0xff] %vm1612, %v1571
      %1641 = vst.msk [vmem:[#allocation2 + $0x1c0] sm:$0xff] %vm1612, %v1573
      %1642 = vst.msk [vmem:[#allocation2 + $0x1d0] sm:$0xff] %vm1612, %v1575
      %1643 = vst.msk [vmem:[#allocation2 + $0x1e0] sm:$0xff] %vm1612, %v1577
      %1644 = vst.msk [vmem:[#allocation2 + $0x1f0] sm:$0xff] %vm1612, %v1579
      %s1645 = sadd.s32 %s213, 22
      %s1646 = scalar_lea.vmem %s0, %s1645
      %v1647 = vld [vmem:[%s1646] sm:$0xff]
      %v1648 = vld [vmem:[%s1646 + $0x8] sm:$0xff]
      %v1649 = vld [vmem:[%s1646 + $0x10] sm:$0xff]
      %v1650 = vld [vmem:[%s1646 + $0x18] sm:$0xff]
      %v1651 = vld [vmem:[%s1646 + $0x20] sm:$0xff]
      %v1652 = vld [vmem:[%s1646 + $0x28] sm:$0xff]
      %v1653 = vld [vmem:[%s1646 + $0x30] sm:$0xff]
      %v1654 = vld [vmem:[%s1646 + $0x38] sm:$0xff]
      %v1655 = vld [vmem:[%s1646 + $0x40] sm:$0xff]
      %v1656 = vld [vmem:[%s1646 + $0x48] sm:$0xff]
      %v1657 = vld [vmem:[%s1646 + $0x50] sm:$0xff]
      %v1658 = vld [vmem:[%s1646 + $0x58] sm:$0xff]
      %v1659 = vld [vmem:[%s1646 + $0x60] sm:$0xff]
      %v1660 = vld [vmem:[%s1646 + $0x68] sm:$0xff]
      %v1661 = vld [vmem:[%s1646 + $0x70] sm:$0xff]
      %v1662 = vld [vmem:[%s1646 + $0x78] sm:$0xff]
      %v1663 = vld [vmem:[%s1646 + $0x80] sm:$0xff]
      %v1664 = vld [vmem:[%s1646 + $0x88] sm:$0xff]
      %v1665 = vld [vmem:[%s1646 + $0x90] sm:$0xff]
      %v1666 = vld [vmem:[%s1646 + $0x98] sm:$0xff]
      %v1667 = vld [vmem:[%s1646 + $0xa0] sm:$0xff]
      %v1668 = vld [vmem:[%s1646 + $0xa8] sm:$0xff]
      %v1669 = vld [vmem:[%s1646 + $0xb0] sm:$0xff]
      %v1670 = vld [vmem:[%s1646 + $0xb8] sm:$0xff]
      %v1671 = vld [vmem:[%s1646 + $0xc0] sm:$0xff]
      %v1672 = vld [vmem:[%s1646 + $0xc8] sm:$0xff]
      %v1673 = vld [vmem:[%s1646 + $0xd0] sm:$0xff]
      %v1674 = vld [vmem:[%s1646 + $0xd8] sm:$0xff]
      %v1675 = vld [vmem:[%s1646 + $0xe0] sm:$0xff]
      %v1676 = vld [vmem:[%s1646 + $0xe8] sm:$0xff]
      %v1677 = vld [vmem:[%s1646 + $0xf0] sm:$0xff]
      %v1678 = vld [vmem:[%s1646 + $0xf8] sm:$0xff]
      %1711 = vrot.lane.b32.xlu0 %v1647, 64
      %v1712 = vpop.permute.xlu0 %1711
      %1713 = vrot.lane.b32.xlu0 %v1648, 64
      %v1714 = vpop.permute.xlu0 %1713
      %1715 = vrot.lane.b32.xlu0 %v1649, 64
      %v1716 = vpop.permute.xlu0 %1715
      %1717 = vrot.lane.b32.xlu0 %v1650, 64
      %v1718 = vpop.permute.xlu0 %1717
      %1719 = vrot.lane.b32.xlu0 %v1651, 64
      %v1720 = vpop.permute.xlu0 %1719
      %1721 = vrot.lane.b32.xlu0 %v1652, 64
      %v1722 = vpop.permute.xlu0 %1721
      %1723 = vrot.lane.b32.xlu0 %v1653, 64
      %v1724 = vpop.permute.xlu0 %1723
      %1725 = vrot.lane.b32.xlu0 %v1654, 64
      %v1726 = vpop.permute.xlu0 %1725
      %1727 = vrot.lane.b32.xlu0 %v1655, 64
      %v1728 = vpop.permute.xlu0 %1727
      %1729 = vrot.lane.b32.xlu0 %v1656, 64
      %v1730 = vpop.permute.xlu0 %1729
      %1731 = vrot.lane.b32.xlu0 %v1657, 64
      %v1732 = vpop.permute.xlu0 %1731
      %1733 = vrot.lane.b32.xlu0 %v1658, 64
      %v1734 = vpop.permute.xlu0 %1733
      %1735 = vrot.lane.b32.xlu0 %v1659, 64
      %v1736 = vpop.permute.xlu0 %1735
      %1737 = vrot.lane.b32.xlu0 %v1660, 64
      %v1738 = vpop.permute.xlu0 %1737
      %1739 = vrot.lane.b32.xlu0 %v1661, 64
      %v1740 = vpop.permute.xlu0 %1739
      %1741 = vrot.lane.b32.xlu0 %v1662, 64
      %v1742 = vpop.permute.xlu0 %1741
      %1743 = vrot.lane.b32.xlu0 %v1663, 64
      %v1744 = vpop.permute.xlu0 %1743
      %1745 = vrot.lane.b32.xlu0 %v1664, 64
      %v1746 = vpop.permute.xlu0 %1745
      %1747 = vrot.lane.b32.xlu0 %v1665, 64
      %v1748 = vpop.permute.xlu0 %1747
      %1749 = vrot.lane.b32.xlu0 %v1666, 64
      %v1750 = vpop.permute.xlu0 %1749
      %1751 = vrot.lane.b32.xlu0 %v1667, 64
      %v1752 = vpop.permute.xlu0 %1751
      %1753 = vrot.lane.b32.xlu0 %v1668, 64
      %v1754 = vpop.permute.xlu0 %1753
      %1755 = vrot.lane.b32.xlu0 %v1669, 64
      %v1756 = vpop.permute.xlu0 %1755
      %1757 = vrot.lane.b32.xlu0 %v1670, 64
      %v1758 = vpop.permute.xlu0 %1757
      %1759 = vrot.lane.b32.xlu0 %v1671, 64
      %v1760 = vpop.permute.xlu0 %1759
      %1761 = vrot.lane.b32.xlu0 %v1672, 64
      %v1762 = vpop.permute.xlu0 %1761
      %1763 = vrot.lane.b32.xlu0 %v1673, 64
      %v1764 = vpop.permute.xlu0 %1763
      %1765 = vrot.lane.b32.xlu0 %v1674, 64
      %v1766 = vpop.permute.xlu0 %1765
      %1767 = vrot.lane.b32.xlu0 %v1675, 64
      %v1768 = vpop.permute.xlu0 %1767
      %1769 = vrot.lane.b32.xlu0 %v1676, 64
      %v1770 = vpop.permute.xlu0 %1769
      %1771 = vrot.lane.b32.xlu0 %v1677, 64
      %v1772 = vpop.permute.xlu0 %1771
      %1773 = vrot.lane.b32.xlu0 %v1678, 64
      %v1774 = vpop.permute.xlu0 %1773
      %vm1807 = vcmask 589312
      %1808 = vst.msk [vmem:[#allocation2] sm:$0xff] %vm1807, %v1712
      %1809 = vst.msk [vmem:[#allocation2 + $0x10] sm:$0xff] %vm1807, %v1714
      %1810 = vst.msk [vmem:[#allocation2 + $0x20] sm:$0xff] %vm1807, %v1716
      %1811 = vst.msk [vmem:[#allocation2 + $0x30] sm:$0xff] %vm1807, %v1718
      %1812 = vst.msk [vmem:[#allocation2 + $0x40] sm:$0xff] %vm1807, %v1720
      %1813 = vst.msk [vmem:[#allocation2 + $0x50] sm:$0xff] %vm1807, %v1722
      %1814 = vst.msk [vmem:[#allocation2 + $0x60] sm:$0xff] %vm1807, %v1724
      %1815 = vst.msk [vmem:[#allocation2 + $0x70] sm:$0xff] %vm1807, %v1726
      %1816 = vst.msk [vmem:[#allocation2 + $0x80] sm:$0xff] %vm1807, %v1728
      %1817 = vst.msk [vmem:[#allocation2 + $0x90] sm:$0xff] %vm1807, %v1730
      %1818 = vst.msk [vmem:[#allocation2 + $0xa0] sm:$0xff] %vm1807, %v1732
      %1819 = vst.msk [vmem:[#allocation2 + $0xb0] sm:$0xff] %vm1807, %v1734
      %1820 = vst.msk [vmem:[#allocation2 + $0xc0] sm:$0xff] %vm1807, %v1736
      %1821 = vst.msk [vmem:[#allocation2 + $0xd0] sm:$0xff] %vm1807, %v1738
      %1822 = vst.msk [vmem:[#allocation2 + $0xe0] sm:$0xff] %vm1807, %v1740
      %1823 = vst.msk [vmem:[#allocation2 + $0xf0] sm:$0xff] %vm1807, %v1742
      %1824 = vst.msk [vmem:[#allocation2 + $0x100] sm:$0xff] %vm1807, %v1744
      %1825 = vst.msk [vmem:[#allocation2 + $0x110] sm:$0xff] %vm1807, %v1746
      %1826 = vst.msk [vmem:[#allocation2 + $0x120] sm:$0xff] %vm1807, %v1748
      %1827 = vst.msk [vmem:[#allocation2 + $0x130] sm:$0xff] %vm1807, %v1750
      %1828 = vst.msk [vmem:[#allocation2 + $0x140] sm:$0xff] %vm1807, %v1752
      %1829 = vst.msk [vmem:[#allocation2 + $0x150] sm:$0xff] %vm1807, %v1754
      %1830 = vst.msk [vmem:[#allocation2 + $0x160] sm:$0xff] %vm1807, %v1756
      %1831 = vst.msk [vmem:[#allocation2 + $0x170] sm:$0xff] %vm1807, %v1758
      %1832 = vst.msk [vmem:[#allocation2 + $0x180] sm:$0xff] %vm1807, %v1760
      %1833 = vst.msk [vmem:[#allocation2 + $0x190] sm:$0xff] %vm1807, %v1762
      %1834 = vst.msk [vmem:[#allocation2 + $0x1a0] sm:$0xff] %vm1807, %v1764
      %1835 = vst.msk [vmem:[#allocation2 + $0x1b0] sm:$0xff] %vm1807, %v1766
      %1836 = vst.msk [vmem:[#allocation2 + $0x1c0] sm:$0xff] %vm1807, %v1768
      %1837 = vst.msk [vmem:[#allocation2 + $0x1d0] sm:$0xff] %vm1807, %v1770
      %1838 = vst.msk [vmem:[#allocation2 + $0x1e0] sm:$0xff] %vm1807, %v1772
      %1839 = vst.msk [vmem:[#allocation2 + $0x1f0] sm:$0xff] %vm1807, %v1774
      %s1840 = sadd.s32 %s213, 100
      %s1841 = scalar_lea.vmem %s0, %s1840
      %v1842 = vld [vmem:[%s1841] sm:$0xff]
      %v1843 = vld [vmem:[%s1841 + $0x8] sm:$0xff]
      %v1844 = vld [vmem:[%s1841 + $0x10] sm:$0xff]
      %v1845 = vld [vmem:[%s1841 + $0x18] sm:$0xff]
      %v1846 = vld [vmem:[%s1841 + $0x20] sm:$0xff]
      %v1847 = vld [vmem:[%s1841 + $0x28] sm:$0xff]
      %v1848 = vld [vmem:[%s1841 + $0x30] sm:$0xff]
      %v1849 = vld [vmem:[%s1841 + $0x38] sm:$0xff]
      %v1850 = vld [vmem:[%s1841 + $0x40] sm:$0xff]
      %v1851 = vld [vmem:[%s1841 + $0x48] sm:$0xff]
      %v1852 = vld [vmem:[%s1841 + $0x50] sm:$0xff]
      %v1853 = vld [vmem:[%s1841 + $0x58] sm:$0xff]
      %v1854 = vld [vmem:[%s1841 + $0x60] sm:$0xff]
      %v1855 = vld [vmem:[%s1841 + $0x68] sm:$0xff]
      %v1856 = vld [vmem:[%s1841 + $0x70] sm:$0xff]
      %v1857 = vld [vmem:[%s1841 + $0x78] sm:$0xff]
      %v1858 = vld [vmem:[%s1841 + $0x80] sm:$0xff]
      %v1859 = vld [vmem:[%s1841 + $0x88] sm:$0xff]
      %v1860 = vld [vmem:[%s1841 + $0x90] sm:$0xff]
      %v1861 = vld [vmem:[%s1841 + $0x98] sm:$0xff]
      %v1862 = vld [vmem:[%s1841 + $0xa0] sm:$0xff]
      %v1863 = vld [vmem:[%s1841 + $0xa8] sm:$0xff]
      %v1864 = vld [vmem:[%s1841 + $0xb0] sm:$0xff]
      %v1865 = vld [vmem:[%s1841 + $0xb8] sm:$0xff]
      %v1866 = vld [vmem:[%s1841 + $0xc0] sm:$0xff]
      %v1867 = vld [vmem:[%s1841 + $0xc8] sm:$0xff]
      %v1868 = vld [vmem:[%s1841 + $0xd0] sm:$0xff]
      %v1869 = vld [vmem:[%s1841 + $0xd8] sm:$0xff]
      %v1870 = vld [vmem:[%s1841 + $0xe0] sm:$0xff]
      %v1871 = vld [vmem:[%s1841 + $0xe8] sm:$0xff]
      %v1872 = vld [vmem:[%s1841 + $0xf0] sm:$0xff]
      %v1873 = vld [vmem:[%s1841 + $0xf8] sm:$0xff]
      %1906 = vrot.lane.b32.xlu0 %v1842, 72
      %v1907 = vpop.permute.xlu0 %1906
      %1908 = vrot.lane.b32.xlu0 %v1843, 72
      %v1909 = vpop.permute.xlu0 %1908
      %1910 = vrot.lane.b32.xlu0 %v1844, 72
      %v1911 = vpop.permute.xlu0 %1910
      %1912 = vrot.lane.b32.xlu0 %v1845, 72
      %v1913 = vpop.permute.xlu0 %1912
      %1914 = vrot.lane.b32.xlu0 %v1846, 72
      %v1915 = vpop.permute.xlu0 %1914
      %1916 = vrot.lane.b32.xlu0 %v1847, 72
      %v1917 = vpop.permute.xlu0 %1916
      %1918 = vrot.lane.b32.xlu0 %v1848, 72
      %v1919 = vpop.permute.xlu0 %1918
      %1920 = vrot.lane.b32.xlu0 %v1849, 72
      %v1921 = vpop.permute.xlu0 %1920
      %1922 = vrot.lane.b32.xlu0 %v1850, 72
      %v1923 = vpop.permute.xlu0 %1922
      %1924 = vrot.lane.b32.xlu0 %v1851, 72
      %v1925 = vpop.permute.xlu0 %1924
      %1926 = vrot.lane.b32.xlu0 %v1852, 72
      %v1927 = vpop.permute.xlu0 %1926
      %1928 = vrot.lane.b32.xlu0 %v1853, 72
      %v1929 = vpop.permute.xlu0 %1928
      %1930 = vrot.lane.b32.xlu0 %v1854, 72
      %v1931 = vpop.permute.xlu0 %1930
      %1932 = vrot.lane.b32.xlu0 %v1855, 72
      %v1933 = vpop.permute.xlu0 %1932
      %1934 = vrot.lane.b32.xlu0 %v1856, 72
      %v1935 = vpop.permute.xlu0 %1934
      %1936 = vrot.lane.b32.xlu0 %v1857, 72
      %v1937 = vpop.permute.xlu0 %1936
      %1938 = vrot.lane.b32.xlu0 %v1858, 72
      %v1939 = vpop.permute.xlu0 %1938
      %1940 = vrot.lane.b32.xlu0 %v1859, 72
      %v1941 = vpop.permute.xlu0 %1940
      %1942 = vrot.lane.b32.xlu0 %v1860, 72
      %v1943 = vpop.permute.xlu0 %1942
      %1944 = vrot.lane.b32.xlu0 %v1861, 72
      %v1945 = vpop.permute.xlu0 %1944
      %1946 = vrot.lane.b32.xlu0 %v1862, 72
      %v1947 = vpop.permute.xlu0 %1946
      %1948 = vrot.lane.b32.xlu0 %v1863, 72
      %v1949 = vpop.permute.xlu0 %1948
      %1950 = vrot.lane.b32.xlu0 %v1864, 72
      %v1951 = vpop.permute.xlu0 %1950
      %1952 = vrot.lane.b32.xlu0 %v1865, 72
      %v1953 = vpop.permute.xlu0 %1952
      %1954 = vrot.lane.b32.xlu0 %v1866, 72
      %v1955 = vpop.permute.xlu0 %1954
      %1956 = vrot.lane.b32.xlu0 %v1867, 72
      %v1957 = vpop.permute.xlu0 %1956
      %1958 = vrot.lane.b32.xlu0 %v1868, 72
      %v1959 = vpop.permute.xlu0 %1958
      %1960 = vrot.lane.b32.xlu0 %v1869, 72
      %v1961 = vpop.permute.xlu0 %1960
      %1962 = vrot.lane.b32.xlu0 %v1870, 72
      %v1963 = vpop.permute.xlu0 %1962
      %1964 = vrot.lane.b32.xlu0 %v1871, 72
      %v1965 = vpop.permute.xlu0 %1964
      %1966 = vrot.lane.b32.xlu0 %v1872, 72
      %v1967 = vpop.permute.xlu0 %1966
      %1968 = vrot.lane.b32.xlu0 %v1873, 72
      %v1969 = vpop.permute.xlu0 %1968
      %vm2002 = vcmask 654912
      %2003 = vst.msk [vmem:[#allocation2] sm:$0xff] %vm2002, %v1907
      %2004 = vst.msk [vmem:[#allocation2 + $0x10] sm:$0xff] %vm2002, %v1909
      %2005 = vst.msk [vmem:[#allocation2 + $0x20] sm:$0xff] %vm2002, %v1911
      %2006 = vst.msk [vmem:[#allocation2 + $0x30] sm:$0xff] %vm2002, %v1913
      %2007 = vst.msk [vmem:[#allocation2 + $0x40] sm:$0xff] %vm2002, %v1915
      %2008 = vst.msk [vmem:[#allocation2 + $0x50] sm:$0xff] %vm2002, %v1917
      %2009 = vst.msk [vmem:[#allocation2 + $0x60] sm:$0xff] %vm2002, %v1919
      %2010 = vst.msk [vmem:[#allocation2 + $0x70] sm:$0xff] %vm2002, %v1921
      %2011 = vst.msk [vmem:[#allocation2 + $0x80] sm:$0xff] %vm2002, %v1923
      %2012 = vst.msk [vmem:[#allocation2 + $0x90] sm:$0xff] %vm2002, %v1925
      %2013 = vst.msk [vmem:[#allocation2 + $0xa0] sm:$0xff] %vm2002, %v1927
      %2014 = vst.msk [vmem:[#allocation2 + $0xb0] sm:$0xff] %vm2002, %v1929
      %2015 = vst.msk [vmem:[#allocation2 + $0xc0] sm:$0xff] %vm2002, %v1931
      %2016 = vst.msk [vmem:[#allocation2 + $0xd0] sm:$0xff] %vm2002, %v1933
      %2017 = vst.msk [vmem:[#allocation2 + $0xe0] sm:$0xff] %vm2002, %v1935
      %2018 = vst.msk [vmem:[#allocation2 + $0xf0] sm:$0xff] %vm2002, %v1937
      %2019 = vst.msk [vmem:[#allocation2 + $0x100] sm:$0xff] %vm2002, %v1939
      %2020 = vst.msk [vmem:[#allocation2 + $0x110] sm:$0xff] %vm2002, %v1941
      %2021 = vst.msk [vmem:[#allocation2 + $0x120] sm:$0xff] %vm2002, %v1943
      %2022 = vst.msk [vmem:[#allocation2 + $0x130] sm:$0xff] %vm2002, %v1945
      %2023 = vst.msk [vmem:[#allocation2 + $0x140] sm:$0xff] %vm2002, %v1947
      %2024 = vst.msk [vmem:[#allocation2 + $0x150] sm:$0xff] %vm2002, %v1949
      %2025 = vst.msk [vmem:[#allocation2 + $0x160] sm:$0xff] %vm2002, %v1951
      %2026 = vst.msk [vmem:[#allocation2 + $0x170] sm:$0xff] %vm2002, %v1953
      %2027 = vst.msk [vmem:[#allocation2 + $0x180] sm:$0xff] %vm2002, %v1955
      %2028 = vst.msk [vmem:[#allocation2 + $0x190] sm:$0xff] %vm2002, %v1957
      %2029 = vst.msk [vmem:[#allocation2 + $0x1a0] sm:$0xff] %vm2002, %v1959
      %2030 = vst.msk [vmem:[#allocation2 + $0x1b0] sm:$0xff] %vm2002, %v1961
      %2031 = vst.msk [vmem:[#allocation2 + $0x1c0] sm:$0xff] %vm2002, %v1963
      %2032 = vst.msk [vmem:[#allocation2 + $0x1d0] sm:$0xff] %vm2002, %v1965
      %2033 = vst.msk [vmem:[#allocation2 + $0x1e0] sm:$0xff] %vm2002, %v1967
      %2034 = vst.msk [vmem:[#allocation2 + $0x1f0] sm:$0xff] %vm2002, %v1969
      %s2035 = sadd.s32 %s213, 101
      %s2036 = scalar_lea.vmem %s0, %s2035
      %v2037 = vld [vmem:[%s2036] sm:$0xff]
      %v2038 = vld [vmem:[%s2036 + $0x8] sm:$0xff]
      %v2039 = vld [vmem:[%s2036 + $0x10] sm:$0xff]
      %v2040 = vld [vmem:[%s2036 + $0x18] sm:$0xff]
      %v2041 = vld [vmem:[%s2036 + $0x20] sm:$0xff]
      %v2042 = vld [vmem:[%s2036 + $0x28] sm:$0xff]
      %v2043 = vld [vmem:[%s2036 + $0x30] sm:$0xff]
      %v2044 = vld [vmem:[%s2036 + $0x38] sm:$0xff]
      %v2045 = vld [vmem:[%s2036 + $0x40] sm:$0xff]
      %v2046 = vld [vmem:[%s2036 + $0x48] sm:$0xff]
      %v2047 = vld [vmem:[%s2036 + $0x50] sm:$0xff]
      %v2048 = vld [vmem:[%s2036 + $0x58] sm:$0xff]
      %v2049 = vld [vmem:[%s2036 + $0x60] sm:$0xff]
      %v2050 = vld [vmem:[%s2036 + $0x68] sm:$0xff]
      %v2051 = vld [vmem:[%s2036 + $0x70] sm:$0xff]
      %v2052 = vld [vmem:[%s2036 + $0x78] sm:$0xff]
      %v2053 = vld [vmem:[%s2036 + $0x80] sm:$0xff]
      %v2054 = vld [vmem:[%s2036 + $0x88] sm:$0xff]
      %v2055 = vld [vmem:[%s2036 + $0x90] sm:$0xff]
      %v2056 = vld [vmem:[%s2036 + $0x98] sm:$0xff]
      %v2057 = vld [vmem:[%s2036 + $0xa0] sm:$0xff]
      %v2058 = vld [vmem:[%s2036 + $0xa8] sm:$0xff]
      %v2059 = vld [vmem:[%s2036 + $0xb0] sm:$0xff]
      %v2060 = vld [vmem:[%s2036 + $0xb8] sm:$0xff]
      %v2061 = vld [vmem:[%s2036 + $0xc0] sm:$0xff]
      %v2062 = vld [vmem:[%s2036 + $0xc8] sm:$0xff]
      %v2063 = vld [vmem:[%s2036 + $0xd0] sm:$0xff]
      %v2064 = vld [vmem:[%s2036 + $0xd8] sm:$0xff]
      %v2065 = vld [vmem:[%s2036 + $0xe0] sm:$0xff]
      %v2066 = vld [vmem:[%s2036 + $0xe8] sm:$0xff]
      %v2067 = vld [vmem:[%s2036 + $0xf0] sm:$0xff]
      %v2068 = vld [vmem:[%s2036 + $0xf8] sm:$0xff]
      %2101 = vrot.lane.b32.xlu0 %v2037, 80
      %v2102 = vpop.permute.xlu0 %2101
      %2103 = vrot.lane.b32.xlu0 %v2038, 80
      %v2104 = vpop.permute.xlu0 %2103
      %2105 = vrot.lane.b32.xlu0 %v2039, 80
      %v2106 = vpop.permute.xlu0 %2105
      %2107 = vrot.lane.b32.xlu0 %v2040, 80
      %v2108 = vpop.permute.xlu0 %2107
      %2109 = vrot.lane.b32.xlu0 %v2041, 80
      %v2110 = vpop.permute.xlu0 %2109
      %2111 = vrot.lane.b32.xlu0 %v2042, 80
      %v2112 = vpop.permute.xlu0 %2111
      %2113 = vrot.lane.b32.xlu0 %v2043, 80
      %v2114 = vpop.permute.xlu0 %2113
      %2115 = vrot.lane.b32.xlu0 %v2044, 80
      %v2116 = vpop.permute.xlu0 %2115
      %2117 = vrot.lane.b32.xlu0 %v2045, 80
      %v2118 = vpop.permute.xlu0 %2117
      %2119 = vrot.lane.b32.xlu0 %v2046, 80
      %v2120 = vpop.permute.xlu0 %2119
      %2121 = vrot.lane.b32.xlu0 %v2047, 80
      %v2122 = vpop.permute.xlu0 %2121
      %2123 = vrot.lane.b32.xlu0 %v2048, 80
      %v2124 = vpop.permute.xlu0 %2123
      %2125 = vrot.lane.b32.xlu0 %v2049, 80
      %v2126 = vpop.permute.xlu0 %2125
      %2127 = vrot.lane.b32.xlu0 %v2050, 80
      %v2128 = vpop.permute.xlu0 %2127
      %2129 = vrot.lane.b32.xlu0 %v2051, 80
      %v2130 = vpop.permute.xlu0 %2129
      %2131 = vrot.lane.b32.xlu0 %v2052, 80
      %v2132 = vpop.permute.xlu0 %2131
      %2133 = vrot.lane.b32.xlu0 %v2053, 80
      %v2134 = vpop.permute.xlu0 %2133
      %2135 = vrot.lane.b32.xlu0 %v2054, 80
      %v2136 = vpop.permute.xlu0 %2135
      %2137 = vrot.lane.b32.xlu0 %v2055, 80
      %v2138 = vpop.permute.xlu0 %2137
      %2139 = vrot.lane.b32.xlu0 %v2056, 80
      %v2140 = vpop.permute.xlu0 %2139
      %2141 = vrot.lane.b32.xlu0 %v2057, 80
      %v2142 = vpop.permute.xlu0 %2141
      %2143 = vrot.lane.b32.xlu0 %v2058, 80
      %v2144 = vpop.permute.xlu0 %2143
      %2145 = vrot.lane.b32.xlu0 %v2059, 80
      %v2146 = vpop.permute.xlu0 %2145
      %2147 = vrot.lane.b32.xlu0 %v2060, 80
      %v2148 = vpop.permute.xlu0 %2147
      %2149 = vrot.lane.b32.xlu0 %v2061, 80
      %v2150 = vpop.permute.xlu0 %2149
      %2151 = vrot.lane.b32.xlu0 %v2062, 80
      %v2152 = vpop.permute.xlu0 %2151
      %2153 = vrot.lane.b32.xlu0 %v2063, 80
      %v2154 = vpop.permute.xlu0 %2153
      %2155 = vrot.lane.b32.xlu0 %v2064, 80
      %v2156 = vpop.permute.xlu0 %2155
      %2157 = vrot.lane.b32.xlu0 %v2065, 80
      %v2158 = vpop.permute.xlu0 %2157
      %2159 = vrot.lane.b32.xlu0 %v2066, 80
      %v2160 = vpop.permute.xlu0 %2159
      %2161 = vrot.lane.b32.xlu0 %v2067, 80
      %v2162 = vpop.permute.xlu0 %2161
      %2163 = vrot.lane.b32.xlu0 %v2068, 80
      %v2164 = vpop.permute.xlu0 %2163
      %vm2197 = vcmask 720512
      %2198 = vst.msk [vmem:[#allocation2] sm:$0xff] %vm2197, %v2102
      %2199 = vst.msk [vmem:[#allocation2 + $0x10] sm:$0xff] %vm2197, %v2104
      %2200 = vst.msk [vmem:[#allocation2 + $0x20] sm:$0xff] %vm2197, %v2106
      %2201 = vst.msk [vmem:[#allocation2 + $0x30] sm:$0xff] %vm2197, %v2108
      %2202 = vst.msk [vmem:[#allocation2 + $0x40] sm:$0xff] %vm2197, %v2110
      %2203 = vst.msk [vmem:[#allocation2 + $0x50] sm:$0xff] %vm2197, %v2112
      %2204 = vst.msk [vmem:[#allocation2 + $0x60] sm:$0xff] %vm2197, %v2114
      %2205 = vst.msk [vmem:[#allocation2 + $0x70] sm:$0xff] %vm2197, %v2116
      %2206 = vst.msk [vmem:[#allocation2 + $0x80] sm:$0xff] %vm2197, %v2118
      %2207 = vst.msk [vmem:[#allocation2 + $0x90] sm:$0xff] %vm2197, %v2120
      %2208 = vst.msk [vmem:[#allocation2 + $0xa0] sm:$0xff] %vm2197, %v2122
      %2209 = vst.msk [vmem:[#allocation2 + $0xb0] sm:$0xff] %vm2197, %v2124
      %2210 = vst.msk [vmem:[#allocation2 + $0xc0] sm:$0xff] %vm2197, %v2126
      %2211 = vst.msk [vmem:[#allocation2 + $0xd0] sm:$0xff] %vm2197, %v2128
      %2212 = vst.msk [vmem:[#allocation2 + $0xe0] sm:$0xff] %vm2197, %v2130
      %2213 = vst.msk [vmem:[#allocation2 + $0xf0] sm:$0xff] %vm2197, %v2132
      %2214 = vst.msk [vmem:[#allocation2 + $0x100] sm:$0xff] %vm2197, %v2134
      %2215 = vst.msk [vmem:[#allocation2 + $0x110] sm:$0xff] %vm2197, %v2136
      %2216 = vst.msk [vmem:[#allocation2 + $0x120] sm:$0xff] %vm2197, %v2138
      %2217 = vst.msk [vmem:[#allocation2 + $0x130] sm:$0xff] %vm2197, %v2140
      %2218 = vst.msk [vmem:[#allocation2 + $0x140] sm:$0xff] %vm2197, %v2142
      %2219 = vst.msk [vmem:[#allocation2 + $0x150] sm:$0xff] %vm2197, %v2144
      %2220 = vst.msk [vmem:[#allocation2 + $0x160] sm:$0xff] %vm2197, %v2146
      %2221 = vst.msk [vmem:[#allocation2 + $0x170] sm:$0xff] %vm2197, %v2148
      %2222 = vst.msk [vmem:[#allocation2 + $0x180] sm:$0xff] %vm2197, %v2150
      %2223 = vst.msk [vmem:[#allocation2 + $0x190] sm:$0xff] %vm2197, %v2152
      %2224 = vst.msk [vmem:[#allocation2 + $0x1a0] sm:$0xff] %vm2197, %v2154
      %2225 = vst.msk [vmem:[#allocation2 + $0x1b0] sm:$0xff] %vm2197, %v2156
      %2226 = vst.msk [vmem:[#allocation2 + $0x1c0] sm:$0xff] %vm2197, %v2158
      %2227 = vst.msk [vmem:[#allocation2 + $0x1d0] sm:$0xff] %vm2197, %v2160
      %2228 = vst.msk [vmem:[#allocation2 + $0x1e0] sm:$0xff] %vm2197, %v2162
      %2229 = vst.msk [vmem:[#allocation2 + $0x1f0] sm:$0xff] %vm2197, %v2164
      %s2230 = sadd.s32 %s213, 102
      %s2231 = scalar_lea.vmem %s0, %s2230
      %v2232 = vld [vmem:[%s2231] sm:$0xff]
      %v2233 = vld [vmem:[%s2231 + $0x8] sm:$0xff]
      %v2234 = vld [vmem:[%s2231 + $0x10] sm:$0xff]
      %v2235 = vld [vmem:[%s2231 + $0x18] sm:$0xff]
      %v2236 = vld [vmem:[%s2231 + $0x20] sm:$0xff]
      %v2237 = vld [vmem:[%s2231 + $0x28] sm:$0xff]
      %v2238 = vld [vmem:[%s2231 + $0x30] sm:$0xff]
      %v2239 = vld [vmem:[%s2231 + $0x38] sm:$0xff]
      %v2240 = vld [vmem:[%s2231 + $0x40] sm:$0xff]
      %v2241 = vld [vmem:[%s2231 + $0x48] sm:$0xff]
      %v2242 = vld [vmem:[%s2231 + $0x50] sm:$0xff]
      %v2243 = vld [vmem:[%s2231 + $0x58] sm:$0xff]
      %v2244 = vld [vmem:[%s2231 + $0x60] sm:$0xff]
      %v2245 = vld [vmem:[%s2231 + $0x68] sm:$0xff]
      %v2246 = vld [vmem:[%s2231 + $0x70] sm:$0xff]
      %v2247 = vld [vmem:[%s2231 + $0x78] sm:$0xff]
      %v2248 = vld [vmem:[%s2231 + $0x80] sm:$0xff]
      %v2249 = vld [vmem:[%s2231 + $0x88] sm:$0xff]
      %v2250 = vld [vmem:[%s2231 + $0x90] sm:$0xff]
      %v2251 = vld [vmem:[%s2231 + $0x98] sm:$0xff]
      %v2252 = vld [vmem:[%s2231 + $0xa0] sm:$0xff]
      %v2253 = vld [vmem:[%s2231 + $0xa8] sm:$0xff]
      %v2254 = vld [vmem:[%s2231 + $0xb0] sm:$0xff]
      %v2255 = vld [vmem:[%s2231 + $0xb8] sm:$0xff]
      %v2256 = vld [vmem:[%s2231 + $0xc0] sm:$0xff]
      %v2257 = vld [vmem:[%s2231 + $0xc8] sm:$0xff]
      %v2258 = vld [vmem:[%s2231 + $0xd0] sm:$0xff]
      %v2259 = vld [vmem:[%s2231 + $0xd8] sm:$0xff]
      %v2260 = vld [vmem:[%s2231 + $0xe0] sm:$0xff]
      %v2261 = vld [vmem:[%s2231 + $0xe8] sm:$0xff]
      %v2262 = vld [vmem:[%s2231 + $0xf0] sm:$0xff]
      %v2263 = vld [vmem:[%s2231 + $0xf8] sm:$0xff]
      %2296 = vrot.lane.b32.xlu0 %v2232, 88
      %v2297 = vpop.permute.xlu0 %2296
      %2298 = vrot.lane.b32.xlu0 %v2233, 88
      %v2299 = vpop.permute.xlu0 %2298
      %2300 = vrot.lane.b32.xlu0 %v2234, 88
      %v2301 = vpop.permute.xlu0 %2300
      %2302 = vrot.lane.b32.xlu0 %v2235, 88
      %v2303 = vpop.permute.xlu0 %2302
      %2304 = vrot.lane.b32.xlu0 %v2236, 88
      %v2305 = vpop.permute.xlu0 %2304
      %2306 = vrot.lane.b32.xlu0 %v2237, 88
      %v2307 = vpop.permute.xlu0 %2306
      %2308 = vrot.lane.b32.xlu0 %v2238, 88
      %v2309 = vpop.permute.xlu0 %2308
      %2310 = vrot.lane.b32.xlu0 %v2239, 88
      %v2311 = vpop.permute.xlu0 %2310
      %2312 = vrot.lane.b32.xlu0 %v2240, 88
      %v2313 = vpop.permute.xlu0 %2312
      %2314 = vrot.lane.b32.xlu0 %v2241, 88
      %v2315 = vpop.permute.xlu0 %2314
      %2316 = vrot.lane.b32.xlu0 %v2242, 88
      %v2317 = vpop.permute.xlu0 %2316
      %2318 = vrot.lane.b32.xlu0 %v2243, 88
      %v2319 = vpop.permute.xlu0 %2318
      %2320 = vrot.lane.b32.xlu0 %v2244, 88
      %v2321 = vpop.permute.xlu0 %2320
      %2322 = vrot.lane.b32.xlu0 %v2245, 88
      %v2323 = vpop.permute.xlu0 %2322
      %2324 = vrot.lane.b32.xlu0 %v2246, 88
      %v2325 = vpop.permute.xlu0 %2324
      %2326 = vrot.lane.b32.xlu0 %v2247, 88
      %v2327 = vpop.permute.xlu0 %2326
      %2328 = vrot.lane.b32.xlu0 %v2248, 88
      %v2329 = vpop.permute.xlu0 %2328
      %2330 = vrot.lane.b32.xlu0 %v2249, 88
      %v2331 = vpop.permute.xlu0 %2330
      %2332 = vrot.lane.b32.xlu0 %v2250, 88
      %v2333 = vpop.permute.xlu0 %2332
      %2334 = vrot.lane.b32.xlu0 %v2251, 88
      %v2335 = vpop.permute.xlu0 %2334
      %2336 = vrot.lane.b32.xlu0 %v2252, 88
      %v2337 = vpop.permute.xlu0 %2336
      %2338 = vrot.lane.b32.xlu0 %v2253, 88
      %v2339 = vpop.permute.xlu0 %2338
      %2340 = vrot.lane.b32.xlu0 %v2254, 88
      %v2341 = vpop.permute.xlu0 %2340
      %2342 = vrot.lane.b32.xlu0 %v2255, 88
      %v2343 = vpop.permute.xlu0 %2342
      %2344 = vrot.lane.b32.xlu0 %v2256, 88
      %v2345 = vpop.permute.xlu0 %2344
      %2346 = vrot.lane.b32.xlu0 %v2257, 88
      %v2347 = vpop.permute.xlu0 %2346
      %2348 = vrot.lane.b32.xlu0 %v2258, 88
      %v2349 = vpop.permute.xlu0 %2348
      %2350 = vrot.lane.b32.xlu0 %v2259, 88
      %v2351 = vpop.permute.xlu0 %2350
      %2352 = vrot.lane.b32.xlu0 %v2260, 88
      %v2353 = vpop.permute.xlu0 %2352
      %2354 = vrot.lane.b32.xlu0 %v2261, 88
      %v2355 = vpop.permute.xlu0 %2354
      %2356 = vrot.lane.b32.xlu0 %v2262, 88
      %v2357 = vpop.permute.xlu0 %2356
      %2358 = vrot.lane.b32.xlu0 %v2263, 88
      %v2359 = vpop.permute.xlu0 %2358
      %vm2392 = vcmask 786112
      %2393 = vst.msk [vmem:[#allocation2] sm:$0xff] %vm2392, %v2297
      %2394 = vst.msk [vmem:[#allocation2 + $0x10] sm:$0xff] %vm2392, %v2299
      %2395 = vst.msk [vmem:[#allocation2 + $0x20] sm:$0xff] %vm2392, %v2301
      %2396 = vst.msk [vmem:[#allocation2 + $0x30] sm:$0xff] %vm2392, %v2303
      %2397 = vst.msk [vmem:[#allocation2 + $0x40] sm:$0xff] %vm2392, %v2305
      %2398 = vst.msk [vmem:[#allocation2 + $0x50] sm:$0xff] %vm2392, %v2307
      %2399 = vst.msk [vmem:[#allocation2 + $0x60] sm:$0xff] %vm2392, %v2309
      %2400 = vst.msk [vmem:[#allocation2 + $0x70] sm:$0xff] %vm2392, %v2311
      %2401 = vst.msk [vmem:[#allocation2 + $0x80] sm:$0xff] %vm2392, %v2313
      %2402 = vst.msk [vmem:[#allocation2 + $0x90] sm:$0xff] %vm2392, %v2315
      %2403 = vst.msk [vmem:[#allocation2 + $0xa0] sm:$0xff] %vm2392, %v2317
      %2404 = vst.msk [vmem:[#allocation2 + $0xb0] sm:$0xff] %vm2392, %v2319
      %2405 = vst.msk [vmem:[#allocation2 + $0xc0] sm:$0xff] %vm2392, %v2321
      %2406 = vst.msk [vmem:[#allocation2 + $0xd0] sm:$0xff] %vm2392, %v2323
      %2407 = vst.msk [vmem:[#allocation2 + $0xe0] sm:$0xff] %vm2392, %v2325
      %2408 = vst.msk [vmem:[#allocation2 + $0xf0] sm:$0xff] %vm2392, %v2327
      %2409 = vst.msk [vmem:[#allocation2 + $0x100] sm:$0xff] %vm2392, %v2329
      %2410 = vst.msk [vmem:[#allocation2 + $0x110] sm:$0xff] %vm2392, %v2331
      %2411 = vst.msk [vmem:[#allocation2 + $0x120] sm:$0xff] %vm2392, %v2333
      %2412 = vst.msk [vmem:[#allocation2 + $0x130] sm:$0xff] %vm2392, %v2335
      %2413 = vst.msk [vmem:[#allocation2 + $0x140] sm:$0xff] %vm2392, %v2337
      %2414 = vst.msk [vmem:[#allocation2 + $0x150] sm:$0xff] %vm2392, %v2339
      %2415 = vst.msk [vmem:[#allocation2 + $0x160] sm:$0xff] %vm2392, %v2341
      %2416 = vst.msk [vmem:[#allocation2 + $0x170] sm:$0xff] %vm2392, %v2343
      %2417 = vst.msk [vmem:[#allocation2 + $0x180] sm:$0xff] %vm2392, %v2345
      %2418 = vst.msk [vmem:[#allocation2 + $0x190] sm:$0xff] %vm2392, %v2347
      %2419 = vst.msk [vmem:[#allocation2 + $0x1a0] sm:$0xff] %vm2392, %v2349
      %2420 = vst.msk [vmem:[#allocation2 + $0x1b0] sm:$0xff] %vm2392, %v2351
      %2421 = vst.msk [vmem:[#allocation2 + $0x1c0] sm:$0xff] %vm2392, %v2353
      %2422 = vst.msk [vmem:[#allocation2 + $0x1d0] sm:$0xff] %vm2392, %v2355
      %2423 = vst.msk [vmem:[#allocation2 + $0x1e0] sm:$0xff] %vm2392, %v2357
      %2424 = vst.msk [vmem:[#allocation2 + $0x1f0] sm:$0xff] %vm2392, %v2359
      %s2425 = sadd.s32 %s213, 110
      %s2426 = scalar_lea.vmem %s0, %s2425
      %v2427 = vld [vmem:[%s2426] sm:$0xff]
      %v2428 = vld [vmem:[%s2426 + $0x8] sm:$0xff]
      %v2429 = vld [vmem:[%s2426 + $0x10] sm:$0xff]
      %v2430 = vld [vmem:[%s2426 + $0x18] sm:$0xff]
      %v2431 = vld [vmem:[%s2426 + $0x20] sm:$0xff]
      %v2432 = vld [vmem:[%s2426 + $0x28] sm:$0xff]
      %v2433 = vld [vmem:[%s2426 + $0x30] sm:$0xff]
      %v2434 = vld [vmem:[%s2426 + $0x38] sm:$0xff]
      %v2435 = vld [vmem:[%s2426 + $0x40] sm:$0xff]
      %v2436 = vld [vmem:[%s2426 + $0x48] sm:$0xff]
      %v2437 = vld [vmem:[%s2426 + $0x50] sm:$0xff]
      %v2438 = vld [vmem:[%s2426 + $0x58] sm:$0xff]
      %v2439 = vld [vmem:[%s2426 + $0x60] sm:$0xff]
      %v2440 = vld [vmem:[%s2426 + $0x68] sm:$0xff]
      %v2441 = vld [vmem:[%s2426 + $0x70] sm:$0xff]
      %v2442 = vld [vmem:[%s2426 + $0x78] sm:$0xff]
      %v2443 = vld [vmem:[%s2426 + $0x80] sm:$0xff]
      %v2444 = vld [vmem:[%s2426 + $0x88] sm:$0xff]
      %v2445 = vld [vmem:[%s2426 + $0x90] sm:$0xff]
      %v2446 = vld [vmem:[%s2426 + $0x98] sm:$0xff]
      %v2447 = vld [vmem:[%s2426 + $0xa0] sm:$0xff]
      %v2448 = vld [vmem:[%s2426 + $0xa8] sm:$0xff]
      %v2449 = vld [vmem:[%s2426 + $0xb0] sm:$0xff]
      %v2450 = vld [vmem:[%s2426 + $0xb8] sm:$0xff]
      %v2451 = vld [vmem:[%s2426 + $0xc0] sm:$0xff]
      %v2452 = vld [vmem:[%s2426 + $0xc8] sm:$0xff]
      %v2453 = vld [vmem:[%s2426 + $0xd0] sm:$0xff]
      %v2454 = vld [vmem:[%s2426 + $0xd8] sm:$0xff]
      %v2455 = vld [vmem:[%s2426 + $0xe0] sm:$0xff]
      %v2456 = vld [vmem:[%s2426 + $0xe8] sm:$0xff]
      %v2457 = vld [vmem:[%s2426 + $0xf0] sm:$0xff]
      %v2458 = vld [vmem:[%s2426 + $0xf8] sm:$0xff]
      %2491 = vrot.lane.b32.xlu0 %v2427, 96
      %v2492 = vpop.permute.xlu0 %2491
      %2493 = vrot.lane.b32.xlu0 %v2428, 96
      %v2494 = vpop.permute.xlu0 %2493
      %2495 = vrot.lane.b32.xlu0 %v2429, 96
      %v2496 = vpop.permute.xlu0 %2495
      %2497 = vrot.lane.b32.xlu0 %v2430, 96
      %v2498 = vpop.permute.xlu0 %2497
      %2499 = vrot.lane.b32.xlu0 %v2431, 96
      %v2500 = vpop.permute.xlu0 %2499
      %2501 = vrot.lane.b32.xlu0 %v2432, 96
      %v2502 = vpop.permute.xlu0 %2501
      %2503 = vrot.lane.b32.xlu0 %v2433, 96
      %v2504 = vpop.permute.xlu0 %2503
      %2505 = vrot.lane.b32.xlu0 %v2434, 96
      %v2506 = vpop.permute.xlu0 %2505
      %2507 = vrot.lane.b32.xlu0 %v2435, 96
      %v2508 = vpop.permute.xlu0 %2507
      %2509 = vrot.lane.b32.xlu0 %v2436, 96
      %v2510 = vpop.permute.xlu0 %2509
      %2511 = vrot.lane.b32.xlu0 %v2437, 96
      %v2512 = vpop.permute.xlu0 %2511
      %2513 = vrot.lane.b32.xlu0 %v2438, 96
      %v2514 = vpop.permute.xlu0 %2513
      %2515 = vrot.lane.b32.xlu0 %v2439, 96
      %v2516 = vpop.permute.xlu0 %2515
      %2517 = vrot.lane.b32.xlu0 %v2440, 96
      %v2518 = vpop.permute.xlu0 %2517
      %2519 = vrot.lane.b32.xlu0 %v2441, 96
      %v2520 = vpop.permute.xlu0 %2519
      %2521 = vrot.lane.b32.xlu0 %v2442, 96
      %v2522 = vpop.permute.xlu0 %2521
      %2523 = vrot.lane.b32.xlu0 %v2443, 96
      %v2524 = vpop.permute.xlu0 %2523
      %2525 = vrot.lane.b32.xlu0 %v2444, 96
      %v2526 = vpop.permute.xlu0 %2525
      %2527 = vrot.lane.b32.xlu0 %v2445, 96
      %v2528 = vpop.permute.xlu0 %2527
      %2529 = vrot.lane.b32.xlu0 %v2446, 96
      %v2530 = vpop.permute.xlu0 %2529
      %2531 = vrot.lane.b32.xlu0 %v2447, 96
      %v2532 = vpop.permute.xlu0 %2531
      %2533 = vrot.lane.b32.xlu0 %v2448, 96
      %v2534 = vpop.permute.xlu0 %2533
      %2535 = vrot.lane.b32.xlu0 %v2449, 96
      %v2536 = vpop.permute.xlu0 %2535
      %2537 = vrot.lane.b32.xlu0 %v2450, 96
      %v2538 = vpop.permute.xlu0 %2537
      %2539 = vrot.lane.b32.xlu0 %v2451, 96
      %v2540 = vpop.permute.xlu0 %2539
      %2541 = vrot.lane.b32.xlu0 %v2452, 96
      %v2542 = vpop.permute.xlu0 %2541
      %2543 = vrot.lane.b32.xlu0 %v2453, 96
      %v2544 = vpop.permute.xlu0 %2543
      %2545 = vrot.lane.b32.xlu0 %v2454, 96
      %v2546 = vpop.permute.xlu0 %2545
      %2547 = vrot.lane.b32.xlu0 %v2455, 96
      %v2548 = vpop.permute.xlu0 %2547
      %2549 = vrot.lane.b32.xlu0 %v2456, 96
      %v2550 = vpop.permute.xlu0 %2549
      %2551 = vrot.lane.b32.xlu0 %v2457, 96
      %v2552 = vpop.permute.xlu0 %2551
      %2553 = vrot.lane.b32.xlu0 %v2458, 96
      %v2554 = vpop.permute.xlu0 %2553
      %vm2587 = vcmask 851712
      %2588 = vst.msk [vmem:[#allocation2] sm:$0xff] %vm2587, %v2492
      %2589 = vst.msk [vmem:[#allocation2 + $0x10] sm:$0xff] %vm2587, %v2494
      %2590 = vst.msk [vmem:[#allocation2 + $0x20] sm:$0xff] %vm2587, %v2496
      %2591 = vst.msk [vmem:[#allocation2 + $0x30] sm:$0xff] %vm2587, %v2498
      %2592 = vst.msk [vmem:[#allocation2 + $0x40] sm:$0xff] %vm2587, %v2500
      %2593 = vst.msk [vmem:[#allocation2 + $0x50] sm:$0xff] %vm2587, %v2502
      %2594 = vst.msk [vmem:[#allocation2 + $0x60] sm:$0xff] %vm2587, %v2504
      %2595 = vst.msk [vmem:[#allocation2 + $0x70] sm:$0xff] %vm2587, %v2506
      %2596 = vst.msk [vmem:[#allocation2 + $0x80] sm:$0xff] %vm2587, %v2508
      %2597 = vst.msk [vmem:[#allocation2 + $0x90] sm:$0xff] %vm2587, %v2510
      %2598 = vst.msk [vmem:[#allocation2 + $0xa0] sm:$0xff] %vm2587, %v2512
      %2599 = vst.msk [vmem:[#allocation2 + $0xb0] sm:$0xff] %vm2587, %v2514
      %2600 = vst.msk [vmem:[#allocation2 + $0xc0] sm:$0xff] %vm2587, %v2516
      %2601 = vst.msk [vmem:[#allocation2 + $0xd0] sm:$0xff] %vm2587, %v2518
      %2602 = vst.msk [vmem:[#allocation2 + $0xe0] sm:$0xff] %vm2587, %v2520
      %2603 = vst.msk [vmem:[#allocation2 + $0xf0] sm:$0xff] %vm2587, %v2522
      %2604 = vst.msk [vmem:[#allocation2 + $0x100] sm:$0xff] %vm2587, %v2524
      %2605 = vst.msk [vmem:[#allocation2 + $0x110] sm:$0xff] %vm2587, %v2526
      %2606 = vst.msk [vmem:[#allocation2 + $0x120] sm:$0xff] %vm2587, %v2528
      %2607 = vst.msk [vmem:[#allocation2 + $0x130] sm:$0xff] %vm2587, %v2530
      %2608 = vst.msk [vmem:[#allocation2 + $0x140] sm:$0xff] %vm2587, %v2532
      %2609 = vst.msk [vmem:[#allocation2 + $0x150] sm:$0xff] %vm2587, %v2534
      %2610 = vst.msk [vmem:[#allocation2 + $0x160] sm:$0xff] %vm2587, %v2536
      %2611 = vst.msk [vmem:[#allocation2 + $0x170] sm:$0xff] %vm2587, %v2538
      %2612 = vst.msk [vmem:[#allocation2 + $0x180] sm:$0xff] %vm2587, %v2540
      %2613 = vst.msk [vmem:[#allocation2 + $0x190] sm:$0xff] %vm2587, %v2542
      %2614 = vst.msk [vmem:[#allocation2 + $0x1a0] sm:$0xff] %vm2587, %v2544
      %2615 = vst.msk [vmem:[#allocation2 + $0x1b0] sm:$0xff] %vm2587, %v2546
      %2616 = vst.msk [vmem:[#allocation2 + $0x1c0] sm:$0xff] %vm2587, %v2548
      %2617 = vst.msk [vmem:[#allocation2 + $0x1d0] sm:$0xff] %vm2587, %v2550
      %2618 = vst.msk [vmem:[#allocation2 + $0x1e0] sm:$0xff] %vm2587, %v2552
      %2619 = vst.msk [vmem:[#allocation2 + $0x1f0] sm:$0xff] %vm2587, %v2554
      %s2620 = sadd.s32 %s213, 111
      %s2621 = scalar_lea.vmem %s0, %s2620
      %v2622 = vld [vmem:[%s2621] sm:$0xff]
      %v2623 = vld [vmem:[%s2621 + $0x8] sm:$0xff]
      %v2624 = vld [vmem:[%s2621 + $0x10] sm:$0xff]
      %v2625 = vld [vmem:[%s2621 + $0x18] sm:$0xff]
      %v2626 = vld [vmem:[%s2621 + $0x20] sm:$0xff]
      %v2627 = vld [vmem:[%s2621 + $0x28] sm:$0xff]
      %v2628 = vld [vmem:[%s2621 + $0x30] sm:$0xff]
      %v2629 = vld [vmem:[%s2621 + $0x38] sm:$0xff]
      %v2630 = vld [vmem:[%s2621 + $0x40] sm:$0xff]
      %v2631 = vld [vmem:[%s2621 + $0x48] sm:$0xff]
      %v2632 = vld [vmem:[%s2621 + $0x50] sm:$0xff]
      %v2633 = vld [vmem:[%s2621 + $0x58] sm:$0xff]
      %v2634 = vld [vmem:[%s2621 + $0x60] sm:$0xff]
      %v2635 = vld [vmem:[%s2621 + $0x68] sm:$0xff]
      %v2636 = vld [vmem:[%s2621 + $0x70] sm:$0xff]
      %v2637 = vld [vmem:[%s2621 + $0x78] sm:$0xff]
      %v2638 = vld [vmem:[%s2621 + $0x80] sm:$0xff]
      %v2639 = vld [vmem:[%s2621 + $0x88] sm:$0xff]
      %v2640 = vld [vmem:[%s2621 + $0x90] sm:$0xff]
      %v2641 = vld [vmem:[%s2621 + $0x98] sm:$0xff]
      %v2642 = vld [vmem:[%s2621 + $0xa0] sm:$0xff]
      %v2643 = vld [vmem:[%s2621 + $0xa8] sm:$0xff]
      %v2644 = vld [vmem:[%s2621 + $0xb0] sm:$0xff]
      %v2645 = vld [vmem:[%s2621 + $0xb8] sm:$0xff]
      %v2646 = vld [vmem:[%s2621 + $0xc0] sm:$0xff]
      %v2647 = vld [vmem:[%s2621 + $0xc8] sm:$0xff]
      %v2648 = vld [vmem:[%s2621 + $0xd0] sm:$0xff]
      %v2649 = vld [vmem:[%s2621 + $0xd8] sm:$0xff]
      %v2650 = vld [vmem:[%s2621 + $0xe0] sm:$0xff]
      %v2651 = vld [vmem:[%s2621 + $0xe8] sm:$0xff]
      %v2652 = vld [vmem:[%s2621 + $0xf0] sm:$0xff]
      %v2653 = vld [vmem:[%s2621 + $0xf8] sm:$0xff]
      %2686 = vrot.lane.b32.xlu0 %v2622, 104
      %v2687 = vpop.permute.xlu0 %2686
      %2688 = vrot.lane.b32.xlu0 %v2623, 104
      %v2689 = vpop.permute.xlu0 %2688
      %2690 = vrot.lane.b32.xlu0 %v2624, 104
      %v2691 = vpop.permute.xlu0 %2690
      %2692 = vrot.lane.b32.xlu0 %v2625, 104
      %v2693 = vpop.permute.xlu0 %2692
      %2694 = vrot.lane.b32.xlu0 %v2626, 104
      %v2695 = vpop.permute.xlu0 %2694
      %2696 = vrot.lane.b32.xlu0 %v2627, 104
      %v2697 = vpop.permute.xlu0 %2696
      %2698 = vrot.lane.b32.xlu0 %v2628, 104
      %v2699 = vpop.permute.xlu0 %2698
      %2700 = vrot.lane.b32.xlu0 %v2629, 104
      %v2701 = vpop.permute.xlu0 %2700
      %2702 = vrot.lane.b32.xlu0 %v2630, 104
      %v2703 = vpop.permute.xlu0 %2702
      %2704 = vrot.lane.b32.xlu0 %v2631, 104
      %v2705 = vpop.permute.xlu0 %2704
      %2706 = vrot.lane.b32.xlu0 %v2632, 104
      %v2707 = vpop.permute.xlu0 %2706
      %2708 = vrot.lane.b32.xlu0 %v2633, 104
      %v2709 = vpop.permute.xlu0 %2708
      %2710 = vrot.lane.b32.xlu0 %v2634, 104
      %v2711 = vpop.permute.xlu0 %2710
      %2712 = vrot.lane.b32.xlu0 %v2635, 104
      %v2713 = vpop.permute.xlu0 %2712
      %2714 = vrot.lane.b32.xlu0 %v2636, 104
      %v2715 = vpop.permute.xlu0 %2714
      %2716 = vrot.lane.b32.xlu0 %v2637, 104
      %v2717 = vpop.permute.xlu0 %2716
      %2718 = vrot.lane.b32.xlu0 %v2638, 104
      %v2719 = vpop.permute.xlu0 %2718
      %2720 = vrot.lane.b32.xlu0 %v2639, 104
      %v2721 = vpop.permute.xlu0 %2720
      %2722 = vrot.lane.b32.xlu0 %v2640, 104
      %v2723 = vpop.permute.xlu0 %2722
      %2724 = vrot.lane.b32.xlu0 %v2641, 104
      %v2725 = vpop.permute.xlu0 %2724
      %2726 = vrot.lane.b32.xlu0 %v2642, 104
      %v2727 = vpop.permute.xlu0 %2726
      %2728 = vrot.lane.b32.xlu0 %v2643, 104
      %v2729 = vpop.permute.xlu0 %2728
      %2730 = vrot.lane.b32.xlu0 %v2644, 104
      %v2731 = vpop.permute.xlu0 %2730
      %2732 = vrot.lane.b32.xlu0 %v2645, 104
      %v2733 = vpop.permute.xlu0 %2732
      %2734 = vrot.lane.b32.xlu0 %v2646, 104
      %v2735 = vpop.permute.xlu0 %2734
      %2736 = vrot.lane.b32.xlu0 %v2647, 104
      %v2737 = vpop.permute.xlu0 %2736
      %2738 = vrot.lane.b32.xlu0 %v2648, 104
      %v2739 = vpop.permute.xlu0 %2738
      %2740 = vrot.lane.b32.xlu0 %v2649, 104
      %v2741 = vpop.permute.xlu0 %2740
      %2742 = vrot.lane.b32.xlu0 %v2650, 104
      %v2743 = vpop.permute.xlu0 %2742
      %2744 = vrot.lane.b32.xlu0 %v2651, 104
      %v2745 = vpop.permute.xlu0 %2744
      %2746 = vrot.lane.b32.xlu0 %v2652, 104
      %v2747 = vpop.permute.xlu0 %2746
      %2748 = vrot.lane.b32.xlu0 %v2653, 104
      %v2749 = vpop.permute.xlu0 %2748
      %vm2782 = vcmask 917312
      %2783 = vst.msk [vmem:[#allocation2] sm:$0xff] %vm2782, %v2687
      %2784 = vst.msk [vmem:[#allocation2 + $0x10] sm:$0xff] %vm2782, %v2689
      %2785 = vst.msk [vmem:[#allocation2 + $0x20] sm:$0xff] %vm2782, %v2691
      %2786 = vst.msk [vmem:[#allocation2 + $0x30] sm:$0xff] %vm2782, %v2693
      %2787 = vst.msk [vmem:[#allocation2 + $0x40] sm:$0xff] %vm2782, %v2695
      %2788 = vst.msk [vmem:[#allocation2 + $0x50] sm:$0xff] %vm2782, %v2697
      %2789 = vst.msk [vmem:[#allocation2 + $0x60] sm:$0xff] %vm2782, %v2699
      %2790 = vst.msk [vmem:[#allocation2 + $0x70] sm:$0xff] %vm2782, %v2701
      %2791 = vst.msk [vmem:[#allocation2 + $0x80] sm:$0xff] %vm2782, %v2703
      %2792 = vst.msk [vmem:[#allocation2 + $0x90] sm:$0xff] %vm2782, %v2705
      %2793 = vst.msk [vmem:[#allocation2 + $0xa0] sm:$0xff] %vm2782, %v2707
      %2794 = vst.msk [vmem:[#allocation2 + $0xb0] sm:$0xff] %vm2782, %v2709
      %2795 = vst.msk [vmem:[#allocation2 + $0xc0] sm:$0xff] %vm2782, %v2711
      %2796 = vst.msk [vmem:[#allocation2 + $0xd0] sm:$0xff] %vm2782, %v2713
      %2797 = vst.msk [vmem:[#allocation2 + $0xe0] sm:$0xff] %vm2782, %v2715
      %2798 = vst.msk [vmem:[#allocation2 + $0xf0] sm:$0xff] %vm2782, %v2717
      %2799 = vst.msk [vmem:[#allocation2 + $0x100] sm:$0xff] %vm2782, %v2719
      %2800 = vst.msk [vmem:[#allocation2 + $0x110] sm:$0xff] %vm2782, %v2721
      %2801 = vst.msk [vmem:[#allocation2 + $0x120] sm:$0xff] %vm2782, %v2723
      %2802 = vst.msk [vmem:[#allocation2 + $0x130] sm:$0xff] %vm2782, %v2725
      %2803 = vst.msk [vmem:[#allocation2 + $0x140] sm:$0xff] %vm2782, %v2727
      %2804 = vst.msk [vmem:[#allocation2 + $0x150] sm:$0xff] %vm2782, %v2729
      %2805 = vst.msk [vmem:[#allocation2 + $0x160] sm:$0xff] %vm2782, %v2731
      %2806 = vst.msk [vmem:[#allocation2 + $0x170] sm:$0xff] %vm2782, %v2733
      %2807 = vst.msk [vmem:[#allocation2 + $0x180] sm:$0xff] %vm2782, %v2735
      %2808 = vst.msk [vmem:[#allocation2 + $0x190] sm:$0xff] %vm2782, %v2737
      %2809 = vst.msk [vmem:[#allocation2 + $0x1a0] sm:$0xff] %vm2782, %v2739
      %2810 = vst.msk [vmem:[#allocation2 + $0x1b0] sm:$0xff] %vm2782, %v2741
      %2811 = vst.msk [vmem:[#allocation2 + $0x1c0] sm:$0xff] %vm2782, %v2743
      %2812 = vst.msk [vmem:[#allocation2 + $0x1d0] sm:$0xff] %vm2782, %v2745
      %2813 = vst.msk [vmem:[#allocation2 + $0x1e0] sm:$0xff] %vm2782, %v2747
      %2814 = vst.msk [vmem:[#allocation2 + $0x1f0] sm:$0xff] %vm2782, %v2749
      %s2815 = sadd.s32 %s213, 112
      %s2816 = scalar_lea.vmem %s0, %s2815
      %v2817 = vld [vmem:[%s2816] sm:$0xff]
      %v2818 = vld [vmem:[%s2816 + $0x8] sm:$0xff]
      %v2819 = vld [vmem:[%s2816 + $0x10] sm:$0xff]
      %v2820 = vld [vmem:[%s2816 + $0x18] sm:$0xff]
      %v2821 = vld [vmem:[%s2816 + $0x20] sm:$0xff]
      %v2822 = vld [vmem:[%s2816 + $0x28] sm:$0xff]
      %v2823 = vld [vmem:[%s2816 + $0x30] sm:$0xff]
      %v2824 = vld [vmem:[%s2816 + $0x38] sm:$0xff]
      %v2825 = vld [vmem:[%s2816 + $0x40] sm:$0xff]
      %v2826 = vld [vmem:[%s2816 + $0x48] sm:$0xff]
      %v2827 = vld [vmem:[%s2816 + $0x50] sm:$0xff]
      %v2828 = vld [vmem:[%s2816 + $0x58] sm:$0xff]
      %v2829 = vld [vmem:[%s2816 + $0x60] sm:$0xff]
      %v2830 = vld [vmem:[%s2816 + $0x68] sm:$0xff]
      %v2831 = vld [vmem:[%s2816 + $0x70] sm:$0xff]
      %v2832 = vld [vmem:[%s2816 + $0x78] sm:$0xff]
      %v2833 = vld [vmem:[%s2816 + $0x80] sm:$0xff]
      %v2834 = vld [vmem:[%s2816 + $0x88] sm:$0xff]
      %v2835 = vld [vmem:[%s2816 + $0x90] sm:$0xff]
      %v2836 = vld [vmem:[%s2816 + $0x98] sm:$0xff]
      %v2837 = vld [vmem:[%s2816 + $0xa0] sm:$0xff]
      %v2838 = vld [vmem:[%s2816 + $0xa8] sm:$0xff]
      %v2839 = vld [vmem:[%s2816 + $0xb0] sm:$0xff]
      %v2840 = vld [vmem:[%s2816 + $0xb8] sm:$0xff]
      %v2841 = vld [vmem:[%s2816 + $0xc0] sm:$0xff]
      %v2842 = vld [vmem:[%s2816 + $0xc8] sm:$0xff]
      %v2843 = vld [vmem:[%s2816 + $0xd0] sm:$0xff]
      %v2844 = vld [vmem:[%s2816 + $0xd8] sm:$0xff]
      %v2845 = vld [vmem:[%s2816 + $0xe0] sm:$0xff]
      %v2846 = vld [vmem:[%s2816 + $0xe8] sm:$0xff]
      %v2847 = vld [vmem:[%s2816 + $0xf0] sm:$0xff]
      %v2848 = vld [vmem:[%s2816 + $0xf8] sm:$0xff]
      %2881 = vrot.lane.b32.xlu0 %v2817, 112
      %v2882 = vpop.permute.xlu0 %2881
      %2883 = vrot.lane.b32.xlu0 %v2818, 112
      %v2884 = vpop.permute.xlu0 %2883
      %2885 = vrot.lane.b32.xlu0 %v2819, 112
      %v2886 = vpop.permute.xlu0 %2885
      %2887 = vrot.lane.b32.xlu0 %v2820, 112
      %v2888 = vpop.permute.xlu0 %2887
      %2889 = vrot.lane.b32.xlu0 %v2821, 112
      %v2890 = vpop.permute.xlu0 %2889
      %2891 = vrot.lane.b32.xlu0 %v2822, 112
      %v2892 = vpop.permute.xlu0 %2891
      %2893 = vrot.lane.b32.xlu0 %v2823, 112
      %v2894 = vpop.permute.xlu0 %2893
      %2895 = vrot.lane.b32.xlu0 %v2824, 112
      %v2896 = vpop.permute.xlu0 %2895
      %2897 = vrot.lane.b32.xlu0 %v2825, 112
      %v2898 = vpop.permute.xlu0 %2897
      %2899 = vrot.lane.b32.xlu0 %v2826, 112
      %v2900 = vpop.permute.xlu0 %2899
      %2901 = vrot.lane.b32.xlu0 %v2827, 112
      %v2902 = vpop.permute.xlu0 %2901
      %2903 = vrot.lane.b32.xlu0 %v2828, 112
      %v2904 = vpop.permute.xlu0 %2903
      %2905 = vrot.lane.b32.xlu0 %v2829, 112
      %v2906 = vpop.permute.xlu0 %2905
      %2907 = vrot.lane.b32.xlu0 %v2830, 112
      %v2908 = vpop.permute.xlu0 %2907
      %2909 = vrot.lane.b32.xlu0 %v2831, 112
      %v2910 = vpop.permute.xlu0 %2909
      %2911 = vrot.lane.b32.xlu0 %v2832, 112
      %v2912 = vpop.permute.xlu0 %2911
      %2913 = vrot.lane.b32.xlu0 %v2833, 112
      %v2914 = vpop.permute.xlu0 %2913
      %2915 = vrot.lane.b32.xlu0 %v2834, 112
      %v2916 = vpop.permute.xlu0 %2915
      %2917 = vrot.lane.b32.xlu0 %v2835, 112
      %v2918 = vpop.permute.xlu0 %2917
      %2919 = vrot.lane.b32.xlu0 %v2836, 112
      %v2920 = vpop.permute.xlu0 %2919
      %2921 = vrot.lane.b32.xlu0 %v2837, 112
      %v2922 = vpop.permute.xlu0 %2921
      %2923 = vrot.lane.b32.xlu0 %v2838, 112
      %v2924 = vpop.permute.xlu0 %2923
      %2925 = vrot.lane.b32.xlu0 %v2839, 112
      %v2926 = vpop.permute.xlu0 %2925
      %2927 = vrot.lane.b32.xlu0 %v2840, 112
      %v2928 = vpop.permute.xlu0 %2927
      %2929 = vrot.lane.b32.xlu0 %v2841, 112
      %v2930 = vpop.permute.xlu0 %2929
      %2931 = vrot.lane.b32.xlu0 %v2842, 112
      %v2932 = vpop.permute.xlu0 %2931
      %2933 = vrot.lane.b32.xlu0 %v2843, 112
      %v2934 = vpop.permute.xlu0 %2933
      %2935 = vrot.lane.b32.xlu0 %v2844, 112
      %v2936 = vpop.permute.xlu0 %2935
      %2937 = vrot.lane.b32.xlu0 %v2845, 112
      %v2938 = vpop.permute.xlu0 %2937
      %2939 = vrot.lane.b32.xlu0 %v2846, 112
      %v2940 = vpop.permute.xlu0 %2939
      %2941 = vrot.lane.b32.xlu0 %v2847, 112
      %v2942 = vpop.permute.xlu0 %2941
      %2943 = vrot.lane.b32.xlu0 %v2848, 112
      %v2944 = vpop.permute.xlu0 %2943
      %vm2977 = vcmask 982912
      %2978 = vst.msk [vmem:[#allocation2] sm:$0xff] %vm2977, %v2882
      %2979 = vst.msk [vmem:[#allocation2 + $0x10] sm:$0xff] %vm2977, %v2884
      %2980 = vst.msk [vmem:[#allocation2 + $0x20] sm:$0xff] %vm2977, %v2886
      %2981 = vst.msk [vmem:[#allocation2 + $0x30] sm:$0xff] %vm2977, %v2888
      %2982 = vst.msk [vmem:[#allocation2 + $0x40] sm:$0xff] %vm2977, %v2890
      %2983 = vst.msk [vmem:[#allocation2 + $0x50] sm:$0xff] %vm2977, %v2892
      %2984 = vst.msk [vmem:[#allocation2 + $0x60] sm:$0xff] %vm2977, %v2894
      %2985 = vst.msk [vmem:[#allocation2 + $0x70] sm:$0xff] %vm2977, %v2896
      %2986 = vst.msk [vmem:[#allocation2 + $0x80] sm:$0xff] %vm2977, %v2898
      %2987 = vst.msk [vmem:[#allocation2 + $0x90] sm:$0xff] %vm2977, %v2900
      %2988 = vst.msk [vmem:[#allocation2 + $0xa0] sm:$0xff] %vm2977, %v2902
      %2989 = vst.msk [vmem:[#allocation2 + $0xb0] sm:$0xff] %vm2977, %v2904
      %2990 = vst.msk [vmem:[#allocation2 + $0xc0] sm:$0xff] %vm2977, %v2906
      %2991 = vst.msk [vmem:[#allocation2 + $0xd0] sm:$0xff] %vm2977, %v2908
      %2992 = vst.msk [vmem:[#allocation2 + $0xe0] sm:$0xff] %vm2977, %v2910
      %2993 = vst.msk [vmem:[#allocation2 + $0xf0] sm:$0xff] %vm2977, %v2912
      %2994 = vst.msk [vmem:[#allocation2 + $0x100] sm:$0xff] %vm2977, %v2914
      %2995 = vst.msk [vmem:[#allocation2 + $0x110] sm:$0xff] %vm2977, %v2916
      %2996 = vst.msk [vmem:[#allocation2 + $0x120] sm:$0xff] %vm2977, %v2918
      %2997 = vst.msk [vmem:[#allocation2 + $0x130] sm:$0xff] %vm2977, %v2920
      %2998 = vst.msk [vmem:[#allocation2 + $0x140] sm:$0xff] %vm2977, %v2922
      %2999 = vst.msk [vmem:[#allocation2 + $0x150] sm:$0xff] %vm2977, %v2924
      %3000 = vst.msk [vmem:[#allocation2 + $0x160] sm:$0xff] %vm2977, %v2926
      %3001 = vst.msk [vmem:[#allocation2 + $0x170] sm:$0xff] %vm2977, %v2928
      %3002 = vst.msk [vmem:[#allocation2 + $0x180] sm:$0xff] %vm2977, %v2930
      %3003 = vst.msk [vmem:[#allocation2 + $0x190] sm:$0xff] %vm2977, %v2932
      %3004 = vst.msk [vmem:[#allocation2 + $0x1a0] sm:$0xff] %vm2977, %v2934
      %3005 = vst.msk [vmem:[#allocation2 + $0x1b0] sm:$0xff] %vm2977, %v2936
      %3006 = vst.msk [vmem:[#allocation2 + $0x1c0] sm:$0xff] %vm2977, %v2938
      %3007 = vst.msk [vmem:[#allocation2 + $0x1d0] sm:$0xff] %vm2977, %v2940
      %3008 = vst.msk [vmem:[#allocation2 + $0x1e0] sm:$0xff] %vm2977, %v2942
      %3009 = vst.msk [vmem:[#allocation2 + $0x1f0] sm:$0xff] %vm2977, %v2944
      %s3010 = sadd.s32 %s213, 120
      %s3011 = scalar_lea.vmem %s0, %s3010
      %v3012 = vld [vmem:[%s3011] sm:$0xff]
      %v3013 = vld [vmem:[%s3011 + $0x8] sm:$0xff]
      %v3014 = vld [vmem:[%s3011 + $0x10] sm:$0xff]
      %v3015 = vld [vmem:[%s3011 + $0x18] sm:$0xff]
      %v3016 = vld [vmem:[%s3011 + $0x20] sm:$0xff]
      %v3017 = vld [vmem:[%s3011 + $0x28] sm:$0xff]
      %v3018 = vld [vmem:[%s3011 + $0x30] sm:$0xff]
      %v3019 = vld [vmem:[%s3011 + $0x38] sm:$0xff]
      %v3020 = vld [vmem:[%s3011 + $0x40] sm:$0xff]
      %v3021 = vld [vmem:[%s3011 + $0x48] sm:$0xff]
      %v3022 = vld [vmem:[%s3011 + $0x50] sm:$0xff]
      %v3023 = vld [vmem:[%s3011 + $0x58] sm:$0xff]
      %v3024 = vld [vmem:[%s3011 + $0x60] sm:$0xff]
      %v3025 = vld [vmem:[%s3011 + $0x68] sm:$0xff]
      %v3026 = vld [vmem:[%s3011 + $0x70] sm:$0xff]
      %v3027 = vld [vmem:[%s3011 + $0x78] sm:$0xff]
      %v3028 = vld [vmem:[%s3011 + $0x80] sm:$0xff]
      %v3029 = vld [vmem:[%s3011 + $0x88] sm:$0xff]
      %v3030 = vld [vmem:[%s3011 + $0x90] sm:$0xff]
      %v3031 = vld [vmem:[%s3011 + $0x98] sm:$0xff]
      %v3032 = vld [vmem:[%s3011 + $0xa0] sm:$0xff]
      %v3033 = vld [vmem:[%s3011 + $0xa8] sm:$0xff]
      %v3034 = vld [vmem:[%s3011 + $0xb0] sm:$0xff]
      %v3035 = vld [vmem:[%s3011 + $0xb8] sm:$0xff]
      %v3036 = vld [vmem:[%s3011 + $0xc0] sm:$0xff]
      %v3037 = vld [vmem:[%s3011 + $0xc8] sm:$0xff]
      %v3038 = vld [vmem:[%s3011 + $0xd0] sm:$0xff]
      %v3039 = vld [vmem:[%s3011 + $0xd8] sm:$0xff]
      %v3040 = vld [vmem:[%s3011 + $0xe0] sm:$0xff]
      %v3041 = vld [vmem:[%s3011 + $0xe8] sm:$0xff]
      %v3042 = vld [vmem:[%s3011 + $0xf0] sm:$0xff]
      %v3043 = vld [vmem:[%s3011 + $0xf8] sm:$0xff]
      %3076 = vrot.lane.b32.xlu0 %v3012, 120
      %v3077 = vpop.permute.xlu0 %3076
      %3078 = vrot.lane.b32.xlu0 %v3013, 120
      %v3079 = vpop.permute.xlu0 %3078
      %3080 = vrot.lane.b32.xlu0 %v3014, 120
      %v3081 = vpop.permute.xlu0 %3080
      %3082 = vrot.lane.b32.xlu0 %v3015, 120
      %v3083 = vpop.permute.xlu0 %3082
      %3084 = vrot.lane.b32.xlu0 %v3016, 120
      %v3085 = vpop.permute.xlu0 %3084
      %3086 = vrot.lane.b32.xlu0 %v3017, 120
      %v3087 = vpop.permute.xlu0 %3086
      %3088 = vrot.lane.b32.xlu0 %v3018, 120
      %v3089 = vpop.permute.xlu0 %3088
      %3090 = vrot.lane.b32.xlu0 %v3019, 120
      %v3091 = vpop.permute.xlu0 %3090
      %3092 = vrot.lane.b32.xlu0 %v3020, 120
      %v3093 = vpop.permute.xlu0 %3092
      %3094 = vrot.lane.b32.xlu0 %v3021, 120
      %v3095 = vpop.permute.xlu0 %3094
      %3096 = vrot.lane.b32.xlu0 %v3022, 120
      %v3097 = vpop.permute.xlu0 %3096
      %3098 = vrot.lane.b32.xlu0 %v3023, 120
      %v3099 = vpop.permute.xlu0 %3098
      %3100 = vrot.lane.b32.xlu0 %v3024, 120
      %v3101 = vpop.permute.xlu0 %3100
      %3102 = vrot.lane.b32.xlu0 %v3025, 120
      %v3103 = vpop.permute.xlu0 %3102
      %3104 = vrot.lane.b32.xlu0 %v3026, 120
      %v3105 = vpop.permute.xlu0 %3104
      %3106 = vrot.lane.b32.xlu0 %v3027, 120
      %v3107 = vpop.permute.xlu0 %3106
      %3108 = vrot.lane.b32.xlu0 %v3028, 120
      %v3109 = vpop.permute.xlu0 %3108
      %3110 = vrot.lane.b32.xlu0 %v3029, 120
      %v3111 = vpop.permute.xlu0 %3110
      %3112 = vrot.lane.b32.xlu0 %v3030, 120
      %v3113 = vpop.permute.xlu0 %3112
      %3114 = vrot.lane.b32.xlu0 %v3031, 120
      %v3115 = vpop.permute.xlu0 %3114
      %3116 = vrot.lane.b32.xlu0 %v3032, 120
      %v3117 = vpop.permute.xlu0 %3116
      %3118 = vrot.lane.b32.xlu0 %v3033, 120
      %v3119 = vpop.permute.xlu0 %3118
      %3120 = vrot.lane.b32.xlu0 %v3034, 120
      %v3121 = vpop.permute.xlu0 %3120
      %3122 = vrot.lane.b32.xlu0 %v3035, 120
      %v3123 = vpop.permute.xlu0 %3122
      %3124 = vrot.lane.b32.xlu0 %v3036, 120
      %v3125 = vpop.permute.xlu0 %3124
      %3126 = vrot.lane.b32.xlu0 %v3037, 120
      %v3127 = vpop.permute.xlu0 %3126
      %3128 = vrot.lane.b32.xlu0 %v3038, 120
      %v3129 = vpop.permute.xlu0 %3128
      %3130 = vrot.lane.b32.xlu0 %v3039, 120
      %v3131 = vpop.permute.xlu0 %3130
      %3132 = vrot.lane.b32.xlu0 %v3040, 120
      %v3133 = vpop.permute.xlu0 %3132
      %3134 = vrot.lane.b32.xlu0 %v3041, 120
      %v3135 = vpop.permute.xlu0 %3134
      %3136 = vrot.lane.b32.xlu0 %v3042, 120
      %v3137 = vpop.permute.xlu0 %3136
      %3138 = vrot.lane.b32.xlu0 %v3043, 120
      %v3139 = vpop.permute.xlu0 %3138
      %vm3172 = vcmask 1048512
      %3173 = vst.msk [vmem:[#allocation2] sm:$0xff] %vm3172, %v3077
      %3174 = vst.msk [vmem:[#allocation2 + $0x10] sm:$0xff] %vm3172, %v3079
      %3175 = vst.msk [vmem:[#allocation2 + $0x20] sm:$0xff] %vm3172, %v3081
      %3176 = vst.msk [vmem:[#allocation2 + $0x30] sm:$0xff] %vm3172, %v3083
      %3177 = vst.msk [vmem:[#allocation2 + $0x40] sm:$0xff] %vm3172, %v3085
      %3178 = vst.msk [vmem:[#allocation2 + $0x50] sm:$0xff] %vm3172, %v3087
      %3179 = vst.msk [vmem:[#allocation2 + $0x60] sm:$0xff] %vm3172, %v3089
      %3180 = vst.msk [vmem:[#allocation2 + $0x70] sm:$0xff] %vm3172, %v3091
      %3181 = vst.msk [vmem:[#allocation2 + $0x80] sm:$0xff] %vm3172, %v3093
      %3182 = vst.msk [vmem:[#allocation2 + $0x90] sm:$0xff] %vm3172, %v3095
      %3183 = vst.msk [vmem:[#allocation2 + $0xa0] sm:$0xff] %vm3172, %v3097
      %3184 = vst.msk [vmem:[#allocation2 + $0xb0] sm:$0xff] %vm3172, %v3099
      %3185 = vst.msk [vmem:[#allocation2 + $0xc0] sm:$0xff] %vm3172, %v3101
      %3186 = vst.msk [vmem:[#allocation2 + $0xd0] sm:$0xff] %vm3172, %v3103
      %3187 = vst.msk [vmem:[#allocation2 + $0xe0] sm:$0xff] %vm3172, %v3105
      %3188 = vst.msk [vmem:[#allocation2 + $0xf0] sm:$0xff] %vm3172, %v3107
      %3189 = vst.msk [vmem:[#allocation2 + $0x100] sm:$0xff] %vm3172, %v3109
      %3190 = vst.msk [vmem:[#allocation2 + $0x110] sm:$0xff] %vm3172, %v3111
      %3191 = vst.msk [vmem:[#allocation2 + $0x120] sm:$0xff] %vm3172, %v3113
      %3192 = vst.msk [vmem:[#allocation2 + $0x130] sm:$0xff] %vm3172, %v3115
      %3193 = vst.msk [vmem:[#allocation2 + $0x140] sm:$0xff] %vm3172, %v3117
      %3194 = vst.msk [vmem:[#allocation2 + $0x150] sm:$0xff] %vm3172, %v3119
      %3195 = vst.msk [vmem:[#allocation2 + $0x160] sm:$0xff] %vm3172, %v3121
      %3196 = vst.msk [vmem:[#allocation2 + $0x170] sm:$0xff] %vm3172, %v3123
      %3197 = vst.msk [vmem:[#allocation2 + $0x180] sm:$0xff] %vm3172, %v3125
      %3198 = vst.msk [vmem:[#allocation2 + $0x190] sm:$0xff] %vm3172, %v3127
      %3199 = vst.msk [vmem:[#allocation2 + $0x1a0] sm:$0xff] %vm3172, %v3129
      %3200 = vst.msk [vmem:[#allocation2 + $0x1b0] sm:$0xff] %vm3172, %v3131
      %3201 = vst.msk [vmem:[#allocation2 + $0x1c0] sm:$0xff] %vm3172, %v3133
      %3202 = vst.msk [vmem:[#allocation2 + $0x1d0] sm:$0xff] %vm3172, %v3135
      %3203 = vst.msk [vmem:[#allocation2 + $0x1e0] sm:$0xff] %vm3172, %v3137
      %3204 = vst.msk [vmem:[#allocation2 + $0x1f0] sm:$0xff] %vm3172, %v3139
      %s3205 = sadd.s32 %s213, 121
      %s3206 = scalar_lea.vmem %s0, %s3205
      %v3207 = vld [vmem:[%s3206] sm:$0xff]
      %v3208 = vld [vmem:[%s3206 + $0x8] sm:$0xff]
      %v3209 = vld [vmem:[%s3206 + $0x10] sm:$0xff]
      %v3210 = vld [vmem:[%s3206 + $0x18] sm:$0xff]
      %v3211 = vld [vmem:[%s3206 + $0x20] sm:$0xff]
      %v3212 = vld [vmem:[%s3206 + $0x28] sm:$0xff]
      %v3213 = vld [vmem:[%s3206 + $0x30] sm:$0xff]
      %v3214 = vld [vmem:[%s3206 + $0x38] sm:$0xff]
      %v3215 = vld [vmem:[%s3206 + $0x40] sm:$0xff]
      %v3216 = vld [vmem:[%s3206 + $0x48] sm:$0xff]
      %v3217 = vld [vmem:[%s3206 + $0x50] sm:$0xff]
      %v3218 = vld [vmem:[%s3206 + $0x58] sm:$0xff]
      %v3219 = vld [vmem:[%s3206 + $0x60] sm:$0xff]
      %v3220 = vld [vmem:[%s3206 + $0x68] sm:$0xff]
      %v3221 = vld [vmem:[%s3206 + $0x70] sm:$0xff]
      %v3222 = vld [vmem:[%s3206 + $0x78] sm:$0xff]
      %v3223 = vld [vmem:[%s3206 + $0x80] sm:$0xff]
      %v3224 = vld [vmem:[%s3206 + $0x88] sm:$0xff]
      %v3225 = vld [vmem:[%s3206 + $0x90] sm:$0xff]
      %v3226 = vld [vmem:[%s3206 + $0x98] sm:$0xff]
      %v3227 = vld [vmem:[%s3206 + $0xa0] sm:$0xff]
      %v3228 = vld [vmem:[%s3206 + $0xa8] sm:$0xff]
      %v3229 = vld [vmem:[%s3206 + $0xb0] sm:$0xff]
      %v3230 = vld [vmem:[%s3206 + $0xb8] sm:$0xff]
      %v3231 = vld [vmem:[%s3206 + $0xc0] sm:$0xff]
      %v3232 = vld [vmem:[%s3206 + $0xc8] sm:$0xff]
      %v3233 = vld [vmem:[%s3206 + $0xd0] sm:$0xff]
      %v3234 = vld [vmem:[%s3206 + $0xd8] sm:$0xff]
      %v3235 = vld [vmem:[%s3206 + $0xe0] sm:$0xff]
      %v3236 = vld [vmem:[%s3206 + $0xe8] sm:$0xff]
      %v3237 = vld [vmem:[%s3206 + $0xf0] sm:$0xff]
      %v3238 = vld [vmem:[%s3206 + $0xf8] sm:$0xff]
      %3239 = vst.msk [vmem:[#allocation2 + $0x8] sm:$0xff] %vm247, %v3207
      %3240 = vst.msk [vmem:[#allocation2 + $0x18] sm:$0xff] %vm247, %v3208
      %3241 = vst.msk [vmem:[#allocation2 + $0x28] sm:$0xff] %vm247, %v3209
      %3242 = vst.msk [vmem:[#allocation2 + $0x38] sm:$0xff] %vm247, %v3210
      %3243 = vst.msk [vmem:[#allocation2 + $0x48] sm:$0xff] %vm247, %v3211
      %3244 = vst.msk [vmem:[#allocation2 + $0x58] sm:$0xff] %vm247, %v3212
      %3245 = vst.msk [vmem:[#allocation2 + $0x68] sm:$0xff] %vm247, %v3213
      %3246 = vst.msk [vmem:[#allocation2 + $0x78] sm:$0xff] %vm247, %v3214
      %3247 = vst.msk [vmem:[#allocation2 + $0x88] sm:$0xff] %vm247, %v3215
      %3248 = vst.msk [vmem:[#allocation2 + $0x98] sm:$0xff] %vm247, %v3216
      %3249 = vst.msk [vmem:[#allocation2 + $0xa8] sm:$0xff] %vm247, %v3217
      %3250 = vst.msk [vmem:[#allocation2 + $0xb8] sm:$0xff] %vm247, %v3218
      %3251 = vst.msk [vmem:[#allocation2 + $0xc8] sm:$0xff] %vm247, %v3219
      %3252 = vst.msk [vmem:[#allocation2 + $0xd8] sm:$0xff] %vm247, %v3220
      %3253 = vst.msk [vmem:[#allocation2 + $0xe8] sm:$0xff] %vm247, %v3221
      %3254 = vst.msk [vmem:[#allocation2 + $0xf8] sm:$0xff] %vm247, %v3222
      %3255 = vst.msk [vmem:[#allocation2 + $0x108] sm:$0xff] %vm247, %v3223
      %3256 = vst.msk [vmem:[#allocation2 + $0x118] sm:$0xff] %vm247, %v3224
      %3257 = vst.msk [vmem:[#allocation2 + $0x128] sm:$0xff] %vm247, %v3225
      %3258 = vst.msk [vmem:[#allocation2 + $0x138] sm:$0xff] %vm247, %v3226
      %3259 = vst.msk [vmem:[#allocation2 + $0x148] sm:$0xff] %vm247, %v3227
      %3260 = vst.msk [vmem:[#allocation2 + $0x158] sm:$0xff] %vm247, %v3228
      %3261 = vst.msk [vmem:[#allocation2 + $0x168] sm:$0xff] %vm247, %v3229
      %3262 = vst.msk [vmem:[#allocation2 + $0x178] sm:$0xff] %vm247, %v3230
      %3263 = vst.msk [vmem:[#allocation2 + $0x188] sm:$0xff] %vm247, %v3231
      %3264 = vst.msk [vmem:[#allocation2 + $0x198] sm:$0xff] %vm247, %v3232
      %3265 = vst.msk [vmem:[#allocation2 + $0x1a8] sm:$0xff] %vm247, %v3233
      %3266 = vst.msk [vmem:[#allocation2 + $0x1b8] sm:$0xff] %vm247, %v3234
      %3267 = vst.msk [vmem:[#allocation2 + $0x1c8] sm:$0xff] %vm247, %v3235
      %3268 = vst.msk [vmem:[#allocation2 + $0x1d8] sm:$0xff] %vm247, %v3236
      %3269 = vst.msk [vmem:[#allocation2 + $0x1e8] sm:$0xff] %vm247, %v3237
      %3270 = vst.msk [vmem:[#allocation2 + $0x1f8] sm:$0xff] %vm247, %v3238
      %s3271 = sadd.s32 %s213, 122
      %s3272 = scalar_lea.vmem %s0, %s3271
      %v3273 = vld [vmem:[%s3272] sm:$0xff]
      %v3274 = vld [vmem:[%s3272 + $0x8] sm:$0xff]
      %v3275 = vld [vmem:[%s3272 + $0x10] sm:$0xff]
      %v3276 = vld [vmem:[%s3272 + $0x18] sm:$0xff]
      %v3277 = vld [vmem:[%s3272 + $0x20] sm:$0xff]
      %v3278 = vld [vmem:[%s3272 + $0x28] sm:$0xff]
      %v3279 = vld [vmem:[%s3272 + $0x30] sm:$0xff]
      %v3280 = vld [vmem:[%s3272 + $0x38] sm:$0xff]
      %v3281 = vld [vmem:[%s3272 + $0x40] sm:$0xff]
      %v3282 = vld [vmem:[%s3272 + $0x48] sm:$0xff]
      %v3283 = vld [vmem:[%s3272 + $0x50] sm:$0xff]
      %v3284 = vld [vmem:[%s3272 + $0x58] sm:$0xff]
      %v3285 = vld [vmem:[%s3272 + $0x60] sm:$0xff]
      %v3286 = vld [vmem:[%s3272 + $0x68] sm:$0xff]
      %v3287 = vld [vmem:[%s3272 + $0x70] sm:$0xff]
      %v3288 = vld [vmem:[%s3272 + $0x78] sm:$0xff]
      %v3289 = vld [vmem:[%s3272 + $0x80] sm:$0xff]
      %v3290 = vld [vmem:[%s3272 + $0x88] sm:$0xff]
      %v3291 = vld [vmem:[%s3272 + $0x90] sm:$0xff]
      %v3292 = vld [vmem:[%s3272 + $0x98] sm:$0xff]
      %v3293 = vld [vmem:[%s3272 + $0xa0] sm:$0xff]
      %v3294 = vld [vmem:[%s3272 + $0xa8] sm:$0xff]
      %v3295 = vld [vmem:[%s3272 + $0xb0] sm:$0xff]
      %v3296 = vld [vmem:[%s3272 + $0xb8] sm:$0xff]
      %v3297 = vld [vmem:[%s3272 + $0xc0] sm:$0xff]
      %v3298 = vld [vmem:[%s3272 + $0xc8] sm:$0xff]
      %v3299 = vld [vmem:[%s3272 + $0xd0] sm:$0xff]
      %v3300 = vld [vmem:[%s3272 + $0xd8] sm:$0xff]
      %v3301 = vld [vmem:[%s3272 + $0xe0] sm:$0xff]
      %v3302 = vld [vmem:[%s3272 + $0xe8] sm:$0xff]
      %v3303 = vld [vmem:[%s3272 + $0xf0] sm:$0xff]
      %v3304 = vld [vmem:[%s3272 + $0xf8] sm:$0xff]
      %3337 = vrot.lane.b32.xlu0 %v3273, 8
      %v3338 = vpop.permute.xlu0 %3337
      %3339 = vrot.lane.b32.xlu0 %v3274, 8
      %v3340 = vpop.permute.xlu0 %3339
      %3341 = vrot.lane.b32.xlu0 %v3275, 8
      %v3342 = vpop.permute.xlu0 %3341
      %3343 = vrot.lane.b32.xlu0 %v3276, 8
      %v3344 = vpop.permute.xlu0 %3343
      %3345 = vrot.lane.b32.xlu0 %v3277, 8
      %v3346 = vpop.permute.xlu0 %3345
      %3347 = vrot.lane.b32.xlu0 %v3278, 8
      %v3348 = vpop.permute.xlu0 %3347
      %3349 = vrot.lane.b32.xlu0 %v3279, 8
      %v3350 = vpop.permute.xlu0 %3349
      %3351 = vrot.lane.b32.xlu0 %v3280, 8
      %v3352 = vpop.permute.xlu0 %3351
      %3353 = vrot.lane.b32.xlu0 %v3281, 8
      %v3354 = vpop.permute.xlu0 %3353
      %3355 = vrot.lane.b32.xlu0 %v3282, 8
      %v3356 = vpop.permute.xlu0 %3355
      %3357 = vrot.lane.b32.xlu0 %v3283, 8
      %v3358 = vpop.permute.xlu0 %3357
      %3359 = vrot.lane.b32.xlu0 %v3284, 8
      %v3360 = vpop.permute.xlu0 %3359
      %3361 = vrot.lane.b32.xlu0 %v3285, 8
      %v3362 = vpop.permute.xlu0 %3361
      %3363 = vrot.lane.b32.xlu0 %v3286, 8
      %v3364 = vpop.permute.xlu0 %3363
      %3365 = vrot.lane.b32.xlu0 %v3287, 8
      %v3366 = vpop.permute.xlu0 %3365
      %3367 = vrot.lane.b32.xlu0 %v3288, 8
      %v3368 = vpop.permute.xlu0 %3367
      %3369 = vrot.lane.b32.xlu0 %v3289, 8
      %v3370 = vpop.permute.xlu0 %3369
      %3371 = vrot.lane.b32.xlu0 %v3290, 8
      %v3372 = vpop.permute.xlu0 %3371
      %3373 = vrot.lane.b32.xlu0 %v3291, 8
      %v3374 = vpop.permute.xlu0 %3373
      %3375 = vrot.lane.b32.xlu0 %v3292, 8
      %v3376 = vpop.permute.xlu0 %3375
      %3377 = vrot.lane.b32.xlu0 %v3293, 8
      %v3378 = vpop.permute.xlu0 %3377
      %3379 = vrot.lane.b32.xlu0 %v3294, 8
      %v3380 = vpop.permute.xlu0 %3379
      %3381 = vrot.lane.b32.xlu0 %v3295, 8
      %v3382 = vpop.permute.xlu0 %3381
      %3383 = vrot.lane.b32.xlu0 %v3296, 8
      %v3384 = vpop.permute.xlu0 %3383
      %3385 = vrot.lane.b32.xlu0 %v3297, 8
      %v3386 = vpop.permute.xlu0 %3385
      %3387 = vrot.lane.b32.xlu0 %v3298, 8
      %v3388 = vpop.permute.xlu0 %3387
      %3389 = vrot.lane.b32.xlu0 %v3299, 8
      %v3390 = vpop.permute.xlu0 %3389
      %3391 = vrot.lane.b32.xlu0 %v3300, 8
      %v3392 = vpop.permute.xlu0 %3391
      %3393 = vrot.lane.b32.xlu0 %v3301, 8
      %v3394 = vpop.permute.xlu0 %3393
      %3395 = vrot.lane.b32.xlu0 %v3302, 8
      %v3396 = vpop.permute.xlu0 %3395
      %3397 = vrot.lane.b32.xlu0 %v3303, 8
      %v3398 = vpop.permute.xlu0 %3397
      %3399 = vrot.lane.b32.xlu0 %v3304, 8
      %v3400 = vpop.permute.xlu0 %3399
      %3433 = vst.msk [vmem:[#allocation2 + $0x8] sm:$0xff] %vm442, %v3338
      %3434 = vst.msk [vmem:[#allocation2 + $0x18] sm:$0xff] %vm442, %v3340
      %3435 = vst.msk [vmem:[#allocation2 + $0x28] sm:$0xff] %vm442, %v3342
      %3436 = vst.msk [vmem:[#allocation2 + $0x38] sm:$0xff] %vm442, %v3344
      %3437 = vst.msk [vmem:[#allocation2 + $0x48] sm:$0xff] %vm442, %v3346
      %3438 = vst.msk [vmem:[#allocation2 + $0x58] sm:$0xff] %vm442, %v3348
      %3439 = vst.msk [vmem:[#allocation2 + $0x68] sm:$0xff] %vm442, %v3350
      %3440 = vst.msk [vmem:[#allocation2 + $0x78] sm:$0xff] %vm442, %v3352
      %3441 = vst.msk [vmem:[#allocation2 + $0x88] sm:$0xff] %vm442, %v3354
      %3442 = vst.msk [vmem:[#allocation2 + $0x98] sm:$0xff] %vm442, %v3356
      %3443 = vst.msk [vmem:[#allocation2 + $0xa8] sm:$0xff] %vm442, %v3358
      %3444 = vst.msk [vmem:[#allocation2 + $0xb8] sm:$0xff] %vm442, %v3360
      %3445 = vst.msk [vmem:[#allocation2 + $0xc8] sm:$0xff] %vm442, %v3362
      %3446 = vst.msk [vmem:[#allocation2 + $0xd8] sm:$0xff] %vm442, %v3364
      %3447 = vst.msk [vmem:[#allocation2 + $0xe8] sm:$0xff] %vm442, %v3366
      %3448 = vst.msk [vmem:[#allocation2 + $0xf8] sm:$0xff] %vm442, %v3368
      %3449 = vst.msk [vmem:[#allocation2 + $0x108] sm:$0xff] %vm442, %v3370
      %3450 = vst.msk [vmem:[#allocation2 + $0x118] sm:$0xff] %vm442, %v3372
      %3451 = vst.msk [vmem:[#allocation2 + $0x128] sm:$0xff] %vm442, %v3374
      %3452 = vst.msk [vmem:[#allocation2 + $0x138] sm:$0xff] %vm442, %v3376
      %3453 = vst.msk [vmem:[#allocation2 + $0x148] sm:$0xff] %vm442, %v3378
      %3454 = vst.msk [vmem:[#allocation2 + $0x158] sm:$0xff] %vm442, %v3380
      %3455 = vst.msk [vmem:[#allocation2 + $0x168] sm:$0xff] %vm442, %v3382
      %3456 = vst.msk [vmem:[#allocation2 + $0x178] sm:$0xff] %vm442, %v3384
      %3457 = vst.msk [vmem:[#allocation2 + $0x188] sm:$0xff] %vm442, %v3386
      %3458 = vst.msk [vmem:[#allocation2 + $0x198] sm:$0xff] %vm442, %v3388
      %3459 = vst.msk [vmem:[#allocation2 + $0x1a8] sm:$0xff] %vm442, %v3390
      %3460 = vst.msk [vmem:[#allocation2 + $0x1b8] sm:$0xff] %vm442, %v3392
      %3461 = vst.msk [vmem:[#allocation2 + $0x1c8] sm:$0xff] %vm442, %v3394
      %3462 = vst.msk [vmem:[#allocation2 + $0x1d8] sm:$0xff] %vm442, %v3396
      %3463 = vst.msk [vmem:[#allocation2 + $0x1e8] sm:$0xff] %vm442, %v3398
      %3464 = vst.msk [vmem:[#allocation2 + $0x1f8] sm:$0xff] %vm442, %v3400
      %s3465 = sadd.s32 %s213, 200
      %s3466 = scalar_lea.vmem %s0, %s3465
      %v3467 = vld [vmem:[%s3466] sm:$0xff]
      %v3468 = vld [vmem:[%s3466 + $0x8] sm:$0xff]
      %v3469 = vld [vmem:[%s3466 + $0x10] sm:$0xff]
      %v3470 = vld [vmem:[%s3466 + $0x18] sm:$0xff]
      %v3471 = vld [vmem:[%s3466 + $0x20] sm:$0xff]
      %v3472 = vld [vmem:[%s3466 + $0x28] sm:$0xff]
      %v3473 = vld [vmem:[%s3466 + $0x30] sm:$0xff]
      %v3474 = vld [vmem:[%s3466 + $0x38] sm:$0xff]
      %v3475 = vld [vmem:[%s3466 + $0x40] sm:$0xff]
      %v3476 = vld [vmem:[%s3466 + $0x48] sm:$0xff]
      %v3477 = vld [vmem:[%s3466 + $0x50] sm:$0xff]
      %v3478 = vld [vmem:[%s3466 + $0x58] sm:$0xff]
      %v3479 = vld [vmem:[%s3466 + $0x60] sm:$0xff]
      %v3480 = vld [vmem:[%s3466 + $0x68] sm:$0xff]
      %v3481 = vld [vmem:[%s3466 + $0x70] sm:$0xff]
      %v3482 = vld [vmem:[%s3466 + $0x78] sm:$0xff]
      %v3483 = vld [vmem:[%s3466 + $0x80] sm:$0xff]
      %v3484 = vld [vmem:[%s3466 + $0x88] sm:$0xff]
      %v3485 = vld [vmem:[%s3466 + $0x90] sm:$0xff]
      %v3486 = vld [vmem:[%s3466 + $0x98] sm:$0xff]
      %v3487 = vld [vmem:[%s3466 + $0xa0] sm:$0xff]
      %v3488 = vld [vmem:[%s3466 + $0xa8] sm:$0xff]
      %v3489 = vld [vmem:[%s3466 + $0xb0] sm:$0xff]
      %v3490 = vld [vmem:[%s3466 + $0xb8] sm:$0xff]
      %v3491 = vld [vmem:[%s3466 + $0xc0] sm:$0xff]
      %v3492 = vld [vmem:[%s3466 + $0xc8] sm:$0xff]
      %v3493 = vld [vmem:[%s3466 + $0xd0] sm:$0xff]
      %v3494 = vld [vmem:[%s3466 + $0xd8] sm:$0xff]
      %v3495 = vld [vmem:[%s3466 + $0xe0] sm:$0xff]
      %v3496 = vld [vmem:[%s3466 + $0xe8] sm:$0xff]
      %v3497 = vld [vmem:[%s3466 + $0xf0] sm:$0xff]
      %v3498 = vld [vmem:[%s3466 + $0xf8] sm:$0xff]
      %3531 = vrot.lane.b32.xlu0 %v3467, 16
      %v3532 = vpop.permute.xlu0 %3531
      %3533 = vrot.lane.b32.xlu0 %v3468, 16
      %v3534 = vpop.permute.xlu0 %3533
      %3535 = vrot.lane.b32.xlu0 %v3469, 16
      %v3536 = vpop.permute.xlu0 %3535
      %3537 = vrot.lane.b32.xlu0 %v3470, 16
      %v3538 = vpop.permute.xlu0 %3537
      %3539 = vrot.lane.b32.xlu0 %v3471, 16
      %v3540 = vpop.permute.xlu0 %3539
      %3541 = vrot.lane.b32.xlu0 %v3472, 16
      %v3542 = vpop.permute.xlu0 %3541
      %3543 = vrot.lane.b32.xlu0 %v3473, 16
      %v3544 = vpop.permute.xlu0 %3543
      %3545 = vrot.lane.b32.xlu0 %v3474, 16
      %v3546 = vpop.permute.xlu0 %3545
      %3547 = vrot.lane.b32.xlu0 %v3475, 16
      %v3548 = vpop.permute.xlu0 %3547
      %3549 = vrot.lane.b32.xlu0 %v3476, 16
      %v3550 = vpop.permute.xlu0 %3549
      %3551 = vrot.lane.b32.xlu0 %v3477, 16
      %v3552 = vpop.permute.xlu0 %3551
      %3553 = vrot.lane.b32.xlu0 %v3478, 16
      %v3554 = vpop.permute.xlu0 %3553
      %3555 = vrot.lane.b32.xlu0 %v3479, 16
      %v3556 = vpop.permute.xlu0 %3555
      %3557 = vrot.lane.b32.xlu0 %v3480, 16
      %v3558 = vpop.permute.xlu0 %3557
      %3559 = vrot.lane.b32.xlu0 %v3481, 16
      %v3560 = vpop.permute.xlu0 %3559
      %3561 = vrot.lane.b32.xlu0 %v3482, 16
      %v3562 = vpop.permute.xlu0 %3561
      %3563 = vrot.lane.b32.xlu0 %v3483, 16
      %v3564 = vpop.permute.xlu0 %3563
      %3565 = vrot.lane.b32.xlu0 %v3484, 16
      %v3566 = vpop.permute.xlu0 %3565
      %3567 = vrot.lane.b32.xlu0 %v3485, 16
      %v3568 = vpop.permute.xlu0 %3567
      %3569 = vrot.lane.b32.xlu0 %v3486, 16
      %v3570 = vpop.permute.xlu0 %3569
      %3571 = vrot.lane.b32.xlu0 %v3487, 16
      %v3572 = vpop.permute.xlu0 %3571
      %3573 = vrot.lane.b32.xlu0 %v3488, 16
      %v3574 = vpop.permute.xlu0 %3573
      %3575 = vrot.lane.b32.xlu0 %v3489, 16
      %v3576 = vpop.permute.xlu0 %3575
      %3577 = vrot.lane.b32.xlu0 %v3490, 16
      %v3578 = vpop.permute.xlu0 %3577
      %3579 = vrot.lane.b32.xlu0 %v3491, 16
      %v3580 = vpop.permute.xlu0 %3579
      %3581 = vrot.lane.b32.xlu0 %v3492, 16
      %v3582 = vpop.permute.xlu0 %3581
      %3583 = vrot.lane.b32.xlu0 %v3493, 16
      %v3584 = vpop.permute.xlu0 %3583
      %3585 = vrot.lane.b32.xlu0 %v3494, 16
      %v3586 = vpop.permute.xlu0 %3585
      %3587 = vrot.lane.b32.xlu0 %v3495, 16
      %v3588 = vpop.permute.xlu0 %3587
      %3589 = vrot.lane.b32.xlu0 %v3496, 16
      %v3590 = vpop.permute.xlu0 %3589
      %3591 = vrot.lane.b32.xlu0 %v3497, 16
      %v3592 = vpop.permute.xlu0 %3591
      %3593 = vrot.lane.b32.xlu0 %v3498, 16
      %v3594 = vpop.permute.xlu0 %3593
      %3627 = vst.msk [vmem:[#allocation2 + $0x8] sm:$0xff] %vm637, %v3532
      %3628 = vst.msk [vmem:[#allocation2 + $0x18] sm:$0xff] %vm637, %v3534
      %3629 = vst.msk [vmem:[#allocation2 + $0x28] sm:$0xff] %vm637, %v3536
      %3630 = vst.msk [vmem:[#allocation2 + $0x38] sm:$0xff] %vm637, %v3538
      %3631 = vst.msk [vmem:[#allocation2 + $0x48] sm:$0xff] %vm637, %v3540
      %3632 = vst.msk [vmem:[#allocation2 + $0x58] sm:$0xff] %vm637, %v3542
      %3633 = vst.msk [vmem:[#allocation2 + $0x68] sm:$0xff] %vm637, %v3544
      %3634 = vst.msk [vmem:[#allocation2 + $0x78] sm:$0xff] %vm637, %v3546
      %3635 = vst.msk [vmem:[#allocation2 + $0x88] sm:$0xff] %vm637, %v3548
      %3636 = vst.msk [vmem:[#allocation2 + $0x98] sm:$0xff] %vm637, %v3550
      %3637 = vst.msk [vmem:[#allocation2 + $0xa8] sm:$0xff] %vm637, %v3552
      %3638 = vst.msk [vmem:[#allocation2 + $0xb8] sm:$0xff] %vm637, %v3554
      %3639 = vst.msk [vmem:[#allocation2 + $0xc8] sm:$0xff] %vm637, %v3556
      %3640 = vst.msk [vmem:[#allocation2 + $0xd8] sm:$0xff] %vm637, %v3558
      %3641 = vst.msk [vmem:[#allocation2 + $0xe8] sm:$0xff] %vm637, %v3560
      %3642 = vst.msk [vmem:[#allocation2 + $0xf8] sm:$0xff] %vm637, %v3562
      %3643 = vst.msk [vmem:[#allocation2 + $0x108] sm:$0xff] %vm637, %v3564
      %3644 = vst.msk [vmem:[#allocation2 + $0x118] sm:$0xff] %vm637, %v3566
      %3645 = vst.msk [vmem:[#allocation2 + $0x128] sm:$0xff] %vm637, %v3568
      %3646 = vst.msk [vmem:[#allocation2 + $0x138] sm:$0xff] %vm637, %v3570
      %3647 = vst.msk [vmem:[#allocation2 + $0x148] sm:$0xff] %vm637, %v3572
      %3648 = vst.msk [vmem:[#allocation2 + $0x158] sm:$0xff] %vm637, %v3574
      %3649 = vst.msk [vmem:[#allocation2 + $0x168] sm:$0xff] %vm637, %v3576
      %3650 = vst.msk [vmem:[#allocation2 + $0x178] sm:$0xff] %vm637, %v3578
      %3651 = vst.msk [vmem:[#allocation2 + $0x188] sm:$0xff] %vm637, %v3580
      %3652 = vst.msk [vmem:[#allocation2 + $0x198] sm:$0xff] %vm637, %v3582
      %3653 = vst.msk [vmem:[#allocation2 + $0x1a8] sm:$0xff] %vm637, %v3584
      %3654 = vst.msk [vmem:[#allocation2 + $0x1b8] sm:$0xff] %vm637, %v3586
      %3655 = vst.msk [vmem:[#allocation2 + $0x1c8] sm:$0xff] %vm637, %v3588
      %3656 = vst.msk [vmem:[#allocation2 + $0x1d8] sm:$0xff] %vm637, %v3590
      %3657 = vst.msk [vmem:[#allocation2 + $0x1e8] sm:$0xff] %vm637, %v3592
      %3658 = vst.msk [vmem:[#allocation2 + $0x1f8] sm:$0xff] %vm637, %v3594
      %s3659 = sadd.s32 %s213, 201
      %s3660 = scalar_lea.vmem %s0, %s3659
      %v3661 = vld [vmem:[%s3660] sm:$0xff]
      %v3662 = vld [vmem:[%s3660 + $0x8] sm:$0xff]
      %v3663 = vld [vmem:[%s3660 + $0x10] sm:$0xff]
      %v3664 = vld [vmem:[%s3660 + $0x18] sm:$0xff]
      %v3665 = vld [vmem:[%s3660 + $0x20] sm:$0xff]
      %v3666 = vld [vmem:[%s3660 + $0x28] sm:$0xff]
      %v3667 = vld [vmem:[%s3660 + $0x30] sm:$0xff]
      %v3668 = vld [vmem:[%s3660 + $0x38] sm:$0xff]
      %v3669 = vld [vmem:[%s3660 + $0x40] sm:$0xff]
      %v3670 = vld [vmem:[%s3660 + $0x48] sm:$0xff]
      %v3671 = vld [vmem:[%s3660 + $0x50] sm:$0xff]
      %v3672 = vld [vmem:[%s3660 + $0x58] sm:$0xff]
      %v3673 = vld [vmem:[%s3660 + $0x60] sm:$0xff]
      %v3674 = vld [vmem:[%s3660 + $0x68] sm:$0xff]
      %v3675 = vld [vmem:[%s3660 + $0x70] sm:$0xff]
      %v3676 = vld [vmem:[%s3660 + $0x78] sm:$0xff]
      %v3677 = vld [vmem:[%s3660 + $0x80] sm:$0xff]
      %v3678 = vld [vmem:[%s3660 + $0x88] sm:$0xff]
      %v3679 = vld [vmem:[%s3660 + $0x90] sm:$0xff]
      %v3680 = vld [vmem:[%s3660 + $0x98] sm:$0xff]
      %v3681 = vld [vmem:[%s3660 + $0xa0] sm:$0xff]
      %v3682 = vld [vmem:[%s3660 + $0xa8] sm:$0xff]
      %v3683 = vld [vmem:[%s3660 + $0xb0] sm:$0xff]
      %v3684 = vld [vmem:[%s3660 + $0xb8] sm:$0xff]
      %v3685 = vld [vmem:[%s3660 + $0xc0] sm:$0xff]
      %v3686 = vld [vmem:[%s3660 + $0xc8] sm:$0xff]
      %v3687 = vld [vmem:[%s3660 + $0xd0] sm:$0xff]
      %v3688 = vld [vmem:[%s3660 + $0xd8] sm:$0xff]
      %v3689 = vld [vmem:[%s3660 + $0xe0] sm:$0xff]
      %v3690 = vld [vmem:[%s3660 + $0xe8] sm:$0xff]
      %v3691 = vld [vmem:[%s3660 + $0xf0] sm:$0xff]
      %v3692 = vld [vmem:[%s3660 + $0xf8] sm:$0xff]
      %3725 = vrot.lane.b32.xlu0 %v3661, 24
      %v3726 = vpop.permute.xlu0 %3725
      %3727 = vrot.lane.b32.xlu0 %v3662, 24
      %v3728 = vpop.permute.xlu0 %3727
      %3729 = vrot.lane.b32.xlu0 %v3663, 24
      %v3730 = vpop.permute.xlu0 %3729
      %3731 = vrot.lane.b32.xlu0 %v3664, 24
      %v3732 = vpop.permute.xlu0 %3731
      %3733 = vrot.lane.b32.xlu0 %v3665, 24
      %v3734 = vpop.permute.xlu0 %3733
      %3735 = vrot.lane.b32.xlu0 %v3666, 24
      %v3736 = vpop.permute.xlu0 %3735
      %3737 = vrot.lane.b32.xlu0 %v3667, 24
      %v3738 = vpop.permute.xlu0 %3737
      %3739 = vrot.lane.b32.xlu0 %v3668, 24
      %v3740 = vpop.permute.xlu0 %3739
      %3741 = vrot.lane.b32.xlu0 %v3669, 24
      %v3742 = vpop.permute.xlu0 %3741
      %3743 = vrot.lane.b32.xlu0 %v3670, 24
      %v3744 = vpop.permute.xlu0 %3743
      %3745 = vrot.lane.b32.xlu0 %v3671, 24
      %v3746 = vpop.permute.xlu0 %3745
      %3747 = vrot.lane.b32.xlu0 %v3672, 24
      %v3748 = vpop.permute.xlu0 %3747
      %3749 = vrot.lane.b32.xlu0 %v3673, 24
      %v3750 = vpop.permute.xlu0 %3749
      %3751 = vrot.lane.b32.xlu0 %v3674, 24
      %v3752 = vpop.permute.xlu0 %3751
      %3753 = vrot.lane.b32.xlu0 %v3675, 24
      %v3754 = vpop.permute.xlu0 %3753
      %3755 = vrot.lane.b32.xlu0 %v3676, 24
      %v3756 = vpop.permute.xlu0 %3755
      %3757 = vrot.lane.b32.xlu0 %v3677, 24
      %v3758 = vpop.permute.xlu0 %3757
      %3759 = vrot.lane.b32.xlu0 %v3678, 24
      %v3760 = vpop.permute.xlu0 %3759
      %3761 = vrot.lane.b32.xlu0 %v3679, 24
      %v3762 = vpop.permute.xlu0 %3761
      %3763 = vrot.lane.b32.xlu0 %v3680, 24
      %v3764 = vpop.permute.xlu0 %3763
      %3765 = vrot.lane.b32.xlu0 %v3681, 24
      %v3766 = vpop.permute.xlu0 %3765
      %3767 = vrot.lane.b32.xlu0 %v3682, 24
      %v3768 = vpop.permute.xlu0 %3767
      %3769 = vrot.lane.b32.xlu0 %v3683, 24
      %v3770 = vpop.permute.xlu0 %3769
      %3771 = vrot.lane.b32.xlu0 %v3684, 24
      %v3772 = vpop.permute.xlu0 %3771
      %3773 = vrot.lane.b32.xlu0 %v3685, 24
      %v3774 = vpop.permute.xlu0 %3773
      %3775 = vrot.lane.b32.xlu0 %v3686, 24
      %v3776 = vpop.permute.xlu0 %3775
      %3777 = vrot.lane.b32.xlu0 %v3687, 24
      %v3778 = vpop.permute.xlu0 %3777
      %3779 = vrot.lane.b32.xlu0 %v3688, 24
      %v3780 = vpop.permute.xlu0 %3779
      %3781 = vrot.lane.b32.xlu0 %v3689, 24
      %v3782 = vpop.permute.xlu0 %3781
      %3783 = vrot.lane.b32.xlu0 %v3690, 24
      %v3784 = vpop.permute.xlu0 %3783
      %3785 = vrot.lane.b32.xlu0 %v3691, 24
      %v3786 = vpop.permute.xlu0 %3785
      %3787 = vrot.lane.b32.xlu0 %v3692, 24
      %v3788 = vpop.permute.xlu0 %3787
      %3821 = vst.msk [vmem:[#allocation2 + $0x8] sm:$0xff] %vm832, %v3726
      %3822 = vst.msk [vmem:[#allocation2 + $0x18] sm:$0xff] %vm832, %v3728
      %3823 = vst.msk [vmem:[#allocation2 + $0x28] sm:$0xff] %vm832, %v3730
      %3824 = vst.msk [vmem:[#allocation2 + $0x38] sm:$0xff] %vm832, %v3732
      %3825 = vst.msk [vmem:[#allocation2 + $0x48] sm:$0xff] %vm832, %v3734
      %3826 = vst.msk [vmem:[#allocation2 + $0x58] sm:$0xff] %vm832, %v3736
      %3827 = vst.msk [vmem:[#allocation2 + $0x68] sm:$0xff] %vm832, %v3738
      %3828 = vst.msk [vmem:[#allocation2 + $0x78] sm:$0xff] %vm832, %v3740
      %3829 = vst.msk [vmem:[#allocation2 + $0x88] sm:$0xff] %vm832, %v3742
      %3830 = vst.msk [vmem:[#allocation2 + $0x98] sm:$0xff] %vm832, %v3744
      %3831 = vst.msk [vmem:[#allocation2 + $0xa8] sm:$0xff] %vm832, %v3746
      %3832 = vst.msk [vmem:[#allocation2 + $0xb8] sm:$0xff] %vm832, %v3748
      %3833 = vst.msk [vmem:[#allocation2 + $0xc8] sm:$0xff] %vm832, %v3750
      %3834 = vst.msk [vmem:[#allocation2 + $0xd8] sm:$0xff] %vm832, %v3752
      %3835 = vst.msk [vmem:[#allocation2 + $0xe8] sm:$0xff] %vm832, %v3754
      %3836 = vst.msk [vmem:[#allocation2 + $0xf8] sm:$0xff] %vm832, %v3756
      %3837 = vst.msk [vmem:[#allocation2 + $0x108] sm:$0xff] %vm832, %v3758
      %3838 = vst.msk [vmem:[#allocation2 + $0x118] sm:$0xff] %vm832, %v3760
      %3839 = vst.msk [vmem:[#allocation2 + $0x128] sm:$0xff] %vm832, %v3762
      %3840 = vst.msk [vmem:[#allocation2 + $0x138] sm:$0xff] %vm832, %v3764
      %3841 = vst.msk [vmem:[#allocation2 + $0x148] sm:$0xff] %vm832, %v3766
      %3842 = vst.msk [vmem:[#allocation2 + $0x158] sm:$0xff] %vm832, %v3768
      %3843 = vst.msk [vmem:[#allocation2 + $0x168] sm:$0xff] %vm832, %v3770
      %3844 = vst.msk [vmem:[#allocation2 + $0x178] sm:$0xff] %vm832, %v3772
      %3845 = vst.msk [vmem:[#allocation2 + $0x188] sm:$0xff] %vm832, %v3774
      %3846 = vst.msk [vmem:[#allocation2 + $0x198] sm:$0xff] %vm832, %v3776
      %3847 = vst.msk [vmem:[#allocation2 + $0x1a8] sm:$0xff] %vm832, %v3778
      %3848 = vst.msk [vmem:[#allocation2 + $0x1b8] sm:$0xff] %vm832, %v3780
      %3849 = vst.msk [vmem:[#allocation2 + $0x1c8] sm:$0xff] %vm832, %v3782
      %3850 = vst.msk [vmem:[#allocation2 + $0x1d8] sm:$0xff] %vm832, %v3784
      %3851 = vst.msk [vmem:[#allocation2 + $0x1e8] sm:$0xff] %vm832, %v3786
      %3852 = vst.msk [vmem:[#allocation2 + $0x1f8] sm:$0xff] %vm832, %v3788
      %s3853 = sadd.s32 %s213, 202
      %s3854 = scalar_lea.vmem %s0, %s3853
      %v3855 = vld [vmem:[%s3854] sm:$0xff]
      %v3856 = vld [vmem:[%s3854 + $0x8] sm:$0xff]
      %v3857 = vld [vmem:[%s3854 + $0x10] sm:$0xff]
      %v3858 = vld [vmem:[%s3854 + $0x18] sm:$0xff]
      %v3859 = vld [vmem:[%s3854 + $0x20] sm:$0xff]
      %v3860 = vld [vmem:[%s3854 + $0x28] sm:$0xff]
      %v3861 = vld [vmem:[%s3854 + $0x30] sm:$0xff]
      %v3862 = vld [vmem:[%s3854 + $0x38] sm:$0xff]
      %v3863 = vld [vmem:[%s3854 + $0x40] sm:$0xff]
      %v3864 = vld [vmem:[%s3854 + $0x48] sm:$0xff]
      %v3865 = vld [vmem:[%s3854 + $0x50] sm:$0xff]
      %v3866 = vld [vmem:[%s3854 + $0x58] sm:$0xff]
      %v3867 = vld [vmem:[%s3854 + $0x60] sm:$0xff]
      %v3868 = vld [vmem:[%s3854 + $0x68] sm:$0xff]
      %v3869 = vld [vmem:[%s3854 + $0x70] sm:$0xff]
      %v3870 = vld [vmem:[%s3854 + $0x78] sm:$0xff]
      %v3871 = vld [vmem:[%s3854 + $0x80] sm:$0xff]
      %v3872 = vld [vmem:[%s3854 + $0x88] sm:$0xff]
      %v3873 = vld [vmem:[%s3854 + $0x90] sm:$0xff]
      %v3874 = vld [vmem:[%s3854 + $0x98] sm:$0xff]
      %v3875 = vld [vmem:[%s3854 + $0xa0] sm:$0xff]
      %v3876 = vld [vmem:[%s3854 + $0xa8] sm:$0xff]
      %v3877 = vld [vmem:[%s3854 + $0xb0] sm:$0xff]
      %v3878 = vld [vmem:[%s3854 + $0xb8] sm:$0xff]
      %v3879 = vld [vmem:[%s3854 + $0xc0] sm:$0xff]
      %v3880 = vld [vmem:[%s3854 + $0xc8] sm:$0xff]
      %v3881 = vld [vmem:[%s3854 + $0xd0] sm:$0xff]
      %v3882 = vld [vmem:[%s3854 + $0xd8] sm:$0xff]
      %v3883 = vld [vmem:[%s3854 + $0xe0] sm:$0xff]
      %v3884 = vld [vmem:[%s3854 + $0xe8] sm:$0xff]
      %v3885 = vld [vmem:[%s3854 + $0xf0] sm:$0xff]
      %v3886 = vld [vmem:[%s3854 + $0xf8] sm:$0xff]
      %3919 = vrot.lane.b32.xlu0 %v3855, 32
      %v3920 = vpop.permute.xlu0 %3919
      %3921 = vrot.lane.b32.xlu0 %v3856, 32
      %v3922 = vpop.permute.xlu0 %3921
      %3923 = vrot.lane.b32.xlu0 %v3857, 32
      %v3924 = vpop.permute.xlu0 %3923
      %3925 = vrot.lane.b32.xlu0 %v3858, 32
      %v3926 = vpop.permute.xlu0 %3925
      %3927 = vrot.lane.b32.xlu0 %v3859, 32
      %v3928 = vpop.permute.xlu0 %3927
      %3929 = vrot.lane.b32.xlu0 %v3860, 32
      %v3930 = vpop.permute.xlu0 %3929
      %3931 = vrot.lane.b32.xlu0 %v3861, 32
      %v3932 = vpop.permute.xlu0 %3931
      %3933 = vrot.lane.b32.xlu0 %v3862, 32
      %v3934 = vpop.permute.xlu0 %3933
      %3935 = vrot.lane.b32.xlu0 %v3863, 32
      %v3936 = vpop.permute.xlu0 %3935
      %3937 = vrot.lane.b32.xlu0 %v3864, 32
      %v3938 = vpop.permute.xlu0 %3937
      %3939 = vrot.lane.b32.xlu0 %v3865, 32
      %v3940 = vpop.permute.xlu0 %3939
      %3941 = vrot.lane.b32.xlu0 %v3866, 32
      %v3942 = vpop.permute.xlu0 %3941
      %3943 = vrot.lane.b32.xlu0 %v3867, 32
      %v3944 = vpop.permute.xlu0 %3943
      %3945 = vrot.lane.b32.xlu0 %v3868, 32
      %v3946 = vpop.permute.xlu0 %3945
      %3947 = vrot.lane.b32.xlu0 %v3869, 32
      %v3948 = vpop.permute.xlu0 %3947
      %3949 = vrot.lane.b32.xlu0 %v3870, 32
      %v3950 = vpop.permute.xlu0 %3949
      %3951 = vrot.lane.b32.xlu0 %v3871, 32
      %v3952 = vpop.permute.xlu0 %3951
      %3953 = vrot.lane.b32.xlu0 %v3872, 32
      %v3954 = vpop.permute.xlu0 %3953
      %3955 = vrot.lane.b32.xlu0 %v3873, 32
      %v3956 = vpop.permute.xlu0 %3955
      %3957 = vrot.lane.b32.xlu0 %v3874, 32
      %v3958 = vpop.permute.xlu0 %3957
      %3959 = vrot.lane.b32.xlu0 %v3875, 32
      %v3960 = vpop.permute.xlu0 %3959
      %3961 = vrot.lane.b32.xlu0 %v3876, 32
      %v3962 = vpop.permute.xlu0 %3961
      %3963 = vrot.lane.b32.xlu0 %v3877, 32
      %v3964 = vpop.permute.xlu0 %3963
      %3965 = vrot.lane.b32.xlu0 %v3878, 32
      %v3966 = vpop.permute.xlu0 %3965
      %3967 = vrot.lane.b32.xlu0 %v3879, 32
      %v3968 = vpop.permute.xlu0 %3967
      %3969 = vrot.lane.b32.xlu0 %v3880, 32
      %v3970 = vpop.permute.xlu0 %3969
      %3971 = vrot.lane.b32.xlu0 %v3881, 32
      %v3972 = vpop.permute.xlu0 %3971
      %3973 = vrot.lane.b32.xlu0 %v3882, 32
      %v3974 = vpop.permute.xlu0 %3973
      %3975 = vrot.lane.b32.xlu0 %v3883, 32
      %v3976 = vpop.permute.xlu0 %3975
      %3977 = vrot.lane.b32.xlu0 %v3884, 32
      %v3978 = vpop.permute.xlu0 %3977
      %3979 = vrot.lane.b32.xlu0 %v3885, 32
      %v3980 = vpop.permute.xlu0 %3979
      %3981 = vrot.lane.b32.xlu0 %v3886, 32
      %v3982 = vpop.permute.xlu0 %3981
      %4015 = vst.msk [vmem:[#allocation2 + $0x8] sm:$0xff] %vm1027, %v3920
      %4016 = vst.msk [vmem:[#allocation2 + $0x18] sm:$0xff] %vm1027, %v3922
      %4017 = vst.msk [vmem:[#allocation2 + $0x28] sm:$0xff] %vm1027, %v3924
      %4018 = vst.msk [vmem:[#allocation2 + $0x38] sm:$0xff] %vm1027, %v3926
      %4019 = vst.msk [vmem:[#allocation2 + $0x48] sm:$0xff] %vm1027, %v3928
      %4020 = vst.msk [vmem:[#allocation2 + $0x58] sm:$0xff] %vm1027, %v3930
      %4021 = vst.msk [vmem:[#allocation2 + $0x68] sm:$0xff] %vm1027, %v3932
      %4022 = vst.msk [vmem:[#allocation2 + $0x78] sm:$0xff] %vm1027, %v3934
      %4023 = vst.msk [vmem:[#allocation2 + $0x88] sm:$0xff] %vm1027, %v3936
      %4024 = vst.msk [vmem:[#allocation2 + $0x98] sm:$0xff] %vm1027, %v3938
      %4025 = vst.msk [vmem:[#allocation2 + $0xa8] sm:$0xff] %vm1027, %v3940
      %4026 = vst.msk [vmem:[#allocation2 + $0xb8] sm:$0xff] %vm1027, %v3942
      %4027 = vst.msk [vmem:[#allocation2 + $0xc8] sm:$0xff] %vm1027, %v3944
      %4028 = vst.msk [vmem:[#allocation2 + $0xd8] sm:$0xff] %vm1027, %v3946
      %4029 = vst.msk [vmem:[#allocation2 + $0xe8] sm:$0xff] %vm1027, %v3948
      %4030 = vst.msk [vmem:[#allocation2 + $0xf8] sm:$0xff] %vm1027, %v3950
      %4031 = vst.msk [vmem:[#allocation2 + $0x108] sm:$0xff] %vm1027, %v3952
      %4032 = vst.msk [vmem:[#allocation2 + $0x118] sm:$0xff] %vm1027, %v3954
      %4033 = vst.msk [vmem:[#allocation2 + $0x128] sm:$0xff] %vm1027, %v3956
      %4034 = vst.msk [vmem:[#allocation2 + $0x138] sm:$0xff] %vm1027, %v3958
      %4035 = vst.msk [vmem:[#allocation2 + $0x148] sm:$0xff] %vm1027, %v3960
      %4036 = vst.msk [vmem:[#allocation2 + $0x158] sm:$0xff] %vm1027, %v3962
      %4037 = vst.msk [vmem:[#allocation2 + $0x168] sm:$0xff] %vm1027, %v3964
      %4038 = vst.msk [vmem:[#allocation2 + $0x178] sm:$0xff] %vm1027, %v3966
      %4039 = vst.msk [vmem:[#allocation2 + $0x188] sm:$0xff] %vm1027, %v3968
      %4040 = vst.msk [vmem:[#allocation2 + $0x198] sm:$0xff] %vm1027, %v3970
      %4041 = vst.msk [vmem:[#allocation2 + $0x1a8] sm:$0xff] %vm1027, %v3972
      %4042 = vst.msk [vmem:[#allocation2 + $0x1b8] sm:$0xff] %vm1027, %v3974
      %4043 = vst.msk [vmem:[#allocation2 + $0x1c8] sm:$0xff] %vm1027, %v3976
      %4044 = vst.msk [vmem:[#allocation2 + $0x1d8] sm:$0xff] %vm1027, %v3978
      %4045 = vst.msk [vmem:[#allocation2 + $0x1e8] sm:$0xff] %vm1027, %v3980
      %4046 = vst.msk [vmem:[#allocation2 + $0x1f8] sm:$0xff] %vm1027, %v3982
      %s4047 = sadd.s32 %s213, 210
      %s4048 = scalar_lea.vmem %s0, %s4047
      %v4049 = vld [vmem:[%s4048] sm:$0xff]
      %v4050 = vld [vmem:[%s4048 + $0x8] sm:$0xff]
      %v4051 = vld [vmem:[%s4048 + $0x10] sm:$0xff]
      %v4052 = vld [vmem:[%s4048 + $0x18] sm:$0xff]
      %v4053 = vld [vmem:[%s4048 + $0x20] sm:$0xff]
      %v4054 = vld [vmem:[%s4048 + $0x28] sm:$0xff]
      %v4055 = vld [vmem:[%s4048 + $0x30] sm:$0xff]
      %v4056 = vld [vmem:[%s4048 + $0x38] sm:$0xff]
      %v4057 = vld [vmem:[%s4048 + $0x40] sm:$0xff]
      %v4058 = vld [vmem:[%s4048 + $0x48] sm:$0xff]
      %v4059 = vld [vmem:[%s4048 + $0x50] sm:$0xff]
      %v4060 = vld [vmem:[%s4048 + $0x58] sm:$0xff]
      %v4061 = vld [vmem:[%s4048 + $0x60] sm:$0xff]
      %v4062 = vld [vmem:[%s4048 + $0x68] sm:$0xff]
      %v4063 = vld [vmem:[%s4048 + $0x70] sm:$0xff]
      %v4064 = vld [vmem:[%s4048 + $0x78] sm:$0xff]
      %v4065 = vld [vmem:[%s4048 + $0x80] sm:$0xff]
      %v4066 = vld [vmem:[%s4048 + $0x88] sm:$0xff]
      %v4067 = vld [vmem:[%s4048 + $0x90] sm:$0xff]
      %v4068 = vld [vmem:[%s4048 + $0x98] sm:$0xff]
      %v4069 = vld [vmem:[%s4048 + $0xa0] sm:$0xff]
      %v4070 = vld [vmem:[%s4048 + $0xa8] sm:$0xff]
      %v4071 = vld [vmem:[%s4048 + $0xb0] sm:$0xff]
      %v4072 = vld [vmem:[%s4048 + $0xb8] sm:$0xff]
      %v4073 = vld [vmem:[%s4048 + $0xc0] sm:$0xff]
      %v4074 = vld [vmem:[%s4048 + $0xc8] sm:$0xff]
      %v4075 = vld [vmem:[%s4048 + $0xd0] sm:$0xff]
      %v4076 = vld [vmem:[%s4048 + $0xd8] sm:$0xff]
      %v4077 = vld [vmem:[%s4048 + $0xe0] sm:$0xff]
      %v4078 = vld [vmem:[%s4048 + $0xe8] sm:$0xff]
      %v4079 = vld [vmem:[%s4048 + $0xf0] sm:$0xff]
      %v4080 = vld [vmem:[%s4048 + $0xf8] sm:$0xff]
      %4113 = vrot.lane.b32.xlu0 %v4049, 40
      %v4114 = vpop.permute.xlu0 %4113
      %4115 = vrot.lane.b32.xlu0 %v4050, 40
      %v4116 = vpop.permute.xlu0 %4115
      %4117 = vrot.lane.b32.xlu0 %v4051, 40
      %v4118 = vpop.permute.xlu0 %4117
      %4119 = vrot.lane.b32.xlu0 %v4052, 40
      %v4120 = vpop.permute.xlu0 %4119
      %4121 = vrot.lane.b32.xlu0 %v4053, 40
      %v4122 = vpop.permute.xlu0 %4121
      %4123 = vrot.lane.b32.xlu0 %v4054, 40
      %v4124 = vpop.permute.xlu0 %4123
      %4125 = vrot.lane.b32.xlu0 %v4055, 40
      %v4126 = vpop.permute.xlu0 %4125
      %4127 = vrot.lane.b32.xlu0 %v4056, 40
      %v4128 = vpop.permute.xlu0 %4127
      %4129 = vrot.lane.b32.xlu0 %v4057, 40
      %v4130 = vpop.permute.xlu0 %4129
      %4131 = vrot.lane.b32.xlu0 %v4058, 40
      %v4132 = vpop.permute.xlu0 %4131
      %4133 = vrot.lane.b32.xlu0 %v4059, 40
      %v4134 = vpop.permute.xlu0 %4133
      %4135 = vrot.lane.b32.xlu0 %v4060, 40
      %v4136 = vpop.permute.xlu0 %4135
      %4137 = vrot.lane.b32.xlu0 %v4061, 40
      %v4138 = vpop.permute.xlu0 %4137
      %4139 = vrot.lane.b32.xlu0 %v4062, 40
      %v4140 = vpop.permute.xlu0 %4139
      %4141 = vrot.lane.b32.xlu0 %v4063, 40
      %v4142 = vpop.permute.xlu0 %4141
      %4143 = vrot.lane.b32.xlu0 %v4064, 40
      %v4144 = vpop.permute.xlu0 %4143
      %4145 = vrot.lane.b32.xlu0 %v4065, 40
      %v4146 = vpop.permute.xlu0 %4145
      %4147 = vrot.lane.b32.xlu0 %v4066, 40
      %v4148 = vpop.permute.xlu0 %4147
      %4149 = vrot.lane.b32.xlu0 %v4067, 40
      %v4150 = vpop.permute.xlu0 %4149
      %4151 = vrot.lane.b32.xlu0 %v4068, 40
      %v4152 = vpop.permute.xlu0 %4151
      %4153 = vrot.lane.b32.xlu0 %v4069, 40
      %v4154 = vpop.permute.xlu0 %4153
      %4155 = vrot.lane.b32.xlu0 %v4070, 40
      %v4156 = vpop.permute.xlu0 %4155
      %4157 = vrot.lane.b32.xlu0 %v4071, 40
      %v4158 = vpop.permute.xlu0 %4157
      %4159 = vrot.lane.b32.xlu0 %v4072, 40
      %v4160 = vpop.permute.xlu0 %4159
      %4161 = vrot.lane.b32.xlu0 %v4073, 40
      %v4162 = vpop.permute.xlu0 %4161
      %4163 = vrot.lane.b32.xlu0 %v4074, 40
      %v4164 = vpop.permute.xlu0 %4163
      %4165 = vrot.lane.b32.xlu0 %v4075, 40
      %v4166 = vpop.permute.xlu0 %4165
      %4167 = vrot.lane.b32.xlu0 %v4076, 40
      %v4168 = vpop.permute.xlu0 %4167
      %4169 = vrot.lane.b32.xlu0 %v4077, 40
      %v4170 = vpop.permute.xlu0 %4169
      %4171 = vrot.lane.b32.xlu0 %v4078, 40
      %v4172 = vpop.permute.xlu0 %4171
      %4173 = vrot.lane.b32.xlu0 %v4079, 40
      %v4174 = vpop.permute.xlu0 %4173
      %4175 = vrot.lane.b32.xlu0 %v4080, 40
      %v4176 = vpop.permute.xlu0 %4175
      %4209 = vst.msk [vmem:[#allocation2 + $0x8] sm:$0xff] %vm1222, %v4114
      %4210 = vst.msk [vmem:[#allocation2 + $0x18] sm:$0xff] %vm1222, %v4116
      %4211 = vst.msk [vmem:[#allocation2 + $0x28] sm:$0xff] %vm1222, %v4118
      %4212 = vst.msk [vmem:[#allocation2 + $0x38] sm:$0xff] %vm1222, %v4120
      %4213 = vst.msk [vmem:[#allocation2 + $0x48] sm:$0xff] %vm1222, %v4122
      %4214 = vst.msk [vmem:[#allocation2 + $0x58] sm:$0xff] %vm1222, %v4124
      %4215 = vst.msk [vmem:[#allocation2 + $0x68] sm:$0xff] %vm1222, %v4126
      %4216 = vst.msk [vmem:[#allocation2 + $0x78] sm:$0xff] %vm1222, %v4128
      %4217 = vst.msk [vmem:[#allocation2 + $0x88] sm:$0xff] %vm1222, %v4130
      %4218 = vst.msk [vmem:[#allocation2 + $0x98] sm:$0xff] %vm1222, %v4132
      %4219 = vst.msk [vmem:[#allocation2 + $0xa8] sm:$0xff] %vm1222, %v4134
      %4220 = vst.msk [vmem:[#allocation2 + $0xb8] sm:$0xff] %vm1222, %v4136
      %4221 = vst.msk [vmem:[#allocation2 + $0xc8] sm:$0xff] %vm1222, %v4138
      %4222 = vst.msk [vmem:[#allocation2 + $0xd8] sm:$0xff] %vm1222, %v4140
      %4223 = vst.msk [vmem:[#allocation2 + $0xe8] sm:$0xff] %vm1222, %v4142
      %4224 = vst.msk [vmem:[#allocation2 + $0xf8] sm:$0xff] %vm1222, %v4144
      %4225 = vst.msk [vmem:[#allocation2 + $0x108] sm:$0xff] %vm1222, %v4146
      %4226 = vst.msk [vmem:[#allocation2 + $0x118] sm:$0xff] %vm1222, %v4148
      %4227 = vst.msk [vmem:[#allocation2 + $0x128] sm:$0xff] %vm1222, %v4150
      %4228 = vst.msk [vmem:[#allocation2 + $0x138] sm:$0xff] %vm1222, %v4152
      %4229 = vst.msk [vmem:[#allocation2 + $0x148] sm:$0xff] %vm1222, %v4154
      %4230 = vst.msk [vmem:[#allocation2 + $0x158] sm:$0xff] %vm1222, %v4156
      %4231 = vst.msk [vmem:[#allocation2 + $0x168] sm:$0xff] %vm1222, %v4158
      %4232 = vst.msk [vmem:[#allocation2 + $0x178] sm:$0xff] %vm1222, %v4160
      %4233 = vst.msk [vmem:[#allocation2 + $0x188] sm:$0xff] %vm1222, %v4162
      %4234 = vst.msk [vmem:[#allocation2 + $0x198] sm:$0xff] %vm1222, %v4164
      %4235 = vst.msk [vmem:[#allocation2 + $0x1a8] sm:$0xff] %vm1222, %v4166
      %4236 = vst.msk [vmem:[#allocation2 + $0x1b8] sm:$0xff] %vm1222, %v4168
      %4237 = vst.msk [vmem:[#allocation2 + $0x1c8] sm:$0xff] %vm1222, %v4170
      %4238 = vst.msk [vmem:[#allocation2 + $0x1d8] sm:$0xff] %vm1222, %v4172
      %4239 = vst.msk [vmem:[#allocation2 + $0x1e8] sm:$0xff] %vm1222, %v4174
      %4240 = vst.msk [vmem:[#allocation2 + $0x1f8] sm:$0xff] %vm1222, %v4176
      %s4241 = sadd.s32 %s213, 211
      %s4242 = scalar_lea.vmem %s0, %s4241
      %v4243 = vld [vmem:[%s4242] sm:$0xff]
      %v4244 = vld [vmem:[%s4242 + $0x8] sm:$0xff]
      %v4245 = vld [vmem:[%s4242 + $0x10] sm:$0xff]
      %v4246 = vld [vmem:[%s4242 + $0x18] sm:$0xff]
      %v4247 = vld [vmem:[%s4242 + $0x20] sm:$0xff]
      %v4248 = vld [vmem:[%s4242 + $0x28] sm:$0xff]
      %v4249 = vld [vmem:[%s4242 + $0x30] sm:$0xff]
      %v4250 = vld [vmem:[%s4242 + $0x38] sm:$0xff]
      %v4251 = vld [vmem:[%s4242 + $0x40] sm:$0xff]
      %v4252 = vld [vmem:[%s4242 + $0x48] sm:$0xff]
      %v4253 = vld [vmem:[%s4242 + $0x50] sm:$0xff]
      %v4254 = vld [vmem:[%s4242 + $0x58] sm:$0xff]
      %v4255 = vld [vmem:[%s4242 + $0x60] sm:$0xff]
      %v4256 = vld [vmem:[%s4242 + $0x68] sm:$0xff]
      %v4257 = vld [vmem:[%s4242 + $0x70] sm:$0xff]
      %v4258 = vld [vmem:[%s4242 + $0x78] sm:$0xff]
      %v4259 = vld [vmem:[%s4242 + $0x80] sm:$0xff]
      %v4260 = vld [vmem:[%s4242 + $0x88] sm:$0xff]
      %v4261 = vld [vmem:[%s4242 + $0x90] sm:$0xff]
      %v4262 = vld [vmem:[%s4242 + $0x98] sm:$0xff]
      %v4263 = vld [vmem:[%s4242 + $0xa0] sm:$0xff]
      %v4264 = vld [vmem:[%s4242 + $0xa8] sm:$0xff]
      %v4265 = vld [vmem:[%s4242 + $0xb0] sm:$0xff]
      %v4266 = vld [vmem:[%s4242 + $0xb8] sm:$0xff]
      %v4267 = vld [vmem:[%s4242 + $0xc0] sm:$0xff]
      %v4268 = vld [vmem:[%s4242 + $0xc8] sm:$0xff]
      %v4269 = vld [vmem:[%s4242 + $0xd0] sm:$0xff]
      %v4270 = vld [vmem:[%s4242 + $0xd8] sm:$0xff]
      %v4271 = vld [vmem:[%s4242 + $0xe0] sm:$0xff]
      %v4272 = vld [vmem:[%s4242 + $0xe8] sm:$0xff]
      %v4273 = vld [vmem:[%s4242 + $0xf0] sm:$0xff]
      %v4274 = vld [vmem:[%s4242 + $0xf8] sm:$0xff]
      %4307 = vrot.lane.b32.xlu0 %v4243, 48
      %v4308 = vpop.permute.xlu0 %4307
      %4309 = vrot.lane.b32.xlu0 %v4244, 48
      %v4310 = vpop.permute.xlu0 %4309
      %4311 = vrot.lane.b32.xlu0 %v4245, 48
      %v4312 = vpop.permute.xlu0 %4311
      %4313 = vrot.lane.b32.xlu0 %v4246, 48
      %v4314 = vpop.permute.xlu0 %4313
      %4315 = vrot.lane.b32.xlu0 %v4247, 48
      %v4316 = vpop.permute.xlu0 %4315
      %4317 = vrot.lane.b32.xlu0 %v4248, 48
      %v4318 = vpop.permute.xlu0 %4317
      %4319 = vrot.lane.b32.xlu0 %v4249, 48
      %v4320 = vpop.permute.xlu0 %4319
      %4321 = vrot.lane.b32.xlu0 %v4250, 48
      %v4322 = vpop.permute.xlu0 %4321
      %4323 = vrot.lane.b32.xlu0 %v4251, 48
      %v4324 = vpop.permute.xlu0 %4323
      %4325 = vrot.lane.b32.xlu0 %v4252, 48
      %v4326 = vpop.permute.xlu0 %4325
      %4327 = vrot.lane.b32.xlu0 %v4253, 48
      %v4328 = vpop.permute.xlu0 %4327
      %4329 = vrot.lane.b32.xlu0 %v4254, 48
      %v4330 = vpop.permute.xlu0 %4329
      %4331 = vrot.lane.b32.xlu0 %v4255, 48
      %v4332 = vpop.permute.xlu0 %4331
      %4333 = vrot.lane.b32.xlu0 %v4256, 48
      %v4334 = vpop.permute.xlu0 %4333
      %4335 = vrot.lane.b32.xlu0 %v4257, 48
      %v4336 = vpop.permute.xlu0 %4335
      %4337 = vrot.lane.b32.xlu0 %v4258, 48
      %v4338 = vpop.permute.xlu0 %4337
      %4339 = vrot.lane.b32.xlu0 %v4259, 48
      %v4340 = vpop.permute.xlu0 %4339
      %4341 = vrot.lane.b32.xlu0 %v4260, 48
      %v4342 = vpop.permute.xlu0 %4341
      %4343 = vrot.lane.b32.xlu0 %v4261, 48
      %v4344 = vpop.permute.xlu0 %4343
      %4345 = vrot.lane.b32.xlu0 %v4262, 48
      %v4346 = vpop.permute.xlu0 %4345
      %4347 = vrot.lane.b32.xlu0 %v4263, 48
      %v4348 = vpop.permute.xlu0 %4347
      %4349 = vrot.lane.b32.xlu0 %v4264, 48
      %v4350 = vpop.permute.xlu0 %4349
      %4351 = vrot.lane.b32.xlu0 %v4265, 48
      %v4352 = vpop.permute.xlu0 %4351
      %4353 = vrot.lane.b32.xlu0 %v4266, 48
      %v4354 = vpop.permute.xlu0 %4353
      %4355 = vrot.lane.b32.xlu0 %v4267, 48
      %v4356 = vpop.permute.xlu0 %4355
      %4357 = vrot.lane.b32.xlu0 %v4268, 48
      %v4358 = vpop.permute.xlu0 %4357
      %4359 = vrot.lane.b32.xlu0 %v4269, 48
      %v4360 = vpop.permute.xlu0 %4359
      %4361 = vrot.lane.b32.xlu0 %v4270, 48
      %v4362 = vpop.permute.xlu0 %4361
      %4363 = vrot.lane.b32.xlu0 %v4271, 48
      %v4364 = vpop.permute.xlu0 %4363
      %4365 = vrot.lane.b32.xlu0 %v4272, 48
      %v4366 = vpop.permute.xlu0 %4365
      %4367 = vrot.lane.b32.xlu0 %v4273, 48
      %v4368 = vpop.permute.xlu0 %4367
      %4369 = vrot.lane.b32.xlu0 %v4274, 48
      %v4370 = vpop.permute.xlu0 %4369
      %4403 = vst.msk [vmem:[#allocation2 + $0x8] sm:$0xff] %vm1417, %v4308
      %4404 = vst.msk [vmem:[#allocation2 + $0x18] sm:$0xff] %vm1417, %v4310
      %4405 = vst.msk [vmem:[#allocation2 + $0x28] sm:$0xff] %vm1417, %v4312
      %4406 = vst.msk [vmem:[#allocation2 + $0x38] sm:$0xff] %vm1417, %v4314
      %4407 = vst.msk [vmem:[#allocation2 + $0x48] sm:$0xff] %vm1417, %v4316
      %4408 = vst.msk [vmem:[#allocation2 + $0x58] sm:$0xff] %vm1417, %v4318
      %4409 = vst.msk [vmem:[#allocation2 + $0x68] sm:$0xff] %vm1417, %v4320
      %4410 = vst.msk [vmem:[#allocation2 + $0x78] sm:$0xff] %vm1417, %v4322
      %4411 = vst.msk [vmem:[#allocation2 + $0x88] sm:$0xff] %vm1417, %v4324
      %4412 = vst.msk [vmem:[#allocation2 + $0x98] sm:$0xff] %vm1417, %v4326
      %4413 = vst.msk [vmem:[#allocation2 + $0xa8] sm:$0xff] %vm1417, %v4328
      %4414 = vst.msk [vmem:[#allocation2 + $0xb8] sm:$0xff] %vm1417, %v4330
      %4415 = vst.msk [vmem:[#allocation2 + $0xc8] sm:$0xff] %vm1417, %v4332
      %4416 = vst.msk [vmem:[#allocation2 + $0xd8] sm:$0xff] %vm1417, %v4334
      %4417 = vst.msk [vmem:[#allocation2 + $0xe8] sm:$0xff] %vm1417, %v4336
      %4418 = vst.msk [vmem:[#allocation2 + $0xf8] sm:$0xff] %vm1417, %v4338
      %4419 = vst.msk [vmem:[#allocation2 + $0x108] sm:$0xff] %vm1417, %v4340
      %4420 = vst.msk [vmem:[#allocation2 + $0x118] sm:$0xff] %vm1417, %v4342
      %4421 = vst.msk [vmem:[#allocation2 + $0x128] sm:$0xff] %vm1417, %v4344
      %4422 = vst.msk [vmem:[#allocation2 + $0x138] sm:$0xff] %vm1417, %v4346
      %4423 = vst.msk [vmem:[#allocation2 + $0x148] sm:$0xff] %vm1417, %v4348
      %4424 = vst.msk [vmem:[#allocation2 + $0x158] sm:$0xff] %vm1417, %v4350
      %4425 = vst.msk [vmem:[#allocation2 + $0x168] sm:$0xff] %vm1417, %v4352
      %4426 = vst.msk [vmem:[#allocation2 + $0x178] sm:$0xff] %vm1417, %v4354
      %4427 = vst.msk [vmem:[#allocation2 + $0x188] sm:$0xff] %vm1417, %v4356
      %4428 = vst.msk [vmem:[#allocation2 + $0x198] sm:$0xff] %vm1417, %v4358
      %4429 = vst.msk [vmem:[#allocation2 + $0x1a8] sm:$0xff] %vm1417, %v4360
      %4430 = vst.msk [vmem:[#allocation2 + $0x1b8] sm:$0xff] %vm1417, %v4362
      %4431 = vst.msk [vmem:[#allocation2 + $0x1c8] sm:$0xff] %vm1417, %v4364
      %4432 = vst.msk [vmem:[#allocation2 + $0x1d8] sm:$0xff] %vm1417, %v4366
      %4433 = vst.msk [vmem:[#allocation2 + $0x1e8] sm:$0xff] %vm1417, %v4368
      %4434 = vst.msk [vmem:[#allocation2 + $0x1f8] sm:$0xff] %vm1417, %v4370
      %s4435 = sadd.s32 %s213, 212
      %s4436 = scalar_lea.vmem %s0, %s4435
      %v4437 = vld [vmem:[%s4436] sm:$0xff]
      %v4438 = vld [vmem:[%s4436 + $0x8] sm:$0xff]
      %v4439 = vld [vmem:[%s4436 + $0x10] sm:$0xff]
      %v4440 = vld [vmem:[%s4436 + $0x18] sm:$0xff]
      %v4441 = vld [vmem:[%s4436 + $0x20] sm:$0xff]
      %v4442 = vld [vmem:[%s4436 + $0x28] sm:$0xff]
      %v4443 = vld [vmem:[%s4436 + $0x30] sm:$0xff]
      %v4444 = vld [vmem:[%s4436 + $0x38] sm:$0xff]
      %v4445 = vld [vmem:[%s4436 + $0x40] sm:$0xff]
      %v4446 = vld [vmem:[%s4436 + $0x48] sm:$0xff]
      %v4447 = vld [vmem:[%s4436 + $0x50] sm:$0xff]
      %v4448 = vld [vmem:[%s4436 + $0x58] sm:$0xff]
      %v4449 = vld [vmem:[%s4436 + $0x60] sm:$0xff]
      %v4450 = vld [vmem:[%s4436 + $0x68] sm:$0xff]
      %v4451 = vld [vmem:[%s4436 + $0x70] sm:$0xff]
      %v4452 = vld [vmem:[%s4436 + $0x78] sm:$0xff]
      %v4453 = vld [vmem:[%s4436 + $0x80] sm:$0xff]
      %v4454 = vld [vmem:[%s4436 + $0x88] sm:$0xff]
      %v4455 = vld [vmem:[%s4436 + $0x90] sm:$0xff]
      %v4456 = vld [vmem:[%s4436 + $0x98] sm:$0xff]
      %v4457 = vld [vmem:[%s4436 + $0xa0] sm:$0xff]
      %v4458 = vld [vmem:[%s4436 + $0xa8] sm:$0xff]
      %v4459 = vld [vmem:[%s4436 + $0xb0] sm:$0xff]
      %v4460 = vld [vmem:[%s4436 + $0xb8] sm:$0xff]
      %v4461 = vld [vmem:[%s4436 + $0xc0] sm:$0xff]
      %v4462 = vld [vmem:[%s4436 + $0xc8] sm:$0xff]
      %v4463 = vld [vmem:[%s4436 + $0xd0] sm:$0xff]
      %v4464 = vld [vmem:[%s4436 + $0xd8] sm:$0xff]
      %v4465 = vld [vmem:[%s4436 + $0xe0] sm:$0xff]
      %v4466 = vld [vmem:[%s4436 + $0xe8] sm:$0xff]
      %v4467 = vld [vmem:[%s4436 + $0xf0] sm:$0xff]
      %v4468 = vld [vmem:[%s4436 + $0xf8] sm:$0xff]
      %4501 = vrot.lane.b32.xlu0 %v4437, 56
      %v4502 = vpop.permute.xlu0 %4501
      %4503 = vrot.lane.b32.xlu0 %v4438, 56
      %v4504 = vpop.permute.xlu0 %4503
      %4505 = vrot.lane.b32.xlu0 %v4439, 56
      %v4506 = vpop.permute.xlu0 %4505
      %4507 = vrot.lane.b32.xlu0 %v4440, 56
      %v4508 = vpop.permute.xlu0 %4507
      %4509 = vrot.lane.b32.xlu0 %v4441, 56
      %v4510 = vpop.permute.xlu0 %4509
      %4511 = vrot.lane.b32.xlu0 %v4442, 56
      %v4512 = vpop.permute.xlu0 %4511
      %4513 = vrot.lane.b32.xlu0 %v4443, 56
      %v4514 = vpop.permute.xlu0 %4513
      %4515 = vrot.lane.b32.xlu0 %v4444, 56
      %v4516 = vpop.permute.xlu0 %4515
      %4517 = vrot.lane.b32.xlu0 %v4445, 56
      %v4518 = vpop.permute.xlu0 %4517
      %4519 = vrot.lane.b32.xlu0 %v4446, 56
      %v4520 = vpop.permute.xlu0 %4519
      %4521 = vrot.lane.b32.xlu0 %v4447, 56
      %v4522 = vpop.permute.xlu0 %4521
      %4523 = vrot.lane.b32.xlu0 %v4448, 56
      %v4524 = vpop.permute.xlu0 %4523
      %4525 = vrot.lane.b32.xlu0 %v4449, 56
      %v4526 = vpop.permute.xlu0 %4525
      %4527 = vrot.lane.b32.xlu0 %v4450, 56
      %v4528 = vpop.permute.xlu0 %4527
      %4529 = vrot.lane.b32.xlu0 %v4451, 56
      %v4530 = vpop.permute.xlu0 %4529
      %4531 = vrot.lane.b32.xlu0 %v4452, 56
      %v4532 = vpop.permute.xlu0 %4531
      %4533 = vrot.lane.b32.xlu0 %v4453, 56
      %v4534 = vpop.permute.xlu0 %4533
      %4535 = vrot.lane.b32.xlu0 %v4454, 56
      %v4536 = vpop.permute.xlu0 %4535
      %4537 = vrot.lane.b32.xlu0 %v4455, 56
      %v4538 = vpop.permute.xlu0 %4537
      %4539 = vrot.lane.b32.xlu0 %v4456, 56
      %v4540 = vpop.permute.xlu0 %4539
      %4541 = vrot.lane.b32.xlu0 %v4457, 56
      %v4542 = vpop.permute.xlu0 %4541
      %4543 = vrot.lane.b32.xlu0 %v4458, 56
      %v4544 = vpop.permute.xlu0 %4543
      %4545 = vrot.lane.b32.xlu0 %v4459, 56
      %v4546 = vpop.permute.xlu0 %4545
      %4547 = vrot.lane.b32.xlu0 %v4460, 56
      %v4548 = vpop.permute.xlu0 %4547
      %4549 = vrot.lane.b32.xlu0 %v4461, 56
      %v4550 = vpop.permute.xlu0 %4549
      %4551 = vrot.lane.b32.xlu0 %v4462, 56
      %v4552 = vpop.permute.xlu0 %4551
      %4553 = vrot.lane.b32.xlu0 %v4463, 56
      %v4554 = vpop.permute.xlu0 %4553
      %4555 = vrot.lane.b32.xlu0 %v4464, 56
      %v4556 = vpop.permute.xlu0 %4555
      %4557 = vrot.lane.b32.xlu0 %v4465, 56
      %v4558 = vpop.permute.xlu0 %4557
      %4559 = vrot.lane.b32.xlu0 %v4466, 56
      %v4560 = vpop.permute.xlu0 %4559
      %4561 = vrot.lane.b32.xlu0 %v4467, 56
      %v4562 = vpop.permute.xlu0 %4561
      %4563 = vrot.lane.b32.xlu0 %v4468, 56
      %v4564 = vpop.permute.xlu0 %4563
      %4597 = vst.msk [vmem:[#allocation2 + $0x8] sm:$0xff] %vm1612, %v4502
      %4598 = vst.msk [vmem:[#allocation2 + $0x18] sm:$0xff] %vm1612, %v4504
      %4599 = vst.msk [vmem:[#allocation2 + $0x28] sm:$0xff] %vm1612, %v4506
      %4600 = vst.msk [vmem:[#allocation2 + $0x38] sm:$0xff] %vm1612, %v4508
      %4601 = vst.msk [vmem:[#allocation2 + $0x48] sm:$0xff] %vm1612, %v4510
      %4602 = vst.msk [vmem:[#allocation2 + $0x58] sm:$0xff] %vm1612, %v4512
      %4603 = vst.msk [vmem:[#allocation2 + $0x68] sm:$0xff] %vm1612, %v4514
      %4604 = vst.msk [vmem:[#allocation2 + $0x78] sm:$0xff] %vm1612, %v4516
      %4605 = vst.msk [vmem:[#allocation2 + $0x88] sm:$0xff] %vm1612, %v4518
      %4606 = vst.msk [vmem:[#allocation2 + $0x98] sm:$0xff] %vm1612, %v4520
      %4607 = vst.msk [vmem:[#allocation2 + $0xa8] sm:$0xff] %vm1612, %v4522
      %4608 = vst.msk [vmem:[#allocation2 + $0xb8] sm:$0xff] %vm1612, %v4524
      %4609 = vst.msk [vmem:[#allocation2 + $0xc8] sm:$0xff] %vm1612, %v4526
      %4610 = vst.msk [vmem:[#allocation2 + $0xd8] sm:$0xff] %vm1612, %v4528
      %4611 = vst.msk [vmem:[#allocation2 + $0xe8] sm:$0xff] %vm1612, %v4530
      %4612 = vst.msk [vmem:[#allocation2 + $0xf8] sm:$0xff] %vm1612, %v4532
      %4613 = vst.msk [vmem:[#allocation2 + $0x108] sm:$0xff] %vm1612, %v4534
      %4614 = vst.msk [vmem:[#allocation2 + $0x118] sm:$0xff] %vm1612, %v4536
      %4615 = vst.msk [vmem:[#allocation2 + $0x128] sm:$0xff] %vm1612, %v4538
      %4616 = vst.msk [vmem:[#allocation2 + $0x138] sm:$0xff] %vm1612, %v4540
      %4617 = vst.msk [vmem:[#allocation2 + $0x148] sm:$0xff] %vm1612, %v4542
      %4618 = vst.msk [vmem:[#allocation2 + $0x158] sm:$0xff] %vm1612, %v4544
      %4619 = vst.msk [vmem:[#allocation2 + $0x168] sm:$0xff] %vm1612, %v4546
      %4620 = vst.msk [vmem:[#allocation2 + $0x178] sm:$0xff] %vm1612, %v4548
      %4621 = vst.msk [vmem:[#allocation2 + $0x188] sm:$0xff] %vm1612, %v4550
      %4622 = vst.msk [vmem:[#allocation2 + $0x198] sm:$0xff] %vm1612, %v4552
      %4623 = vst.msk [vmem:[#allocation2 + $0x1a8] sm:$0xff] %vm1612, %v4554
      %4624 = vst.msk [vmem:[#allocation2 + $0x1b8] sm:$0xff] %vm1612, %v4556
      %4625 = vst.msk [vmem:[#allocation2 + $0x1c8] sm:$0xff] %vm1612, %v4558
      %4626 = vst.msk [vmem:[#allocation2 + $0x1d8] sm:$0xff] %vm1612, %v4560
      %4627 = vst.msk [vmem:[#allocation2 + $0x1e8] sm:$0xff] %vm1612, %v4562
      %4628 = vst.msk [vmem:[#allocation2 + $0x1f8] sm:$0xff] %vm1612, %v4564
      %s4629 = sadd.s32 %s213, 220
      %s4630 = scalar_lea.vmem %s0, %s4629
      %v4631 = vld [vmem:[%s4630] sm:$0xff]
      %v4632 = vld [vmem:[%s4630 + $0x8] sm:$0xff]
      %v4633 = vld [vmem:[%s4630 + $0x10] sm:$0xff]
      %v4634 = vld [vmem:[%s4630 + $0x18] sm:$0xff]
      %v4635 = vld [vmem:[%s4630 + $0x20] sm:$0xff]
      %v4636 = vld [vmem:[%s4630 + $0x28] sm:$0xff]
      %v4637 = vld [vmem:[%s4630 + $0x30] sm:$0xff]
      %v4638 = vld [vmem:[%s4630 + $0x38] sm:$0xff]
      %v4639 = vld [vmem:[%s4630 + $0x40] sm:$0xff]
      %v4640 = vld [vmem:[%s4630 + $0x48] sm:$0xff]
      %v4641 = vld [vmem:[%s4630 + $0x50] sm:$0xff]
      %v4642 = vld [vmem:[%s4630 + $0x58] sm:$0xff]
      %v4643 = vld [vmem:[%s4630 + $0x60] sm:$0xff]
      %v4644 = vld [vmem:[%s4630 + $0x68] sm:$0xff]
      %v4645 = vld [vmem:[%s4630 + $0x70] sm:$0xff]
      %v4646 = vld [vmem:[%s4630 + $0x78] sm:$0xff]
      %v4647 = vld [vmem:[%s4630 + $0x80] sm:$0xff]
      %v4648 = vld [vmem:[%s4630 + $0x88] sm:$0xff]
      %v4649 = vld [vmem:[%s4630 + $0x90] sm:$0xff]
      %v4650 = vld [vmem:[%s4630 + $0x98] sm:$0xff]
      %v4651 = vld [vmem:[%s4630 + $0xa0] sm:$0xff]
      %v4652 = vld [vmem:[%s4630 + $0xa8] sm:$0xff]
      %v4653 = vld [vmem:[%s4630 + $0xb0] sm:$0xff]
      %v4654 = vld [vmem:[%s4630 + $0xb8] sm:$0xff]
      %v4655 = vld [vmem:[%s4630 + $0xc0] sm:$0xff]
      %v4656 = vld [vmem:[%s4630 + $0xc8] sm:$0xff]
      %v4657 = vld [vmem:[%s4630 + $0xd0] sm:$0xff]
      %v4658 = vld [vmem:[%s4630 + $0xd8] sm:$0xff]
      %v4659 = vld [vmem:[%s4630 + $0xe0] sm:$0xff]
      %v4660 = vld [vmem:[%s4630 + $0xe8] sm:$0xff]
      %v4661 = vld [vmem:[%s4630 + $0xf0] sm:$0xff]
      %v4662 = vld [vmem:[%s4630 + $0xf8] sm:$0xff]
      %4695 = vrot.lane.b32.xlu0 %v4631, 64
      %v4696 = vpop.permute.xlu0 %4695
      %4697 = vrot.lane.b32.xlu0 %v4632, 64
      %v4698 = vpop.permute.xlu0 %4697
      %4699 = vrot.lane.b32.xlu0 %v4633, 64
      %v4700 = vpop.permute.xlu0 %4699
      %4701 = vrot.lane.b32.xlu0 %v4634, 64
      %v4702 = vpop.permute.xlu0 %4701
      %4703 = vrot.lane.b32.xlu0 %v4635, 64
      %v4704 = vpop.permute.xlu0 %4703
      %4705 = vrot.lane.b32.xlu0 %v4636, 64
      %v4706 = vpop.permute.xlu0 %4705
      %4707 = vrot.lane.b32.xlu0 %v4637, 64
      %v4708 = vpop.permute.xlu0 %4707
      %4709 = vrot.lane.b32.xlu0 %v4638, 64
      %v4710 = vpop.permute.xlu0 %4709
      %4711 = vrot.lane.b32.xlu0 %v4639, 64
      %v4712 = vpop.permute.xlu0 %4711
      %4713 = vrot.lane.b32.xlu0 %v4640, 64
      %v4714 = vpop.permute.xlu0 %4713
      %4715 = vrot.lane.b32.xlu0 %v4641, 64
      %v4716 = vpop.permute.xlu0 %4715
      %4717 = vrot.lane.b32.xlu0 %v4642, 64
      %v4718 = vpop.permute.xlu0 %4717
      %4719 = vrot.lane.b32.xlu0 %v4643, 64
      %v4720 = vpop.permute.xlu0 %4719
      %4721 = vrot.lane.b32.xlu0 %v4644, 64
      %v4722 = vpop.permute.xlu0 %4721
      %4723 = vrot.lane.b32.xlu0 %v4645, 64
      %v4724 = vpop.permute.xlu0 %4723
      %4725 = vrot.lane.b32.xlu0 %v4646, 64
      %v4726 = vpop.permute.xlu0 %4725
      %4727 = vrot.lane.b32.xlu0 %v4647, 64
      %v4728 = vpop.permute.xlu0 %4727
      %4729 = vrot.lane.b32.xlu0 %v4648, 64
      %v4730 = vpop.permute.xlu0 %4729
      %4731 = vrot.lane.b32.xlu0 %v4649, 64
      %v4732 = vpop.permute.xlu0 %4731
      %4733 = vrot.lane.b32.xlu0 %v4650, 64
      %v4734 = vpop.permute.xlu0 %4733
      %4735 = vrot.lane.b32.xlu0 %v4651, 64
      %v4736 = vpop.permute.xlu0 %4735
      %4737 = vrot.lane.b32.xlu0 %v4652, 64
      %v4738 = vpop.permute.xlu0 %4737
      %4739 = vrot.lane.b32.xlu0 %v4653, 64
      %v4740 = vpop.permute.xlu0 %4739
      %4741 = vrot.lane.b32.xlu0 %v4654, 64
      %v4742 = vpop.permute.xlu0 %4741
      %4743 = vrot.lane.b32.xlu0 %v4655, 64
      %v4744 = vpop.permute.xlu0 %4743
      %4745 = vrot.lane.b32.xlu0 %v4656, 64
      %v4746 = vpop.permute.xlu0 %4745
      %4747 = vrot.lane.b32.xlu0 %v4657, 64
      %v4748 = vpop.permute.xlu0 %4747
      %4749 = vrot.lane.b32.xlu0 %v4658, 64
      %v4750 = vpop.permute.xlu0 %4749
      %4751 = vrot.lane.b32.xlu0 %v4659, 64
      %v4752 = vpop.permute.xlu0 %4751
      %4753 = vrot.lane.b32.xlu0 %v4660, 64
      %v4754 = vpop.permute.xlu0 %4753
      %4755 = vrot.lane.b32.xlu0 %v4661, 64
      %v4756 = vpop.permute.xlu0 %4755
      %4757 = vrot.lane.b32.xlu0 %v4662, 64
      %v4758 = vpop.permute.xlu0 %4757
      %4791 = vst.msk [vmem:[#allocation2 + $0x8] sm:$0xff] %vm1807, %v4696
      %4792 = vst.msk [vmem:[#allocation2 + $0x18] sm:$0xff] %vm1807, %v4698
      %4793 = vst.msk [vmem:[#allocation2 + $0x28] sm:$0xff] %vm1807, %v4700
      %4794 = vst.msk [vmem:[#allocation2 + $0x38] sm:$0xff] %vm1807, %v4702
      %4795 = vst.msk [vmem:[#allocation2 + $0x48] sm:$0xff] %vm1807, %v4704
      %4796 = vst.msk [vmem:[#allocation2 + $0x58] sm:$0xff] %vm1807, %v4706
      %4797 = vst.msk [vmem:[#allocation2 + $0x68] sm:$0xff] %vm1807, %v4708
      %4798 = vst.msk [vmem:[#allocation2 + $0x78] sm:$0xff] %vm1807, %v4710
      %4799 = vst.msk [vmem:[#allocation2 + $0x88] sm:$0xff] %vm1807, %v4712
      %4800 = vst.msk [vmem:[#allocation2 + $0x98] sm:$0xff] %vm1807, %v4714
      %4801 = vst.msk [vmem:[#allocation2 + $0xa8] sm:$0xff] %vm1807, %v4716
      %4802 = vst.msk [vmem:[#allocation2 + $0xb8] sm:$0xff] %vm1807, %v4718
      %4803 = vst.msk [vmem:[#allocation2 + $0xc8] sm:$0xff] %vm1807, %v4720
      %4804 = vst.msk [vmem:[#allocation2 + $0xd8] sm:$0xff] %vm1807, %v4722
      %4805 = vst.msk [vmem:[#allocation2 + $0xe8] sm:$0xff] %vm1807, %v4724
      %4806 = vst.msk [vmem:[#allocation2 + $0xf8] sm:$0xff] %vm1807, %v4726
      %4807 = vst.msk [vmem:[#allocation2 + $0x108] sm:$0xff] %vm1807, %v4728
      %4808 = vst.msk [vmem:[#allocation2 + $0x118] sm:$0xff] %vm1807, %v4730
      %4809 = vst.msk [vmem:[#allocation2 + $0x128] sm:$0xff] %vm1807, %v4732
      %4810 = vst.msk [vmem:[#allocation2 + $0x138] sm:$0xff] %vm1807, %v4734
      %4811 = vst.msk [vmem:[#allocation2 + $0x148] sm:$0xff] %vm1807, %v4736
      %4812 = vst.msk [vmem:[#allocation2 + $0x158] sm:$0xff] %vm1807, %v4738
      %4813 = vst.msk [vmem:[#allocation2 + $0x168] sm:$0xff] %vm1807, %v4740
      %4814 = vst.msk [vmem:[#allocation2 + $0x178] sm:$0xff] %vm1807, %v4742
      %4815 = vst.msk [vmem:[#allocation2 + $0x188] sm:$0xff] %vm1807, %v4744
      %4816 = vst.msk [vmem:[#allocation2 + $0x198] sm:$0xff] %vm1807, %v4746
      %4817 = vst.msk [vmem:[#allocation2 + $0x1a8] sm:$0xff] %vm1807, %v4748
      %4818 = vst.msk [vmem:[#allocation2 + $0x1b8] sm:$0xff] %vm1807, %v4750
      %4819 = vst.msk [vmem:[#allocation2 + $0x1c8] sm:$0xff] %vm1807, %v4752
      %4820 = vst.msk [vmem:[#allocation2 + $0x1d8] sm:$0xff] %vm1807, %v4754
      %4821 = vst.msk [vmem:[#allocation2 + $0x1e8] sm:$0xff] %vm1807, %v4756
      %4822 = vst.msk [vmem:[#allocation2 + $0x1f8] sm:$0xff] %vm1807, %v4758
      %s4823 = sadd.s32 %s213, 221
      %s4824 = scalar_lea.vmem %s0, %s4823
      %v4825 = vld [vmem:[%s4824] sm:$0xff]
      %v4826 = vld [vmem:[%s4824 + $0x8] sm:$0xff]
      %v4827 = vld [vmem:[%s4824 + $0x10] sm:$0xff]
      %v4828 = vld [vmem:[%s4824 + $0x18] sm:$0xff]
      %v4829 = vld [vmem:[%s4824 + $0x20] sm:$0xff]
      %v4830 = vld [vmem:[%s4824 + $0x28] sm:$0xff]
      %v4831 = vld [vmem:[%s4824 + $0x30] sm:$0xff]
      %v4832 = vld [vmem:[%s4824 + $0x38] sm:$0xff]
      %v4833 = vld [vmem:[%s4824 + $0x40] sm:$0xff]
      %v4834 = vld [vmem:[%s4824 + $0x48] sm:$0xff]
      %v4835 = vld [vmem:[%s4824 + $0x50] sm:$0xff]
      %v4836 = vld [vmem:[%s4824 + $0x58] sm:$0xff]
      %v4837 = vld [vmem:[%s4824 + $0x60] sm:$0xff]
      %v4838 = vld [vmem:[%s4824 + $0x68] sm:$0xff]
      %v4839 = vld [vmem:[%s4824 + $0x70] sm:$0xff]
      %v4840 = vld [vmem:[%s4824 + $0x78] sm:$0xff]
      %v4841 = vld [vmem:[%s4824 + $0x80] sm:$0xff]
      %v4842 = vld [vmem:[%s4824 + $0x88] sm:$0xff]
      %v4843 = vld [vmem:[%s4824 + $0x90] sm:$0xff]
      %v4844 = vld [vmem:[%s4824 + $0x98] sm:$0xff]
      %v4845 = vld [vmem:[%s4824 + $0xa0] sm:$0xff]
      %v4846 = vld [vmem:[%s4824 + $0xa8] sm:$0xff]
      %v4847 = vld [vmem:[%s4824 + $0xb0] sm:$0xff]
      %v4848 = vld [vmem:[%s4824 + $0xb8] sm:$0xff]
      %v4849 = vld [vmem:[%s4824 + $0xc0] sm:$0xff]
      %v4850 = vld [vmem:[%s4824 + $0xc8] sm:$0xff]
      %v4851 = vld [vmem:[%s4824 + $0xd0] sm:$0xff]
      %v4852 = vld [vmem:[%s4824 + $0xd8] sm:$0xff]
      %v4853 = vld [vmem:[%s4824 + $0xe0] sm:$0xff]
      %v4854 = vld [vmem:[%s4824 + $0xe8] sm:$0xff]
      %v4855 = vld [vmem:[%s4824 + $0xf0] sm:$0xff]
      %v4856 = vld [vmem:[%s4824 + $0xf8] sm:$0xff]
      %4889 = vrot.lane.b32.xlu0 %v4825, 72
      %v4890 = vpop.permute.xlu0 %4889
      %4891 = vrot.lane.b32.xlu0 %v4826, 72
      %v4892 = vpop.permute.xlu0 %4891
      %4893 = vrot.lane.b32.xlu0 %v4827, 72
      %v4894 = vpop.permute.xlu0 %4893
      %4895 = vrot.lane.b32.xlu0 %v4828, 72
      %v4896 = vpop.permute.xlu0 %4895
      %4897 = vrot.lane.b32.xlu0 %v4829, 72
      %v4898 = vpop.permute.xlu0 %4897
      %4899 = vrot.lane.b32.xlu0 %v4830, 72
      %v4900 = vpop.permute.xlu0 %4899
      %4901 = vrot.lane.b32.xlu0 %v4831, 72
      %v4902 = vpop.permute.xlu0 %4901
      %4903 = vrot.lane.b32.xlu0 %v4832, 72
      %v4904 = vpop.permute.xlu0 %4903
      %4905 = vrot.lane.b32.xlu0 %v4833, 72
      %v4906 = vpop.permute.xlu0 %4905
      %4907 = vrot.lane.b32.xlu0 %v4834, 72
      %v4908 = vpop.permute.xlu0 %4907
      %4909 = vrot.lane.b32.xlu0 %v4835, 72
      %v4910 = vpop.permute.xlu0 %4909
      %4911 = vrot.lane.b32.xlu0 %v4836, 72
      %v4912 = vpop.permute.xlu0 %4911
      %4913 = vrot.lane.b32.xlu0 %v4837, 72
      %v4914 = vpop.permute.xlu0 %4913
      %4915 = vrot.lane.b32.xlu0 %v4838, 72
      %v4916 = vpop.permute.xlu0 %4915
      %4917 = vrot.lane.b32.xlu0 %v4839, 72
      %v4918 = vpop.permute.xlu0 %4917
      %4919 = vrot.lane.b32.xlu0 %v4840, 72
      %v4920 = vpop.permute.xlu0 %4919
      %4921 = vrot.lane.b32.xlu0 %v4841, 72
      %v4922 = vpop.permute.xlu0 %4921
      %4923 = vrot.lane.b32.xlu0 %v4842, 72
      %v4924 = vpop.permute.xlu0 %4923
      %4925 = vrot.lane.b32.xlu0 %v4843, 72
      %v4926 = vpop.permute.xlu0 %4925
      %4927 = vrot.lane.b32.xlu0 %v4844, 72
      %v4928 = vpop.permute.xlu0 %4927
      %4929 = vrot.lane.b32.xlu0 %v4845, 72
      %v4930 = vpop.permute.xlu0 %4929
      %4931 = vrot.lane.b32.xlu0 %v4846, 72
      %v4932 = vpop.permute.xlu0 %4931
      %4933 = vrot.lane.b32.xlu0 %v4847, 72
      %v4934 = vpop.permute.xlu0 %4933
      %4935 = vrot.lane.b32.xlu0 %v4848, 72
      %v4936 = vpop.permute.xlu0 %4935
      %4937 = vrot.lane.b32.xlu0 %v4849, 72
      %v4938 = vpop.permute.xlu0 %4937
      %4939 = vrot.lane.b32.xlu0 %v4850, 72
      %v4940 = vpop.permute.xlu0 %4939
      %4941 = vrot.lane.b32.xlu0 %v4851, 72
      %v4942 = vpop.permute.xlu0 %4941
      %4943 = vrot.lane.b32.xlu0 %v4852, 72
      %v4944 = vpop.permute.xlu0 %4943
      %4945 = vrot.lane.b32.xlu0 %v4853, 72
      %v4946 = vpop.permute.xlu0 %4945
      %4947 = vrot.lane.b32.xlu0 %v4854, 72
      %v4948 = vpop.permute.xlu0 %4947
      %4949 = vrot.lane.b32.xlu0 %v4855, 72
      %v4950 = vpop.permute.xlu0 %4949
      %4951 = vrot.lane.b32.xlu0 %v4856, 72
      %v4952 = vpop.permute.xlu0 %4951
      %4985 = vst.msk [vmem:[#allocation2 + $0x8] sm:$0xff] %vm2002, %v4890
      %4986 = vst.msk [vmem:[#allocation2 + $0x18] sm:$0xff] %vm2002, %v4892
      %4987 = vst.msk [vmem:[#allocation2 + $0x28] sm:$0xff] %vm2002, %v4894
      %4988 = vst.msk [vmem:[#allocation2 + $0x38] sm:$0xff] %vm2002, %v4896
      %4989 = vst.msk [vmem:[#allocation2 + $0x48] sm:$0xff] %vm2002, %v4898
      %4990 = vst.msk [vmem:[#allocation2 + $0x58] sm:$0xff] %vm2002, %v4900
      %4991 = vst.msk [vmem:[#allocation2 + $0x68] sm:$0xff] %vm2002, %v4902
      %4992 = vst.msk [vmem:[#allocation2 + $0x78] sm:$0xff] %vm2002, %v4904
      %4993 = vst.msk [vmem:[#allocation2 + $0x88] sm:$0xff] %vm2002, %v4906
      %4994 = vst.msk [vmem:[#allocation2 + $0x98] sm:$0xff] %vm2002, %v4908
      %4995 = vst.msk [vmem:[#allocation2 + $0xa8] sm:$0xff] %vm2002, %v4910
      %4996 = vst.msk [vmem:[#allocation2 + $0xb8] sm:$0xff] %vm2002, %v4912
      %4997 = vst.msk [vmem:[#allocation2 + $0xc8] sm:$0xff] %vm2002, %v4914
      %4998 = vst.msk [vmem:[#allocation2 + $0xd8] sm:$0xff] %vm2002, %v4916
      %4999 = vst.msk [vmem:[#allocation2 + $0xe8] sm:$0xff] %vm2002, %v4918
      %5000 = vst.msk [vmem:[#allocation2 + $0xf8] sm:$0xff] %vm2002, %v4920
      %5001 = vst.msk [vmem:[#allocation2 + $0x108] sm:$0xff] %vm2002, %v4922
      %5002 = vst.msk [vmem:[#allocation2 + $0x118] sm:$0xff] %vm2002, %v4924
      %5003 = vst.msk [vmem:[#allocation2 + $0x128] sm:$0xff] %vm2002, %v4926
      %5004 = vst.msk [vmem:[#allocation2 + $0x138] sm:$0xff] %vm2002, %v4928
      %5005 = vst.msk [vmem:[#allocation2 + $0x148] sm:$0xff] %vm2002, %v4930
      %5006 = vst.msk [vmem:[#allocation2 + $0x158] sm:$0xff] %vm2002, %v4932
      %5007 = vst.msk [vmem:[#allocation2 + $0x168] sm:$0xff] %vm2002, %v4934
      %5008 = vst.msk [vmem:[#allocation2 + $0x178] sm:$0xff] %vm2002, %v4936
      %5009 = vst.msk [vmem:[#allocation2 + $0x188] sm:$0xff] %vm2002, %v4938
      %5010 = vst.msk [vmem:[#allocation2 + $0x198] sm:$0xff] %vm2002, %v4940
      %5011 = vst.msk [vmem:[#allocation2 + $0x1a8] sm:$0xff] %vm2002, %v4942
      %5012 = vst.msk [vmem:[#allocation2 + $0x1b8] sm:$0xff] %vm2002, %v4944
      %5013 = vst.msk [vmem:[#allocation2 + $0x1c8] sm:$0xff] %vm2002, %v4946
      %5014 = vst.msk [vmem:[#allocation2 + $0x1d8] sm:$0xff] %vm2002, %v4948
      %5015 = vst.msk [vmem:[#allocation2 + $0x1e8] sm:$0xff] %vm2002, %v4950
      %5016 = vst.msk [vmem:[#allocation2 + $0x1f8] sm:$0xff] %vm2002, %v4952
      %s5017 = sadd.s32 %s213, 222
      %s5018 = scalar_lea.vmem %s0, %s5017
      %v5019 = vld [vmem:[%s5018] sm:$0xff]
      %v5020 = vld [vmem:[%s5018 + $0x8] sm:$0xff]
      %v5021 = vld [vmem:[%s5018 + $0x10] sm:$0xff]
      %v5022 = vld [vmem:[%s5018 + $0x18] sm:$0xff]
      %v5023 = vld [vmem:[%s5018 + $0x20] sm:$0xff]
      %v5024 = vld [vmem:[%s5018 + $0x28] sm:$0xff]
      %v5025 = vld [vmem:[%s5018 + $0x30] sm:$0xff]
      %v5026 = vld [vmem:[%s5018 + $0x38] sm:$0xff]
      %v5027 = vld [vmem:[%s5018 + $0x40] sm:$0xff]
      %v5028 = vld [vmem:[%s5018 + $0x48] sm:$0xff]
      %v5029 = vld [vmem:[%s5018 + $0x50] sm:$0xff]
      %v5030 = vld [vmem:[%s5018 + $0x58] sm:$0xff]
      %v5031 = vld [vmem:[%s5018 + $0x60] sm:$0xff]
      %v5032 = vld [vmem:[%s5018 + $0x68] sm:$0xff]
      %v5033 = vld [vmem:[%s5018 + $0x70] sm:$0xff]
      %v5034 = vld [vmem:[%s5018 + $0x78] sm:$0xff]
      %v5035 = vld [vmem:[%s5018 + $0x80] sm:$0xff]
      %v5036 = vld [vmem:[%s5018 + $0x88] sm:$0xff]
      %v5037 = vld [vmem:[%s5018 + $0x90] sm:$0xff]
      %v5038 = vld [vmem:[%s5018 + $0x98] sm:$0xff]
      %v5039 = vld [vmem:[%s5018 + $0xa0] sm:$0xff]
      %v5040 = vld [vmem:[%s5018 + $0xa8] sm:$0xff]
      %v5041 = vld [vmem:[%s5018 + $0xb0] sm:$0xff]
      %v5042 = vld [vmem:[%s5018 + $0xb8] sm:$0xff]
      %v5043 = vld [vmem:[%s5018 + $0xc0] sm:$0xff]
      %v5044 = vld [vmem:[%s5018 + $0xc8] sm:$0xff]
      %v5045 = vld [vmem:[%s5018 + $0xd0] sm:$0xff]
      %v5046 = vld [vmem:[%s5018 + $0xd8] sm:$0xff]
      %v5047 = vld [vmem:[%s5018 + $0xe0] sm:$0xff]
      %v5048 = vld [vmem:[%s5018 + $0xe8] sm:$0xff]
      %v5049 = vld [vmem:[%s5018 + $0xf0] sm:$0xff]
      %v5050 = vld [vmem:[%s5018 + $0xf8] sm:$0xff]
      %5083 = vrot.lane.b32.xlu0 %v5019, 80
      %v5084 = vpop.permute.xlu0 %5083
      %5085 = vrot.lane.b32.xlu0 %v5020, 80
      %v5086 = vpop.permute.xlu0 %5085
      %5087 = vrot.lane.b32.xlu0 %v5021, 80
      %v5088 = vpop.permute.xlu0 %5087
      %5089 = vrot.lane.b32.xlu0 %v5022, 80
      %v5090 = vpop.permute.xlu0 %5089
      %5091 = vrot.lane.b32.xlu0 %v5023, 80
      %v5092 = vpop.permute.xlu0 %5091
      %5093 = vrot.lane.b32.xlu0 %v5024, 80
      %v5094 = vpop.permute.xlu0 %5093
      %5095 = vrot.lane.b32.xlu0 %v5025, 80
      %v5096 = vpop.permute.xlu0 %5095
      %5097 = vrot.lane.b32.xlu0 %v5026, 80
      %v5098 = vpop.permute.xlu0 %5097
      %5099 = vrot.lane.b32.xlu0 %v5027, 80
      %v5100 = vpop.permute.xlu0 %5099
      %5101 = vrot.lane.b32.xlu0 %v5028, 80
      %v5102 = vpop.permute.xlu0 %5101
      %5103 = vrot.lane.b32.xlu0 %v5029, 80
      %v5104 = vpop.permute.xlu0 %5103
      %5105 = vrot.lane.b32.xlu0 %v5030, 80
      %v5106 = vpop.permute.xlu0 %5105
      %5107 = vrot.lane.b32.xlu0 %v5031, 80
      %v5108 = vpop.permute.xlu0 %5107
      %5109 = vrot.lane.b32.xlu0 %v5032, 80
      %v5110 = vpop.permute.xlu0 %5109
      %5111 = vrot.lane.b32.xlu0 %v5033, 80
      %v5112 = vpop.permute.xlu0 %5111
      %5113 = vrot.lane.b32.xlu0 %v5034, 80
      %v5114 = vpop.permute.xlu0 %5113
      %5115 = vrot.lane.b32.xlu0 %v5035, 80
      %v5116 = vpop.permute.xlu0 %5115
      %5117 = vrot.lane.b32.xlu0 %v5036, 80
      %v5118 = vpop.permute.xlu0 %5117
      %5119 = vrot.lane.b32.xlu0 %v5037, 80
      %v5120 = vpop.permute.xlu0 %5119
      %5121 = vrot.lane.b32.xlu0 %v5038, 80
      %v5122 = vpop.permute.xlu0 %5121
      %5123 = vrot.lane.b32.xlu0 %v5039, 80
      %v5124 = vpop.permute.xlu0 %5123
      %5125 = vrot.lane.b32.xlu0 %v5040, 80
      %v5126 = vpop.permute.xlu0 %5125
      %5127 = vrot.lane.b32.xlu0 %v5041, 80
      %v5128 = vpop.permute.xlu0 %5127
      %5129 = vrot.lane.b32.xlu0 %v5042, 80
      %v5130 = vpop.permute.xlu0 %5129
      %5131 = vrot.lane.b32.xlu0 %v5043, 80
      %v5132 = vpop.permute.xlu0 %5131
      %5133 = vrot.lane.b32.xlu0 %v5044, 80
      %v5134 = vpop.permute.xlu0 %5133
      %5135 = vrot.lane.b32.xlu0 %v5045, 80
      %v5136 = vpop.permute.xlu0 %5135
      %5137 = vrot.lane.b32.xlu0 %v5046, 80
      %v5138 = vpop.permute.xlu0 %5137
      %5139 = vrot.lane.b32.xlu0 %v5047, 80
      %v5140 = vpop.permute.xlu0 %5139
      %5141 = vrot.lane.b32.xlu0 %v5048, 80
      %v5142 = vpop.permute.xlu0 %5141
      %5143 = vrot.lane.b32.xlu0 %v5049, 80
      %v5144 = vpop.permute.xlu0 %5143
      %5145 = vrot.lane.b32.xlu0 %v5050, 80
      %v5146 = vpop.permute.xlu0 %5145
      %5179 = vst.msk [vmem:[#allocation2 + $0x8] sm:$0xff] %vm2197, %v5084
      %5180 = vst.msk [vmem:[#allocation2 + $0x18] sm:$0xff] %vm2197, %v5086
      %5181 = vst.msk [vmem:[#allocation2 + $0x28] sm:$0xff] %vm2197, %v5088
      %5182 = vst.msk [vmem:[#allocation2 + $0x38] sm:$0xff] %vm2197, %v5090
      %5183 = vst.msk [vmem:[#allocation2 + $0x48] sm:$0xff] %vm2197, %v5092
      %5184 = vst.msk [vmem:[#allocation2 + $0x58] sm:$0xff] %vm2197, %v5094
      %5185 = vst.msk [vmem:[#allocation2 + $0x68] sm:$0xff] %vm2197, %v5096
      %5186 = vst.msk [vmem:[#allocation2 + $0x78] sm:$0xff] %vm2197, %v5098
      %5187 = vst.msk [vmem:[#allocation2 + $0x88] sm:$0xff] %vm2197, %v5100
      %5188 = vst.msk [vmem:[#allocation2 + $0x98] sm:$0xff] %vm2197, %v5102
      %5189 = vst.msk [vmem:[#allocation2 + $0xa8] sm:$0xff] %vm2197, %v5104
      %5190 = vst.msk [vmem:[#allocation2 + $0xb8] sm:$0xff] %vm2197, %v5106
      %5191 = vst.msk [vmem:[#allocation2 + $0xc8] sm:$0xff] %vm2197, %v5108
      %5192 = vst.msk [vmem:[#allocation2 + $0xd8] sm:$0xff] %vm2197, %v5110
      %5193 = vst.msk [vmem:[#allocation2 + $0xe8] sm:$0xff] %vm2197, %v5112
      %5194 = vst.msk [vmem:[#allocation2 + $0xf8] sm:$0xff] %vm2197, %v5114
      %5195 = vst.msk [vmem:[#allocation2 + $0x108] sm:$0xff] %vm2197, %v5116
      %5196 = vst.msk [vmem:[#allocation2 + $0x118] sm:$0xff] %vm2197, %v5118
      %5197 = vst.msk [vmem:[#allocation2 + $0x128] sm:$0xff] %vm2197, %v5120
      %5198 = vst.msk [vmem:[#allocation2 + $0x138] sm:$0xff] %vm2197, %v5122
      %5199 = vst.msk [vmem:[#allocation2 + $0x148] sm:$0xff] %vm2197, %v5124
      %5200 = vst.msk [vmem:[#allocation2 + $0x158] sm:$0xff] %vm2197, %v5126
      %5201 = vst.msk [vmem:[#allocation2 + $0x168] sm:$0xff] %vm2197, %v5128
      %5202 = vst.msk [vmem:[#allocation2 + $0x178] sm:$0xff] %vm2197, %v5130
      %5203 = vst.msk [vmem:[#allocation2 + $0x188] sm:$0xff] %vm2197, %v5132
      %5204 = vst.msk [vmem:[#allocation2 + $0x198] sm:$0xff] %vm2197, %v5134
      %5205 = vst.msk [vmem:[#allocation2 + $0x1a8] sm:$0xff] %vm2197, %v5136
      %5206 = vst.msk [vmem:[#allocation2 + $0x1b8] sm:$0xff] %vm2197, %v5138
      %5207 = vst.msk [vmem:[#allocation2 + $0x1c8] sm:$0xff] %vm2197, %v5140
      %5208 = vst.msk [vmem:[#allocation2 + $0x1d8] sm:$0xff] %vm2197, %v5142
      %5209 = vst.msk [vmem:[#allocation2 + $0x1e8] sm:$0xff] %vm2197, %v5144
      %5210 = vst.msk [vmem:[#allocation2 + $0x1f8] sm:$0xff] %vm2197, %v5146
      %v5211 = vld [vmem:[#allocation2] sm:$0xff]
      %v5212 = vld [vmem:[#allocation2 + $0x8] sm:$0xff]
      %v5213 = vld [vmem:[#allocation2 + $0x10] sm:$0xff]
      %v5214 = vld [vmem:[#allocation2 + $0x18] sm:$0xff]
      %v5215 = vld [vmem:[#allocation2 + $0x20] sm:$0xff]
      %v5216 = vld [vmem:[#allocation2 + $0x28] sm:$0xff]
      %v5217 = vld [vmem:[#allocation2 + $0x30] sm:$0xff]
      %v5218 = vld [vmem:[#allocation2 + $0x38] sm:$0xff]
      %v5219 = vld [vmem:[#allocation2 + $0x40] sm:$0xff]
      %v5220 = vld [vmem:[#allocation2 + $0x48] sm:$0xff]
      %v5221 = vld [vmem:[#allocation2 + $0x50] sm:$0xff]
      %v5222 = vld [vmem:[#allocation2 + $0x58] sm:$0xff]
      %v5223 = vld [vmem:[#allocation2 + $0x60] sm:$0xff]
      %v5224 = vld [vmem:[#allocation2 + $0x68] sm:$0xff]
      %v5225 = vld [vmem:[#allocation2 + $0x70] sm:$0xff]
      %v5226 = vld [vmem:[#allocation2 + $0x78] sm:$0xff]
      %v5227 = vld [vmem:[#allocation2 + $0x80] sm:$0xff]
      %v5228 = vld [vmem:[#allocation2 + $0x88] sm:$0xff]
      %v5229 = vld [vmem:[#allocation2 + $0x90] sm:$0xff]
      %v5230 = vld [vmem:[#allocation2 + $0x98] sm:$0xff]
      %v5231 = vld [vmem:[#allocation2 + $0xa0] sm:$0xff]
      %v5232 = vld [vmem:[#allocation2 + $0xa8] sm:$0xff]
      %v5233 = vld [vmem:[#allocation2 + $0xb0] sm:$0xff]
      %v5234 = vld [vmem:[#allocation2 + $0xb8] sm:$0xff]
      %v5235 = vld [vmem:[#allocation2 + $0xc0] sm:$0xff]
      %v5236 = vld [vmem:[#allocation2 + $0xc8] sm:$0xff]
      %v5237 = vld [vmem:[#allocation2 + $0xd0] sm:$0xff]
      %v5238 = vld [vmem:[#allocation2 + $0xd8] sm:$0xff]
      %v5239 = vld [vmem:[#allocation2 + $0xe0] sm:$0xff]
      %v5240 = vld [vmem:[#allocation2 + $0xe8] sm:$0xff]
      %v5241 = vld [vmem:[#allocation2 + $0xf0] sm:$0xff]
      %v5242 = vld [vmem:[#allocation2 + $0xf8] sm:$0xff]
      %v5243 = vld [vmem:[#allocation2 + $0x100] sm:$0xff]
      %v5244 = vld [vmem:[#allocation2 + $0x108] sm:$0xff]
      %v5245 = vld [vmem:[#allocation2 + $0x110] sm:$0xff]
      %v5246 = vld [vmem:[#allocation2 + $0x118] sm:$0xff]
      %v5247 = vld [vmem:[#allocation2 + $0x120] sm:$0xff]
      %v5248 = vld [vmem:[#allocation2 + $0x128] sm:$0xff]
      %v5249 = vld [vmem:[#allocation2 + $0x130] sm:$0xff]
      %v5250 = vld [vmem:[#allocation2 + $0x138] sm:$0xff]
      %v5251 = vld [vmem:[#allocation2 + $0x140] sm:$0xff]
      %v5252 = vld [vmem:[#allocation2 + $0x148] sm:$0xff]
      %v5253 = vld [vmem:[#allocation2 + $0x150] sm:$0xff]
      %v5254 = vld [vmem:[#allocation2 + $0x158] sm:$0xff]
      %v5255 = vld [vmem:[#allocation2 + $0x160] sm:$0xff]
      %v5256 = vld [vmem:[#allocation2 + $0x168] sm:$0xff]
      %v5257 = vld [vmem:[#allocation2 + $0x170] sm:$0xff]
      %v5258 = vld [vmem:[#allocation2 + $0x178] sm:$0xff]
      %v5259 = vld [vmem:[#allocation2 + $0x180] sm:$0xff]
      %v5260 = vld [vmem:[#allocation2 + $0x188] sm:$0xff]
      %v5261 = vld [vmem:[#allocation2 + $0x190] sm:$0xff]
      %v5262 = vld [vmem:[#allocation2 + $0x198] sm:$0xff]
      %v5263 = vld [vmem:[#allocation2 + $0x1a0] sm:$0xff]
      %v5264 = vld [vmem:[#allocation2 + $0x1a8] sm:$0xff]
      %v5265 = vld [vmem:[#allocation2 + $0x1b0] sm:$0xff]
      %v5266 = vld [vmem:[#allocation2 + $0x1b8] sm:$0xff]
      %v5267 = vld [vmem:[#allocation2 + $0x1c0] sm:$0xff]
      %v5268 = vld [vmem:[#allocation2 + $0x1c8] sm:$0xff]
      %v5269 = vld [vmem:[#allocation2 + $0x1d0] sm:$0xff]
      %v5270 = vld [vmem:[#allocation2 + $0x1d8] sm:$0xff]
      %v5271 = vld [vmem:[#allocation2 + $0x1e0] sm:$0xff]
      %v5272 = vld [vmem:[#allocation2 + $0x1e8] sm:$0xff]
      %v5273 = vld [vmem:[#allocation2 + $0x1f0] sm:$0xff]
      %v5274 = vld [vmem:[#allocation2 + $0x1f8] sm:$0xff]
      %v5275 = vpack.c.bf16 %v5213, %v5211
      %v5276 = vpack.c.bf16 %v5214, %v5212
      %v5277 = vpack.c.bf16 %v5217, %v5215
      %v5278 = vpack.c.bf16 %v5218, %v5216
      %v5279 = vpack.c.bf16 %v5221, %v5219
      %v5280 = vpack.c.bf16 %v5222, %v5220
      %v5281 = vpack.c.bf16 %v5225, %v5223
      %v5282 = vpack.c.bf16 %v5226, %v5224
      %v5283 = vpack.c.bf16 %v5229, %v5227
      %v5284 = vpack.c.bf16 %v5230, %v5228
      %v5285 = vpack.c.bf16 %v5233, %v5231
      %v5286 = vpack.c.bf16 %v5234, %v5232
      %v5287 = vpack.c.bf16 %v5237, %v5235
      %v5288 = vpack.c.bf16 %v5238, %v5236
      %v5289 = vpack.c.bf16 %v5241, %v5239
      %v5290 = vpack.c.bf16 %v5242, %v5240
      %v5291 = vpack.c.bf16 %v5245, %v5243
      %v5292 = vpack.c.bf16 %v5246, %v5244
      %v5293 = vpack.c.bf16 %v5249, %v5247
      %v5294 = vpack.c.bf16 %v5250, %v5248
      %v5295 = vpack.c.bf16 %v5253, %v5251
      %v5296 = vpack.c.bf16 %v5254, %v5252
      %v5297 = vpack.c.bf16 %v5257, %v5255
      %v5298 = vpack.c.bf16 %v5258, %v5256
      %v5299 = vpack.c.bf16 %v5261, %v5259
      %v5300 = vpack.c.bf16 %v5262, %v5260
      %v5301 = vpack.c.bf16 %v5265, %v5263
      %v5302 = vpack.c.bf16 %v5266, %v5264
      %v5303 = vpack.c.bf16 %v5269, %v5267
      %v5304 = vpack.c.bf16 %v5270, %v5268
      %v5305 = vpack.c.bf16 %v5273, %v5271
      %v5306 = vpack.c.bf16 %v5274, %v5272
      %v5307 = vld [vmem:[%s1] sm:$0xf]
      %v5308 = vld [vmem:[%s1 + $0x4] sm:$0xf]
      %v5309 = vld [vmem:[%s1 + $0x8] sm:$0xf]
      %v5310 = vld [vmem:[%s1 + $0xc] sm:$0xf]
      %v5311 = vld [vmem:[%s1 + $0x10] sm:$0xf]
      %v5312 = vld [vmem:[%s1 + $0x14] sm:$0xf]
      %v5313 = vld [vmem:[%s1 + $0x18] sm:$0xf]
      %v5314 = vld [vmem:[%s1 + $0x1c] sm:$0xf]
      %v5315 = vld [vmem:[%s1 + $0x20] sm:$0xf]
      %v5316 = vld [vmem:[%s1 + $0x24] sm:$0xf]
      %v5317 = vld [vmem:[%s1 + $0x28] sm:$0xf]
      %v5318 = vld [vmem:[%s1 + $0x2c] sm:$0xf]
      %v5319 = vld [vmem:[%s1 + $0x30] sm:$0xf]
      %v5320 = vld [vmem:[%s1 + $0x34] sm:$0xf]
      %v5321 = vld [vmem:[%s1 + $0x38] sm:$0xf]
      %v5322 = vld [vmem:[%s1 + $0x3c] sm:$0xf]
      %v5323 = vld [vmem:[%s1 + $0x40] sm:$0xf]
      %v5324 = vld [vmem:[%s1 + $0x44] sm:$0xf]
      %v5325 = vld [vmem:[%s1 + $0x48] sm:$0xf]
      %v5326 = vld [vmem:[%s1 + $0x4c] sm:$0xf]
      %v5327 = vld [vmem:[%s1 + $0x50] sm:$0xf]
      %v5328 = vld [vmem:[%s1 + $0x54] sm:$0xf]
      %v5329 = vld [vmem:[%s1 + $0x58] sm:$0xf]
      %v5330 = vld [vmem:[%s1 + $0x5c] sm:$0xf]
      %v5331 = vld [vmem:[%s1 + $0x60] sm:$0xf]
      %v5332 = vld [vmem:[%s1 + $0x64] sm:$0xf]
      %v5333 = vld [vmem:[%s1 + $0x68] sm:$0xf]
      %v5361 = vunpack.c.l.b16 %v5307
      %v5362 = vunpack.c.l.b16 %v5308
      %v5363 = vunpack.c.l.b16 %v5309
      %v5364 = vunpack.c.l.b16 %v5310
      %v5365 = vunpack.c.l.b16 %v5311
      %v5366 = vunpack.c.l.b16 %v5312
      %v5367 = vunpack.c.l.b16 %v5313
      %v5368 = vunpack.c.l.b16 %v5314
      %v5369 = vunpack.c.l.b16 %v5315
      %v5370 = vunpack.c.l.b16 %v5316
      %v5371 = vunpack.c.l.b16 %v5317
      %v5372 = vunpack.c.l.b16 %v5318
      %v5373 = vunpack.c.l.b16 %v5319
      %v5374 = vunpack.c.l.b16 %v5320
      %v5375 = vunpack.c.l.b16 %v5321
      %v5376 = vunpack.c.l.b16 %v5322
      %v5377 = vunpack.c.l.b16 %v5323
      %v5378 = vunpack.c.l.b16 %v5324
      %v5379 = vunpack.c.l.b16 %v5325
      %v5380 = vunpack.c.l.b16 %v5326
      %v5381 = vunpack.c.l.b16 %v5327
      %v5382 = vunpack.c.l.b16 %v5328
      %v5383 = vunpack.c.l.b16 %v5329
      %v5384 = vunpack.c.l.b16 %v5330
      %v5385 = vunpack.c.l.b16 %v5331
      %v5386 = vunpack.c.l.b16 %v5332
      %v5387 = vunpack.c.l.b16 %v5333
      %v5388 = vpack.c.b16 %v5362, %v5361
      %v5389 = vpack.c.b16 %v5364, %v5363
      %v5390 = vpack.c.b16 %v5366, %v5365
      %v5391 = vpack.c.b16 %v5368, %v5367
      %v5392 = vpack.c.b16 %v5370, %v5369
      %v5393 = vpack.c.b16 %v5372, %v5371
      %v5394 = vpack.c.b16 %v5374, %v5373
      %v5395 = vpack.c.b16 %v5376, %v5375
      %v5396 = vpack.c.b16 %v5378, %v5377
      %v5397 = vpack.c.b16 %v5380, %v5379
      %v5398 = vpack.c.b16 %v5382, %v5381
      %v5399 = vpack.c.b16 %v5384, %v5383
      %v5400 = vpack.c.b16 %v5386, %v5385
      %v5401 = vpack.c.b16 %v5387, %v5387
      %vm5415 = vcmask 719872
      %v5417 = vsel %vm5415, %v5276, 0
      %v5420 = vsel %vm5415, %v5278, 0
      %v5423 = vsel %vm5415, %v5280, 0
      %v5426 = vsel %vm5415, %v5282, 0
      %v5429 = vsel %vm5415, %v5284, 0
      %v5432 = vsel %vm5415, %v5286, 0
      %v5435 = vsel %vm5415, %v5288, 0
      %v5438 = vsel %vm5415, %v5290, 0
      %v5441 = vsel %vm5415, %v5292, 0
      %v5444 = vsel %vm5415, %v5294, 0
      %v5447 = vsel %vm5415, %v5296, 0
      %v5450 = vsel %vm5415, %v5298, 0
      %v5453 = vsel %vm5415, %v5300, 0
      %v5456 = vsel %vm5415, %v5302, 0
      %v5459 = vsel %vm5415, %v5304, 0
      %v5462 = vsel %vm5415, %v5306, 0
      %vm5464 = vcmask 1043456
      %v5466 = vsel %vm5464, %v5401, 0
      %5468 = vmatprep.subr.bf16.mxu0 0
      %5469 = vmatpush1.bf16.msra.mxu0 %v5388
      %5470 = vmatprep.subr.bf16.mxu0 0
      %5471 = vmatpush1.bf16.msra.mxu0 %v5389
      %5472 = vmatprep.subr.bf16.mxu0 0
      %5473 = vmatpush1.bf16.msra.mxu0 %v5390
      %5474 = vmatprep.subr.bf16.mxu0 0
      %5475 = vmatpush1.bf16.msra.mxu0 %v5391
      %5476 = vmatprep.subr.bf16.mxu0 0
      %5477 = vmatpush1.bf16.msra.mxu0 %v5392
      %5478 = vmatprep.subr.bf16.mxu0 0
      %5479 = vmatpush1.bf16.msra.mxu0 %v5393
      %5480 = vmatprep.subr.bf16.mxu0 0
      %5481 = vmatpush1.bf16.msra.mxu0 %v5394
      %5482 = vmatprep.subr.bf16.mxu0 0
      %5483 = vmatpush1.bf16.msra.mxu0 %v5395
      %5484 = vmatprep.subr.bf16.mxu0 0
      %5485 = vmatpush1.bf16.msra.mxu0 %v5396
      %5486 = vmatprep.subr.bf16.mxu0 0
      %5487 = vmatpush1.bf16.msra.mxu0 %v5397
      %5488 = vmatprep.subr.bf16.mxu0 0
      %5489 = vmatpush1.bf16.msra.mxu0 %v5398
      %5490 = vmatprep.subr.bf16.mxu0 0
      %5491 = vmatpush1.bf16.msra.mxu0 %v5399
      %5492 = vmatprep.subr.bf16.mxu0 0
      %5493 = vmatpush1.bf16.msra.mxu0 %v5400
      %5494 = vmatprep.subr.bf16.mxu0 0
      %5495 = vmatpush1.bf16.msra.mxu0 %v5466
      %5496 = vmatprep.subr.bf16.mxu0 0
      %5497 = vmatpush1.bf16.msra.mxu0 0
      %5498 = vmatprep.subr.bf16.mxu0 0
      %5499 = vmatpush1.bf16.msra.mxu0 0
      %5500 = vmatprep.mubr.bf16.mxu0 %v5417
      %5501 = vmatmul.mubr.bf16.gmra.mrb[0].mxu0 %v5275
      %v5502 = vpop.f32.mrb[0].mxu0
      %v5503 = vadd.f32 0.0, %v5502
      %v5504 = vpop.f32.mrb[0].mxu0
      %v5505 = vpop.f32.mrb[0].mxu0
      %v5506 = vadd.f32 0.0, %v5505
      %v5507 = vpop.f32.mrb[0].mxu0
      %5508 = vmatprep.mubr.bf16.mxu0 %v5420
      %5509 = vmatmul.mubr.bf16.gmra.mrb[0].mxu0 %v5277
      %v5510 = vpop.f32.mrb[0].mxu0
      %v5511 = vadd.f32 0.0, %v5510
      %v5512 = vpop.f32.mrb[0].mxu0
      %v5513 = vpop.f32.mrb[0].mxu0
      %v5514 = vadd.f32 0.0, %v5513
      %v5515 = vpop.f32.mrb[0].mxu0
      %5516 = vmatprep.mubr.bf16.mxu0 %v5423
      %5517 = vmatmul.mubr.bf16.gmra.mrb[0].mxu0 %v5279
      %v5518 = vpop.f32.mrb[0].mxu0
      %v5519 = vadd.f32 0.0, %v5518
      %v5520 = vpop.f32.mrb[0].mxu0
      %v5521 = vpop.f32.mrb[0].mxu0
      %v5522 = vadd.f32 0.0, %v5521
      %v5523 = vpop.f32.mrb[0].mxu0
      %5524 = vmatprep.mubr.bf16.mxu0 %v5426
      %5525 = vmatmul.mubr.bf16.gmra.mrb[0].mxu0 %v5281
      %v5526 = vpop.f32.mrb[0].mxu0
      %v5527 = vadd.f32 0.0, %v5526
      %v5528 = vpop.f32.mrb[0].mxu0
      %v5529 = vpop.f32.mrb[0].mxu0
      %v5530 = vadd.f32 0.0, %v5529
      %v5531 = vpop.f32.mrb[0].mxu0
      %5532 = vmatprep.mubr.bf16.mxu0 %v5429
      %5533 = vmatmul.mubr.bf16.gmra.mrb[0].mxu0 %v5283
      %v5534 = vpop.f32.mrb[0].mxu0
      %v5535 = vadd.f32 0.0, %v5534
      %v5536 = vpop.f32.mrb[0].mxu0
      %v5537 = vpop.f32.mrb[0].mxu0
      %v5538 = vadd.f32 0.0, %v5537
      %v5539 = vpop.f32.mrb[0].mxu0
      %5540 = vmatprep.mubr.bf16.mxu0 %v5432
      %5541 = vmatmul.mubr.bf16.gmra.mrb[0].mxu0 %v5285
      %v5542 = vpop.f32.mrb[0].mxu0
      %v5543 = vadd.f32 0.0, %v5542
      %v5544 = vpop.f32.mrb[0].mxu0
      %v5545 = vpop.f32.mrb[0].mxu0
      %v5546 = vadd.f32 0.0, %v5545
      %v5547 = vpop.f32.mrb[0].mxu0
      %5548 = vmatprep.mubr.bf16.mxu0 %v5435
      %5549 = vmatmul.mubr.bf16.gmra.mrb[0].mxu0 %v5287
      %v5550 = vpop.f32.mrb[0].mxu0
      %v5551 = vadd.f32 0.0, %v5550
      %v5552 = vpop.f32.mrb[0].mxu0
      %v5553 = vpop.f32.mrb[0].mxu0
      %v5554 = vadd.f32 0.0, %v5553
      %v5555 = vpop.f32.mrb[0].mxu0
      %5556 = vmatprep.mubr.bf16.mxu0 %v5438
      %5557 = vmatmul.mubr.bf16.gmra.mrb[0].mxu0 %v5289
      %v5558 = vpop.f32.mrb[0].mxu0
      %v5559 = vadd.f32 0.0, %v5558
      %v5560 = vpop.f32.mrb[0].mxu0
      %v5561 = vpop.f32.mrb[0].mxu0
      %v5562 = vadd.f32 0.0, %v5561
      %v5563 = vpop.f32.mrb[0].mxu0
      %5564 = vmatprep.mubr.bf16.mxu0 %v5441
      %5565 = vmatmul.mubr.bf16.gmra.mrb[0].mxu0 %v5291
      %v5566 = vpop.f32.mrb[0].mxu0
      %v5567 = vadd.f32 0.0, %v5566
      %v5568 = vpop.f32.mrb[0].mxu0
      %v5569 = vpop.f32.mrb[0].mxu0
      %v5570 = vadd.f32 0.0, %v5569
      %v5571 = vpop.f32.mrb[0].mxu0
      %5572 = vmatprep.mubr.bf16.mxu0 %v5444
      %5573 = vmatmul.mubr.bf16.gmra.mrb[0].mxu0 %v5293
      %v5574 = vpop.f32.mrb[0].mxu0
      %v5575 = vadd.f32 0.0, %v5574
      %v5576 = vpop.f32.mrb[0].mxu0
      %v5577 = vpop.f32.mrb[0].mxu0
      %v5578 = vadd.f32 0.0, %v5577
      %v5579 = vpop.f32.mrb[0].mxu0
      %5580 = vmatprep.mubr.bf16.mxu0 %v5447
      %5581 = vmatmul.mubr.bf16.gmra.mrb[0].mxu0 %v5295
      %v5582 = vpop.f32.mrb[0].mxu0
      %v5583 = vadd.f32 0.0, %v5582
      %v5584 = vpop.f32.mrb[0].mxu0
      %v5585 = vpop.f32.mrb[0].mxu0
      %v5586 = vadd.f32 0.0, %v5585
      %v5587 = vpop.f32.mrb[0].mxu0
      %5588 = vmatprep.mubr.bf16.mxu0 %v5450
      %5589 = vmatmul.mubr.bf16.gmra.mrb[0].mxu0 %v5297
      %v5590 = vpop.f32.mrb[0].mxu0
      %v5591 = vadd.f32 0.0, %v5590
      %v5592 = vpop.f32.mrb[0].mxu0
      %v5593 = vpop.f32.mrb[0].mxu0
      %v5594 = vadd.f32 0.0, %v5593
      %v5595 = vpop.f32.mrb[0].mxu0
      %5596 = vmatprep.mubr.bf16.mxu0 %v5453
      %5597 = vmatmul.mubr.bf16.gmra.mrb[0].mxu0 %v5299
      %v5598 = vpop.f32.mrb[0].mxu0
      %v5599 = vadd.f32 0.0, %v5598
      %v5600 = vpop.f32.mrb[0].mxu0
      %v5601 = vpop.f32.mrb[0].mxu0
      %v5602 = vadd.f32 0.0, %v5601
      %v5603 = vpop.f32.mrb[0].mxu0
      %5604 = vmatprep.mubr.bf16.mxu0 %v5456
      %5605 = vmatmul.mubr.bf16.gmra.mrb[0].mxu0 %v5301
      %v5606 = vpop.f32.mrb[0].mxu0
      %v5607 = vadd.f32 0.0, %v5606
      %v5608 = vpop.f32.mrb[0].mxu0
      %v5609 = vpop.f32.mrb[0].mxu0
      %v5610 = vadd.f32 0.0, %v5609
      %v5611 = vpop.f32.mrb[0].mxu0
      %5612 = vmatprep.mubr.bf16.mxu0 %v5459
      %5613 = vmatmul.mubr.bf16.gmra.mrb[0].mxu0 %v5303
      %v5614 = vpop.f32.mrb[0].mxu0
      %v5615 = vadd.f32 0.0, %v5614
      %v5616 = vpop.f32.mrb[0].mxu0
      %v5617 = vpop.f32.mrb[0].mxu0
      %v5618 = vadd.f32 0.0, %v5617
      %v5619 = vpop.f32.mrb[0].mxu0
      %5620 = vmatprep.mubr.bf16.mxu0 %v5462
      %5621 = vmatmul.mubr.bf16.gmra.mrb[0].mxu0 %v5305
      %v5622 = vpop.f32.mrb[0].mxu0
      %v5623 = vadd.f32 0.0, %v5622
      %v5624 = vpop.f32.mrb[0].mxu0
      %v5625 = vpop.f32.mrb[0].mxu0
      %v5626 = vadd.f32 0.0, %v5625
      %v5627 = vpop.f32.mrb[0].mxu0
      %5628 = vdwg.mxu0
      %5629 = vst.msk [vmem:[%s206] sm:$0xff] %vm247, %v5503
      %5630 = vst.msk [vmem:[%s206 + $0x8] sm:$0xff] %vm247, %v5506
      %5631 = vst.msk [vmem:[%s206 + $0x10] sm:$0xff] %vm247, %v5511
      %5632 = vst.msk [vmem:[%s206 + $0x18] sm:$0xff] %vm247, %v5514
      %5633 = vst.msk [vmem:[%s206 + $0x20] sm:$0xff] %vm247, %v5519
      %5634 = vst.msk [vmem:[%s206 + $0x28] sm:$0xff] %vm247, %v5522
      %5635 = vst.msk [vmem:[%s206 + $0x30] sm:$0xff] %vm247, %v5527
      %5636 = vst.msk [vmem:[%s206 + $0x38] sm:$0xff] %vm247, %v5530
      %5637 = vst.msk [vmem:[%s206 + $0x40] sm:$0xff] %vm247, %v5535
      %5638 = vst.msk [vmem:[%s206 + $0x48] sm:$0xff] %vm247, %v5538
      %5639 = vst.msk [vmem:[%s206 + $0x50] sm:$0xff] %vm247, %v5543
      %5640 = vst.msk [vmem:[%s206 + $0x58] sm:$0xff] %vm247, %v5546
      %5641 = vst.msk [vmem:[%s206 + $0x60] sm:$0xff] %vm247, %v5551
      %5642 = vst.msk [vmem:[%s206 + $0x68] sm:$0xff] %vm247, %v5554
      %5643 = vst.msk [vmem:[%s206 + $0x70] sm:$0xff] %vm247, %v5559
      %5644 = vst.msk [vmem:[%s206 + $0x78] sm:$0xff] %vm247, %v5562
      %5645 = vst.msk [vmem:[%s206 + $0x80] sm:$0xff] %vm247, %v5567
      %5646 = vst.msk [vmem:[%s206 + $0x88] sm:$0xff] %vm247, %v5570
      %5647 = vst.msk [vmem:[%s206 + $0x90] sm:$0xff] %vm247, %v5575
      %5648 = vst.msk [vmem:[%s206 + $0x98] sm:$0xff] %vm247, %v5578
      %5649 = vst.msk [vmem:[%s206 + $0xa0] sm:$0xff] %vm247, %v5583
      %5650 = vst.msk [vmem:[%s206 + $0xa8] sm:$0xff] %vm247, %v5586
      %5651 = vst.msk [vmem:[%s206 + $0xb0] sm:$0xff] %vm247, %v5591
      %5652 = vst.msk [vmem:[%s206 + $0xb8] sm:$0xff] %vm247, %v5594
      %5653 = vst.msk [vmem:[%s206 + $0xc0] sm:$0xff] %vm247, %v5599
      %5654 = vst.msk [vmem:[%s206 + $0xc8] sm:$0xff] %vm247, %v5602
      %5655 = vst.msk [vmem:[%s206 + $0xd0] sm:$0xff] %vm247, %v5607
      %5656 = vst.msk [vmem:[%s206 + $0xd8] sm:$0xff] %vm247, %v5610
      %5657 = vst.msk [vmem:[%s206 + $0xe0] sm:$0xff] %vm247, %v5615
      %5658 = vst.msk [vmem:[%s206 + $0xe8] sm:$0xff] %vm247, %v5618
      %5659 = vst.msk [vmem:[%s206 + $0xf0] sm:$0xff] %vm247, %v5623
      %5660 = vst.msk [vmem:[%s206 + $0xf8] sm:$0xff] %vm247, %v5626
      %v5661 = vld [vmem:[%s200] sm:$0xff]
      %v5662 = vld [vmem:[%s200 + $0x8] sm:$0xff]
      %v5663 = vld [vmem:[%s200 + $0x10] sm:$0xff]
      %v5664 = vld [vmem:[%s200 + $0x18] sm:$0xff]
      %v5665 = vld [vmem:[%s200 + $0x20] sm:$0xff]
      %v5666 = vld [vmem:[%s200 + $0x28] sm:$0xff]
      %v5667 = vld [vmem:[%s200 + $0x30] sm:$0xff]
      %v5668 = vld [vmem:[%s200 + $0x38] sm:$0xff]
      %v5669 = vld [vmem:[%s200 + $0x40] sm:$0xff]
      %v5670 = vld [vmem:[%s200 + $0x48] sm:$0xff]
      %v5671 = vld [vmem:[%s200 + $0x50] sm:$0xff]
      %v5672 = vld [vmem:[%s200 + $0x58] sm:$0xff]
      %v5673 = vld [vmem:[%s200 + $0x60] sm:$0xff]
      %v5674 = vld [vmem:[%s200 + $0x68] sm:$0xff]
      %v5675 = vld [vmem:[%s200 + $0x70] sm:$0xff]
      %v5676 = vld [vmem:[%s200 + $0x78] sm:$0xff]
      %v5677 = vld [vmem:[%s200 + $0x80] sm:$0xff]
      %v5678 = vld [vmem:[%s200 + $0x88] sm:$0xff]
      %v5679 = vld [vmem:[%s200 + $0x90] sm:$0xff]
      %v5680 = vld [vmem:[%s200 + $0x98] sm:$0xff]
      %v5681 = vld [vmem:[%s200 + $0xa0] sm:$0xff]
      %v5682 = vld [vmem:[%s200 + $0xa8] sm:$0xff]
      %v5683 = vld [vmem:[%s200 + $0xb0] sm:$0xff]
      %v5684 = vld [vmem:[%s200 + $0xb8] sm:$0xff]
      %v5685 = vld [vmem:[%s200 + $0xc0] sm:$0xff]
      %v5686 = vld [vmem:[%s200 + $0xc8] sm:$0xff]
      %v5687 = vld [vmem:[%s200 + $0xd0] sm:$0xff]
      %v5688 = vld [vmem:[%s200 + $0xd8] sm:$0xff]
      %v5689 = vld [vmem:[%s200 + $0xe0] sm:$0xff]
      %v5690 = vld [vmem:[%s200 + $0xe8] sm:$0xff]
      %v5691 = vld [vmem:[%s200 + $0xf0] sm:$0xff]
      %v5692 = vld [vmem:[%s200 + $0xf8] sm:$0xff]
      %5694 = vset.pattern.permute.xlu0 0
      %5695 = vperm.xlu0 %5694, %v5661
      %v5696 = vpop.permute.xlu0 %5695
      %5699 = vset.pattern.permute.xlu0 0
      %5700 = vperm.xlu0 %5699, %v5662
      %v5701 = vpop.permute.xlu0 %5700
      %5704 = vset.pattern.permute.xlu0 0
      %5705 = vperm.xlu0 %5704, %v5663
      %v5706 = vpop.permute.xlu0 %5705
      %5709 = vset.pattern.permute.xlu0 0
      %5710 = vperm.xlu0 %5709, %v5664
      %v5711 = vpop.permute.xlu0 %5710
      %5714 = vset.pattern.permute.xlu0 0
      %5715 = vperm.xlu0 %5714, %v5665
      %v5716 = vpop.permute.xlu0 %5715
      %5719 = vset.pattern.permute.xlu0 0
      %5720 = vperm.xlu0 %5719, %v5666
      %v5721 = vpop.permute.xlu0 %5720
      %5724 = vset.pattern.permute.xlu0 0
      %5725 = vperm.xlu0 %5724, %v5667
      %v5726 = vpop.permute.xlu0 %5725
      %5729 = vset.pattern.permute.xlu0 0
      %5730 = vperm.xlu0 %5729, %v5668
      %v5731 = vpop.permute.xlu0 %5730
      %5734 = vset.pattern.permute.xlu0 0
      %5735 = vperm.xlu0 %5734, %v5669
      %v5736 = vpop.permute.xlu0 %5735
      %5739 = vset.pattern.permute.xlu0 0
      %5740 = vperm.xlu0 %5739, %v5670
      %v5741 = vpop.permute.xlu0 %5740
      %5744 = vset.pattern.permute.xlu0 0
      %5745 = vperm.xlu0 %5744, %v5671
      %v5746 = vpop.permute.xlu0 %5745
      %5749 = vset.pattern.permute.xlu0 0
      %5750 = vperm.xlu0 %5749, %v5672
      %v5751 = vpop.permute.xlu0 %5750
      %5754 = vset.pattern.permute.xlu0 0
      %5755 = vperm.xlu0 %5754, %v5673
      %v5756 = vpop.permute.xlu0 %5755
      %5759 = vset.pattern.permute.xlu0 0
      %5760 = vperm.xlu0 %5759, %v5674
      %v5761 = vpop.permute.xlu0 %5760
      %5764 = vset.pattern.permute.xlu0 0
      %5765 = vperm.xlu0 %5764, %v5675
      %v5766 = vpop.permute.xlu0 %5765
      %5769 = vset.pattern.permute.xlu0 0
      %5770 = vperm.xlu0 %5769, %v5676
      %v5771 = vpop.permute.xlu0 %5770
      %5774 = vset.pattern.permute.xlu0 0
      %5775 = vperm.xlu0 %5774, %v5677
      %v5776 = vpop.permute.xlu0 %5775
      %5779 = vset.pattern.permute.xlu0 0
      %5780 = vperm.xlu0 %5779, %v5678
      %v5781 = vpop.permute.xlu0 %5780
      %5784 = vset.pattern.permute.xlu0 0
      %5785 = vperm.xlu0 %5784, %v5679
      %v5786 = vpop.permute.xlu0 %5785
      %5789 = vset.pattern.permute.xlu0 0
      %5790 = vperm.xlu0 %5789, %v5680
      %v5791 = vpop.permute.xlu0 %5790
      %5794 = vset.pattern.permute.xlu0 0
      %5795 = vperm.xlu0 %5794, %v5681
      %v5796 = vpop.permute.xlu0 %5795
      %5799 = vset.pattern.permute.xlu0 0
      %5800 = vperm.xlu0 %5799, %v5682
      %v5801 = vpop.permute.xlu0 %5800
      %5804 = vset.pattern.permute.xlu0 0
      %5805 = vperm.xlu0 %5804, %v5683
      %v5806 = vpop.permute.xlu0 %5805
      %5809 = vset.pattern.permute.xlu0 0
      %5810 = vperm.xlu0 %5809, %v5684
      %v5811 = vpop.permute.xlu0 %5810
      %5814 = vset.pattern.permute.xlu0 0
      %5815 = vperm.xlu0 %5814, %v5685
      %v5816 = vpop.permute.xlu0 %5815
      %5819 = vset.pattern.permute.xlu0 0
      %5820 = vperm.xlu0 %5819, %v5686
      %v5821 = vpop.permute.xlu0 %5820
      %5824 = vset.pattern.permute.xlu0 0
      %5825 = vperm.xlu0 %5824, %v5687
      %v5826 = vpop.permute.xlu0 %5825
      %5829 = vset.pattern.permute.xlu0 0
      %5830 = vperm.xlu0 %5829, %v5688
      %v5831 = vpop.permute.xlu0 %5830
      %5834 = vset.pattern.permute.xlu0 0
      %5835 = vperm.xlu0 %5834, %v5689
      %v5836 = vpop.permute.xlu0 %5835
      %5839 = vset.pattern.permute.xlu0 0
      %5840 = vperm.xlu0 %5839, %v5690
      %v5841 = vpop.permute.xlu0 %5840
      %5844 = vset.pattern.permute.xlu0 0
      %5845 = vperm.xlu0 %5844, %v5691
      %v5846 = vpop.permute.xlu0 %5845
      %5849 = vset.pattern.permute.xlu0 0
      %5850 = vperm.xlu0 %5849, %v5692
      %v5851 = vpop.permute.xlu0 %5850
      %v5853 = vmul.f32 %v5503, %v5696
      %v5854 = vmul.f32 %v5506, %v5701
      %v5855 = vmul.f32 %v5511, %v5706
      %v5856 = vmul.f32 %v5514, %v5711
      %v5857 = vmul.f32 %v5519, %v5716
      %v5858 = vmul.f32 %v5522, %v5721
      %v5859 = vmul.f32 %v5527, %v5726
      %v5860 = vmul.f32 %v5530, %v5731
      %v5861 = vmul.f32 %v5535, %v5736
      %v5862 = vmul.f32 %v5538, %v5741
      %v5863 = vmul.f32 %v5543, %v5746
      %v5864 = vmul.f32 %v5546, %v5751
      %v5865 = vmul.f32 %v5551, %v5756
      %v5866 = vmul.f32 %v5554, %v5761
      %v5867 = vmul.f32 %v5559, %v5766
      %v5868 = vmul.f32 %v5562, %v5771
      %v5869 = vmul.f32 %v5567, %v5776
      %v5870 = vmul.f32 %v5570, %v5781
      %v5871 = vmul.f32 %v5575, %v5786
      %v5872 = vmul.f32 %v5578, %v5791
      %v5873 = vmul.f32 %v5583, %v5796
      %v5874 = vmul.f32 %v5586, %v5801
      %v5875 = vmul.f32 %v5591, %v5806
      %v5876 = vmul.f32 %v5594, %v5811
      %v5877 = vmul.f32 %v5599, %v5816
      %v5878 = vmul.f32 %v5602, %v5821
      %v5879 = vmul.f32 %v5607, %v5826
      %v5880 = vmul.f32 %v5610, %v5831
      %v5881 = vmul.f32 %v5615, %v5836
      %v5882 = vmul.f32 %v5618, %v5841
      %v5883 = vmul.f32 %v5623, %v5846
      %v5884 = vmul.f32 %v5626, %v5851
      %v5885 = vsel %vm247, %v5853, 0.0
      %v5886 = vsel %vm247, %v5854, 0.0
      %v5887 = vadd.f32 %v5885, %v5886
      %v5888 = vsel %vm247, %v5855, 0.0
      %v5889 = vadd.f32 %v5887, %v5888
      %v5890 = vsel %vm247, %v5856, 0.0
      %v5891 = vadd.f32 %v5889, %v5890
      %v5892 = vsel %vm247, %v5857, 0.0
      %v5893 = vadd.f32 %v5891, %v5892
      %v5894 = vsel %vm247, %v5858, 0.0
      %v5895 = vadd.f32 %v5893, %v5894
      %v5896 = vsel %vm247, %v5859, 0.0
      %v5897 = vadd.f32 %v5895, %v5896
      %v5898 = vsel %vm247, %v5860, 0.0
      %v5899 = vadd.f32 %v5897, %v5898
      %v5900 = vsel %vm247, %v5861, 0.0
      %v5901 = vadd.f32 %v5899, %v5900
      %v5902 = vsel %vm247, %v5862, 0.0
      %v5903 = vadd.f32 %v5901, %v5902
      %v5904 = vsel %vm247, %v5863, 0.0
      %v5905 = vadd.f32 %v5903, %v5904
      %v5906 = vsel %vm247, %v5864, 0.0
      %v5907 = vadd.f32 %v5905, %v5906
      %v5908 = vsel %vm247, %v5865, 0.0
      %v5909 = vadd.f32 %v5907, %v5908
      %v5910 = vsel %vm247, %v5866, 0.0
      %v5911 = vadd.f32 %v5909, %v5910
      %v5912 = vsel %vm247, %v5867, 0.0
      %v5913 = vadd.f32 %v5911, %v5912
      %v5914 = vsel %vm247, %v5868, 0.0
      %v5915 = vadd.f32 %v5913, %v5914
      %v5916 = vsel %vm247, %v5869, 0.0
      %v5917 = vadd.f32 %v5915, %v5916
      %v5918 = vsel %vm247, %v5870, 0.0
      %v5919 = vadd.f32 %v5917, %v5918
      %v5920 = vsel %vm247, %v5871, 0.0
      %v5921 = vadd.f32 %v5919, %v5920
      %v5922 = vsel %vm247, %v5872, 0.0
      %v5923 = vadd.f32 %v5921, %v5922
      %v5924 = vsel %vm247, %v5873, 0.0
      %v5925 = vadd.f32 %v5923, %v5924
      %v5926 = vsel %vm247, %v5874, 0.0
      %v5927 = vadd.f32 %v5925, %v5926
      %v5928 = vsel %vm247, %v5875, 0.0
      %v5929 = vadd.f32 %v5927, %v5928
      %v5930 = vsel %vm247, %v5876, 0.0
      %v5931 = vadd.f32 %v5929, %v5930
      %v5932 = vsel %vm247, %v5877, 0.0
      %v5933 = vadd.f32 %v5931, %v5932
      %v5934 = vsel %vm247, %v5878, 0.0
      %v5935 = vadd.f32 %v5933, %v5934
      %v5936 = vsel %vm247, %v5879, 0.0
      %v5937 = vadd.f32 %v5935, %v5936
      %v5938 = vsel %vm247, %v5880, 0.0
      %v5939 = vadd.f32 %v5937, %v5938
      %v5940 = vsel %vm247, %v5881, 0.0
      %v5941 = vadd.f32 %v5939, %v5940
      %v5942 = vsel %vm247, %v5882, 0.0
      %v5943 = vadd.f32 %v5941, %v5942
      %v5944 = vsel %vm247, %v5883, 0.0
      %v5945 = vadd.f32 %v5943, %v5944
      %v5946 = vsel %vm247, %v5884, 0.0
      %v5947 = vadd.f32 %v5945, %v5946
      %v5948 = vrot.slane %v5947, 4
      %v5949 = vadd.f32 %v5947, %v5948
      %v5950 = vrot.slane %v5949, 2
      %v5951 = vadd.f32 %v5949, %v5950
      %v5952 = vrot.slane %v5951, 1
      %v5953 = vadd.f32 %v5951, %v5952
      %v5954 = vmul.f32 %v5503, %v5503
      %v5955 = vmul.f32 %v5506, %v5506
      %v5956 = vmul.f32 %v5511, %v5511
      %v5957 = vmul.f32 %v5514, %v5514
      %v5958 = vmul.f32 %v5519, %v5519
      %v5959 = vmul.f32 %v5522, %v5522
      %v5960 = vmul.f32 %v5527, %v5527
      %v5961 = vmul.f32 %v5530, %v5530
      %v5962 = vmul.f32 %v5535, %v5535
      %v5963 = vmul.f32 %v5538, %v5538
      %v5964 = vmul.f32 %v5543, %v5543
      %v5965 = vmul.f32 %v5546, %v5546
      %v5966 = vmul.f32 %v5551, %v5551
      %v5967 = vmul.f32 %v5554, %v5554
      %v5968 = vmul.f32 %v5559, %v5559
      %v5969 = vmul.f32 %v5562, %v5562
      %v5970 = vmul.f32 %v5567, %v5567
      %v5971 = vmul.f32 %v5570, %v5570
      %v5972 = vmul.f32 %v5575, %v5575
      %v5973 = vmul.f32 %v5578, %v5578
      %v5974 = vmul.f32 %v5583, %v5583
      %v5975 = vmul.f32 %v5586, %v5586
      %v5976 = vmul.f32 %v5591, %v5591
      %v5977 = vmul.f32 %v5594, %v5594
      %v5978 = vmul.f32 %v5599, %v5599
      %v5979 = vmul.f32 %v5602, %v5602
      %v5980 = vmul.f32 %v5607, %v5607
      %v5981 = vmul.f32 %v5610, %v5610
      %v5982 = vmul.f32 %v5615, %v5615
      %v5983 = vmul.f32 %v5618, %v5618
      %v5984 = vmul.f32 %v5623, %v5623
      %v5985 = vmul.f32 %v5626, %v5626
      %v5986 = vmul.f32 %v5954, %v5696
      %v5987 = vmul.f32 %v5955, %v5701
      %v5988 = vmul.f32 %v5956, %v5706
      %v5989 = vmul.f32 %v5957, %v5711
      %v5990 = vmul.f32 %v5958, %v5716
      %v5991 = vmul.f32 %v5959, %v5721
      %v5992 = vmul.f32 %v5960, %v5726
      %v5993 = vmul.f32 %v5961, %v5731
      %v5994 = vmul.f32 %v5962, %v5736
      %v5995 = vmul.f32 %v5963, %v5741
      %v5996 = vmul.f32 %v5964, %v5746
      %v5997 = vmul.f32 %v5965, %v5751
      %v5998 = vmul.f32 %v5966, %v5756
      %v5999 = vmul.f32 %v5967, %v5761
      %v6000 = vmul.f32 %v5968, %v5766
      %v6001 = vmul.f32 %v5969, %v5771
      %v6002 = vmul.f32 %v5970, %v5776
      %v6003 = vmul.f32 %v5971, %v5781
      %v6004 = vmul.f32 %v5972, %v5786
      %v6005 = vmul.f32 %v5973, %v5791
      %v6006 = vmul.f32 %v5974, %v5796
      %v6007 = vmul.f32 %v5975, %v5801
      %v6008 = vmul.f32 %v5976, %v5806
      %v6009 = vmul.f32 %v5977, %v5811
      %v6010 = vmul.f32 %v5978, %v5816
      %v6011 = vmul.f32 %v5979, %v5821
      %v6012 = vmul.f32 %v5980, %v5826
      %v6013 = vmul.f32 %v5981, %v5831
      %v6014 = vmul.f32 %v5982, %v5836
      %v6015 = vmul.f32 %v5983, %v5841
      %v6016 = vmul.f32 %v5984, %v5846
      %v6017 = vmul.f32 %v5985, %v5851
      %v6018 = vsel %vm247, %v5986, 0.0
      %v6019 = vsel %vm247, %v5987, 0.0
      %v6020 = vadd.f32 %v6018, %v6019
      %v6021 = vsel %vm247, %v5988, 0.0
      %v6022 = vadd.f32 %v6020, %v6021
      %v6023 = vsel %vm247, %v5989, 0.0
      %v6024 = vadd.f32 %v6022, %v6023
      %v6025 = vsel %vm247, %v5990, 0.0
      %v6026 = vadd.f32 %v6024, %v6025
      %v6027 = vsel %vm247, %v5991, 0.0
      %v6028 = vadd.f32 %v6026, %v6027
      %v6029 = vsel %vm247, %v5992, 0.0
      %v6030 = vadd.f32 %v6028, %v6029
      %v6031 = vsel %vm247, %v5993, 0.0
      %v6032 = vadd.f32 %v6030, %v6031
      %v6033 = vsel %vm247, %v5994, 0.0
      %v6034 = vadd.f32 %v6032, %v6033
      %v6035 = vsel %vm247, %v5995, 0.0
      %v6036 = vadd.f32 %v6034, %v6035
      %v6037 = vsel %vm247, %v5996, 0.0
      %v6038 = vadd.f32 %v6036, %v6037
      %v6039 = vsel %vm247, %v5997, 0.0
      %v6040 = vadd.f32 %v6038, %v6039
      %v6041 = vsel %vm247, %v5998, 0.0
      %v6042 = vadd.f32 %v6040, %v6041
      %v6043 = vsel %vm247, %v5999, 0.0
      %v6044 = vadd.f32 %v6042, %v6043
      %v6045 = vsel %vm247, %v6000, 0.0
      %v6046 = vadd.f32 %v6044, %v6045
      %v6047 = vsel %vm247, %v6001, 0.0
      %v6048 = vadd.f32 %v6046, %v6047
      %v6049 = vsel %vm247, %v6002, 0.0
      %v6050 = vadd.f32 %v6048, %v6049
      %v6051 = vsel %vm247, %v6003, 0.0
      %v6052 = vadd.f32 %v6050, %v6051
      %v6053 = vsel %vm247, %v6004, 0.0
      %v6054 = vadd.f32 %v6052, %v6053
      %v6055 = vsel %vm247, %v6005, 0.0
      %v6056 = vadd.f32 %v6054, %v6055
      %v6057 = vsel %vm247, %v6006, 0.0
      %v6058 = vadd.f32 %v6056, %v6057
      %v6059 = vsel %vm247, %v6007, 0.0
      %v6060 = vadd.f32 %v6058, %v6059
      %v6061 = vsel %vm247, %v6008, 0.0
      %v6062 = vadd.f32 %v6060, %v6061
      %v6063 = vsel %vm247, %v6009, 0.0
      %v6064 = vadd.f32 %v6062, %v6063
      %v6065 = vsel %vm247, %v6010, 0.0
      %v6066 = vadd.f32 %v6064, %v6065
      %v6067 = vsel %vm247, %v6011, 0.0
      %v6068 = vadd.f32 %v6066, %v6067
      %v6069 = vsel %vm247, %v6012, 0.0
      %v6070 = vadd.f32 %v6068, %v6069
      %v6071 = vsel %vm247, %v6013, 0.0
      %v6072 = vadd.f32 %v6070, %v6071
      %v6073 = vsel %vm247, %v6014, 0.0
      %v6074 = vadd.f32 %v6072, %v6073
      %v6075 = vsel %vm247, %v6015, 0.0
      %v6076 = vadd.f32 %v6074, %v6075
      %v6077 = vsel %vm247, %v6016, 0.0
      %v6078 = vadd.f32 %v6076, %v6077
      %v6079 = vsel %vm247, %v6017, 0.0
      %v6080 = vadd.f32 %v6078, %v6079
      %v6081 = vrot.slane %v6080, 4
      %v6082 = vadd.f32 %v6080, %v6081
      %v6083 = vrot.slane %v6082, 2
      %v6084 = vadd.f32 %v6082, %v6083
      %v6085 = vrot.slane %v6084, 1
      %v6086 = vadd.f32 %v6084, %v6085
      %vm6087 = vcmask 1040384
      %v6088 = vsel %vm6087, %v5953, %v6086
      %vm6089 = vcmask 1041408
      %v6090 = vsel %vm6089, %v6088, 0.0
      %6091 = vst.msk [vmem:[%s211] sm:$0xff] %vm247, %v6090
      %s6092 = smul.u32 32, %s16
      %p6093 = scmp.lt.s32.totalorder %s6092, 255
      %s6094 = scalar_select %p6093, %s6092, 255
      %s6095 = smul.addr %s6094, 8
      %s6096 = scalar_lea.vmem %s3, %s6095
      %p6097 = scmp.lt.s32.totalorder %s16, 7
      %s6098 = scalar_select %p6097, %s16, 7
      %s6099 = smul.addr %s6098, 8
      %s6100 = scalar_lea.vmem %s4, %s6099
      // Predicated region
      $region33: #{up_forward.6} parent=31 // pred_check
        %p6101 = pneg %p102
      $region34: #{up_forward.6} parent=31 // pred_check_branch
        %6103 = sbr.rel (%p6101) target = $region36
      $region35: #{up_forward.6} parent=31 // pred_region
        %s6104 = smul.u32 32, %s16
      $region36: #{up_forward.6} parent=31 // pred_fallthru
        _
      // Predicated region
      $region37: #{up_forward.6} parent=31 // pred_check
        %p6105 = pneg %p128
      $region38: #{up_forward.6} parent=31 // pred_check_branch
        %6107 = sbr.rel (%p6105) target = $region40
      $region39: #{up_forward.6} parent=31 // pred_region
        _
      $region40: #{up_forward.6} parent=31 // pred_fallthru
        _
    $region32: #{up_forward.6} parent=5 // pred_fallthru
      _
    %p6108 = scmp.le.s32.totalorder 2, %s11
    // Predicated region
    $region41: #{up_forward.6} parent=5 // pred_check
      %p6109 = pneg %p6108
    $region42: #{up_forward.6} parent=5 // pred_check_branch
      %6111 = sbr.rel (%p6109) target = $region44
    $region43: #{up_forward.6} parent=5 // pred_region
      %s6112 = ssub.s32 %s11, 2
      // Predicated region
      $region45: #{up_forward.6} parent=43 // pred_check
        %p6113 = pneg %p108
      $region46: #{up_forward.6} parent=43 // pred_check_branch
        %6115 = sbr.rel (%p6113) target = $region48
      $region47: #{up_forward.6} parent=43 // pred_region
        %s6116 = smul.u32 32, %s17
        %p6117 = scmp.lt.s32.totalorder %s6116, 255
        %s6118 = scalar_select %p6117, %s6116, 255
        %s6119 = smul.addr %s6118, 8
        %s6120 = scalar_lea.vmem %s3, %s6119
      $region48: #{up_forward.6} parent=43 // pred_fallthru
        _
      // Predicated region
      $region49: #{up_forward.6} parent=43 // pred_check
        %p6121 = pneg %p134
      $region50: #{up_forward.6} parent=43 // pred_check_branch
        %6123 = sbr.rel (%p6121) target = $region52
      $region51: #{up_forward.6} parent=43 // pred_region
        %p6124 = scmp.lt.s32.totalorder %s17, 7
        %s6125 = scalar_select %p6124, %s17, 7
        %s6126 = smul.addr %s6125, 8
        %s6127 = scalar_lea.vmem %s4, %s6126
      $region52: #{up_forward.6} parent=43 // pred_fallthru
        _
    $region44: #{up_forward.6} parent=5 // pred_fallthru
      _
  $region6: #{up_forward.6} parent=0 // loop_footer
    %s15 = sadd.s32 1, %s11
  $region7: #{up_forward.6} parent=0 // loop_footer_branch
    %10 = sbr.rel target = $region3
  $region8: #{up_forward.6} parent=0 // loop_exit
    _

</llo_original>
